<compile_context>
chip_gen: v6e
topology: v6e:2x2x1
jax: 0.10.0
libtpu: 0.0.40
codegen_flags: <defaults>
</compile_context>

<pallas_src>
import functools

import jax
import jax.numpy as jnp
from jax.experimental import pallas as pl
from jax.experimental.pallas import tpu as pltpu

# ----------------------------- config (synthetic, small) --------------------
TOWER_LAYERS = 2          # CARHead tower depth (real SiamCAR uses 4)
STRIDE = 4                # synthetic total stride of the tiny backbone
CLS_WEIGHT, LOC_WEIGHT, CEN_WEIGHT = 1.0, 3.0, 1.0
C0, C_BB, C_ADJ = 8, 16, 16
GN_GROUPS = 4
H_OUT = 5                 # feature map size after xcorr (32/4 - 16/4 + 1)


# ----------------------------- Pallas kernels -------------------------------
def _mm_chain_kernel(*refs, acts):
    """h = a; for each layer: h = act(h @ w + b).  bf16 MXU operands, f32 acc."""
    a_ref, o_ref = refs[0], refs[-1]
    wb = refs[1:-1]
    h = a_ref[...].astype(jnp.bfloat16)
    for li, act in enumerate(acts):
        w = wb[2 * li][...]                          # bf16
        b = wb[2 * li + 1][...]                      # (1, N) f32
        h = jnp.dot(h, w, preferred_element_type=jnp.float32) + b
        if act == "relu":
            h = jnp.maximum(h, 0.0)
        if li + 1 < len(acts):
            h = h.astype(jnp.bfloat16)
    o_ref[...] = h.astype(o_ref.dtype)


def matmul_chain(a, layers, acts, m_split=2):
    """One pallas_call running a chain of (matmul + bias [+ relu]) stages,
    M-split into a `parallel` grid so both v7x TensorCores get work."""
    M, K = a.shape
    N = layers[-1][0].shape[1]
    tm = M
    if m_split > 1 and M % m_split == 0 and (M // m_split) % 8 == 0:
        tm = M // m_split
    in_specs = [pl.BlockSpec((tm, K), lambda i: (i, 0))]
    operands = [a]
    for w, b in layers:
        in_specs.append(pl.BlockSpec(w.shape, lambda i: (0, 0)))
        in_specs.append(pl.BlockSpec((1, w.shape[1]), lambda i: (0, 0)))
        operands += [w.astype(jnp.bfloat16), b.reshape(1, -1)]
    return pl.pallas_call(
        functools.partial(_mm_chain_kernel, acts=tuple(acts)),
        out_shape=jax.ShapeDtypeStruct((M, N), jnp.float32),
        grid=(M // tm,),
        in_specs=in_specs,
        out_specs=pl.BlockSpec((tm, N), lambda i: (i, 0)),
        compiler_params=pltpu.CompilerParams(
            dimension_semantics=("parallel",)),
    )(*operands)


def _xcorr_down_kernel(x_ref, z_ref, w_ref, b_ref, o_ref):
    """Depthwise xcorr of all 3 levels (stacked on C) + fused `down` 1x1 conv,
    one batch element per grid point.
    TODO(synk): at real scale keep acc in a VMEM scratch swept by lax.fori_loop
    and tile the channel axis; the unrolled vreg chain is fine only at toy size."""
    x = x_ref[...]                                   # (1, Hx, Wx, C) f32
    z = z_ref[...]                                   # (1, Hz, Wz, C) f32
    _, Hx, Wx, C = x.shape
    Hz, Wz = z.shape[1], z.shape[2]
    Ho, Wo = Hx - Hz + 1, Wx - Wz + 1
    acc = jnp.zeros((1, Ho, Wo, C), jnp.float32)
    for dy in range(Hz):
        for dx in range(Wz):
            acc = acc + (x[:, dy:dy + Ho, dx:dx + Wo, :]
                         * z[:, dy:dy + 1, dx:dx + 1, :])
    Cout = o_ref.shape[-1]
    out = jnp.dot(acc.reshape(Ho * Wo, C).astype(jnp.bfloat16), w_ref[...],
                  preferred_element_type=jnp.float32) + b_ref[...]
    o_ref[...] = out.reshape(1, Ho, Wo, Cout)


def xcorr_depthwise_down(x, z, w_down, b_down):
    B, Hx, Wx, C = x.shape
    _, Hz, Wz, _ = z.shape
    Ho, Wo = Hx - Hz + 1, Wx - Wz + 1
    Cout = w_down.shape[1]
    return pl.pallas_call(
        _xcorr_down_kernel,
        out_shape=jax.ShapeDtypeStruct((B, Ho, Wo, Cout), jnp.float32),
        grid=(B,),
        in_specs=[pl.BlockSpec((1, Hx, Wx, C), lambda b: (b, 0, 0, 0)),
                  pl.BlockSpec((1, Hz, Wz, C), lambda b: (b, 0, 0, 0)),
                  pl.BlockSpec((C, Cout), lambda b: (0, 0)),
                  pl.BlockSpec((1, Cout), lambda b: (0, 0))],
        out_specs=pl.BlockSpec((1, Ho, Wo, Cout), lambda b: (b, 0, 0, 0)),
        compiler_params=pltpu.CompilerParams(
            dimension_semantics=("parallel",)),
    )(x, z, w_down.astype(jnp.bfloat16), b_down.reshape(1, Cout))


def _car_head_fused_kernel(x_ref, wt_ref, gnp_ref, gm_ref, wo_ref, bo_ref,
                           out_ref, *, n_layers, eps):
    """Entire CARHead for one batch element: all tower layers (cls+box packed on
    channels via block-diag weights; conv3x3 + bias + GroupNorm + ReLU) plus the
    combined output conv [cls(2)|cen(1)|exp(bbox)(4)|pad].  Activations stay in
    vregs/VMEM; zero-padding is done in-kernel with concats (no HBM bounce)."""
    _, H, W, C2 = x_ref.shape
    M = H * W
    inv_hw = 1.0 / float(M)
    gmask = gm_ref[...]                              # (C2, C2) group-mean matrix

    zrow = jnp.zeros((1, 1, W + 2, C2), jnp.float32)
    zcol = jnp.zeros((1, H, 1, C2), jnp.float32)

    def conv_input(h):
        """(M, C2) f32 activation -> (M, 9*C2) bf16 im2col matrix (3x3, pad 1)."""
        h4 = h.reshape(1, H, W, C2)
        h4 = jnp.concatenate([zcol, h4, zcol], axis=2)
        h4 = jnp.concatenate([zrow, h4, zrow], axis=1)      # (1, H+2, W+2, C2)
        cols = [h4[:, dy:dy + H, dx:dx + W, :].reshape(M, C2)
                for dy in range(3) for dx in range(3)]
        # single K = 9*C2 dot (vs 9 tiny K=C2 dots).  At real C=256 keep the
        # per-tap 9-dot form instead.
        return jnp.concatenate(cols, axis=-1).astype(jnp.bfloat16)

    h = x_ref[...].reshape(M, C2)
    for li in range(n_layers):
        pat = conv_input(h)                                       # (M, 9*C2) bf16
        y = jnp.dot(pat, wt_ref[li], preferred_element_type=jnp.float32)
        gnp = gnp_ref[li]                                         # (3, C2) f32
        y = y + gnp[0:1, :]
        # GroupNorm (centered two-pass, f32); group stats via hoisted mask matmul.
        mu = jnp.dot(y.sum(axis=0, keepdims=True), gmask,
                     preferred_element_type=jnp.float32) * inv_hw
        d = y - mu
        var = jnp.dot((d * d).sum(axis=0, keepdims=True), gmask,
                      preferred_element_type=jnp.float32) * inv_hw
        h = d * (jax.lax.rsqrt(var + eps) * gnp[1:2, :]) + gnp[2:3, :]
        h = jnp.maximum(h, 0.0)

    # Combined head outputs: channels [cls0, cls1, cen, bb0..bb3, pad].
    o = jnp.dot(conv_input(h), wo_ref[...],
                preferred_element_type=jnp.float32) + bo_ref[...]
    ch = jax.lax.broadcasted_iota(jnp.int32, o.shape, 1)
    o = jnp.where((ch >= 3) & (ch < 7), jnp.exp(o), o)            # exp(bbox_pred)
    out_ref[...] = o.reshape(1, H, W, out_ref.shape[-1])


# ----------------------------- glue helpers ---------------------------------
def _im2col_3x3_s2(x):
    """3x3 / stride-2 / pad-1 patch matrix for the backbone convs.
    TODO(synk): stride-2 strided patch extraction stays in JAX glue; in-kernel
    im2col is used for every stride-1 conv (the hot CARHead path)."""
    B, H, W, Cin = x.shape
    xp = jnp.pad(x, ((0, 0), (1, 1), (1, 1), (0, 0)))
    Ho = (H + 2 - 3) // 2 + 1
    Wo = (W + 2 - 3) // 2 + 1
    patches = [xp[:, dy:dy + 2 * Ho:2, dx:dx + 2 * Wo:2, :]
               for dy in range(3) for dx in range(3)]
    pat = jnp.concatenate(patches, axis=-1).reshape(B * Ho * Wo, 9 * Cin)
    return pat, (B, Ho, Wo)


def _block_diag3(ws):
    C = ws[0].shape[0]
    z = jnp.zeros((C, C), jnp.float32)
    return jnp.concatenate([
        jnp.concatenate([ws[0], z, z], axis=1),
        jnp.concatenate([z, ws[1], z], axis=1),
        jnp.concatenate([z, z, ws[2]], axis=1)], axis=0)


def _group_mean_mask(c, groups):
    cg = c // groups
    gid = jnp.arange(c) // cg
    return jnp.where(gid[:, None] == gid[None, :], 1.0 / cg, 0.0).astype(jnp.float32)


# ----------------------------- model pieces ---------------------------------
def init_params(key):
    params = {}
    keys = iter(jax.random.split(key, 64))

    def w(shape, scale=0.1):
        return scale * jax.random.normal(next(keys), shape, dtype=jnp.float32)

    # tiny backbone (stand-in for ResNet-50, total stride 4, 3 output levels)
    params['bb_conv1_w'] = w((3, 3, 3, C0));       params['bb_conv1_b'] = w((C0,))
    params['bb_conv2_w'] = w((3, 3, C0, C_BB));    params['bb_conv2_b'] = w((C_BB,))
    for i in range(3):
        params[f'bb_head{i}_w'] = w((C_BB, C_BB)); params[f'bb_head{i}_b'] = w((C_BB,))
        params[f'neck{i}_w'] = w((C_BB, C_ADJ));   params[f'neck{i}_b'] = w((C_ADJ,))
    # down = ConvTranspose2d(3*C_ADJ, C_ADJ, 1, 1) == 1x1 matmul with (3C, C) weight
    params['down_w'] = w((3 * C_ADJ, C_ADJ));      params['down_b'] = w((C_ADJ,))
    # CARHead
    for i in range(TOWER_LAYERS):
        for t in ('cls', 'box'):
            params[f'{t}_tower{i}_w'] = w((3, 3, C_ADJ, C_ADJ))
            params[f'{t}_tower{i}_b'] = w((C_ADJ,))
            params[f'{t}_tower{i}_gamma'] = jnp.ones((C_ADJ,), jnp.float32)
            params[f'{t}_tower{i}_beta'] = jnp.zeros((C_ADJ,), jnp.float32)
    params['cls_logits_w'] = w((3, 3, C_ADJ, 2));  params['cls_logits_b'] = w((2,))
    params['centerness_w'] = w((3, 3, C_ADJ, 1));  params['centerness_b'] = w((1,))
    params['bbox_pred_w'] = w((3, 3, C_ADJ, 4));   params['bbox_pred_b'] = w((4,))
    return params


def backbone_neck_pair(params, z_nchw, x_nchw):
    """Shared-weight backbone + neck on z and x, batched along M (2 pallas_calls).
    TODO(synk): cfg.BACKBONE (ResNet-50) replaced by a tiny deterministic conv
    backbone with the same interface; cfg.ADJUST neck `method`/center-crop is
    external to the module source — a plain per-level 1x1 adjust is fused in."""
    z = jnp.transpose(z_nchw, (0, 2, 3, 1)).astype(jnp.float32)   # NCHW -> NHWC
    x = jnp.transpose(x_nchw, (0, 2, 3, 1)).astype(jnp.float32)
    # stage 1: conv1 (3x3 s2) + ReLU on z and x together
    pz1, (B, Hz1, Wz1) = _im2col_3x3_s2(z)
    px1, (_, Hx1, Wx1) = _im2col_3x3_s2(x)
    Mz1 = pz1.shape[0]
    y = matmul_chain(jnp.concatenate([pz1, px1], axis=0),
                     [(params['bb_conv1_w'].reshape(27, C0), params['bb_conv1_b'])],
                     ['relu'])
    yz = y[:Mz1].reshape(B, Hz1, Wz1, C0)
    yx = y[Mz1:].reshape(B, Hx1, Wx1, C0)
    # stage 2: conv2 (3x3 s2)+ReLU + 3 bb heads (1x1, relu, packed to N=48)
    #          + 3 necks (1x1, block-diag 48x48) : one 3-stage GEMM chain
    pz2, (_, Hz2, Wz2) = _im2col_3x3_s2(yz)
    px2, (_, Hx2, Wx2) = _im2col_3x3_s2(yx)
    Mz2 = pz2.shape[0]
    w_heads = jnp.concatenate([params[f'bb_head{i}_w'] for i in range(3)], axis=1)
    b_heads = jnp.concatenate([params[f'bb_head{i}_b'] for i in range(3)])
    w_neck = _block_diag3([params[f'neck{i}_w'] for i in range(3)])
    b_neck = jnp.concatenate([params[f'neck{i}_b'] for i in range(3)])
    feat = matmul_chain(
        jnp.concatenate([pz2, px2], axis=0),
        [(params['bb_conv2_w'].reshape(9 * C0, C_BB), params['bb_conv2_b']),
         (w_heads, b_heads),
         (w_neck, b_neck)],
        ['relu', 'relu', 'none'])
    zf = feat[:Mz2].reshape(B, Hz2, Wz2, 3 * C_ADJ)   # 3 levels stacked on channels
    xf = feat[Mz2:].reshape(B, Hx2, Wx2, 3 * C_ADJ)
    return zf, xf


def car_head(params, x):
    """Fully fused CARHead (one pallas_call): cls & box towers packed on channels."""
    C = C_ADJ
    C2 = 2 * C
    L = TOWER_LAYERS
    wt, gnp = [], []
    for i in range(L):
        wc, wb = params[f'cls_tower{i}_w'], params[f'box_tower{i}_w']
        z = jnp.zeros((3, 3, C, C), jnp.float32)
        w = jnp.concatenate([jnp.concatenate([wc, z], axis=3),
                             jnp.concatenate([z, wb], axis=3)], axis=2)  # (3,3,2C,2C)
        wt.append(w.reshape(9 * C2, C2))
        gnp.append(jnp.stack([
            jnp.concatenate([params[f'cls_tower{i}_b'], params[f'box_tower{i}_b']]),
            jnp.concatenate([params[f'cls_tower{i}_gamma'], params[f'box_tower{i}_gamma']]),
            jnp.concatenate([params[f'cls_tower{i}_beta'], params[f'box_tower{i}_beta']]),
        ]))
    wt = jnp.stack(wt).astype(jnp.bfloat16)                 # (L, 9*2C, 2C)
    gnp = jnp.stack(gnp)                                    # (L, 3, 2C) f32
    # combined output conv: [cls_logits(2) | centerness(1) | bbox_pred(4) | pad]
    wo = jnp.zeros((3, 3, C2, 8), jnp.float32)
    wo = wo.at[:, :, :C, 0:2].set(params['cls_logits_w'])
    wo = wo.at[:, :, :C, 2:3].set(params['centerness_w'])
    wo = wo.at[:, :, C:, 3:7].set(params['bbox_pred_w'])
    wo = wo.reshape(9 * C2, 8).astype(jnp.bfloat16)
    bo = jnp.concatenate([params['cls_logits_b'], params['centerness_b'],
                          params['bbox_pred_b'],
                          jnp.zeros((1,), jnp.float32)]).reshape(1, 8)
    gmask = _group_mean_mask(C2, 2 * GN_GROUPS)             # hoisted GN group mask

    x2 = jnp.concatenate([x, x], axis=-1)                   # cls & box share input
    B, H, W, _ = x2.shape
    out = pl.pallas_call(
        functools.partial(_car_head_fused_kernel, n_layers=L, eps=1e-5),
        out_shape=jax.ShapeDtypeStruct((B, H, W, 8), jnp.float32),
        grid=(B,),
        in_specs=[pl.BlockSpec((1, H, W, C2), lambda b: (b, 0, 0, 0)),
                  pl.BlockSpec(wt.shape, lambda b: (0, 0, 0)),
                  pl.BlockSpec(gnp.shape, lambda b: (0, 0, 0)),
                  pl.BlockSpec(gmask.shape, lambda b: (0, 0)),
                  pl.BlockSpec(wo.shape, lambda b: (0, 0)),
                  pl.BlockSpec(bo.shape, lambda b: (0, 0))],
        out_specs=pl.BlockSpec((1, H, W, 8), lambda b: (b, 0, 0, 0)),
        compiler_params=pltpu.CompilerParams(
            dimension_semantics=("parallel",)),
    )(x2, wt, gnp, gmask, wo, bo)
    cls, cen, loc = out[..., 0:2], out[..., 2:3], out[..., 3:7]
    to_nchw = lambda t: jnp.transpose(t, (0, 3, 1, 2))      # match torch NCHW heads
    return to_nchw(cls), to_nchw(loc), to_nchw(cen)


def compute_locations(h, w, stride):
    sx = jnp.arange(0, w * stride, stride, dtype=jnp.float32)
    sy = jnp.arange(0, h * stride, stride, dtype=jnp.float32)
    yy, xx = jnp.meshgrid(sy, sx, indexing='ij')
    return jnp.stack([xx.reshape(-1), yy.reshape(-1)], axis=1) + stride // 2


def log_softmax_head(cls):
    # torch: view(b,2,a2//2,h,w).permute(0,2,3,4,1) -> log_softmax(dim=4).
    # stays in plain JAX so XLA fuses it into the loss (a (50,2) Pallas block
    # would waste >98% of the lanes).
    b, a2, h, w = cls.shape
    c = jnp.transpose(cls.reshape(b, 2, a2 // 2, h, w), (0, 2, 3, 4, 1))
    return jax.nn.log_softmax(c, axis=4)


def siamcar_losses(locations, cen, cls_log, loc, gt_cls, gt_boxes):
    # TODO(synk): make_siamcar_loss_evaluator's exact label assignment is external;
    # standard SiamCAR losses (select-CE, centerness-weighted IoU, centerness BCE).
    b = cen.shape[0]
    h, w = cen.shape[2], cen.shape[3]
    hw = h * w
    logp = cls_log.reshape(b, hw, 2)
    labels = gt_cls.reshape(b, hw).astype(jnp.float32)
    pos = (labels == 1.0).astype(jnp.float32)
    neg = (labels == 0.0).astype(jnp.float32)
    cls_pos_loss = jnp.sum(-logp[..., 1] * pos) / jnp.maximum(jnp.sum(pos), 1.0)
    cls_neg_loss = jnp.sum(-logp[..., 0] * neg) / jnp.maximum(jnp.sum(neg), 1.0)
    cls_loss = 0.5 * (cls_pos_loss + cls_neg_loss)

    xs, ys = locations[:, 0], locations[:, 1]
    l_t = xs[None, :] - gt_boxes[:, 0:1]
    t_t = ys[None, :] - gt_boxes[:, 1:2]
    r_t = gt_boxes[:, 2:3] - xs[None, :]
    b_t = gt_boxes[:, 3:4] - ys[None, :]

    pred = loc.reshape(b, 4, hw)
    p_l, p_t, p_r, p_b = pred[:, 0], pred[:, 1], pred[:, 2], pred[:, 3]

    target_area = (l_t + r_t) * (t_t + b_t)
    pred_area = (p_l + p_r) * (p_t + p_b)
    w_i = jnp.minimum(p_l, l_t) + jnp.minimum(p_r, r_t)
    h_i = jnp.minimum(p_t, t_t) + jnp.minimum(p_b, b_t)
    inter = w_i * h_i
    union = target_area + pred_area - inter
    iou_loss = -jnp.log(jnp.clip((inter + 1.0) / (union + 1.0), 1e-6, None))

    cen_tgt = jnp.sqrt(jnp.clip(
        (jnp.minimum(l_t, r_t) / jnp.maximum(jnp.maximum(l_t, r_t), 1e-6)) *
        (jnp.minimum(t_t, b_t) / jnp.maximum(jnp.maximum(t_t, b_t), 1e-6)),
        0.0, None))
    cen_w = cen_tgt * pos
    loc_loss = jnp.sum(iou_loss * cen_w) / jnp.maximum(jnp.sum(cen_w), 1e-6)

    cen_pred = cen.reshape(b, hw)
    bce = (jnp.maximum(cen_pred, 0.0) - cen_pred * cen_tgt
           + jnp.log1p(jnp.exp(-jnp.abs(cen_pred))))
    cen_loss = jnp.sum(bce * pos) / jnp.maximum(jnp.sum(pos), 1.0)
    return cen_loss, cls_loss, loc_loss, cls_pos_loss, cls_neg_loss


def model_builder_forward(params, z_img, x_img, gt_cls, gt_boxes, method="default"):
    del method   # TODO(synk): neck `method` behaviour external to module source
    zf, xf = backbone_neck_pair(params, z_img, x_img)   # (B,4,4,48), (B,8,8,48)
    # fused: depthwise xcorr of all 3 levels + channel concat + `down` 1x1 conv
    features = xcorr_depthwise_down(xf, zf, params['down_w'], params['down_b'])
    cls, loc, cen = car_head(params, features)
    locations = compute_locations(cls.shape[2], cls.shape[3], STRIDE)
    cls_log = log_softmax_head(cls)
    cen_loss, cls_loss, loc_loss, cls_pos_loss, cls_neg_loss = siamcar_losses(
        locations, cen, cls_log, loc, gt_cls, gt_boxes)
    return {
        'cen': cen_loss,
        'cls': cls_loss,
        'loc': loc_loss,
        'total': CLS_WEIGHT * cls_loss + LOC_WEIGHT * loc_loss + CEN_WEIGHT * cen_loss,
        'cls_pos': cls_pos_loss,
        'cls_neg': cls_neg_loss,
    }


# ----------------------------- main ------------------------------------------
if __name__ == "__main__":
    key = jax.random.PRNGKey(0)
    kp, kz, kx = jax.random.split(key, 3)
    params = init_params(kp)

    B = 2
    z_img = jax.random.normal(kz, (B, 3, 16, 16), dtype=jnp.float32)
    x_img = jax.random.normal(kx, (B, 3, 32, 32), dtype=jnp.float32)
    gt_boxes = jnp.array([[4.0, 4.0, 28.0, 28.0],
                          [6.0, 6.0, 26.0, 26.0]], dtype=jnp.float32)

    # deterministic gt_cls: 1 where the location falls strictly inside the box
    locs = compute_locations(H_OUT, H_OUT, STRIDE)
    xs, ys = locs[:, 0], locs[:, 1]
    l = xs[None] - gt_boxes[:, 0:1]
    t = ys[None] - gt_boxes[:, 1:2]
    r = gt_boxes[:, 2:3] - xs[None]
    bb = gt_boxes[:, 3:4] - ys[None]
    inside = jnp.minimum(jnp.minimum(l, r), jnp.minimum(t, bb)) > 0
    gt_cls = inside.astype(jnp.int32).reshape(B, H_OUT, H_OUT)

    fwd = jax.jit(functools.partial(model_builder_forward, method="default"))
    losses = fwd(params, z_img, x_img, gt_cls, gt_boxes)
    jax.block_until_ready(losses)
    for k, v in losses.items():
        assert bool(jnp.isfinite(v)), f"non-finite loss {k}"
    print("KERNEL_OK")
</pallas_src>

<mosaic_0001>
module attributes {stable_mosaic.version = 11 : i64} {
  func.func @_mm_chain_kernel(%arg0: i32, %arg1: memref<320x27xf32, #tpu.memory_space<vmem>>, %arg2: memref<27x8xbf16, #tpu.memory_space<vmem>>, %arg3: memref<1x8xf32, #tpu.memory_space<vmem>>, %arg4: memref<320x8xf32, #tpu.memory_space<vmem>>) attributes {dimension_semantics = [#tpu.dimension_semantics<parallel>], iteration_bounds = array<i64: 2>, scalar_prefetch = 0 : i64, scratch_operands = 0 : i64, tpu.core_type = #tpu.core_type<tc>, window_params = [{transform_indices = @transform_0, window_bounds = array<i64: 320, 27>}, {pipeline_mode = #tpu.pipeline_mode<synchronous>, transform_indices = @transform_1, window_bounds = array<i64: 27, 8>}, {pipeline_mode = #tpu.pipeline_mode<synchronous>, transform_indices = @transform_2, window_bounds = array<i64: 1, 8>}, {transform_indices = @transform_3, window_bounds = array<i64: 320, 8>}]} {
    %c0 = arith.constant 0 : index
    %c0_0 = arith.constant 0 : index
    %0 = vector.load %arg1[%c0, %c0_0] : memref<320x27xf32, #tpu.memory_space<vmem>>, vector<320x27xf32>
    %1 = arith.truncf %0 : vector<320x27xf32> to vector<320x27xbf16>
    %c0_1 = arith.constant 0 : index
    %c0_2 = arith.constant 0 : index
    %2 = vector.load %arg2[%c0_1, %c0_2] : memref<27x8xbf16, #tpu.memory_space<vmem>>, vector<27x8xbf16>
    %c0_3 = arith.constant 0 : index
    %c0_4 = arith.constant 0 : index
    %3 = vector.load %arg3[%c0_3, %c0_4] : memref<1x8xf32, #tpu.memory_space<vmem>>, vector<1x8xf32>
    %cst = arith.constant dense<0.000000e+00> : vector<320x8xf32>
    %4 = tpu.matmul %1, %2, %cst {dimension_numbers = #tpu.dot_dimension_numbers<[1], [0], [0], [1], [0, 0, 1, 1], [], []>} : vector<320x27xbf16>, vector<27x8xbf16>, vector<320x8xf32> -> vector<320x8xf32>
    %5 = vector.broadcast %3 : vector<1x8xf32> to vector<320x8xf32>
    %6 = arith.addf %4, %5 : vector<320x8xf32>
    %cst_5 = arith.constant 0.000000e+00 : f32
    %7 = vector.broadcast %cst_5 : f32 to vector<320x8xf32>
    %8 = arith.maximumf %6, %7 : vector<320x8xf32>
    %c0_6 = arith.constant 0 : index
    %c0_7 = arith.constant 0 : index
    %9 = vector.load %arg4[%c0_6, %c0_7] : memref<320x8xf32, #tpu.memory_space<vmem>>, vector<320x8xf32>
    tpu.vector_store %arg4[%c0_6, %c0_7], %8 {strides = array<i32>} : memref<320x8xf32, #tpu.memory_space<vmem>>, vector<320x8xf32>,
    return
  }
  func.func @transform_0(%arg0: i32) -> (i32, i32) {
    %c0_i32 = arith.constant 0 : i32
    %c0_i32_0 = arith.constant 0 : i32
    return %arg0, %c0_i32 : i32, i32
  }
  func.func @transform_1(%arg0: i32) -> (i32, i32) {
    %c0_i32 = arith.constant 0 : i32
    %c0_i32_0 = arith.constant 0 : i32
    %c0_i32_1 = arith.constant 0 : i32
    return %c0_i32, %c0_i32_0 : i32, i32
  }
  func.func @transform_2(%arg0: i32) -> (i32, i32) {
    %c0_i32 = arith.constant 0 : i32
    %c0_i32_0 = arith.constant 0 : i32
    %c0_i32_1 = arith.constant 0 : i32
    return %c0_i32, %c0_i32_0 : i32, i32
  }
  func.func @transform_3(%arg0: i32) -> (i32, i32) {
    %c0_i32 = arith.constant 0 : i32
    %c0_i32_0 = arith.constant 0 : i32
    return %arg0, %c0_i32 : i32, i32
  }
}

module attributes {stable_mosaic.version = 11 : i64} {
  func.func @_xcorr_down_kernel(%arg0: i32, %arg1: memref<1x8x8x48xf32, #tpu.memory_space<vmem>>, %arg2: memref<1x4x4x48xf32, #tpu.memory_space<vmem>>, %arg3: memref<48x16xbf16, #tpu.memory_space<vmem>>, %arg4: memref<1x16xf32, #tpu.memory_space<vmem>>, %arg5: memref<1x5x5x16xf32, #tpu.memory_space<vmem>>) attributes {dimension_semantics = [#tpu.dimension_semantics<parallel>], iteration_bounds = array<i64: 2>, scalar_prefetch = 0 : i64, scratch_operands = 0 : i64, tpu.core_type = #tpu.core_type<tc>, window_params = [{transform_indices = @transform_0, window_bounds = array<i64: 1, 8, 8, 48>}, {transform_indices = @transform_1, window_bounds = array<i64: 1, 4, 4, 48>}, {pipeline_mode = #tpu.pipeline_mode<synchronous>, transform_indices = @transform_2, window_bounds = array<i64: 48, 16>}, {pipeline_mode = #tpu.pipeline_mode<synchronous>, transform_indices = @transform_3, window_bounds = array<i64: 1, 16>}, {transform_indices = @transform_4, window_bounds = array<i64: 1, 5, 5, 16>}]} {
    %c0 = arith.constant 0 : index
    %c0_0 = arith.constant 0 : index
    %c0_1 = arith.constant 0 : index
    %c0_2 = arith.constant 0 : index
    %0 = vector.load %arg1[%c0, %c0_0, %c0_1, %c0_2] : memref<1x8x8x48xf32, #tpu.memory_space<vmem>>, vector<1x8x8x48xf32>
    %c0_3 = arith.constant 0 : index
    %c0_4 = arith.constant 0 : index
    %c0_5 = arith.constant 0 : index
    %c0_6 = arith.constant 0 : index
    %1 = vector.load %arg2[%c0_3, %c0_4, %c0_5, %c0_6] : memref<1x4x4x48xf32, #tpu.memory_space<vmem>>, vector<1x4x4x48xf32>
    %cst = arith.constant 0.000000e+00 : f32
    %2 = vector.broadcast %cst : f32 to vector<1x5x5x48xf32>
    %3 = vector.extract_strided_slice %0 {offsets = [0, 0, 0, 0], sizes = [1, 5, 5, 48], strides = [1, 1, 1, 1]} : vector<1x8x8x48xf32> to vector<1x5x5x48xf32>
    %4 = vector.extract_strided_slice %1 {offsets = [0, 0, 0, 0], sizes = [1, 1, 1, 48], strides = [1, 1, 1, 1]} : vector<1x4x4x48xf32> to vector<1x1x1x48xf32>
    %5 = vector.broadcast %4 : vector<1x1x1x48xf32> to vector<1x5x5x48xf32>
    %6 = arith.mulf %3, %5 : vector<1x5x5x48xf32>
    %7 = arith.addf %2, %6 : vector<1x5x5x48xf32>
    %8 = vector.extract_strided_slice %0 {offsets = [0, 0, 1, 0], sizes = [1, 5, 5, 48], strides = [1, 1, 1, 1]} : vector<1x8x8x48xf32> to vector<1x5x5x48xf32>
    %9 = vector.extract_strided_slice %1 {offsets = [0, 0, 1, 0], sizes = [1, 1, 1, 48], strides = [1, 1, 1, 1]} : vector<1x4x4x48xf32> to vector<1x1x1x48xf32>
    %10 = vector.broadcast %9 : vector<1x1x1x48xf32> to vector<1x5x5x48xf32>
    %11 = arith.mulf %8, %10 : vector<1x5x5x48xf32>
    %12 = arith.addf %7, %11 : vector<1x5x5x48xf32>
    %13 = vector.extract_strided_slice %0 {offsets = [0, 0, 2, 0], sizes = [1, 5, 5, 48], strides = [1, 1, 1, 1]} : vector<1x8x8x48xf32> to vector<1x5x5x48xf32>
    %14 = vector.extract_strided_slice %1 {offsets = [0, 0, 2, 0], sizes = [1, 1, 1, 48], strides = [1, 1, 1, 1]} : vector<1x4x4x48xf32> to vector<1x1x1x48xf32>
    %15 = vector.broadcast %14 : vector<1x1x1x48xf32> to vector<1x5x5x48xf32>
    %16 = arith.mulf %13, %15 : vector<1x5x5x48xf32>
    %17 = arith.addf %12, %16 : vector<1x5x5x48xf32>
    %18 = vector.extract_strided_slice %0 {offsets = [0, 0, 3, 0], sizes = [1, 5, 5, 48], strides = [1, 1, 1, 1]} : vector<1x8x8x48xf32> to vector<1x5x5x48xf32>
    %19 = vector.extract_strided_slice %1 {offsets = [0, 0, 3, 0], sizes = [1, 1, 1, 48], strides = [1, 1, 1, 1]} : vector<1x4x4x48xf32> to vector<1x1x1x48xf32>
    %20 = vector.broadcast %19 : vector<1x1x1x48xf32> to vector<1x5x5x48xf32>
    %21 = arith.mulf %18, %20 : vector<1x5x5x48xf32>
    %22 = arith.addf %17, %21 : vector<1x5x5x48xf32>
    %23 = vector.extract_strided_slice %0 {offsets = [0, 1, 0, 0], sizes = [1, 5, 5, 48], strides = [1, 1, 1, 1]} : vector<1x8x8x48xf32> to vector<1x5x5x48xf32>
    %24 = vector.extract_strided_slice %1 {offsets = [0, 1, 0, 0], sizes = [1, 1, 1, 48], strides = [1, 1, 1, 1]} : vector<1x4x4x48xf32> to vector<1x1x1x48xf32>
    %25 = vector.broadcast %24 : vector<1x1x1x48xf32> to vector<1x5x5x48xf32>
    %26 = arith.mulf %23, %25 : vector<1x5x5x48xf32>
    %27 = arith.addf %22, %26 : vector<1x5x5x48xf32>
    %28 = vector.extract_strided_slice %0 {offsets = [0, 1, 1, 0], sizes = [1, 5, 5, 48], strides = [1, 1, 1, 1]} : vector<1x8x8x48xf32> to vector<1x5x5x48xf32>
    %29 = vector.extract_strided_slice %1 {offsets = [0, 1, 1, 0], sizes = [1, 1, 1, 48], strides = [1, 1, 1, 1]} : vector<1x4x4x48xf32> to vector<1x1x1x48xf32>
    %30 = vector.broadcast %29 : vector<1x1x1x48xf32> to vector<1x5x5x48xf32>
    %31 = arith.mulf %28, %30 : vector<1x5x5x48xf32>
    %32 = arith.addf %27, %31 : vector<1x5x5x48xf32>
    %33 = vector.extract_strided_slice %0 {offsets = [0, 1, 2, 0], sizes = [1, 5, 5, 48], strides = [1, 1, 1, 1]} : vector<1x8x8x48xf32> to vector<1x5x5x48xf32>
    %34 = vector.extract_strided_slice %1 {offsets = [0, 1, 2, 0], sizes = [1, 1, 1, 48], strides = [1, 1, 1, 1]} : vector<1x4x4x48xf32> to vector<1x1x1x48xf32>
    %35 = vector.broadcast %34 : vector<1x1x1x48xf32> to vector<1x5x5x48xf32>
    %36 = arith.mulf %33, %35 : vector<1x5x5x48xf32>
    %37 = arith.addf %32, %36 : vector<1x5x5x48xf32>
    %38 = vector.extract_strided_slice %0 {offsets = [0, 1, 3, 0], sizes = [1, 5, 5, 48], strides = [1, 1, 1, 1]} : vector<1x8x8x48xf32> to vector<1x5x5x48xf32>
    %39 = vector.extract_strided_slice %1 {offsets = [0, 1, 3, 0], sizes = [1, 1, 1, 48], strides = [1, 1, 1, 1]} : vector<1x4x4x48xf32> to vector<1x1x1x48xf32>
    %40 = vector.broadcast %39 : vector<1x1x1x48xf32> to vector<1x5x5x48xf32>
    %41 = arith.mulf %38, %40 : vector<1x5x5x48xf32>
    %42 = arith.addf %37, %41 : vector<1x5x5x48xf32>
    %43 = vector.extract_strided_slice %0 {offsets = [0, 2, 0, 0], sizes = [1, 5, 5, 48], strides = [1, 1, 1, 1]} : vector<1x8x8x48xf32> to vector<1x5x5x48xf32>
    %44 = vector.extract_strided_slice %1 {offsets = [0, 2, 0, 0], sizes = [1, 1, 1, 48], strides = [1, 1, 1, 1]} : vector<1x4x4x48xf32> to vector<1x1x1x48xf32>
    %45 = vector.broadcast %44 : vector<1x1x1x48xf32> to vector<1x5x5x48xf32>
    %46 = arith.mulf %43, %45 : vector<1x5x5x48xf32>
    %47 = arith.addf %42, %46 : vector<1x5x5x48xf32>
    %48 = vector.extract_strided_slice %0 {offsets = [0, 2, 1, 0], sizes = [1, 5, 5, 48], strides = [1, 1, 1, 1]} : vector<1x8x8x48xf32> to vector<1x5x5x48xf32>
    %49 = vector.extract_strided_slice %1 {offsets = [0, 2, 1, 0], sizes = [1, 1, 1, 48], strides = [1, 1, 1, 1]} : vector<1x4x4x48xf32> to vector<1x1x1x48xf32>
    %50 = vector.broadcast %49 : vector<1x1x1x48xf32> to vector<1x5x5x48xf32>
    %51 = arith.mulf %48, %50 : vector<1x5x5x48xf32>
    %52 = arith.addf %47, %51 : vector<1x5x5x48xf32>
    %53 = vector.extract_strided_slice %0 {offsets = [0, 2, 2, 0], sizes = [1, 5, 5, 48], strides = [1, 1, 1, 1]} : vector<1x8x8x48xf32> to vector<1x5x5x48xf32>
    %54 = vector.extract_strided_slice %1 {offsets = [0, 2, 2, 0], sizes = [1, 1, 1, 48], strides = [1, 1, 1, 1]} : vector<1x4x4x48xf32> to vector<1x1x1x48xf32>
    %55 = vector.broadcast %54 : vector<1x1x1x48xf32> to vector<1x5x5x48xf32>
    %56 = arith.mulf %53, %55 : vector<1x5x5x48xf32>
    %57 = arith.addf %52, %56 : vector<1x5x5x48xf32>
    %58 = vector.extract_strided_slice %0 {offsets = [0, 2, 3, 0], sizes = [1, 5, 5, 48], strides = [1, 1, 1, 1]} : vector<1x8x8x48xf32> to vector<1x5x5x48xf32>
    %59 = vector.extract_strided_slice %1 {offsets = [0, 2, 3, 0], sizes = [1, 1, 1, 48], strides = [1, 1, 1, 1]} : vector<1x4x4x48xf32> to vector<1x1x1x48xf32>
    %60 = vector.broadcast %59 : vector<1x1x1x48xf32> to vector<1x5x5x48xf32>
    %61 = arith.mulf %58, %60 : vector<1x5x5x48xf32>
    %62 = arith.addf %57, %61 : vector<1x5x5x48xf32>
    %63 = vector.extract_strided_slice %0 {offsets = [0, 3, 0, 0], sizes = [1, 5, 5, 48], strides = [1, 1, 1, 1]} : vector<1x8x8x48xf32> to vector<1x5x5x48xf32>
    %64 = vector.extract_strided_slice %1 {offsets = [0, 3, 0, 0], sizes = [1, 1, 1, 48], strides = [1, 1, 1, 1]} : vector<1x4x4x48xf32> to vector<1x1x1x48xf32>
    %65 = vector.broadcast %64 : vector<1x1x1x48xf32> to vector<1x5x5x48xf32>
    %66 = arith.mulf %63, %65 : vector<1x5x5x48xf32>
    %67 = arith.addf %62, %66 : vector<1x5x5x48xf32>
    %68 = vector.extract_strided_slice %0 {offsets = [0, 3, 1, 0], sizes = [1, 5, 5, 48], strides = [1, 1, 1, 1]} : vector<1x8x8x48xf32> to vector<1x5x5x48xf32>
    %69 = vector.extract_strided_slice %1 {offsets = [0, 3, 1, 0], sizes = [1, 1, 1, 48], strides = [1, 1, 1, 1]} : vector<1x4x4x48xf32> to vector<1x1x1x48xf32>
    %70 = vector.broadcast %69 : vector<1x1x1x48xf32> to vector<1x5x5x48xf32>
    %71 = arith.mulf %68, %70 : vector<1x5x5x48xf32>
    %72 = arith.addf %67, %71 : vector<1x5x5x48xf32>
    %73 = vector.extract_strided_slice %0 {offsets = [0, 3, 2, 0], sizes = [1, 5, 5, 48], strides = [1, 1, 1, 1]} : vector<1x8x8x48xf32> to vector<1x5x5x48xf32>
    %74 = vector.extract_strided_slice %1 {offsets = [0, 3, 2, 0], sizes = [1, 1, 1, 48], strides = [1, 1, 1, 1]} : vector<1x4x4x48xf32> to vector<1x1x1x48xf32>
    %75 = vector.broadcast %74 : vector<1x1x1x48xf32> to vector<1x5x5x48xf32>
    %76 = arith.mulf %73, %75 : vector<1x5x5x48xf32>
    %77 = arith.addf %72, %76 : vector<1x5x5x48xf32>
    %78 = vector.extract_strided_slice %0 {offsets = [0, 3, 3, 0], sizes = [1, 5, 5, 48], strides = [1, 1, 1, 1]} : vector<1x8x8x48xf32> to vector<1x5x5x48xf32>
    %79 = vector.extract_strided_slice %1 {offsets = [0, 3, 3, 0], sizes = [1, 1, 1, 48], strides = [1, 1, 1, 1]} : vector<1x4x4x48xf32> to vector<1x1x1x48xf32>
    %80 = vector.broadcast %79 : vector<1x1x1x48xf32> to vector<1x5x5x48xf32>
    %81 = arith.mulf %78, %80 : vector<1x5x5x48xf32>
    %82 = arith.addf %77, %81 : vector<1x5x5x48xf32>
    %83 = vector.shape_cast %82 : vector<1x5x5x48xf32> to vector<25x48xf32>
    %84 = arith.truncf %83 : vector<25x48xf32> to vector<25x48xbf16>
    %c0_7 = arith.constant 0 : index
    %c0_8 = arith.constant 0 : index
    %85 = vector.load %arg3[%c0_7, %c0_8] : memref<48x16xbf16, #tpu.memory_space<vmem>>, vector<48x16xbf16>
    %cst_9 = arith.constant dense<0.000000e+00> : vector<25x16xf32>
    %86 = tpu.matmul %84, %85, %cst_9 {dimension_numbers = #tpu.dot_dimension_numbers<[1], [0], [0], [1], [0, 0, 1, 1], [], []>} : vector<25x48xbf16>, vector<48x16xbf16>, vector<25x16xf32> -> vector<25x16xf32>
    %c0_10 = arith.constant 0 : index
    %c0_11 = arith.constant 0 : index
    %87 = vector.load %arg4[%c0_10, %c0_11] : memref<1x16xf32, #tpu.memory_space<vmem>>, vector<1x16xf32>
    %88 = vector.broadcast %87 : vector<1x16xf32> to vector<25x16xf32>
    %89 = arith.addf %86, %88 : vector<25x16xf32>
    %90 = vector.shape_cast %89 : vector<25x16xf32> to vector<1x5x5x16xf32>
    %c0_12 = arith.constant 0 : index
    %c0_13 = arith.constant 0 : index
    %c0_14 = arith.constant 0 : index
    %c0_15 = arith.constant 0 : index
    %91 = vector.load %arg5[%c0_12, %c0_13, %c0_14, %c0_15] : memref<1x5x5x16xf32, #tpu.memory_space<vmem>>, vector<1x5x5x16xf32>
    tpu.vector_store %arg5[%c0_12, %c0_13, %c0_14, %c0_15], %90 {strides = array<i32>} : memref<1x5x5x16xf32, #tpu.memory_space<vmem>>, vector<1x5x5x16xf32>,
    return
  }
  func.func @transform_0(%arg0: i32) -> (i32, i32, i32, i32) {
    %c0_i32 = arith.constant 0 : i32
    %c0_i32_0 = arith.constant 0 : i32
    %c0_i32_1 = arith.constant 0 : i32
    %c0_i32_2 = arith.constant 0 : i32
    return %arg0, %c0_i32, %c0_i32_0, %c0_i32_1 : i32, i32, i32, i32
  }
  func.func @transform_1(%arg0: i32) -> (i32, i32, i32, i32) {
    %c0_i32 = arith.constant 0 : i32
    %c0_i32_0 = arith.constant 0 : i32
    %c0_i32_1 = arith.constant 0 : i32
    %c0_i32_2 = arith.constant 0 : i32
    return %arg0, %c0_i32, %c0_i32_0, %c0_i32_1 : i32, i32, i32, i32
  }
  func.func @transform_2(%arg0: i32) -> (i32, i32) {
    %c0_i32 = arith.constant 0 : i32
    %c0_i32_0 = arith.constant 0 : i32
    %c0_i32_1 = arith.constant 0 : i32
    return %c0_i32, %c0_i32_0 : i32, i32
  }
  func.func @transform_3(%arg0: i32) -> (i32, i32) {
    %c0_i32 = arith.constant 0 : i32
    %c0_i32_0 = arith.constant 0 : i32
    %c0_i32_1 = arith.constant 0 : i32
    return %c0_i32, %c0_i32_0 : i32, i32
  }
  func.func @transform_4(%arg0: i32) -> (i32, i32, i32, i32) {
    %c0_i32 = arith.constant 0 : i32
    %c0_i32_0 = arith.constant 0 : i32
    %c0_i32_1 = arith.constant 0 : i32
    %c0_i32_2 = arith.constant 0 : i32
    return %arg0, %c0_i32, %c0_i32_0, %c0_i32_1 : i32, i32, i32, i32
  }
}

module attributes {stable_mosaic.version = 11 : i64} {
  func.func @_mm_chain_kernel(%arg0: i32, %arg1: memref<80x72xf32, #tpu.memory_space<vmem>>, %arg2: memref<72x16xbf16, #tpu.memory_space<vmem>>, %arg3: memref<1x16xf32, #tpu.memory_space<vmem>>, %arg4: memref<16x48xbf16, #tpu.memory_space<vmem>>, %arg5: memref<1x48xf32, #tpu.memory_space<vmem>>, %arg6: memref<48x48xbf16, #tpu.memory_space<vmem>>, %arg7: memref<1x48xf32, #tpu.memory_space<vmem>>, %arg8: memref<80x48xf32, #tpu.memory_space<vmem>>) attributes {dimension_semantics = [#tpu.dimension_semantics<parallel>], iteration_bounds = array<i64: 2>, scalar_prefetch = 0 : i64, scratch_operands = 0 : i64, tpu.core_type = #tpu.core_type<tc>, window_params = [{transform_indices = @transform_0, window_bounds = array<i64: 80, 72>}, {pipeline_mode = #tpu.pipeline_mode<synchronous>, transform_indices = @transform_1, window_bounds = array<i64: 72, 16>}, {pipeline_mode = #tpu.pipeline_mode<synchronous>, transform_indices = @transform_2, window_bounds = array<i64: 1, 16>}, {pipeline_mode = #tpu.pipeline_mode<synchronous>, transform_indices = @transform_3, window_bounds = array<i64: 16, 48>}, {pipeline_mode = #tpu.pipeline_mode<synchronous>, transform_indices = @transform_4, window_bounds = array<i64: 1, 48>}, {pipeline_mode = #tpu.pipeline_mode<synchronous>, transform_indices = @transform_5, window_bounds = array<i64: 48, 48>}, {pipeline_mode = #tpu.pipeline_mode<synchronous>, transform_indices = @transform_6, window_bounds = array<i64: 1, 48>}, {transform_indices = @transform_7, window_bounds = array<i64: 80, 48>}]} {
    %c0 = arith.constant 0 : index
    %c0_0 = arith.constant 0 : index
    %0 = vector.load %arg1[%c0, %c0_0] : memref<80x72xf32, #tpu.memory_space<vmem>>, vector<80x72xf32>
    %1 = arith.truncf %0 : vector<80x72xf32> to vector<80x72xbf16>
    %c0_1 = arith.constant 0 : index
    %c0_2 = arith.constant 0 : index
    %2 = vector.load %arg2[%c0_1, %c0_2] : memref<72x16xbf16, #tpu.memory_space<vmem>>, vector<72x16xbf16>
    %c0_3 = arith.constant 0 : index
    %c0_4 = arith.constant 0 : index
    %3 = vector.load %arg3[%c0_3, %c0_4] : memref<1x16xf32, #tpu.memory_space<vmem>>, vector<1x16xf32>
    %cst = arith.constant dense<0.000000e+00> : vector<80x16xf32>
    %4 = tpu.matmul %1, %2, %cst {dimension_numbers = #tpu.dot_dimension_numbers<[1], [0], [0], [1], [0, 0, 1, 1], [], []>} : vector<80x72xbf16>, vector<72x16xbf16>, vector<80x16xf32> -> vector<80x16xf32>
    %5 = vector.broadcast %3 : vector<1x16xf32> to vector<80x16xf32>
    %6 = arith.addf %4, %5 : vector<80x16xf32>
    %cst_5 = arith.constant 0.000000e+00 : f32
    %7 = vector.broadcast %cst_5 : f32 to vector<80x16xf32>
    %8 = arith.maximumf %6, %7 : vector<80x16xf32>
    %9 = arith.truncf %8 : vector<80x16xf32> to vector<80x16xbf16>
    %c0_6 = arith.constant 0 : index
    %c0_7 = arith.constant 0 : index
    %10 = vector.load %arg4[%c0_6, %c0_7] : memref<16x48xbf16, #tpu.memory_space<vmem>>, vector<16x48xbf16>
    %c0_8 = arith.constant 0 : index
    %c0_9 = arith.constant 0 : index
    %11 = vector.load %arg5[%c0_8, %c0_9] : memref<1x48xf32, #tpu.memory_space<vmem>>, vector<1x48xf32>
    %cst_10 = arith.constant dense<0.000000e+00> : vector<80x48xf32>
    %12 = tpu.matmul %9, %10, %cst_10 {dimension_numbers = #tpu.dot_dimension_numbers<[1], [0], [0], [1], [0, 0, 1, 1], [], []>} : vector<80x16xbf16>, vector<16x48xbf16>, vector<80x48xf32> -> vector<80x48xf32>
    %13 = vector.broadcast %11 : vector<1x48xf32> to vector<80x48xf32>
    %14 = arith.addf %12, %13 : vector<80x48xf32>
    %cst_11 = arith.constant 0.000000e+00 : f32
    %15 = vector.broadcast %cst_11 : f32 to vector<80x48xf32>
    %16 = arith.maximumf %14, %15 : vector<80x48xf32>
    %17 = arith.truncf %16 : vector<80x48xf32> to vector<80x48xbf16>
    %c0_12 = arith.constant 0 : index
    %c0_13 = arith.constant 0 : index
    %18 = vector.load %arg6[%c0_12, %c0_13] : memref<48x48xbf16, #tpu.memory_space<vmem>>, vector<48x48xbf16>
    %c0_14 = arith.constant 0 : index
    %c0_15 = arith.constant 0 : index
    %19 = vector.load %arg7[%c0_14, %c0_15] : memref<1x48xf32, #tpu.memory_space<vmem>>, vector<1x48xf32>
    %cst_16 = arith.constant dense<0.000000e+00> : vector<80x48xf32>
    %20 = tpu.matmul %17, %18, %cst_16 {dimension_numbers = #tpu.dot_dimension_numbers<[1], [0], [0], [1], [0, 0, 1, 1], [], []>} : vector<80x48xbf16>, vector<48x48xbf16>, vector<80x48xf32> -> vector<80x48xf32>
    %21 = vector.broadcast %19 : vector<1x48xf32> to vector<80x48xf32>
    %22 = arith.addf %20, %21 : vector<80x48xf32>
    %c0_17 = arith.constant 0 : index
    %c0_18 = arith.constant 0 : index
    %23 = vector.load %arg8[%c0_17, %c0_18] : memref<80x48xf32, #tpu.memory_space<vmem>>, vector<80x48xf32>
    tpu.vector_store %arg8[%c0_17, %c0_18], %22 {strides = array<i32>} : memref<80x48xf32, #tpu.memory_space<vmem>>, vector<80x48xf32>,
    return
  }
  func.func @transform_0(%arg0: i32) -> (i32, i32) {
    %c0_i32 = arith.constant 0 : i32
    %c0_i32_0 = arith.constant 0 : i32
    return %arg0, %c0_i32 : i32, i32
  }
  func.func @transform_1(%arg0: i32) -> (i32, i32) {
    %c0_i32 = arith.constant 0 : i32
    %c0_i32_0 = arith.constant 0 : i32
    %c0_i32_1 = arith.constant 0 : i32
    return %c0_i32, %c0_i32_0 : i32, i32
  }
  func.func @transform_2(%arg0: i32) -> (i32, i32) {
    %c0_i32 = arith.constant 0 : i32
    %c0_i32_0 = arith.constant 0 : i32
    %c0_i32_1 = arith.constant 0 : i32
    return %c0_i32, %c0_i32_0 : i32, i32
  }
  func.func @transform_3(%arg0: i32) -> (i32, i32) {
    %c0_i32 = arith.constant 0 : i32
    %c0_i32_0 = arith.constant 0 : i32
    %c0_i32_1 = arith.constant 0 : i32
    return %c0_i32, %c0_i32_0 : i32, i32
  }
  func.func @transform_4(%arg0: i32) -> (i32, i32) {
    %c0_i32 = arith.constant 0 : i32
    %c0_i32_0 = arith.constant 0 : i32
    %c0_i32_1 = arith.constant 0 : i32
    return %c0_i32, %c0_i32_0 : i32, i32
  }
  func.func @transform_5(%arg0: i32) -> (i32, i32) {
    %c0_i32 = arith.constant 0 : i32
    %c0_i32_0 = arith.constant 0 : i32
    %c0_i32_1 = arith.constant 0 : i32
    return %c0_i32, %c0_i32_0 : i32, i32
  }
  func.func @transform_6(%arg0: i32) -> (i32, i32) {
    %c0_i32 = arith.constant 0 : i32
    %c0_i32_0 = arith.constant 0 : i32
    %c0_i32_1 = arith.constant 0 : i32
    return %c0_i32, %c0_i32_0 : i32, i32
  }
  func.func @transform_7(%arg0: i32) -> (i32, i32) {
    %c0_i32 = arith.constant 0 : i32
    %c0_i32_0 = arith.constant 0 : i32
    return %arg0, %c0_i32 : i32, i32
  }
}

module attributes {stable_mosaic.version = 11 : i64} {
  func.func @_car_head_fused_kernel(%arg0: i32, %arg1: memref<1x5x5x32xf32, #tpu.memory_space<vmem>>, %arg2: memref<2x288x32xbf16, #tpu.memory_space<vmem>>, %arg3: memref<2x3x32xf32, #tpu.memory_space<vmem>>, %arg4: memref<32x32xf32, #tpu.memory_space<vmem>>, %arg5: memref<288x8xbf16, #tpu.memory_space<vmem>>, %arg6: memref<1x8xf32, #tpu.memory_space<vmem>>, %arg7: memref<1x5x5x8xf32, #tpu.memory_space<vmem>>) attributes {dimension_semantics = [#tpu.dimension_semantics<parallel>], iteration_bounds = array<i64: 2>, scalar_prefetch = 0 : i64, scratch_operands = 0 : i64, tpu.core_type = #tpu.core_type<tc>, window_params = [{transform_indices = @transform_0, window_bounds = array<i64: 1, 5, 5, 32>}, {pipeline_mode = #tpu.pipeline_mode<synchronous>, transform_indices = @transform_1, window_bounds = array<i64: 2, 288, 32>}, {pipeline_mode = #tpu.pipeline_mode<synchronous>, transform_indices = @transform_2, window_bounds = array<i64: 2, 3, 32>}, {pipeline_mode = #tpu.pipeline_mode<synchronous>, transform_indices = @transform_3, window_bounds = array<i64: 32, 32>}, {pipeline_mode = #tpu.pipeline_mode<synchronous>, transform_indices = @transform_4, window_bounds = array<i64: 288, 8>}, {pipeline_mode = #tpu.pipeline_mode<synchronous>, transform_indices = @transform_5, window_bounds = array<i64: 1, 8>}, {transform_indices = @transform_6, window_bounds = array<i64: 1, 5, 5, 8>}]} {
    %c0 = arith.constant 0 : index
    %c0_0 = arith.constant 0 : index
    %0 = vector.load %arg4[%c0, %c0_0] : memref<32x32xf32, #tpu.memory_space<vmem>>, vector<32x32xf32>
    %cst = arith.constant 0.000000e+00 : f32
    %1 = vector.broadcast %cst : f32 to vector<1x1x7x32xf32>
    %cst_1 = arith.constant 0.000000e+00 : f32
    %2 = vector.broadcast %cst_1 : f32 to vector<1x5x1x32xf32>
    %c0_2 = arith.constant 0 : index
    %c0_3 = arith.constant 0 : index
    %c0_4 = arith.constant 0 : index
    %c0_5 = arith.constant 0 : index
    %3 = vector.load %arg1[%c0_2, %c0_3, %c0_4, %c0_5] : memref<1x5x5x32xf32, #tpu.memory_space<vmem>>, vector<1x5x5x32xf32>
    %4 = vector.shape_cast %3 : vector<1x5x5x32xf32> to vector<25x32xf32>
    %5 = vector.shape_cast %4 : vector<25x32xf32> to vector<1x5x5x32xf32>
    %6 = tpu.concatenate %2, %5, %2 in 2 : vector<1x5x1x32xf32>, vector<1x5x5x32xf32>, vector<1x5x1x32xf32> -> vector<1x5x7x32xf32>
    %7 = tpu.concatenate %1, %6, %1 in 1 : vector<1x1x7x32xf32>, vector<1x5x7x32xf32>, vector<1x1x7x32xf32> -> vector<1x7x7x32xf32>
    %8 = vector.extract_strided_slice %7 {offsets = [0, 0, 0, 0], sizes = [1, 5, 5, 32], strides = [1, 1, 1, 1]} : vector<1x7x7x32xf32> to vector<1x5x5x32xf32>
    %9 = vector.shape_cast %8 : vector<1x5x5x32xf32> to vector<25x32xf32>
    %10 = vector.extract_strided_slice %7 {offsets = [0, 0, 1, 0], sizes = [1, 5, 5, 32], strides = [1, 1, 1, 1]} : vector<1x7x7x32xf32> to vector<1x5x5x32xf32>
    %11 = vector.shape_cast %10 : vector<1x5x5x32xf32> to vector<25x32xf32>
    %12 = vector.extract_strided_slice %7 {offsets = [0, 0, 2, 0], sizes = [1, 5, 5, 32], strides = [1, 1, 1, 1]} : vector<1x7x7x32xf32> to vector<1x5x5x32xf32>
    %13 = vector.shape_cast %12 : vector<1x5x5x32xf32> to vector<25x32xf32>
    %14 = vector.extract_strided_slice %7 {offsets = [0, 1, 0, 0], sizes = [1, 5, 5, 32], strides = [1, 1, 1, 1]} : vector<1x7x7x32xf32> to vector<1x5x5x32xf32>
    %15 = vector.shape_cast %14 : vector<1x5x5x32xf32> to vector<25x32xf32>
    %16 = vector.extract_strided_slice %7 {offsets = [0, 1, 1, 0], sizes = [1, 5, 5, 32], strides = [1, 1, 1, 1]} : vector<1x7x7x32xf32> to vector<1x5x5x32xf32>
    %17 = vector.shape_cast %16 : vector<1x5x5x32xf32> to vector<25x32xf32>
    %18 = vector.extract_strided_slice %7 {offsets = [0, 1, 2, 0], sizes = [1, 5, 5, 32], strides = [1, 1, 1, 1]} : vector<1x7x7x32xf32> to vector<1x5x5x32xf32>
    %19 = vector.shape_cast %18 : vector<1x5x5x32xf32> to vector<25x32xf32>
    %20 = vector.extract_strided_slice %7 {offsets = [0, 2, 0, 0], sizes = [1, 5, 5, 32], strides = [1, 1, 1, 1]} : vector<1x7x7x32xf32> to vector<1x5x5x32xf32>
    %21 = vector.shape_cast %20 : vector<1x5x5x32xf32> to vector<25x32xf32>
    %22 = vector.extract_strided_slice %7 {offsets = [0, 2, 1, 0], sizes = [1, 5, 5, 32], strides = [1, 1, 1, 1]} : vector<1x7x7x32xf32> to vector<1x5x5x32xf32>
    %23 = vector.shape_cast %22 : vector<1x5x5x32xf32> to vector<25x32xf32>
    %24 = vector.extract_strided_slice %7 {offsets = [0, 2, 2, 0], sizes = [1, 5, 5, 32], strides = [1, 1, 1, 1]} : vector<1x7x7x32xf32> to vector<1x5x5x32xf32>
    %25 = vector.shape_cast %24 : vector<1x5x5x32xf32> to vector<25x32xf32>
    %26 = tpu.concatenate %9, %11, %13, %15, %17, %19, %21, %23, %25 in 1 : vector<25x32xf32>, vector<25x32xf32>, vector<25x32xf32>, vector<25x32xf32>, vector<25x32xf32>, vector<25x32xf32>, vector<25x32xf32>, vector<25x32xf32>, vector<25x32xf32> -> vector<25x288xf32>
    %27 = arith.truncf %26 : vector<25x288xf32> to vector<25x288xbf16>
    %c0_6 = arith.constant 0 : index
    %c0_7 = arith.constant 0 : index
    %c0_8 = arith.constant 0 : index
    %28 = vector.load %arg2[%c0_6, %c0_7, %c0_8] : memref<2x288x32xbf16, #tpu.memory_space<vmem>>, vector<1x288x32xbf16>
    %29 = vector.shape_cast %28 : vector<1x288x32xbf16> to vector<288x32xbf16>
    %cst_9 = arith.constant dense<0.000000e+00> : vector<25x32xf32>
    %30 = tpu.matmul %27, %29, %cst_9 {dimension_numbers = #tpu.dot_dimension_numbers<[1], [0], [0], [1], [0, 0, 1, 1], [], []>} : vector<25x288xbf16>, vector<288x32xbf16>, vector<25x32xf32> -> vector<25x32xf32>
    %c0_10 = arith.constant 0 : index
    %c0_11 = arith.constant 0 : index
    %c0_12 = arith.constant 0 : index
    %31 = vector.load %arg3[%c0_10, %c0_11, %c0_12] : memref<2x3x32xf32, #tpu.memory_space<vmem>>, vector<1x3x32xf32>
    %32 = vector.shape_cast %31 : vector<1x3x32xf32> to vector<3x32xf32>
    %33 = vector.extract_strided_slice %32 {offsets = [0, 0], sizes = [1, 32], strides = [1, 1]} : vector<3x32xf32> to vector<1x32xf32>
    %34 = vector.broadcast %33 : vector<1x32xf32> to vector<25x32xf32>
    %35 = arith.addf %30, %34 : vector<25x32xf32>
    %cst_13 = arith.constant dense<0.000000e+00> : vector<32xf32>
    %36 = vector.multi_reduction <add>, %35, %cst_13 [0] : vector<25x32xf32> to vector<32xf32>
    %37 = vector.shape_cast %36 : vector<32xf32> to vector<1x32xf32>
    %cst_14 = arith.constant dense<0.000000e+00> : vector<1x32xf32>
    %38 = tpu.matmul %37, %0, %cst_14 {dimension_numbers = #tpu.dot_dimension_numbers<[1], [0], [0], [1], [0, 0, 1, 1], [], []>} : vector<1x32xf32>, vector<32x32xf32>, vector<1x32xf32> -> vector<1x32xf32>
    %cst_15 = arith.constant 4.000000e-02 : f32
    %39 = vector.broadcast %cst_15 : f32 to vector<1x32xf32>
    %40 = arith.mulf %38, %39 : vector<1x32xf32>
    %41 = vector.broadcast %40 : vector<1x32xf32> to vector<25x32xf32>
    %42 = arith.subf %35, %41 : vector<25x32xf32>
    %43 = arith.mulf %42, %42 : vector<25x32xf32>
    %cst_16 = arith.constant dense<0.000000e+00> : vector<32xf32>
    %44 = vector.multi_reduction <add>, %43, %cst_16 [0] : vector<25x32xf32> to vector<32xf32>
    %45 = vector.shape_cast %44 : vector<32xf32> to vector<1x32xf32>
    %cst_17 = arith.constant dense<0.000000e+00> : vector<1x32xf32>
    %46 = tpu.matmul %45, %0, %cst_17 {dimension_numbers = #tpu.dot_dimension_numbers<[1], [0], [0], [1], [0, 0, 1, 1], [], []>} : vector<1x32xf32>, vector<32x32xf32>, vector<1x32xf32> -> vector<1x32xf32>
    %cst_18 = arith.constant 4.000000e-02 : f32
    %47 = vector.broadcast %cst_18 : f32 to vector<1x32xf32>
    %48 = arith.mulf %46, %47 : vector<1x32xf32>
    %cst_19 = arith.constant 9.99999974E-6 : f32
    %49 = vector.broadcast %cst_19 : f32 to vector<1x32xf32>
    %50 = arith.addf %48, %49 : vector<1x32xf32>
    %51 = math.rsqrt %50 : vector<1x32xf32>
    %52 = vector.extract_strided_slice %32 {offsets = [1, 0], sizes = [1, 32], strides = [1, 1]} : vector<3x32xf32> to vector<1x32xf32>
    %53 = arith.mulf %51, %52 : vector<1x32xf32>
    %54 = vector.broadcast %53 : vector<1x32xf32> to vector<25x32xf32>
    %55 = arith.mulf %42, %54 : vector<25x32xf32>
    %56 = vector.extract_strided_slice %32 {offsets = [2, 0], sizes = [1, 32], strides = [1, 1]} : vector<3x32xf32> to vector<1x32xf32>
    %57 = vector.broadcast %56 : vector<1x32xf32> to vector<25x32xf32>
    %58 = arith.addf %55, %57 : vector<25x32xf32>
    %cst_20 = arith.constant 0.000000e+00 : f32
    %59 = vector.broadcast %cst_20 : f32 to vector<25x32xf32>
    %60 = arith.maximumf %58, %59 : vector<25x32xf32>
    %61 = vector.shape_cast %60 : vector<25x32xf32> to vector<1x5x5x32xf32>
    %62 = tpu.concatenate %2, %61, %2 in 2 : vector<1x5x1x32xf32>, vector<1x5x5x32xf32>, vector<1x5x1x32xf32> -> vector<1x5x7x32xf32>
    %63 = tpu.concatenate %1, %62, %1 in 1 : vector<1x1x7x32xf32>, vector<1x5x7x32xf32>, vector<1x1x7x32xf32> -> vector<1x7x7x32xf32>
    %64 = vector.extract_strided_slice %63 {offsets = [0, 0, 0, 0], sizes = [1, 5, 5, 32], strides = [1, 1, 1, 1]} : vector<1x7x7x32xf32> to vector<1x5x5x32xf32>
    %65 = vector.shape_cast %64 : vector<1x5x5x32xf32> to vector<25x32xf32>
    %66 = vector.extract_strided_slice %63 {offsets = [0, 0, 1, 0], sizes = [1, 5, 5, 32], strides = [1, 1, 1, 1]} : vector<1x7x7x32xf32> to vector<1x5x5x32xf32>
    %67 = vector.shape_cast %66 : vector<1x5x5x32xf32> to vector<25x32xf32>
    %68 = vector.extract_strided_slice %63 {offsets = [0, 0, 2, 0], sizes = [1, 5, 5, 32], strides = [1, 1, 1, 1]} : vector<1x7x7x32xf32> to vector<1x5x5x32xf32>
    %69 = vector.shape_cast %68 : vector<1x5x5x32xf32> to vector<25x32xf32>
    %70 = vector.extract_strided_slice %63 {offsets = [0, 1, 0, 0], sizes = [1, 5, 5, 32], strides = [1, 1, 1, 1]} : vector<1x7x7x32xf32> to vector<1x5x5x32xf32>
    %71 = vector.shape_cast %70 : vector<1x5x5x32xf32> to vector<25x32xf32>
    %72 = vector.extract_strided_slice %63 {offsets = [0, 1, 1, 0], sizes = [1, 5, 5, 32], strides = [1, 1, 1, 1]} : vector<1x7x7x32xf32> to vector<1x5x5x32xf32>
    %73 = vector.shape_cast %72 : vector<1x5x5x32xf32> to vector<25x32xf32>
    %74 = vector.extract_strided_slice %63 {offsets = [0, 1, 2, 0], sizes = [1, 5, 5, 32], strides = [1, 1, 1, 1]} : vector<1x7x7x32xf32> to vector<1x5x5x32xf32>
    %75 = vector.shape_cast %74 : vector<1x5x5x32xf32> to vector<25x32xf32>
    %76 = vector.extract_strided_slice %63 {offsets = [0, 2, 0, 0], sizes = [1, 5, 5, 32], strides = [1, 1, 1, 1]} : vector<1x7x7x32xf32> to vector<1x5x5x32xf32>
    %77 = vector.shape_cast %76 : vector<1x5x5x32xf32> to vector<25x32xf32>
    %78 = vector.extract_strided_slice %63 {offsets = [0, 2, 1, 0], sizes = [1, 5, 5, 32], strides = [1, 1, 1, 1]} : vector<1x7x7x32xf32> to vector<1x5x5x32xf32>
    %79 = vector.shape_cast %78 : vector<1x5x5x32xf32> to vector<25x32xf32>
    %80 = vector.extract_strided_slice %63 {offsets = [0, 2, 2, 0], sizes = [1, 5, 5, 32], strides = [1, 1, 1, 1]} : vector<1x7x7x32xf32> to vector<1x5x5x32xf32>
    %81 = vector.shape_cast %80 : vector<1x5x5x32xf32> to vector<25x32xf32>
    %82 = tpu.concatenate %65, %67, %69, %71, %73, %75, %77, %79, %81 in 1 : vector<25x32xf32>, vector<25x32xf32>, vector<25x32xf32>, vector<25x32xf32>, vector<25x32xf32>, vector<25x32xf32>, vector<25x32xf32>, vector<25x32xf32>, vector<25x32xf32> -> vector<25x288xf32>
    %83 = arith.truncf %82 : vector<25x288xf32> to vector<25x288xbf16>
    %c1 = arith.constant 1 : index
    %c0_21 = arith.constant 0 : index
    %c0_22 = arith.constant 0 : index
    %84 = vector.load %arg2[%c1, %c0_21, %c0_22] : memref<2x288x32xbf16, #tpu.memory_space<vmem>>, vector<1x288x32xbf16>
    %85 = vector.shape_cast %84 : vector<1x288x32xbf16> to vector<288x32xbf16>
    %cst_23 = arith.constant dense<0.000000e+00> : vector<25x32xf32>
    %86 = tpu.matmul %83, %85, %cst_23 {dimension_numbers = #tpu.dot_dimension_numbers<[1], [0], [0], [1], [0, 0, 1, 1], [], []>} : vector<25x288xbf16>, vector<288x32xbf16>, vector<25x32xf32> -> vector<25x32xf32>
    %c1_24 = arith.constant 1 : index
    %c0_25 = arith.constant 0 : index
    %c0_26 = arith.constant 0 : index
    %87 = vector.load %arg3[%c1_24, %c0_25, %c0_26] : memref<2x3x32xf32, #tpu.memory_space<vmem>>, vector<1x3x32xf32>
    %88 = vector.shape_cast %87 : vector<1x3x32xf32> to vector<3x32xf32>
    %89 = vector.extract_strided_slice %88 {offsets = [0, 0], sizes = [1, 32], strides = [1, 1]} : vector<3x32xf32> to vector<1x32xf32>
    %90 = vector.broadcast %89 : vector<1x32xf32> to vector<25x32xf32>
    %91 = arith.addf %86, %90 : vector<25x32xf32>
    %cst_27 = arith.constant dense<0.000000e+00> : vector<32xf32>
    %92 = vector.multi_reduction <add>, %91, %cst_27 [0] : vector<25x32xf32> to vector<32xf32>
    %93 = vector.shape_cast %92 : vector<32xf32> to vector<1x32xf32>
    %cst_28 = arith.constant dense<0.000000e+00> : vector<1x32xf32>
    %94 = tpu.matmul %93, %0, %cst_28 {dimension_numbers = #tpu.dot_dimension_numbers<[1], [0], [0], [1], [0, 0, 1, 1], [], []>} : vector<1x32xf32>, vector<32x32xf32>, vector<1x32xf32> -> vector<1x32xf32>
    %cst_29 = arith.constant 4.000000e-02 : f32
    %95 = vector.broadcast %cst_29 : f32 to vector<1x32xf32>
    %96 = arith.mulf %94, %95 : vector<1x32xf32>
    %97 = vector.broadcast %96 : vector<1x32xf32> to vector<25x32xf32>
    %98 = arith.subf %91, %97 : vector<25x32xf32>
    %99 = arith.mulf %98, %98 : vector<25x32xf32>
    %cst_30 = arith.constant dense<0.000000e+00> : vector<32xf32>
    %100 = vector.multi_reduction <add>, %99, %cst_30 [0] : vector<25x32xf32> to vector<32xf32>
    %101 = vector.shape_cast %100 : vector<32xf32> to vector<1x32xf32>
    %cst_31 = arith.constant dense<0.000000e+00> : vector<1x32xf32>
    %102 = tpu.matmul %101, %0, %cst_31 {dimension_numbers = #tpu.dot_dimension_numbers<[1], [0], [0], [1], [0, 0, 1, 1], [], []>} : vector<1x32xf32>, vector<32x32xf32>, vector<1x32xf32> -> vector<1x32xf32>
    %cst_32 = arith.constant 4.000000e-02 : f32
    %103 = vector.broadcast %cst_32 : f32 to vector<1x32xf32>
    %104 = arith.mulf %102, %103 : vector<1x32xf32>
    %cst_33 = arith.constant 9.99999974E-6 : f32
    %105 = vector.broadcast %cst_33 : f32 to vector<1x32xf32>
    %106 = arith.addf %104, %105 : vector<1x32xf32>
    %107 = math.rsqrt %106 : vector<1x32xf32>
    %108 = vector.extract_strided_slice %88 {offsets = [1, 0], sizes = [1, 32], strides = [1, 1]} : vector<3x32xf32> to vector<1x32xf32>
    %109 = arith.mulf %107, %108 : vector<1x32xf32>
    %110 = vector.broadcast %109 : vector<1x32xf32> to vector<25x32xf32>
    %111 = arith.mulf %98, %110 : vector<25x32xf32>
    %112 = vector.extract_strided_slice %88 {offsets = [2, 0], sizes = [1, 32], strides = [1, 1]} : vector<3x32xf32> to vector<1x32xf32>
    %113 = vector.broadcast %112 : vector<1x32xf32> to vector<25x32xf32>
    %114 = arith.addf %111, %113 : vector<25x32xf32>
    %cst_34 = arith.constant 0.000000e+00 : f32
    %115 = vector.broadcast %cst_34 : f32 to vector<25x32xf32>
    %116 = arith.maximumf %114, %115 : vector<25x32xf32>
    %117 = vector.shape_cast %116 : vector<25x32xf32> to vector<1x5x5x32xf32>
    %118 = tpu.concatenate %2, %117, %2 in 2 : vector<1x5x1x32xf32>, vector<1x5x5x32xf32>, vector<1x5x1x32xf32> -> vector<1x5x7x32xf32>
    %119 = tpu.concatenate %1, %118, %1 in 1 : vector<1x1x7x32xf32>, vector<1x5x7x32xf32>, vector<1x1x7x32xf32> -> vector<1x7x7x32xf32>
    %120 = vector.extract_strided_slice %119 {offsets = [0, 0, 0, 0], sizes = [1, 5, 5, 32], strides = [1, 1, 1, 1]} : vector<1x7x7x32xf32> to vector<1x5x5x32xf32>
    %121 = vector.shape_cast %120 : vector<1x5x5x32xf32> to vector<25x32xf32>
    %122 = vector.extract_strided_slice %119 {offsets = [0, 0, 1, 0], sizes = [1, 5, 5, 32], strides = [1, 1, 1, 1]} : vector<1x7x7x32xf32> to vector<1x5x5x32xf32>
    %123 = vector.shape_cast %122 : vector<1x5x5x32xf32> to vector<25x32xf32>
    %124 = vector.extract_strided_slice %119 {offsets = [0, 0, 2, 0], sizes = [1, 5, 5, 32], strides = [1, 1, 1, 1]} : vector<1x7x7x32xf32> to vector<1x5x5x32xf32>
    %125 = vector.shape_cast %124 : vector<1x5x5x32xf32> to vector<25x32xf32>
    %126 = vector.extract_strided_slice %119 {offsets = [0, 1, 0, 0], sizes = [1, 5, 5, 32], strides = [1, 1, 1, 1]} : vector<1x7x7x32xf32> to vector<1x5x5x32xf32>
    %127 = vector.shape_cast %126 : vector<1x5x5x32xf32> to vector<25x32xf32>
    %128 = vector.extract_strided_slice %119 {offsets = [0, 1, 1, 0], sizes = [1, 5, 5, 32], strides = [1, 1, 1, 1]} : vector<1x7x7x32xf32> to vector<1x5x5x32xf32>
    %129 = vector.shape_cast %128 : vector<1x5x5x32xf32> to vector<25x32xf32>
    %130 = vector.extract_strided_slice %119 {offsets = [0, 1, 2, 0], sizes = [1, 5, 5, 32], strides = [1, 1, 1, 1]} : vector<1x7x7x32xf32> to vector<1x5x5x32xf32>
    %131 = vector.shape_cast %130 : vector<1x5x5x32xf32> to vector<25x32xf32>
    %132 = vector.extract_strided_slice %119 {offsets = [0, 2, 0, 0], sizes = [1, 5, 5, 32], strides = [1, 1, 1, 1]} : vector<1x7x7x32xf32> to vector<1x5x5x32xf32>
    %133 = vector.shape_cast %132 : vector<1x5x5x32xf32> to vector<25x32xf32>
    %134 = vector.extract_strided_slice %119 {offsets = [0, 2, 1, 0], sizes = [1, 5, 5, 32], strides = [1, 1, 1, 1]} : vector<1x7x7x32xf32> to vector<1x5x5x32xf32>
    %135 = vector.shape_cast %134 : vector<1x5x5x32xf32> to vector<25x32xf32>
    %136 = vector.extract_strided_slice %119 {offsets = [0, 2, 2, 0], sizes = [1, 5, 5, 32], strides = [1, 1, 1, 1]} : vector<1x7x7x32xf32> to vector<1x5x5x32xf32>
    %137 = vector.shape_cast %136 : vector<1x5x5x32xf32> to vector<25x32xf32>
    %138 = tpu.concatenate %121, %123, %125, %127, %129, %131, %133, %135, %137 in 1 : vector<25x32xf32>, vector<25x32xf32>, vector<25x32xf32>, vector<25x32xf32>, vector<25x32xf32>, vector<25x32xf32>, vector<25x32xf32>, vector<25x32xf32>, vector<25x32xf32> -> vector<25x288xf32>
    %139 = arith.truncf %138 : vector<25x288xf32> to vector<25x288xbf16>
    %c0_35 = arith.constant 0 : index
    %c0_36 = arith.constant 0 : index
    %140 = vector.load %arg5[%c0_35, %c0_36] : memref<288x8xbf16, #tpu.memory_space<vmem>>, vector<288x8xbf16>
    %cst_37 = arith.constant dense<0.000000e+00> : vector<25x8xf32>
    %141 = tpu.matmul %139, %140, %cst_37 {dimension_numbers = #tpu.dot_dimension_numbers<[1], [0], [0], [1], [0, 0, 1, 1], [], []>} : vector<25x288xbf16>, vector<288x8xbf16>, vector<25x8xf32> -> vector<25x8xf32>
    %c0_38 = arith.constant 0 : index
    %c0_39 = arith.constant 0 : index
    %142 = vector.load %arg6[%c0_38, %c0_39] : memref<1x8xf32, #tpu.memory_space<vmem>>, vector<1x8xf32>
    %143 = vector.broadcast %142 : vector<1x8xf32> to vector<25x8xf32>
    %144 = arith.addf %141, %143 : vector<25x8xf32>
    %145 = tpu.iota {dimensions = array<i32: 1>} : vector<25x8xi32>
    %c3_i32 = arith.constant 3 : i32
    %146 = vector.broadcast %c3_i32 : i32 to vector<25x8xi32>
    %147 = arith.cmpi sge, %145, %146 : vector<25x8xi32>
    %c7_i32 = arith.constant 7 : i32
    %148 = vector.broadcast %c7_i32 : i32 to vector<25x8xi32>
    %149 = arith.cmpi slt, %145, %148 : vector<25x8xi32>
    %150 = arith.andi %147, %149 : vector<25x8xi1>
    %151 = math.exp %144 : vector<25x8xf32>
    %152 = arith.select %150, %151, %144 : vector<25x8xi1>, vector<25x8xf32>
    %153 = vector.shape_cast %152 : vector<25x8xf32> to vector<1x5x5x8xf32>
    %c0_40 = arith.constant 0 : index
    %c0_41 = arith.constant 0 : index
    %c0_42 = arith.constant 0 : index
    %c0_43 = arith.constant 0 : index
    %154 = vector.load %arg7[%c0_40, %c0_41, %c0_42, %c0_43] : memref<1x5x5x8xf32, #tpu.memory_space<vmem>>, vector<1x5x5x8xf32>
    tpu.vector_store %arg7[%c0_40, %c0_41, %c0_42, %c0_43], %153 {strides = array<i32>} : memref<1x5x5x8xf32, #tpu.memory_space<vmem>>, vector<1x5x5x8xf32>,
    return
  }
  func.func @transform_0(%arg0: i32) -> (i32, i32, i32, i32) {
    %c0_i32 = arith.constant 0 : i32
    %c0_i32_0 = arith.constant 0 : i32
    %c0_i32_1 = arith.constant 0 : i32
    %c0_i32_2 = arith.constant 0 : i32
    return %arg0, %c0_i32, %c0_i32_0, %c0_i32_1 : i32, i32, i32, i32
  }
  func.func @transform_1(%arg0: i32) -> (i32, i32, i32) {
    %c0_i32 = arith.constant 0 : i32
    %c0_i32_0 = arith.constant 0 : i32
    %c0_i32_1 = arith.constant 0 : i32
    %c0_i32_2 = arith.constant 0 : i32
    return %c0_i32, %c0_i32_0, %c0_i32_1 : i32, i32, i32
  }
  func.func @transform_2(%arg0: i32) -> (i32, i32, i32) {
    %c0_i32 = arith.constant 0 : i32
    %c0_i32_0 = arith.constant 0 : i32
    %c0_i32_1 = arith.constant 0 : i32
    %c0_i32_2 = arith.constant 0 : i32
    return %c0_i32, %c0_i32_0, %c0_i32_1 : i32, i32, i32
  }
  func.func @transform_3(%arg0: i32) -> (i32, i32) {
    %c0_i32 = arith.constant 0 : i32
    %c0_i32_0 = arith.constant 0 : i32
    %c0_i32_1 = arith.constant 0 : i32
    return %c0_i32, %c0_i32_0 : i32, i32
  }
  func.func @transform_4(%arg0: i32) -> (i32, i32) {
    %c0_i32 = arith.constant 0 : i32
    %c0_i32_0 = arith.constant 0 : i32
    %c0_i32_1 = arith.constant 0 : i32
    return %c0_i32, %c0_i32_0 : i32, i32
  }
  func.func @transform_5(%arg0: i32) -> (i32, i32) {
    %c0_i32 = arith.constant 0 : i32
    %c0_i32_0 = arith.constant 0 : i32
    %c0_i32_1 = arith.constant 0 : i32
    return %c0_i32, %c0_i32_0 : i32, i32
  }
  func.func @transform_6(%arg0: i32) -> (i32, i32, i32, i32) {
    %c0_i32 = arith.constant 0 : i32
    %c0_i32_0 = arith.constant 0 : i32
    %c0_i32_1 = arith.constant 0 : i32
    %c0_i32_2 = arith.constant 0 : i32
    return %arg0, %c0_i32, %c0_i32_0, %c0_i32_1 : i32, i32, i32, i32
  }
}

</mosaic_0001>

<llo_original>
// kernel: model_builder_forward.4
$region0: #{model_builder_forward.4}
  #allocation0 [shape = 'u32[]', space=smem, size = 0x4, offset = 0x4, fixed_abs, tag = 'smem constant byte address 0x4 - core index']
  #allocation1 [shape = 'u32[144,128]{1,0:T(1,128)}', space=vmem, size = 0x12000, scoped, tag = 'internal scratch']
  %s0 = inlined_call_operand.vmem [shape: f32[640,27], index: 0, kind: input, shape index: {}]
  %s1 = inlined_call_operand.vmem [shape: bf16[27,8], index: 1, kind: input, shape index: {}]
  %s2 = inlined_call_operand.vmem [shape: f32[1,8], index: 2, kind: input, shape index: {}]
  %s3 = inlined_call_operand.vmem [shape: f32[640,8], index: 3, kind: output, shape index: {}]
  %s4 = sld [smem:[#allocation0]]
  $region45: #{model_builder_forward.4} parent=0
    _
  %s6 = ssub.s32 1, %s4
  %s7 = scalar_select 0, %s6, %s4
  loop: start=0, step=1, limit=4
  $region2: #{model_builder_forward.4} parent=0 // loop_pre_header
    _
  $region3: #{model_builder_forward.4} parent=0 // loop_header
    %s9 = sphi 0, %s13
    %p10 = scmp.ge.s32.totalorder %s9, 4
    %s19 = sphi 0, %s21
    %s22 = sphi 0, %s19
    %s23 = sphi 0, %s22
    %s39 = sphi 0, %s23
    %s43 = sphi 0, %s43
    %s45 = sphi 0, %s43
    %s46 = sphi 0, %s45
    %s60 = sphi 0, %s46
    %s64 = sphi 0, %s64
    %s66 = sphi 0, %s64
    %s67 = sphi 0, %s66
    %s81 = sphi 0, %s67
    %s87 = sphi 0, %s89
    %s90 = sphi 0, %s87
    %s91 = sphi 0, %s90
    %s107 = sphi 0, %s91
  $region4: #{model_builder_forward.4} parent=0 // loop_header_branch
    %12 = sbr.rel (%p10) target = $region8
  $region5: #{model_builder_forward.4} parent=0 // loop_body
    %s14 = ssub.s32 %s9, 1
    %s15 = ssub.s32 %s9, 2
    %s16 = sadd.s32 %s9, 1
    %s17 = ssub.s32 %s9, %s16
    %p18 = scmp.eq.s32.totalorder %s17, 0
    %s20 = sadd.s32 %s19, 1
    %s21 = scalar_select %p18, %s19, %s20
    %p24 = pneg %p18
    %p25 = scmp.eq.s32.totalorder %s9, 1
    %p26 = por %p24, %p25
    %p27 = scmp.ne.s32.totalorder %s19, %s22
    %p28 = scmp.eq.s32.totalorder %s9, 0
    %p29 = por %p27, %p28
    %p30 = scmp.ne.s32.totalorder %s19, %s22
    %p31 = scmp.eq.s32.totalorder %s14, 1
    %p32 = por %p30, %p31
    %p33 = scmp.ne.s32.totalorder %s22, %s23
    %p34 = scmp.eq.s32.totalorder %s14, 0
    %p35 = por %p33, %p34
    %p36 = scmp.ne.s32.totalorder %s22, %s23
    %p37 = scmp.eq.s32.totalorder %s15, 1
    %p38 = por %p36, %p37
    %p40 = scmp.ne.s32.totalorder %s23, %s39
    %p41 = scmp.eq.s32.totalorder %s15, 0
    %p42 = por %p40, %p41
    %s44 = sadd.s32 %s43, 1
    %p47 = scmp.eq.s32.totalorder %s9, 1
    %p48 = scmp.ne.s32.totalorder %s43, %s45
    %p49 = scmp.eq.s32.totalorder %s9, 0
    %p50 = por %p48, %p49
    %p51 = scmp.ne.s32.totalorder %s43, %s45
    %p52 = scmp.eq.s32.totalorder %s14, 1
    %p53 = por %p51, %p52
    %p54 = scmp.ne.s32.totalorder %s45, %s46
    %p55 = scmp.eq.s32.totalorder %s14, 0
    %p56 = por %p54, %p55
    %p57 = scmp.ne.s32.totalorder %s45, %s46
    %p58 = scmp.eq.s32.totalorder %s15, 1
    %p59 = por %p57, %p58
    %p61 = scmp.ne.s32.totalorder %s46, %s60
    %p62 = scmp.eq.s32.totalorder %s15, 0
    %p63 = por %p61, %p62
    %s65 = sadd.s32 %s64, 1
    %p68 = scmp.eq.s32.totalorder %s9, 1
    %p69 = scmp.ne.s32.totalorder %s64, %s66
    %p70 = scmp.eq.s32.totalorder %s9, 0
    %p71 = por %p69, %p70
    %p72 = scmp.ne.s32.totalorder %s64, %s66
    %p73 = scmp.eq.s32.totalorder %s14, 1
    %p74 = por %p72, %p73
    %p75 = scmp.ne.s32.totalorder %s66, %s67
    %p76 = scmp.eq.s32.totalorder %s14, 0
    %p77 = por %p75, %p76
    %p78 = scmp.ne.s32.totalorder %s66, %s67
    %p79 = scmp.eq.s32.totalorder %s15, 1
    %p80 = por %p78, %p79
    %p82 = scmp.ne.s32.totalorder %s67, %s81
    %p83 = scmp.eq.s32.totalorder %s15, 0
    %p84 = por %p82, %p83
    %s85 = ssub.s32 %s9, %s16
    %p86 = scmp.eq.s32.totalorder %s85, 0
    %s88 = sadd.s32 %s87, 1
    %s89 = scalar_select %p86, %s87, %s88
    %p92 = pneg %p86
    %p93 = scmp.eq.s32.totalorder %s9, 1
    %p94 = por %p92, %p93
    %p95 = scmp.ne.s32.totalorder %s87, %s90
    %p96 = scmp.eq.s32.totalorder %s9, 0
    %p97 = por %p95, %p96
    %p98 = scmp.ne.s32.totalorder %s87, %s90
    %p99 = scmp.eq.s32.totalorder %s14, 1
    %p100 = por %p98, %p99
    %p101 = scmp.ne.s32.totalorder %s90, %s91
    %p102 = scmp.eq.s32.totalorder %s14, 0
    %p103 = por %p101, %p102
    %p104 = scmp.ne.s32.totalorder %s90, %s91
    %p105 = scmp.eq.s32.totalorder %s15, 1
    %p106 = por %p104, %p105
    %p108 = scmp.ne.s32.totalorder %s91, %s107
    %p109 = scmp.eq.s32.totalorder %s15, 0
    %p110 = por %p108, %p109
    %p111 = scmp.le.s32.totalorder 1, %s9
    %p112 = scmp.lt.s32.totalorder %s9, 3
    %p113 = pnand %p111, %p112
    %p114 = pneg %p113
    // Predicated region
    $region9: #{model_builder_forward.4} parent=5 // pred_check
      _
    $region10: #{model_builder_forward.4} parent=5 // pred_check_branch
      %116 = sbr.rel (%p113) target = $region12
    $region11: #{model_builder_forward.4} parent=5 // pred_region
      %s117 = ssub.s32 %s9, 1
      // Predicated region
      $region13: #{model_builder_forward.4} parent=11 // pred_check
        %p118 = pneg %p56
      $region14: #{model_builder_forward.4} parent=11 // pred_check_branch
        %120 = sbr.rel (%p118) target = $region16
      $region15: #{model_builder_forward.4} parent=11 // pred_region
        _
      $region16: #{model_builder_forward.4} parent=11 // pred_fallthru
        _
      // Predicated region
      $region17: #{model_builder_forward.4} parent=11 // pred_check
        %p121 = pneg %p77
      $region18: #{model_builder_forward.4} parent=11 // pred_check_branch
        %123 = sbr.rel (%p121) target = $region20
      $region19: #{model_builder_forward.4} parent=11 // pred_region
        _
      $region20: #{model_builder_forward.4} parent=11 // pred_fallthru
        _
    $region12: #{model_builder_forward.4} parent=5 // pred_fallthru
      _
    %p124 = scmp.lt.s32.totalorder %s9, 2
    // Predicated region
    $region21: #{model_builder_forward.4} parent=5 // pred_check
      %p125 = pneg %p124
    $region22: #{model_builder_forward.4} parent=5 // pred_check_branch
      %127 = sbr.rel (%p125) target = $region24
    $region23: #{model_builder_forward.4} parent=5 // pred_region
      // Predicated region
      $region25: #{model_builder_forward.4} parent=23 // pred_check
        %p128 = pneg %p29
      $region26: #{model_builder_forward.4} parent=23 // pred_check_branch
        %130 = sbr.rel (%p128) target = $region28
      $region27: #{model_builder_forward.4} parent=23 // pred_region
        %s131 = smul.u32 40, %s9
        %p132 = scmp.lt.s32.totalorder %s131, 79
        %s133 = scalar_select %p132, %s131, 79
        %s134 = smul.addr %s133, 8
        %s135 = scalar_lea.vmem %s0, %s134
        %s136 = smul.u32 40, %s9
      $region28: #{model_builder_forward.4} parent=23 // pred_fallthru
        _
    $region24: #{model_builder_forward.4} parent=5 // pred_fallthru
      _
    %p137 = scmp.le.s32.totalorder 1, %s9
    %p138 = scmp.lt.s32.totalorder %s9, 3
    %p139 = pnand %p137, %p138
    %p140 = pneg %p139
    // Predicated region
    $region29: #{model_builder_forward.4} parent=5 // pred_check
      _
    $region30: #{model_builder_forward.4} parent=5 // pred_check_branch
      %142 = sbr.rel (%p139) target = $region32
    $region31: #{model_builder_forward.4} parent=5 // pred_region
      %s143 = ssub.s32 %s9, 1
      %s144 = smul.u32 40, %s14
      %p145 = scmp.lt.s32.totalorder %s144, 79
      %s146 = scalar_select %p145, %s144, 79
      %s147 = smul.addr %s146, 8
      %s148 = scalar_lea.vmem %s0, %s147
      %p149 = pneg %p35
      %p150 = pneg %p32
      %p151 = pneg %p56
      %p152 = pneg %p53
      %p153 = pneg %p77
      %p154 = pneg %p74
      %p155 = pneg %p103
      %p156 = pneg %p100
      %s157 = smul.u32 40, %s14
      %p158 = scmp.lt.s32.totalorder %s157, 79
      %s159 = scalar_select %p158, %s157, 79
      %s160 = smul.addr %s159, 8
      %s161 = scalar_lea.vmem %s3, %s160
      %s162 = smul.u32 40, %s14
      %p163 = scmp.lt.s32.totalorder %s162, 79
      %s164 = scalar_select %p163, %s162, 79
      %s165 = smul.addr %s164, 8
      %s166 = scalar_lea.vmem %s0, %s165
      %s167 = smul.u32 40, %s14
      %s168 = smul.u32 40, %s14
      %p169 = scmp.lt.s32.totalorder %s168, 79
      %s170 = scalar_select %p169, %s168, 79
      %s171 = smul.addr %s170, 8
      %s172 = scalar_lea.vmem %s3, %s171
      %s173 = smul.u32 40, %s14
      %v175 = vld [vmem:[%s166] sm:$0xff]
      %v176 = vld [vmem:[%s166 + $0x8] sm:$0xff]
      %v177 = vld [vmem:[%s166 + $0x10] sm:$0xff]
      %v178 = vld [vmem:[%s166 + $0x18] sm:$0xff]
      %v179 = vld [vmem:[%s166 + $0x20] sm:$0xff]
      %v180 = vld [vmem:[%s166 + $0x28] sm:$0xff]
      %v181 = vld [vmem:[%s166 + $0x30] sm:$0xff]
      %v182 = vld [vmem:[%s166 + $0x38] sm:$0xff]
      %v183 = vld [vmem:[%s166 + $0x40] sm:$0xff]
      %v184 = vld [vmem:[%s166 + $0x48] sm:$0xff]
      %v185 = vld [vmem:[%s166 + $0x50] sm:$0xff]
      %v186 = vld [vmem:[%s166 + $0x58] sm:$0xff]
      %v187 = vld [vmem:[%s166 + $0x60] sm:$0xff]
      %v188 = vld [vmem:[%s166 + $0x68] sm:$0xff]
      %v189 = vld [vmem:[%s166 + $0x70] sm:$0xff]
      %v190 = vld [vmem:[%s166 + $0x78] sm:$0xff]
      %v191 = vld [vmem:[%s166 + $0x80] sm:$0xff]
      %v192 = vld [vmem:[%s166 + $0x88] sm:$0xff]
      %v193 = vld [vmem:[%s166 + $0x90] sm:$0xff]
      %v194 = vld [vmem:[%s166 + $0x98] sm:$0xff]
      %v195 = vld [vmem:[%s166 + $0xa0] sm:$0xff]
      %v196 = vld [vmem:[%s166 + $0xa8] sm:$0xff]
      %v197 = vld [vmem:[%s166 + $0xb0] sm:$0xff]
      %v198 = vld [vmem:[%s166 + $0xb8] sm:$0xff]
      %v199 = vld [vmem:[%s166 + $0xc0] sm:$0xff]
      %v200 = vld [vmem:[%s166 + $0xc8] sm:$0xff]
      %v201 = vld [vmem:[%s166 + $0xd0] sm:$0xff]
      %v202 = vld [vmem:[%s166 + $0xd8] sm:$0xff]
      %v203 = vld [vmem:[%s166 + $0xe0] sm:$0xff]
      %v204 = vld [vmem:[%s166 + $0xe8] sm:$0xff]
      %v205 = vld [vmem:[%s166 + $0xf0] sm:$0xff]
      %v206 = vld [vmem:[%s166 + $0xf8] sm:$0xff]
      %v207 = vld [vmem:[%s166 + $0x100] sm:$0xff]
      %v208 = vld [vmem:[%s166 + $0x108] sm:$0xff]
      %v209 = vld [vmem:[%s166 + $0x110] sm:$0xff]
      %v210 = vld [vmem:[%s166 + $0x118] sm:$0xff]
      %v211 = vld [vmem:[%s166 + $0x120] sm:$0xff]
      %v212 = vld [vmem:[%s166 + $0x128] sm:$0xff]
      %v213 = vld [vmem:[%s166 + $0x130] sm:$0xff]
      %v214 = vld [vmem:[%s166 + $0x138] sm:$0xff]
      %v215 = vpack.c.bf16 %v176, %v175
      %v216 = vpack.c.bf16 %v178, %v177
      %v217 = vpack.c.bf16 %v180, %v179
      %v218 = vpack.c.bf16 %v182, %v181
      %v219 = vpack.c.bf16 %v184, %v183
      %v220 = vpack.c.bf16 %v186, %v185
      %v221 = vpack.c.bf16 %v188, %v187
      %v222 = vpack.c.bf16 %v190, %v189
      %v223 = vpack.c.bf16 %v192, %v191
      %v224 = vpack.c.bf16 %v194, %v193
      %v225 = vpack.c.bf16 %v196, %v195
      %v226 = vpack.c.bf16 %v198, %v197
      %v227 = vpack.c.bf16 %v200, %v199
      %v228 = vpack.c.bf16 %v202, %v201
      %v229 = vpack.c.bf16 %v204, %v203
      %v230 = vpack.c.bf16 %v206, %v205
      %v231 = vpack.c.bf16 %v208, %v207
      %v232 = vpack.c.bf16 %v210, %v209
      %v233 = vpack.c.bf16 %v212, %v211
      %v234 = vpack.c.bf16 %v214, %v213
      %v235 = vld [vmem:[%s1] sm:$0xf]
      %v236 = vld [vmem:[%s1 + $0x4] sm:$0xf]
      %v237 = vld [vmem:[%s1 + $0x8] sm:$0xf]
      %v238 = vld [vmem:[%s1 + $0xc] sm:$0x3]
      %v239 = vld [vmem:[%s2] sm:$0x1]
      %v241 = vlaneseq
      %v242 = vshrl.u32 %v241, 7
      %v243 = vsub.s32 0, %v242
      %v244 = vrot.slane %v239, %v243
      %v250 = vunpack.c.l.b16 %v235
      %v251 = vunpack.c.l.b16 %v236
      %v252 = vunpack.c.l.b16 %v237
      %v253 = vunpack.c.l.b16 %v238
      %v254 = vpack.c.b16 %v251, %v250
      %v255 = vpack.c.b16 %v253, %v252
      %vm257 = vcmask 220160
      %v259 = vsel %vm257, %v215, 0
      %v262 = vsel %vm257, %v216, 0
      %v265 = vsel %vm257, %v217, 0
      %v268 = vsel %vm257, %v218, 0
      %v271 = vsel %vm257, %v219, 0
      %v274 = vsel %vm257, %v220, 0
      %v277 = vsel %vm257, %v221, 0
      %v280 = vsel %vm257, %v222, 0
      %v283 = vsel %vm257, %v223, 0
      %v286 = vsel %vm257, %v224, 0
      %v289 = vsel %vm257, %v225, 0
      %v292 = vsel %vm257, %v226, 0
      %v295 = vsel %vm257, %v227, 0
      %v298 = vsel %vm257, %v228, 0
      %v301 = vsel %vm257, %v229, 0
      %v304 = vsel %vm257, %v230, 0
      %v307 = vsel %vm257, %v231, 0
      %v310 = vsel %vm257, %v232, 0
      %v313 = vsel %vm257, %v233, 0
      %v316 = vsel %vm257, %v234, 0
      %vm318 = vcmask 1044480
      %vm319 = vcmask 1045504
      %v320 = vsel %vm318, 4294967295, 65535
      %v321 = vsel %vm319, %v320, 0
      %v323 = vand.u32 %v255, %v321
      %325 = vmatprep.subr.bf16.mxu0 0
      %326 = vmatpush1.bf16.msra.mxu0 0
      %327 = vmatprep.subr.bf16.mxu0 0
      %328 = vmatpush1.bf16.msra.mxu0 0
      %329 = vmatprep.subr.bf16.mxu0 0
      %330 = vmatpush1.bf16.msra.mxu0 0
      %331 = vmatprep.subr.bf16.mxu0 0
      %332 = vmatpush1.bf16.msra.mxu0 0
      %333 = vmatprep.subr.bf16.mxu0 0
      %334 = vmatpush1.bf16.msra.mxu0 0
      %335 = vmatprep.subr.bf16.mxu0 0
      %336 = vmatpush1.bf16.msra.mxu0 0
      %337 = vmatprep.subr.bf16.mxu0 0
      %338 = vmatpush1.bf16.msra.mxu0 %v323
      %339 = vmatprep.subr.bf16.mxu0 0
      %340 = vmatpush1.bf16.msra.mxu0 %v254
      %341 = vmatprep.subr.bf16.mxu0 0
      %342 = vmatpush2.bf16.msra.mxu0 0
      %343 = vmatprep.subr.bf16.mxu0 0
      %344 = vmatpush2.bf16.msra.mxu0 0
      %345 = vmatprep.subr.bf16.mxu0 0
      %346 = vmatpush2.bf16.msra.mxu0 0
      %347 = vmatprep.subr.bf16.mxu0 0
      %348 = vmatpush2.bf16.msra.mxu0 0
      %349 = vmatprep.subr.bf16.mxu0 0
      %350 = vmatpush2.bf16.msra.mxu0 0
      %351 = vmatprep.subr.bf16.mxu0 0
      %352 = vmatpush2.bf16.msra.mxu0 0
      %353 = vmatprep.subr.bf16.mxu0 0
      %354 = vmatpush2.bf16.msra.mxu0 0
      %355 = vmatprep.subr.bf16.mxu0 0
      %356 = vmatpush2.bf16.msra.mxu0 0
      %357 = vmatprep.mubr.bf16.mxu0 0
      %358 = vmatmul.mubr.bf16.gmra.mxu0 %v259
      %v359 = vpop.f32.mrf.mxu0
      %v360 = vadd.f32 %v244, %v359
      %v361 = vpop.f32.mrf.mxu0
      %v362 = vpop.f32.mrf.mxu0
      %v363 = vadd.f32 %v244, %v362
      %v364 = vpop.f32.mrf.mxu0
      %365 = vmatprep.mubr.bf16.mxu0 0
      %366 = vmatmul.mubr.bf16.gmra.mxu0 %v262
      %v367 = vpop.f32.mrf.mxu0
      %v368 = vadd.f32 %v244, %v367
      %v369 = vpop.f32.mrf.mxu0
      %v370 = vpop.f32.mrf.mxu0
      %v371 = vadd.f32 %v244, %v370
      %v372 = vpop.f32.mrf.mxu0
      %373 = vmatprep.mubr.bf16.mxu0 0
      %374 = vmatmul.mubr.bf16.gmra.mxu0 %v265
      %v375 = vpop.f32.mrf.mxu0
      %v376 = vadd.f32 %v244, %v375
      %v377 = vpop.f32.mrf.mxu0
      %v378 = vpop.f32.mrf.mxu0
      %v379 = vadd.f32 %v244, %v378
      %v380 = vpop.f32.mrf.mxu0
      %381 = vmatprep.mubr.bf16.mxu0 0
      %382 = vmatmul.mubr.bf16.gmra.mxu0 %v268
      %v383 = vpop.f32.mrf.mxu0
      %v384 = vadd.f32 %v244, %v383
      %v385 = vpop.f32.mrf.mxu0
      %v386 = vpop.f32.mrf.mxu0
      %v387 = vadd.f32 %v244, %v386
      %v388 = vpop.f32.mrf.mxu0
      %389 = vmatprep.mubr.bf16.mxu0 0
      %390 = vmatmul.mubr.bf16.gmra.mxu0 %v271
      %v391 = vpop.f32.mrf.mxu0
      %v392 = vadd.f32 %v244, %v391
      %v393 = vpop.f32.mrf.mxu0
      %v394 = vpop.f32.mrf.mxu0
      %v395 = vadd.f32 %v244, %v394
      %v396 = vpop.f32.mrf.mxu0
      %397 = vmatprep.mubr.bf16.mxu0 0
      %398 = vmatmul.mubr.bf16.gmra.mxu0 %v274
      %v399 = vpop.f32.mrf.mxu0
      %v400 = vadd.f32 %v244, %v399
      %v401 = vpop.f32.mrf.mxu0
      %v402 = vpop.f32.mrf.mxu0
      %v403 = vadd.f32 %v244, %v402
      %v404 = vpop.f32.mrf.mxu0
      %405 = vmatprep.mubr.bf16.mxu0 0
      %406 = vmatmul.mubr.bf16.gmra.mxu0 %v277
      %v407 = vpop.f32.mrf.mxu0
      %v408 = vadd.f32 %v244, %v407
      %v409 = vpop.f32.mrf.mxu0
      %v410 = vpop.f32.mrf.mxu0
      %v411 = vadd.f32 %v244, %v410
      %v412 = vpop.f32.mrf.mxu0
      %413 = vmatprep.mubr.bf16.mxu0 0
      %414 = vmatmul.mubr.bf16.gmra.mxu0 %v280
      %v415 = vpop.f32.mrf.mxu0
      %v416 = vadd.f32 %v244, %v415
      %v417 = vpop.f32.mrf.mxu0
      %v418 = vpop.f32.mrf.mxu0
      %v419 = vadd.f32 %v244, %v418
      %v420 = vpop.f32.mrf.mxu0
      %421 = vmatprep.mubr.bf16.mxu0 0
      %422 = vmatmul.mubr.bf16.gmra.mxu0 %v283
      %v423 = vpop.f32.mrf.mxu0
      %v424 = vadd.f32 %v244, %v423
      %v425 = vpop.f32.mrf.mxu0
      %v426 = vpop.f32.mrf.mxu0
      %v427 = vadd.f32 %v244, %v426
      %v428 = vpop.f32.mrf.mxu0
      %429 = vmatprep.mubr.bf16.mxu0 0
      %430 = vmatmul.mubr.bf16.gmra.mxu0 %v286
      %v431 = vpop.f32.mrf.mxu0
      %v432 = vadd.f32 %v244, %v431
      %v433 = vpop.f32.mrf.mxu0
      %v434 = vpop.f32.mrf.mxu0
      %v435 = vadd.f32 %v244, %v434
      %v436 = vpop.f32.mrf.mxu0
      %437 = vmatprep.mubr.bf16.mxu0 0
      %438 = vmatmul.mubr.bf16.gmra.mxu0 %v289
      %v439 = vpop.f32.mrf.mxu0
      %v440 = vadd.f32 %v244, %v439
      %v441 = vpop.f32.mrf.mxu0
      %v442 = vpop.f32.mrf.mxu0
      %v443 = vadd.f32 %v244, %v442
      %v444 = vpop.f32.mrf.mxu0
      %445 = vmatprep.mubr.bf16.mxu0 0
      %446 = vmatmul.mubr.bf16.gmra.mxu0 %v292
      %v447 = vpop.f32.mrf.mxu0
      %v448 = vadd.f32 %v244, %v447
      %v449 = vpop.f32.mrf.mxu0
      %v450 = vpop.f32.mrf.mxu0
      %v451 = vadd.f32 %v244, %v450
      %v452 = vpop.f32.mrf.mxu0
      %453 = vmatprep.mubr.bf16.mxu0 0
      %454 = vmatmul.mubr.bf16.gmra.mxu0 %v295
      %v455 = vpop.f32.mrf.mxu0
      %v456 = vadd.f32 %v244, %v455
      %v457 = vpop.f32.mrf.mxu0
      %v458 = vpop.f32.mrf.mxu0
      %v459 = vadd.f32 %v244, %v458
      %v460 = vpop.f32.mrf.mxu0
      %461 = vmatprep.mubr.bf16.mxu0 0
      %462 = vmatmul.mubr.bf16.gmra.mxu0 %v298
      %v463 = vpop.f32.mrf.mxu0
      %v464 = vadd.f32 %v244, %v463
      %v465 = vpop.f32.mrf.mxu0
      %v466 = vpop.f32.mrf.mxu0
      %v467 = vadd.f32 %v244, %v466
      %v468 = vpop.f32.mrf.mxu0
      %469 = vmatprep.mubr.bf16.mxu0 0
      %470 = vmatmul.mubr.bf16.gmra.mxu0 %v301
      %v471 = vpop.f32.mrf.mxu0
      %v472 = vadd.f32 %v244, %v471
      %v473 = vpop.f32.mrf.mxu0
      %v474 = vpop.f32.mrf.mxu0
      %v475 = vadd.f32 %v244, %v474
      %v476 = vpop.f32.mrf.mxu0
      %477 = vmatprep.mubr.bf16.mxu0 0
      %478 = vmatmul.mubr.bf16.gmra.mxu0 %v304
      %v479 = vpop.f32.mrf.mxu0
      %v480 = vadd.f32 %v244, %v479
      %v481 = vpop.f32.mrf.mxu0
      %v482 = vpop.f32.mrf.mxu0
      %v483 = vadd.f32 %v244, %v482
      %v484 = vpop.f32.mrf.mxu0
      %485 = vmatprep.mubr.bf16.mxu0 0
      %486 = vmatmul.mubr.bf16.gmra.mxu0 %v307
      %v487 = vpop.f32.mrf.mxu0
      %v488 = vadd.f32 %v244, %v487
      %v489 = vpop.f32.mrf.mxu0
      %v490 = vpop.f32.mrf.mxu0
      %v491 = vadd.f32 %v244, %v490
      %v492 = vpop.f32.mrf.mxu0
      %493 = vmatprep.mubr.bf16.mxu0 0
      %494 = vmatmul.mubr.bf16.gmra.mxu0 %v310
      %v495 = vpop.f32.mrf.mxu0
      %v496 = vadd.f32 %v244, %v495
      %v497 = vpop.f32.mrf.mxu0
      %v498 = vpop.f32.mrf.mxu0
      %v499 = vadd.f32 %v244, %v498
      %v500 = vpop.f32.mrf.mxu0
      %501 = vmatprep.mubr.bf16.mxu0 0
      %502 = vmatmul.mubr.bf16.gmra.mxu0 %v313
      %v503 = vpop.f32.mrf.mxu0
      %v504 = vadd.f32 %v244, %v503
      %v505 = vpop.f32.mrf.mxu0
      %v506 = vpop.f32.mrf.mxu0
      %v507 = vadd.f32 %v244, %v506
      %v508 = vpop.f32.mrf.mxu0
      %509 = vmatprep.mubr.bf16.mxu0 0
      %510 = vmatmul.mubr.bf16.gmra.mxu0 %v316
      %v511 = vpop.f32.mrf.mxu0
      %v512 = vadd.f32 %v244, %v511
      %v513 = vpop.f32.mrf.mxu0
      %v514 = vpop.f32.mrf.mxu0
      %v515 = vadd.f32 %v244, %v514
      %v516 = vpop.f32.mrf.mxu0
      %517 = vdwg.mxu0
      %v518 = vmax.f32 %v360, 0.0
      %v519 = vmax.f32 %v363, 0.0
      %v520 = vmax.f32 %v368, 0.0
      %v521 = vmax.f32 %v371, 0.0
      %v522 = vmax.f32 %v376, 0.0
      %v523 = vmax.f32 %v379, 0.0
      %v524 = vmax.f32 %v384, 0.0
      %v525 = vmax.f32 %v387, 0.0
      %v526 = vmax.f32 %v392, 0.0
      %v527 = vmax.f32 %v395, 0.0
      %v528 = vmax.f32 %v400, 0.0
      %v529 = vmax.f32 %v403, 0.0
      %v530 = vmax.f32 %v408, 0.0
      %v531 = vmax.f32 %v411, 0.0
      %v532 = vmax.f32 %v416, 0.0
      %v533 = vmax.f32 %v419, 0.0
      %v534 = vmax.f32 %v424, 0.0
      %v535 = vmax.f32 %v427, 0.0
      %v536 = vmax.f32 %v432, 0.0
      %v537 = vmax.f32 %v435, 0.0
      %v538 = vmax.f32 %v440, 0.0
      %v539 = vmax.f32 %v443, 0.0
      %v540 = vmax.f32 %v448, 0.0
      %v541 = vmax.f32 %v451, 0.0
      %v542 = vmax.f32 %v456, 0.0
      %v543 = vmax.f32 %v459, 0.0
      %v544 = vmax.f32 %v464, 0.0
      %v545 = vmax.f32 %v467, 0.0
      %v546 = vmax.f32 %v472, 0.0
      %v547 = vmax.f32 %v475, 0.0
      %v548 = vmax.f32 %v480, 0.0
      %v549 = vmax.f32 %v483, 0.0
      %v550 = vmax.f32 %v488, 0.0
      %v551 = vmax.f32 %v491, 0.0
      %v552 = vmax.f32 %v496, 0.0
      %v553 = vmax.f32 %v499, 0.0
      %v554 = vmax.f32 %v504, 0.0
      %v555 = vmax.f32 %v507, 0.0
      %v556 = vmax.f32 %v512, 0.0
      %v557 = vmax.f32 %v515, 0.0
      %vm558 = vcmask 64512
      %559 = vst.msk [vmem:[%s172] sm:$0xff] %vm558, %v518
      %560 = vst.msk [vmem:[%s172 + $0x8] sm:$0xff] %vm558, %v519
      %561 = vst.msk [vmem:[%s172 + $0x10] sm:$0xff] %vm558, %v520
      %562 = vst.msk [vmem:[%s172 + $0x18] sm:$0xff] %vm558, %v521
      %563 = vst.msk [vmem:[%s172 + $0x20] sm:$0xff] %vm558, %v522
      %564 = vst.msk [vmem:[%s172 + $0x28] sm:$0xff] %vm558, %v523
      %565 = vst.msk [vmem:[%s172 + $0x30] sm:$0xff] %vm558, %v524
      %566 = vst.msk [vmem:[%s172 + $0x38] sm:$0xff] %vm558, %v525
      %567 = vst.msk [vmem:[%s172 + $0x40] sm:$0xff] %vm558, %v526
      %568 = vst.msk [vmem:[%s172 + $0x48] sm:$0xff] %vm558, %v527
      %569 = vst.msk [vmem:[%s172 + $0x50] sm:$0xff] %vm558, %v528
      %570 = vst.msk [vmem:[%s172 + $0x58] sm:$0xff] %vm558, %v529
      %571 = vst.msk [vmem:[%s172 + $0x60] sm:$0xff] %vm558, %v530
      %572 = vst.msk [vmem:[%s172 + $0x68] sm:$0xff] %vm558, %v531
      %573 = vst.msk [vmem:[%s172 + $0x70] sm:$0xff] %vm558, %v532
      %574 = vst.msk [vmem:[%s172 + $0x78] sm:$0xff] %vm558, %v533
      %575 = vst.msk [vmem:[%s172 + $0x80] sm:$0xff] %vm558, %v534
      %576 = vst.msk [vmem:[%s172 + $0x88] sm:$0xff] %vm558, %v535
      %577 = vst.msk [vmem:[%s172 + $0x90] sm:$0xff] %vm558, %v536
      %578 = vst.msk [vmem:[%s172 + $0x98] sm:$0xff] %vm558, %v537
      %579 = vst.msk [vmem:[%s172 + $0xa0] sm:$0xff] %vm558, %v538
      %580 = vst.msk [vmem:[%s172 + $0xa8] sm:$0xff] %vm558, %v539
      %581 = vst.msk [vmem:[%s172 + $0xb0] sm:$0xff] %vm558, %v540
      %582 = vst.msk [vmem:[%s172 + $0xb8] sm:$0xff] %vm558, %v541
      %583 = vst.msk [vmem:[%s172 + $0xc0] sm:$0xff] %vm558, %v542
      %584 = vst.msk [vmem:[%s172 + $0xc8] sm:$0xff] %vm558, %v543
      %585 = vst.msk [vmem:[%s172 + $0xd0] sm:$0xff] %vm558, %v544
      %586 = vst.msk [vmem:[%s172 + $0xd8] sm:$0xff] %vm558, %v545
      %587 = vst.msk [vmem:[%s172 + $0xe0] sm:$0xff] %vm558, %v546
      %588 = vst.msk [vmem:[%s172 + $0xe8] sm:$0xff] %vm558, %v547
      %589 = vst.msk [vmem:[%s172 + $0xf0] sm:$0xff] %vm558, %v548
      %590 = vst.msk [vmem:[%s172 + $0xf8] sm:$0xff] %vm558, %v549
      %591 = vst.msk [vmem:[%s172 + $0x100] sm:$0xff] %vm558, %v550
      %592 = vst.msk [vmem:[%s172 + $0x108] sm:$0xff] %vm558, %v551
      %593 = vst.msk [vmem:[%s172 + $0x110] sm:$0xff] %vm558, %v552
      %594 = vst.msk [vmem:[%s172 + $0x118] sm:$0xff] %vm558, %v553
      %595 = vst.msk [vmem:[%s172 + $0x120] sm:$0xff] %vm558, %v554
      %596 = vst.msk [vmem:[%s172 + $0x128] sm:$0xff] %vm558, %v555
      %597 = vst.msk [vmem:[%s172 + $0x130] sm:$0xff] %vm558, %v556
      %598 = vst.msk [vmem:[%s172 + $0x138] sm:$0xff] %vm558, %v557
      %s599 = smul.u32 40, %s14
      %p600 = scmp.lt.s32.totalorder %s599, 79
      %s601 = scalar_select %p600, %s599, 79
      %s602 = smul.addr %s601, 8
      %s603 = scalar_lea.vmem %s3, %s602
      // Predicated region
      $region33: #{model_builder_forward.4} parent=31 // pred_check
        %p604 = pneg %p100
      $region34: #{model_builder_forward.4} parent=31 // pred_check_branch
        %606 = sbr.rel (%p604) target = $region36
      $region35: #{model_builder_forward.4} parent=31 // pred_region
        %s607 = smul.u32 40, %s14
      $region36: #{model_builder_forward.4} parent=31 // pred_fallthru
        _
    $region32: #{model_builder_forward.4} parent=5 // pred_fallthru
      _
    %p608 = scmp.le.s32.totalorder 2, %s9
    // Predicated region
    $region37: #{model_builder_forward.4} parent=5 // pred_check
      %p609 = pneg %p608
    $region38: #{model_builder_forward.4} parent=5 // pred_check_branch
      %611 = sbr.rel (%p609) target = $region40
    $region39: #{model_builder_forward.4} parent=5 // pred_region
      %s612 = ssub.s32 %s9, 2
      // Predicated region
      $region41: #{model_builder_forward.4} parent=39 // pred_check
        %p613 = pneg %p106
      $region42: #{model_builder_forward.4} parent=39 // pred_check_branch
        %615 = sbr.rel (%p613) target = $region44
      $region43: #{model_builder_forward.4} parent=39 // pred_region
        %s616 = smul.u32 40, %s15
        %p617 = scmp.lt.s32.totalorder %s616, 79
        %s618 = scalar_select %p617, %s616, 79
        %s619 = smul.addr %s618, 8
        %s620 = scalar_lea.vmem %s3, %s619
      $region44: #{model_builder_forward.4} parent=39 // pred_fallthru
        _
    $region40: #{model_builder_forward.4} parent=5 // pred_fallthru
      _
  $region6: #{model_builder_forward.4} parent=0 // loop_footer
    %s13 = sadd.s32 1, %s9
  $region7: #{model_builder_forward.4} parent=0 // loop_footer_branch
    %8 = sbr.rel target = $region3
  $region8: #{model_builder_forward.4} parent=0 // loop_exit
    _

// kernel: model_builder_forward.5
$region0: #{model_builder_forward.5}
  #allocation0 [shape = 'u32[]', space=smem, size = 0x4, offset = 0x4, fixed_abs, tag = 'smem constant byte address 0x4 - core index']
  #allocation1 [shape = 'u32[144,128]{1,0:T(1,128)}', space=vmem, size = 0x12000, scoped, tag = 'internal scratch']
  %s0 = inlined_call_operand.vmem [shape: f32[160,72], index: 0, kind: input, shape index: {}]
  %s1 = inlined_call_operand.vmem [shape: bf16[72,16], index: 1, kind: input, shape index: {}]
  %s2 = inlined_call_operand.vmem [shape: f32[1,16], index: 2, kind: input, shape index: {}]
  %s3 = inlined_call_operand.vmem [shape: bf16[16,48], index: 3, kind: input, shape index: {}]
  %s4 = inlined_call_operand.vmem [shape: f32[1,48], index: 4, kind: input, shape index: {}]
  %s5 = inlined_call_operand.vmem [shape: bf16[48,48], index: 5, kind: input, shape index: {}]
  %s6 = inlined_call_operand.vmem [shape: f32[1,48], index: 6, kind: input, shape index: {}]
  %s7 = inlined_call_operand.vmem [shape: f32[160,48], index: 7, kind: output, shape index: {}]
  %s8 = sld [smem:[#allocation0]]
  $region61: #{model_builder_forward.5} parent=0
    _
  %s10 = ssub.s32 1, %s8
  %s11 = scalar_select 0, %s10, %s8
  loop: start=0, step=1, limit=4
  $region2: #{model_builder_forward.5} parent=0 // loop_pre_header
    _
  $region3: #{model_builder_forward.5} parent=0 // loop_header
    %s13 = sphi 0, %s17
    %p14 = scmp.ge.s32.totalorder %s13, 4
    %s23 = sphi 0, %s25
    %s26 = sphi 0, %s23
    %s27 = sphi 0, %s26
    %s43 = sphi 0, %s27
    %s47 = sphi 0, %s47
    %s49 = sphi 0, %s47
    %s50 = sphi 0, %s49
    %s64 = sphi 0, %s50
    %s68 = sphi 0, %s68
    %s70 = sphi 0, %s68
    %s71 = sphi 0, %s70
    %s85 = sphi 0, %s71
    %s89 = sphi 0, %s89
    %s91 = sphi 0, %s89
    %s92 = sphi 0, %s91
    %s106 = sphi 0, %s92
    %s110 = sphi 0, %s110
    %s112 = sphi 0, %s110
    %s113 = sphi 0, %s112
    %s127 = sphi 0, %s113
    %s131 = sphi 0, %s131
    %s133 = sphi 0, %s131
    %s134 = sphi 0, %s133
    %s148 = sphi 0, %s134
    %s152 = sphi 0, %s152
    %s154 = sphi 0, %s152
    %s155 = sphi 0, %s154
    %s169 = sphi 0, %s155
    %s175 = sphi 0, %s177
    %s178 = sphi 0, %s175
    %s179 = sphi 0, %s178
    %s195 = sphi 0, %s179
  $region4: #{model_builder_forward.5} parent=0 // loop_header_branch
    %16 = sbr.rel (%p14) target = $region8
  $region5: #{model_builder_forward.5} parent=0 // loop_body
    %s18 = ssub.s32 %s13, 1
    %s19 = ssub.s32 %s13, 2
    %s20 = sadd.s32 %s13, 1
    %s21 = ssub.s32 %s13, %s20
    %p22 = scmp.eq.s32.totalorder %s21, 0
    %s24 = sadd.s32 %s23, 1
    %s25 = scalar_select %p22, %s23, %s24
    %p28 = pneg %p22
    %p29 = scmp.eq.s32.totalorder %s13, 1
    %p30 = por %p28, %p29
    %p31 = scmp.ne.s32.totalorder %s23, %s26
    %p32 = scmp.eq.s32.totalorder %s13, 0
    %p33 = por %p31, %p32
    %p34 = scmp.ne.s32.totalorder %s23, %s26
    %p35 = scmp.eq.s32.totalorder %s18, 1
    %p36 = por %p34, %p35
    %p37 = scmp.ne.s32.totalorder %s26, %s27
    %p38 = scmp.eq.s32.totalorder %s18, 0
    %p39 = por %p37, %p38
    %p40 = scmp.ne.s32.totalorder %s26, %s27
    %p41 = scmp.eq.s32.totalorder %s19, 1
    %p42 = por %p40, %p41
    %p44 = scmp.ne.s32.totalorder %s27, %s43
    %p45 = scmp.eq.s32.totalorder %s19, 0
    %p46 = por %p44, %p45
    %s48 = sadd.s32 %s47, 1
    %p51 = scmp.eq.s32.totalorder %s13, 1
    %p52 = scmp.ne.s32.totalorder %s47, %s49
    %p53 = scmp.eq.s32.totalorder %s13, 0
    %p54 = por %p52, %p53
    %p55 = scmp.ne.s32.totalorder %s47, %s49
    %p56 = scmp.eq.s32.totalorder %s18, 1
    %p57 = por %p55, %p56
    %p58 = scmp.ne.s32.totalorder %s49, %s50
    %p59 = scmp.eq.s32.totalorder %s18, 0
    %p60 = por %p58, %p59
    %p61 = scmp.ne.s32.totalorder %s49, %s50
    %p62 = scmp.eq.s32.totalorder %s19, 1
    %p63 = por %p61, %p62
    %p65 = scmp.ne.s32.totalorder %s50, %s64
    %p66 = scmp.eq.s32.totalorder %s19, 0
    %p67 = por %p65, %p66
    %s69 = sadd.s32 %s68, 1
    %p72 = scmp.eq.s32.totalorder %s13, 1
    %p73 = scmp.ne.s32.totalorder %s68, %s70
    %p74 = scmp.eq.s32.totalorder %s13, 0
    %p75 = por %p73, %p74
    %p76 = scmp.ne.s32.totalorder %s68, %s70
    %p77 = scmp.eq.s32.totalorder %s18, 1
    %p78 = por %p76, %p77
    %p79 = scmp.ne.s32.totalorder %s70, %s71
    %p80 = scmp.eq.s32.totalorder %s18, 0
    %p81 = por %p79, %p80
    %p82 = scmp.ne.s32.totalorder %s70, %s71
    %p83 = scmp.eq.s32.totalorder %s19, 1
    %p84 = por %p82, %p83
    %p86 = scmp.ne.s32.totalorder %s71, %s85
    %p87 = scmp.eq.s32.totalorder %s19, 0
    %p88 = por %p86, %p87
    %s90 = sadd.s32 %s89, 1
    %p93 = scmp.eq.s32.totalorder %s13, 1
    %p94 = scmp.ne.s32.totalorder %s89, %s91
    %p95 = scmp.eq.s32.totalorder %s13, 0
    %p96 = por %p94, %p95
    %p97 = scmp.ne.s32.totalorder %s89, %s91
    %p98 = scmp.eq.s32.totalorder %s18, 1
    %p99 = por %p97, %p98
    %p100 = scmp.ne.s32.totalorder %s91, %s92
    %p101 = scmp.eq.s32.totalorder %s18, 0
    %p102 = por %p100, %p101
    %p103 = scmp.ne.s32.totalorder %s91, %s92
    %p104 = scmp.eq.s32.totalorder %s19, 1
    %p105 = por %p103, %p104
    %p107 = scmp.ne.s32.totalorder %s92, %s106
    %p108 = scmp.eq.s32.totalorder %s19, 0
    %p109 = por %p107, %p108
    %s111 = sadd.s32 %s110, 1
    %p114 = scmp.eq.s32.totalorder %s13, 1
    %p115 = scmp.ne.s32.totalorder %s110, %s112
    %p116 = scmp.eq.s32.totalorder %s13, 0
    %p117 = por %p115, %p116
    %p118 = scmp.ne.s32.totalorder %s110, %s112
    %p119 = scmp.eq.s32.totalorder %s18, 1
    %p120 = por %p118, %p119
    %p121 = scmp.ne.s32.totalorder %s112, %s113
    %p122 = scmp.eq.s32.totalorder %s18, 0
    %p123 = por %p121, %p122
    %p124 = scmp.ne.s32.totalorder %s112, %s113
    %p125 = scmp.eq.s32.totalorder %s19, 1
    %p126 = por %p124, %p125
    %p128 = scmp.ne.s32.totalorder %s113, %s127
    %p129 = scmp.eq.s32.totalorder %s19, 0
    %p130 = por %p128, %p129
    %s132 = sadd.s32 %s131, 1
    %p135 = scmp.eq.s32.totalorder %s13, 1
    %p136 = scmp.ne.s32.totalorder %s131, %s133
    %p137 = scmp.eq.s32.totalorder %s13, 0
    %p138 = por %p136, %p137
    %p139 = scmp.ne.s32.totalorder %s131, %s133
    %p140 = scmp.eq.s32.totalorder %s18, 1
    %p141 = por %p139, %p140
    %p142 = scmp.ne.s32.totalorder %s133, %s134
    %p143 = scmp.eq.s32.totalorder %s18, 0
    %p144 = por %p142, %p143
    %p145 = scmp.ne.s32.totalorder %s133, %s134
    %p146 = scmp.eq.s32.totalorder %s19, 1
    %p147 = por %p145, %p146
    %p149 = scmp.ne.s32.totalorder %s134, %s148
    %p150 = scmp.eq.s32.totalorder %s19, 0
    %p151 = por %p149, %p150
    %s153 = sadd.s32 %s152, 1
    %p156 = scmp.eq.s32.totalorder %s13, 1
    %p157 = scmp.ne.s32.totalorder %s152, %s154
    %p158 = scmp.eq.s32.totalorder %s13, 0
    %p159 = por %p157, %p158
    %p160 = scmp.ne.s32.totalorder %s152, %s154
    %p161 = scmp.eq.s32.totalorder %s18, 1
    %p162 = por %p160, %p161
    %p163 = scmp.ne.s32.totalorder %s154, %s155
    %p164 = scmp.eq.s32.totalorder %s18, 0
    %p165 = por %p163, %p164
    %p166 = scmp.ne.s32.totalorder %s154, %s155
    %p167 = scmp.eq.s32.totalorder %s19, 1
    %p168 = por %p166, %p167
    %p170 = scmp.ne.s32.totalorder %s155, %s169
    %p171 = scmp.eq.s32.totalorder %s19, 0
    %p172 = por %p170, %p171
    %s173 = ssub.s32 %s13, %s20
    %p174 = scmp.eq.s32.totalorder %s173, 0
    %s176 = sadd.s32 %s175, 1
    %s177 = scalar_select %p174, %s175, %s176
    %p180 = pneg %p174
    %p181 = scmp.eq.s32.totalorder %s13, 1
    %p182 = por %p180, %p181
    %p183 = scmp.ne.s32.totalorder %s175, %s178
    %p184 = scmp.eq.s32.totalorder %s13, 0
    %p185 = por %p183, %p184
    %p186 = scmp.ne.s32.totalorder %s175, %s178
    %p187 = scmp.eq.s32.totalorder %s18, 1
    %p188 = por %p186, %p187
    %p189 = scmp.ne.s32.totalorder %s178, %s179
    %p190 = scmp.eq.s32.totalorder %s18, 0
    %p191 = por %p189, %p190
    %p192 = scmp.ne.s32.totalorder %s178, %s179
    %p193 = scmp.eq.s32.totalorder %s19, 1
    %p194 = por %p192, %p193
    %p196 = scmp.ne.s32.totalorder %s179, %s195
    %p197 = scmp.eq.s32.totalorder %s19, 0
    %p198 = por %p196, %p197
    %p199 = scmp.le.s32.totalorder 1, %s13
    %p200 = scmp.lt.s32.totalorder %s13, 3
    %p201 = pnand %p199, %p200
    %p202 = pneg %p201
    // Predicated region
    $region9: #{model_builder_forward.5} parent=5 // pred_check
      _
    $region10: #{model_builder_forward.5} parent=5 // pred_check_branch
      %204 = sbr.rel (%p201) target = $region12
    $region11: #{model_builder_forward.5} parent=5 // pred_region
      %s205 = ssub.s32 %s13, 1
      // Predicated region
      $region13: #{model_builder_forward.5} parent=11 // pred_check
        %p206 = pneg %p60
      $region14: #{model_builder_forward.5} parent=11 // pred_check_branch
        %208 = sbr.rel (%p206) target = $region16
      $region15: #{model_builder_forward.5} parent=11 // pred_region
        _
      $region16: #{model_builder_forward.5} parent=11 // pred_fallthru
        _
      // Predicated region
      $region17: #{model_builder_forward.5} parent=11 // pred_check
        %p209 = pneg %p81
      $region18: #{model_builder_forward.5} parent=11 // pred_check_branch
        %211 = sbr.rel (%p209) target = $region20
      $region19: #{model_builder_forward.5} parent=11 // pred_region
        _
      $region20: #{model_builder_forward.5} parent=11 // pred_fallthru
        _
      // Predicated region
      $region21: #{model_builder_forward.5} parent=11 // pred_check
        %p212 = pneg %p102
      $region22: #{model_builder_forward.5} parent=11 // pred_check_branch
        %214 = sbr.rel (%p212) target = $region24
      $region23: #{model_builder_forward.5} parent=11 // pred_region
        _
      $region24: #{model_builder_forward.5} parent=11 // pred_fallthru
        _
      // Predicated region
      $region25: #{model_builder_forward.5} parent=11 // pred_check
        %p215 = pneg %p123
      $region26: #{model_builder_forward.5} parent=11 // pred_check_branch
        %217 = sbr.rel (%p215) target = $region28
      $region27: #{model_builder_forward.5} parent=11 // pred_region
        _
      $region28: #{model_builder_forward.5} parent=11 // pred_fallthru
        _
      // Predicated region
      $region29: #{model_builder_forward.5} parent=11 // pred_check
        %p218 = pneg %p144
      $region30: #{model_builder_forward.5} parent=11 // pred_check_branch
        %220 = sbr.rel (%p218) target = $region32
      $region31: #{model_builder_forward.5} parent=11 // pred_region
        _
      $region32: #{model_builder_forward.5} parent=11 // pred_fallthru
        _
      // Predicated region
      $region33: #{model_builder_forward.5} parent=11 // pred_check
        %p221 = pneg %p165
      $region34: #{model_builder_forward.5} parent=11 // pred_check_branch
        %223 = sbr.rel (%p221) target = $region36
      $region35: #{model_builder_forward.5} parent=11 // pred_region
        _
      $region36: #{model_builder_forward.5} parent=11 // pred_fallthru
        _
    $region12: #{model_builder_forward.5} parent=5 // pred_fallthru
      _
    %p224 = scmp.lt.s32.totalorder %s13, 2
    // Predicated region
    $region37: #{model_builder_forward.5} parent=5 // pred_check
      %p225 = pneg %p224
    $region38: #{model_builder_forward.5} parent=5 // pred_check_branch
      %227 = sbr.rel (%p225) target = $region40
    $region39: #{model_builder_forward.5} parent=5 // pred_region
      // Predicated region
      $region41: #{model_builder_forward.5} parent=39 // pred_check
        %p228 = pneg %p33
      $region42: #{model_builder_forward.5} parent=39 // pred_check_branch
        %230 = sbr.rel (%p228) target = $region44
      $region43: #{model_builder_forward.5} parent=39 // pred_region
        %s231 = smul.u32 10, %s13
        %p232 = scmp.lt.s32.totalorder %s231, 19
        %s233 = scalar_select %p232, %s231, 19
        %s234 = smul.addr %s233, 8
        %s235 = scalar_lea.vmem %s0, %s234
        %s236 = smul.u32 10, %s13
      $region44: #{model_builder_forward.5} parent=39 // pred_fallthru
        _
    $region40: #{model_builder_forward.5} parent=5 // pred_fallthru
      _
    %p237 = scmp.le.s32.totalorder 1, %s13
    %p238 = scmp.lt.s32.totalorder %s13, 3
    %p239 = pnand %p237, %p238
    %p240 = pneg %p239
    // Predicated region
    $region45: #{model_builder_forward.5} parent=5 // pred_check
      _
    $region46: #{model_builder_forward.5} parent=5 // pred_check_branch
      %242 = sbr.rel (%p239) target = $region48
    $region47: #{model_builder_forward.5} parent=5 // pred_region
      %s243 = ssub.s32 %s13, 1
      %s244 = smul.u32 10, %s18
      %p245 = scmp.lt.s32.totalorder %s244, 19
      %s246 = scalar_select %p245, %s244, 19
      %s247 = smul.addr %s246, 8
      %s248 = scalar_lea.vmem %s0, %s247
      %p249 = pneg %p39
      %p250 = pneg %p36
      %p251 = pneg %p60
      %p252 = pneg %p57
      %p253 = pneg %p81
      %p254 = pneg %p78
      %p255 = pneg %p102
      %p256 = pneg %p99
      %p257 = pneg %p123
      %p258 = pneg %p120
      %p259 = pneg %p144
      %p260 = pneg %p141
      %p261 = pneg %p165
      %p262 = pneg %p162
      %p263 = pneg %p191
      %p264 = pneg %p188
      %s265 = smul.u32 10, %s18
      %p266 = scmp.lt.s32.totalorder %s265, 19
      %s267 = scalar_select %p266, %s265, 19
      %s268 = smul.addr %s267, 8
      %s269 = scalar_lea.vmem %s7, %s268
      %s270 = smul.u32 10, %s18
      %p271 = scmp.lt.s32.totalorder %s270, 19
      %s272 = scalar_select %p271, %s270, 19
      %s273 = smul.addr %s272, 8
      %s274 = scalar_lea.vmem %s0, %s273
      %s275 = smul.u32 10, %s18
      %s276 = smul.u32 10, %s18
      %p277 = scmp.lt.s32.totalorder %s276, 19
      %s278 = scalar_select %p277, %s276, 19
      %s279 = smul.addr %s278, 8
      %s280 = scalar_lea.vmem %s7, %s279
      %s281 = smul.u32 10, %s18
      %v283 = vld [vmem:[%s274] sm:$0xff]
      %v284 = vld [vmem:[%s274 + $0x8] sm:$0xff]
      %v285 = vld [vmem:[%s274 + $0x10] sm:$0xff]
      %v286 = vld [vmem:[%s274 + $0x18] sm:$0xff]
      %v287 = vld [vmem:[%s274 + $0x20] sm:$0xff]
      %v288 = vld [vmem:[%s274 + $0x28] sm:$0xff]
      %v289 = vld [vmem:[%s274 + $0x30] sm:$0xff]
      %v290 = vld [vmem:[%s274 + $0x38] sm:$0xff]
      %v291 = vld [vmem:[%s274 + $0x40] sm:$0xff]
      %v292 = vld [vmem:[%s274 + $0x48] sm:$0xff]
      %v293 = vpack.c.bf16 %v284, %v283
      %v294 = vpack.c.bf16 %v286, %v285
      %v295 = vpack.c.bf16 %v288, %v287
      %v296 = vpack.c.bf16 %v290, %v289
      %v297 = vpack.c.bf16 %v292, %v291
      %v298 = vld [vmem:[%s1] sm:$0xf]
      %v299 = vld [vmem:[%s1 + $0x4] sm:$0xf]
      %v300 = vld [vmem:[%s1 + $0x8] sm:$0xf]
      %v301 = vld [vmem:[%s1 + $0xc] sm:$0xf]
      %v302 = vld [vmem:[%s1 + $0x10] sm:$0xf]
      %v303 = vld [vmem:[%s1 + $0x14] sm:$0xf]
      %v304 = vld [vmem:[%s1 + $0x18] sm:$0xf]
      %v305 = vld [vmem:[%s1 + $0x1c] sm:$0xf]
      %v306 = vld [vmem:[%s1 + $0x20] sm:$0xf]
      %v307 = vld [vmem:[%s2] sm:$0x1]
      %v309 = vlaneseq
      %v310 = vshrl.u32 %v309, 7
      %v311 = vsub.s32 0, %v310
      %v312 = vrot.slane %v307, %v311
      %v323 = vunpack.c.l.b16 %v298
      %v324 = vunpack.c.l.b16 %v299
      %v325 = vunpack.c.l.b16 %v300
      %v326 = vunpack.c.l.b16 %v301
      %v327 = vunpack.c.l.b16 %v302
      %v328 = vunpack.c.l.b16 %v303
      %v329 = vunpack.c.l.b16 %v304
      %v330 = vunpack.c.l.b16 %v305
      %v331 = vunpack.c.l.b16 %v306
      %v332 = vpack.c.b16 %v324, %v323
      %v333 = vpack.c.b16 %v326, %v325
      %v334 = vpack.c.b16 %v328, %v327
      %v335 = vpack.c.b16 %v330, %v329
      %v336 = vpack.c.b16 %v331, %v331
      %vm341 = vcmask 588800
      %v343 = vsel %vm341, %v293, 0
      %v346 = vsel %vm341, %v294, 0
      %v349 = vsel %vm341, %v295, 0
      %v352 = vsel %vm341, %v296, 0
      %v355 = vsel %vm341, %v297, 0
      %vm357 = vcmask 1043456
      %v359 = vsel %vm357, %v336, 0
      %361 = vmatprep.subr.bf16.mxu0 0
      %362 = vmatpush1.bf16.msra.mxu0 0
      %363 = vmatprep.subr.bf16.mxu0 0
      %364 = vmatpush1.bf16.msra.mxu0 0
      %365 = vmatprep.subr.bf16.mxu0 0
      %366 = vmatpush1.bf16.msra.mxu0 0
      %367 = vmatprep.subr.bf16.mxu0 0
      %368 = vmatpush1.bf16.msra.mxu0 %v359
      %369 = vmatprep.subr.bf16.mxu0 0
      %370 = vmatpush1.bf16.msra.mxu0 %v335
      %371 = vmatprep.subr.bf16.mxu0 0
      %372 = vmatpush1.bf16.msra.mxu0 %v334
      %373 = vmatprep.subr.bf16.mxu0 0
      %374 = vmatpush1.bf16.msra.mxu0 %v333
      %375 = vmatprep.subr.bf16.mxu0 0
      %376 = vmatpush1.bf16.msra.mxu0 %v332
      %377 = vmatprep.subr.bf16.mxu0 0
      %378 = vmatpush2.bf16.msra.mxu0 0
      %379 = vmatprep.subr.bf16.mxu0 0
      %380 = vmatpush2.bf16.msra.mxu0 0
      %381 = vmatprep.subr.bf16.mxu0 0
      %382 = vmatpush2.bf16.msra.mxu0 0
      %383 = vmatprep.subr.bf16.mxu0 0
      %384 = vmatpush2.bf16.msra.mxu0 0
      %385 = vmatprep.subr.bf16.mxu0 0
      %386 = vmatpush2.bf16.msra.mxu0 0
      %387 = vmatprep.subr.bf16.mxu0 0
      %388 = vmatpush2.bf16.msra.mxu0 0
      %389 = vmatprep.subr.bf16.mxu0 0
      %390 = vmatpush2.bf16.msra.mxu0 0
      %391 = vmatprep.subr.bf16.mxu0 0
      %392 = vmatpush2.bf16.msra.mxu0 0
      %393 = vmatprep.mubr.bf16.mxu0 0
      %394 = vmatmul.mubr.bf16.gmra.mxu0 %v343
      %v395 = vpop.f32.mrf.mxu0
      %v396 = vadd.f32 %v312, %v395
      %v397 = vpop.f32.mrf.mxu0
      %v398 = vpop.f32.mrf.mxu0
      %v399 = vadd.f32 %v312, %v398
      %v400 = vpop.f32.mrf.mxu0
      %401 = vmatprep.mubr.bf16.mxu0 0
      %402 = vmatmul.mubr.bf16.gmra.mxu0 %v346
      %v403 = vpop.f32.mrf.mxu0
      %v404 = vadd.f32 %v312, %v403
      %v405 = vpop.f32.mrf.mxu0
      %v406 = vpop.f32.mrf.mxu0
      %v407 = vadd.f32 %v312, %v406
      %v408 = vpop.f32.mrf.mxu0
      %409 = vmatprep.mubr.bf16.mxu0 0
      %410 = vmatmul.mubr.bf16.gmra.mxu0 %v349
      %v411 = vpop.f32.mrf.mxu0
      %v412 = vadd.f32 %v312, %v411
      %v413 = vpop.f32.mrf.mxu0
      %v414 = vpop.f32.mrf.mxu0
      %v415 = vadd.f32 %v312, %v414
      %v416 = vpop.f32.mrf.mxu0
      %417 = vmatprep.mubr.bf16.mxu0 0
      %418 = vmatmul.mubr.bf16.gmra.mxu0 %v352
      %v419 = vpop.f32.mrf.mxu0
      %v420 = vadd.f32 %v312, %v419
      %v421 = vpop.f32.mrf.mxu0
      %v422 = vpop.f32.mrf.mxu0
      %v423 = vadd.f32 %v312, %v422
      %v424 = vpop.f32.mrf.mxu0
      %425 = vmatprep.mubr.bf16.mxu0 0
      %426 = vmatmul.mubr.bf16.gmra.mxu0 %v355
      %v427 = vpop.f32.mrf.mxu0
      %v428 = vadd.f32 %v312, %v427
      %v429 = vpop.f32.mrf.mxu0
      %v430 = vpop.f32.mrf.mxu0
      %v431 = vadd.f32 %v312, %v430
      %v432 = vpop.f32.mrf.mxu0
      %433 = vdwg.mxu0
      %v434 = vmax.f32 %v396, 0.0
      %v435 = vmax.f32 %v399, 0.0
      %v436 = vmax.f32 %v404, 0.0
      %v437 = vmax.f32 %v407, 0.0
      %v438 = vmax.f32 %v412, 0.0
      %v439 = vmax.f32 %v415, 0.0
      %v440 = vmax.f32 %v420, 0.0
      %v441 = vmax.f32 %v423, 0.0
      %v442 = vmax.f32 %v428, 0.0
      %v443 = vmax.f32 %v431, 0.0
      %v444 = vpack.c.bf16 %v435, %v434
      %v445 = vpack.c.bf16 %v437, %v436
      %v446 = vpack.c.bf16 %v439, %v438
      %v447 = vpack.c.bf16 %v441, %v440
      %v448 = vpack.c.bf16 %v443, %v442
      %v449 = vld [vmem:[%s3] sm:$0xf]
      %v450 = vld [vmem:[%s3 + $0x4] sm:$0xf]
      %v451 = vld [vmem:[%s4] sm:$0x1]
      %v453 = vlaneseq
      %v454 = vshrl.u32 %v453, 7
      %v455 = vsub.s32 0, %v454
      %v456 = vrot.slane %v451, %v455
      %v460 = vunpack.c.l.b16 %v449
      %v461 = vunpack.c.l.b16 %v450
      %v462 = vpack.c.b16 %v461, %v460
      %vm464 = vcmask 130048
      %v466 = vsel %vm464, %v444, 0
      %v469 = vsel %vm464, %v445, 0
      %v472 = vsel %vm464, %v446, 0
      %v475 = vsel %vm464, %v447, 0
      %v478 = vsel %vm464, %v448, 0
      %480 = vmatprep.subr.bf16.mxu0 0
      %481 = vmatpush1.bf16.msra.mxu0 0
      %482 = vmatprep.subr.bf16.mxu0 0
      %483 = vmatpush1.bf16.msra.mxu0 0
      %484 = vmatprep.subr.bf16.mxu0 0
      %485 = vmatpush1.bf16.msra.mxu0 0
      %486 = vmatprep.subr.bf16.mxu0 0
      %487 = vmatpush1.bf16.msra.mxu0 0
      %488 = vmatprep.subr.bf16.mxu0 0
      %489 = vmatpush1.bf16.msra.mxu0 0
      %490 = vmatprep.subr.bf16.mxu0 0
      %491 = vmatpush1.bf16.msra.mxu0 0
      %492 = vmatprep.subr.bf16.mxu0 0
      %493 = vmatpush1.bf16.msra.mxu0 0
      %494 = vmatprep.subr.bf16.mxu0 0
      %495 = vmatpush1.bf16.msra.mxu0 %v462
      %496 = vmatprep.subr.bf16.mxu0 0
      %497 = vmatpush2.bf16.msra.mxu0 0
      %498 = vmatprep.subr.bf16.mxu0 0
      %499 = vmatpush2.bf16.msra.mxu0 0
      %500 = vmatprep.subr.bf16.mxu0 0
      %501 = vmatpush2.bf16.msra.mxu0 0
      %502 = vmatprep.subr.bf16.mxu0 0
      %503 = vmatpush2.bf16.msra.mxu0 0
      %504 = vmatprep.subr.bf16.mxu0 0
      %505 = vmatpush2.bf16.msra.mxu0 0
      %506 = vmatprep.subr.bf16.mxu0 0
      %507 = vmatpush2.bf16.msra.mxu0 0
      %508 = vmatprep.subr.bf16.mxu0 0
      %509 = vmatpush2.bf16.msra.mxu0 0
      %510 = vmatprep.subr.bf16.mxu0 0
      %511 = vmatpush2.bf16.msra.mxu0 0
      %512 = vmatprep.mubr.bf16.mxu0 0
      %513 = vmatmul.mubr.bf16.gmra.mxu0 %v466
      %v514 = vpop.f32.mrf.mxu0
      %v515 = vadd.f32 %v456, %v514
      %v516 = vpop.f32.mrf.mxu0
      %v517 = vpop.f32.mrf.mxu0
      %v518 = vadd.f32 %v456, %v517
      %v519 = vpop.f32.mrf.mxu0
      %520 = vmatprep.mubr.bf16.mxu0 0
      %521 = vmatmul.mubr.bf16.gmra.mxu0 %v469
      %v522 = vpop.f32.mrf.mxu0
      %v523 = vadd.f32 %v456, %v522
      %v524 = vpop.f32.mrf.mxu0
      %v525 = vpop.f32.mrf.mxu0
      %v526 = vadd.f32 %v456, %v525
      %v527 = vpop.f32.mrf.mxu0
      %528 = vmatprep.mubr.bf16.mxu0 0
      %529 = vmatmul.mubr.bf16.gmra.mxu0 %v472
      %v530 = vpop.f32.mrf.mxu0
      %v531 = vadd.f32 %v456, %v530
      %v532 = vpop.f32.mrf.mxu0
      %v533 = vpop.f32.mrf.mxu0
      %v534 = vadd.f32 %v456, %v533
      %v535 = vpop.f32.mrf.mxu0
      %536 = vmatprep.mubr.bf16.mxu0 0
      %537 = vmatmul.mubr.bf16.gmra.mxu0 %v475
      %v538 = vpop.f32.mrf.mxu0
      %v539 = vadd.f32 %v456, %v538
      %v540 = vpop.f32.mrf.mxu0
      %v541 = vpop.f32.mrf.mxu0
      %v542 = vadd.f32 %v456, %v541
      %v543 = vpop.f32.mrf.mxu0
      %544 = vmatprep.mubr.bf16.mxu0 0
      %545 = vmatmul.mubr.bf16.gmra.mxu0 %v478
      %v546 = vpop.f32.mrf.mxu0
      %v547 = vadd.f32 %v456, %v546
      %v548 = vpop.f32.mrf.mxu0
      %v549 = vpop.f32.mrf.mxu0
      %v550 = vadd.f32 %v456, %v549
      %v551 = vpop.f32.mrf.mxu0
      %552 = vdwg.mxu0
      %v553 = vmax.f32 %v515, 0.0
      %v554 = vmax.f32 %v518, 0.0
      %v555 = vmax.f32 %v523, 0.0
      %v556 = vmax.f32 %v526, 0.0
      %v557 = vmax.f32 %v531, 0.0
      %v558 = vmax.f32 %v534, 0.0
      %v559 = vmax.f32 %v539, 0.0
      %v560 = vmax.f32 %v542, 0.0
      %v561 = vmax.f32 %v547, 0.0
      %v562 = vmax.f32 %v550, 0.0
      %v563 = vpack.c.bf16 %v554, %v553
      %v564 = vpack.c.bf16 %v556, %v555
      %v565 = vpack.c.bf16 %v558, %v557
      %v566 = vpack.c.bf16 %v560, %v559
      %v567 = vpack.c.bf16 %v562, %v561
      %v568 = vld [vmem:[%s5] sm:$0xf]
      %v569 = vld [vmem:[%s5 + $0x4] sm:$0xf]
      %v570 = vld [vmem:[%s5 + $0x8] sm:$0xf]
      %v571 = vld [vmem:[%s5 + $0xc] sm:$0xf]
      %v572 = vld [vmem:[%s5 + $0x10] sm:$0xf]
      %v573 = vld [vmem:[%s5 + $0x14] sm:$0xf]
      %v574 = vld [vmem:[%s6] sm:$0x1]
      %v576 = vlaneseq
      %v577 = vshrl.u32 %v576, 7
      %v578 = vsub.s32 0, %v577
      %v579 = vrot.slane %v574, %v578
      %v587 = vunpack.c.l.b16 %v568
      %v588 = vunpack.c.l.b16 %v569
      %v589 = vunpack.c.l.b16 %v570
      %v590 = vunpack.c.l.b16 %v571
      %v591 = vunpack.c.l.b16 %v572
      %v592 = vunpack.c.l.b16 %v573
      %v593 = vpack.c.b16 %v588, %v587
      %v594 = vpack.c.b16 %v590, %v589
      %v595 = vpack.c.b16 %v592, %v591
      %vm599 = vcmask 392192
      %v601 = vsel %vm599, %v563, 0
      %v604 = vsel %vm599, %v564, 0
      %v607 = vsel %vm599, %v565, 0
      %v610 = vsel %vm599, %v566, 0
      %v613 = vsel %vm599, %v567, 0
      %615 = vmatprep.subr.bf16.mxu0 0
      %616 = vmatpush1.bf16.msra.mxu0 0
      %617 = vmatprep.subr.bf16.mxu0 0
      %618 = vmatpush1.bf16.msra.mxu0 0
      %619 = vmatprep.subr.bf16.mxu0 0
      %620 = vmatpush1.bf16.msra.mxu0 0
      %621 = vmatprep.subr.bf16.mxu0 0
      %622 = vmatpush1.bf16.msra.mxu0 0
      %623 = vmatprep.subr.bf16.mxu0 0
      %624 = vmatpush1.bf16.msra.mxu0 0
      %625 = vmatprep.subr.bf16.mxu0 0
      %626 = vmatpush1.bf16.msra.mxu0 %v595
      %627 = vmatprep.subr.bf16.mxu0 0
      %628 = vmatpush1.bf16.msra.mxu0 %v594
      %629 = vmatprep.subr.bf16.mxu0 0
      %630 = vmatpush1.bf16.msra.mxu0 %v593
      %631 = vmatprep.subr.bf16.mxu0 0
      %632 = vmatpush2.bf16.msra.mxu0 0
      %633 = vmatprep.subr.bf16.mxu0 0
      %634 = vmatpush2.bf16.msra.mxu0 0
      %635 = vmatprep.subr.bf16.mxu0 0
      %636 = vmatpush2.bf16.msra.mxu0 0
      %637 = vmatprep.subr.bf16.mxu0 0
      %638 = vmatpush2.bf16.msra.mxu0 0
      %639 = vmatprep.subr.bf16.mxu0 0
      %640 = vmatpush2.bf16.msra.mxu0 0
      %641 = vmatprep.subr.bf16.mxu0 0
      %642 = vmatpush2.bf16.msra.mxu0 0
      %643 = vmatprep.subr.bf16.mxu0 0
      %644 = vmatpush2.bf16.msra.mxu0 0
      %645 = vmatprep.subr.bf16.mxu0 0
      %646 = vmatpush2.bf16.msra.mxu0 0
      %647 = vmatprep.mubr.bf16.mxu0 0
      %648 = vmatmul.mubr.bf16.gmra.mxu0 %v601
      %v649 = vpop.f32.mrf.mxu0
      %v650 = vadd.f32 %v579, %v649
      %v651 = vpop.f32.mrf.mxu0
      %v652 = vpop.f32.mrf.mxu0
      %v653 = vadd.f32 %v579, %v652
      %v654 = vpop.f32.mrf.mxu0
      %655 = vmatprep.mubr.bf16.mxu0 0
      %656 = vmatmul.mubr.bf16.gmra.mxu0 %v604
      %v657 = vpop.f32.mrf.mxu0
      %v658 = vadd.f32 %v579, %v657
      %v659 = vpop.f32.mrf.mxu0
      %v660 = vpop.f32.mrf.mxu0
      %v661 = vadd.f32 %v579, %v660
      %v662 = vpop.f32.mrf.mxu0
      %663 = vmatprep.mubr.bf16.mxu0 0
      %664 = vmatmul.mubr.bf16.gmra.mxu0 %v607
      %v665 = vpop.f32.mrf.mxu0
      %v666 = vadd.f32 %v579, %v665
      %v667 = vpop.f32.mrf.mxu0
      %v668 = vpop.f32.mrf.mxu0
      %v669 = vadd.f32 %v579, %v668
      %v670 = vpop.f32.mrf.mxu0
      %671 = vmatprep.mubr.bf16.mxu0 0
      %672 = vmatmul.mubr.bf16.gmra.mxu0 %v610
      %v673 = vpop.f32.mrf.mxu0
      %v674 = vadd.f32 %v579, %v673
      %v675 = vpop.f32.mrf.mxu0
      %v676 = vpop.f32.mrf.mxu0
      %v677 = vadd.f32 %v579, %v676
      %v678 = vpop.f32.mrf.mxu0
      %679 = vmatprep.mubr.bf16.mxu0 0
      %680 = vmatmul.mubr.bf16.gmra.mxu0 %v613
      %v681 = vpop.f32.mrf.mxu0
      %v682 = vadd.f32 %v579, %v681
      %v683 = vpop.f32.mrf.mxu0
      %v684 = vpop.f32.mrf.mxu0
      %v685 = vadd.f32 %v579, %v684
      %v686 = vpop.f32.mrf.mxu0
      %687 = vdwg.mxu0
      %688 = vst.msk [vmem:[%s280] sm:$0xff] %vm599, %v650
      %689 = vst.msk [vmem:[%s280 + $0x8] sm:$0xff] %vm599, %v653
      %690 = vst.msk [vmem:[%s280 + $0x10] sm:$0xff] %vm599, %v658
      %691 = vst.msk [vmem:[%s280 + $0x18] sm:$0xff] %vm599, %v661
      %692 = vst.msk [vmem:[%s280 + $0x20] sm:$0xff] %vm599, %v666
      %693 = vst.msk [vmem:[%s280 + $0x28] sm:$0xff] %vm599, %v669
      %694 = vst.msk [vmem:[%s280 + $0x30] sm:$0xff] %vm599, %v674
      %695 = vst.msk [vmem:[%s280 + $0x38] sm:$0xff] %vm599, %v677
      %696 = vst.msk [vmem:[%s280 + $0x40] sm:$0xff] %vm599, %v682
      %697 = vst.msk [vmem:[%s280 + $0x48] sm:$0xff] %vm599, %v685
      %s698 = smul.u32 10, %s18
      %p699 = scmp.lt.s32.totalorder %s698, 19
      %s700 = scalar_select %p699, %s698, 19
      %s701 = smul.addr %s700, 8
      %s702 = scalar_lea.vmem %s7, %s701
      // Predicated region
      $region49: #{model_builder_forward.5} parent=47 // pred_check
        %p703 = pneg %p188
      $region50: #{model_builder_forward.5} parent=47 // pred_check_branch
        %705 = sbr.rel (%p703) target = $region52
      $region51: #{model_builder_forward.5} parent=47 // pred_region
        %s706 = smul.u32 10, %s18
      $region52: #{model_builder_forward.5} parent=47 // pred_fallthru
        _
    $region48: #{model_builder_forward.5} parent=5 // pred_fallthru
      _
    %p707 = scmp.le.s32.totalorder 2, %s13
    // Predicated region
    $region53: #{model_builder_forward.5} parent=5 // pred_check
      %p708 = pneg %p707
    $region54: #{model_builder_forward.5} parent=5 // pred_check_branch
      %710 = sbr.rel (%p708) target = $region56
    $region55: #{model_builder_forward.5} parent=5 // pred_region
      %s711 = ssub.s32 %s13, 2
      // Predicated region
      $region57: #{model_builder_forward.5} parent=55 // pred_check
        %p712 = pneg %p194
      $region58: #{model_builder_forward.5} parent=55 // pred_check_branch
        %714 = sbr.rel (%p712) target = $region60
      $region59: #{model_builder_forward.5} parent=55 // pred_region
        %s715 = smul.u32 10, %s19
        %p716 = scmp.lt.s32.totalorder %s715, 19
        %s717 = scalar_select %p716, %s715, 19
        %s718 = smul.addr %s717, 8
        %s719 = scalar_lea.vmem %s7, %s718
      $region60: #{model_builder_forward.5} parent=55 // pred_fallthru
        _
    $region56: #{model_builder_forward.5} parent=5 // pred_fallthru
      _
  $region6: #{model_builder_forward.5} parent=0 // loop_footer
    %s17 = sadd.s32 1, %s13
  $region7: #{model_builder_forward.5} parent=0 // loop_footer_branch
    %12 = sbr.rel target = $region3
  $region8: #{model_builder_forward.5} parent=0 // loop_exit
    _

// kernel: model_builder_forward.6
$region0: #{model_builder_forward.6}
  #allocation0 [shape = 'u32[]', space=smem, size = 0x4, offset = 0x4, fixed_abs, tag = 'smem constant byte address 0x4 - core index']
  #allocation1 [shape = 'u32[144,128]{1,0:T(1,128)}', space=vmem, size = 0x12000, scoped, tag = 'internal scratch']
  %s0 = inlined_call_operand.vmem [shape: f32[2,8,8,48], index: 0, kind: input, shape index: {}]
  %s1 = inlined_call_operand.vmem [shape: f32[2,4,4,48], index: 1, kind: input, shape index: {}]
  %s2 = inlined_call_operand.vmem [shape: bf16[48,16], index: 2, kind: input, shape index: {}]
  %s3 = inlined_call_operand.vmem [shape: f32[1,16], index: 3, kind: input, shape index: {}]
  %s4 = inlined_call_operand.vmem [shape: f32[2,5,5,16], index: 4, kind: output, shape index: {}]
  %s5 = sld [smem:[#allocation0]]
  $region49: #{model_builder_forward.6} parent=0
    _
  %s7 = ssub.s32 1, %s5
  %s8 = scalar_select 0, %s7, %s5
  loop: start=0, step=1, limit=4
  $region2: #{model_builder_forward.6} parent=0 // loop_pre_header
    _
  $region3: #{model_builder_forward.6} parent=0 // loop_header
    %s10 = sphi 0, %s14
    %p11 = scmp.ge.s32.totalorder %s10, 4
    %s20 = sphi 0, %s22
    %s23 = sphi 0, %s20
    %s24 = sphi 0, %s23
    %s40 = sphi 0, %s24
    %s46 = sphi 0, %s48
    %s49 = sphi 0, %s46
    %s50 = sphi 0, %s49
    %s66 = sphi 0, %s50
    %s70 = sphi 0, %s70
    %s72 = sphi 0, %s70
    %s73 = sphi 0, %s72
    %s87 = sphi 0, %s73
    %s91 = sphi 0, %s91
    %s93 = sphi 0, %s91
    %s94 = sphi 0, %s93
    %s108 = sphi 0, %s94
    %s114 = sphi 0, %s116
    %s117 = sphi 0, %s114
    %s118 = sphi 0, %s117
    %s134 = sphi 0, %s118
  $region4: #{model_builder_forward.6} parent=0 // loop_header_branch
    %13 = sbr.rel (%p11) target = $region8
  $region5: #{model_builder_forward.6} parent=0 // loop_body
    %s15 = ssub.s32 %s10, 1
    %s16 = ssub.s32 %s10, 2
    %s17 = sadd.s32 %s10, 1
    %s18 = ssub.s32 %s10, %s17
    %p19 = scmp.eq.s32.totalorder %s18, 0
    %s21 = sadd.s32 %s20, 1
    %s22 = scalar_select %p19, %s20, %s21
    %p25 = pneg %p19
    %p26 = scmp.eq.s32.totalorder %s10, 1
    %p27 = por %p25, %p26
    %p28 = scmp.ne.s32.totalorder %s20, %s23
    %p29 = scmp.eq.s32.totalorder %s10, 0
    %p30 = por %p28, %p29
    %p31 = scmp.ne.s32.totalorder %s20, %s23
    %p32 = scmp.eq.s32.totalorder %s15, 1
    %p33 = por %p31, %p32
    %p34 = scmp.ne.s32.totalorder %s23, %s24
    %p35 = scmp.eq.s32.totalorder %s15, 0
    %p36 = por %p34, %p35
    %p37 = scmp.ne.s32.totalorder %s23, %s24
    %p38 = scmp.eq.s32.totalorder %s16, 1
    %p39 = por %p37, %p38
    %p41 = scmp.ne.s32.totalorder %s24, %s40
    %p42 = scmp.eq.s32.totalorder %s16, 0
    %p43 = por %p41, %p42
    %s44 = ssub.s32 %s10, %s17
    %p45 = scmp.eq.s32.totalorder %s44, 0
    %s47 = sadd.s32 %s46, 1
    %s48 = scalar_select %p45, %s46, %s47
    %p51 = pneg %p45
    %p52 = scmp.eq.s32.totalorder %s10, 1
    %p53 = por %p51, %p52
    %p54 = scmp.ne.s32.totalorder %s46, %s49
    %p55 = scmp.eq.s32.totalorder %s10, 0
    %p56 = por %p54, %p55
    %p57 = scmp.ne.s32.totalorder %s46, %s49
    %p58 = scmp.eq.s32.totalorder %s15, 1
    %p59 = por %p57, %p58
    %p60 = scmp.ne.s32.totalorder %s49, %s50
    %p61 = scmp.eq.s32.totalorder %s15, 0
    %p62 = por %p60, %p61
    %p63 = scmp.ne.s32.totalorder %s49, %s50
    %p64 = scmp.eq.s32.totalorder %s16, 1
    %p65 = por %p63, %p64
    %p67 = scmp.ne.s32.totalorder %s50, %s66
    %p68 = scmp.eq.s32.totalorder %s16, 0
    %p69 = por %p67, %p68
    %s71 = sadd.s32 %s70, 1
    %p74 = scmp.eq.s32.totalorder %s10, 1
    %p75 = scmp.ne.s32.totalorder %s70, %s72
    %p76 = scmp.eq.s32.totalorder %s10, 0
    %p77 = por %p75, %p76
    %p78 = scmp.ne.s32.totalorder %s70, %s72
    %p79 = scmp.eq.s32.totalorder %s15, 1
    %p80 = por %p78, %p79
    %p81 = scmp.ne.s32.totalorder %s72, %s73
    %p82 = scmp.eq.s32.totalorder %s15, 0
    %p83 = por %p81, %p82
    %p84 = scmp.ne.s32.totalorder %s72, %s73
    %p85 = scmp.eq.s32.totalorder %s16, 1
    %p86 = por %p84, %p85
    %p88 = scmp.ne.s32.totalorder %s73, %s87
    %p89 = scmp.eq.s32.totalorder %s16, 0
    %p90 = por %p88, %p89
    %s92 = sadd.s32 %s91, 1
    %p95 = scmp.eq.s32.totalorder %s10, 1
    %p96 = scmp.ne.s32.totalorder %s91, %s93
    %p97 = scmp.eq.s32.totalorder %s10, 0
    %p98 = por %p96, %p97
    %p99 = scmp.ne.s32.totalorder %s91, %s93
    %p100 = scmp.eq.s32.totalorder %s15, 1
    %p101 = por %p99, %p100
    %p102 = scmp.ne.s32.totalorder %s93, %s94
    %p103 = scmp.eq.s32.totalorder %s15, 0
    %p104 = por %p102, %p103
    %p105 = scmp.ne.s32.totalorder %s93, %s94
    %p106 = scmp.eq.s32.totalorder %s16, 1
    %p107 = por %p105, %p106
    %p109 = scmp.ne.s32.totalorder %s94, %s108
    %p110 = scmp.eq.s32.totalorder %s16, 0
    %p111 = por %p109, %p110
    %s112 = ssub.s32 %s10, %s17
    %p113 = scmp.eq.s32.totalorder %s112, 0
    %s115 = sadd.s32 %s114, 1
    %s116 = scalar_select %p113, %s114, %s115
    %p119 = pneg %p113
    %p120 = scmp.eq.s32.totalorder %s10, 1
    %p121 = por %p119, %p120
    %p122 = scmp.ne.s32.totalorder %s114, %s117
    %p123 = scmp.eq.s32.totalorder %s10, 0
    %p124 = por %p122, %p123
    %p125 = scmp.ne.s32.totalorder %s114, %s117
    %p126 = scmp.eq.s32.totalorder %s15, 1
    %p127 = por %p125, %p126
    %p128 = scmp.ne.s32.totalorder %s117, %s118
    %p129 = scmp.eq.s32.totalorder %s15, 0
    %p130 = por %p128, %p129
    %p131 = scmp.ne.s32.totalorder %s117, %s118
    %p132 = scmp.eq.s32.totalorder %s16, 1
    %p133 = por %p131, %p132
    %p135 = scmp.ne.s32.totalorder %s118, %s134
    %p136 = scmp.eq.s32.totalorder %s16, 0
    %p137 = por %p135, %p136
    %p138 = scmp.le.s32.totalorder 1, %s10
    %p139 = scmp.lt.s32.totalorder %s10, 3
    %p140 = pnand %p138, %p139
    %p141 = pneg %p140
    // Predicated region
    $region9: #{model_builder_forward.6} parent=5 // pred_check
      _
    $region10: #{model_builder_forward.6} parent=5 // pred_check_branch
      %143 = sbr.rel (%p140) target = $region12
    $region11: #{model_builder_forward.6} parent=5 // pred_region
      %s144 = ssub.s32 %s10, 1
      // Predicated region
      $region13: #{model_builder_forward.6} parent=11 // pred_check
        %p145 = pneg %p83
      $region14: #{model_builder_forward.6} parent=11 // pred_check_branch
        %147 = sbr.rel (%p145) target = $region16
      $region15: #{model_builder_forward.6} parent=11 // pred_region
        _
      $region16: #{model_builder_forward.6} parent=11 // pred_fallthru
        _
      // Predicated region
      $region17: #{model_builder_forward.6} parent=11 // pred_check
        %p148 = pneg %p104
      $region18: #{model_builder_forward.6} parent=11 // pred_check_branch
        %150 = sbr.rel (%p148) target = $region20
      $region19: #{model_builder_forward.6} parent=11 // pred_region
        _
      $region20: #{model_builder_forward.6} parent=11 // pred_fallthru
        _
    $region12: #{model_builder_forward.6} parent=5 // pred_fallthru
      _
    %p151 = scmp.lt.s32.totalorder %s10, 2
    // Predicated region
    $region21: #{model_builder_forward.6} parent=5 // pred_check
      %p152 = pneg %p151
    $region22: #{model_builder_forward.6} parent=5 // pred_check_branch
      %154 = sbr.rel (%p152) target = $region24
    $region23: #{model_builder_forward.6} parent=5 // pred_region
      // Predicated region
      $region25: #{model_builder_forward.6} parent=23 // pred_check
        %p155 = pneg %p30
      $region26: #{model_builder_forward.6} parent=23 // pred_check_branch
        %157 = sbr.rel (%p155) target = $region28
      $region27: #{model_builder_forward.6} parent=23 // pred_region
        %p158 = scmp.lt.s32.totalorder %s10, 1
        %s159 = scalar_select %p158, %s10, 1
        %s160 = smul.addr %s159, 8
        %s161 = smul.addr %s160, 8
        %s162 = scalar_lea.vmem %s0, %s161
      $region28: #{model_builder_forward.6} parent=23 // pred_fallthru
        _
      // Predicated region
      $region29: #{model_builder_forward.6} parent=23 // pred_check
        %p163 = pneg %p56
      $region30: #{model_builder_forward.6} parent=23 // pred_check_branch
        %165 = sbr.rel (%p163) target = $region32
      $region31: #{model_builder_forward.6} parent=23 // pred_region
        %p166 = scmp.lt.s32.totalorder %s10, 1
        %s167 = scalar_select %p166, %s10, 1
        %s168 = smul.addr %s167, 4
        %s169 = smul.addr %s168, 4
        %s170 = scalar_lea.vmem %s1, %s169
      $region32: #{model_builder_forward.6} parent=23 // pred_fallthru
        _
    $region24: #{model_builder_forward.6} parent=5 // pred_fallthru
      _
    %p171 = scmp.le.s32.totalorder 1, %s10
    %p172 = scmp.lt.s32.totalorder %s10, 3
    %p173 = pnand %p171, %p172
    %p174 = pneg %p173
    // Predicated region
    $region33: #{model_builder_forward.6} parent=5 // pred_check
      _
    $region34: #{model_builder_forward.6} parent=5 // pred_check_branch
      %176 = sbr.rel (%p173) target = $region36
    $region35: #{model_builder_forward.6} parent=5 // pred_region
      %s177 = ssub.s32 %s10, 1
      %p178 = scmp.lt.s32.totalorder %s15, 1
      %s179 = scalar_select %p178, %s15, 1
      %s180 = smul.addr %s179, 8
      %s181 = smul.addr %s180, 8
      %s182 = scalar_lea.vmem %s0, %s181
      %p183 = pneg %p36
      %p184 = pneg %p33
      %p185 = scmp.lt.s32.totalorder %s15, 1
      %s186 = scalar_select %p185, %s15, 1
      %s187 = smul.addr %s186, 4
      %s188 = smul.addr %s187, 4
      %s189 = scalar_lea.vmem %s1, %s188
      %p190 = pneg %p62
      %p191 = pneg %p59
      %p192 = pneg %p83
      %p193 = pneg %p80
      %p194 = pneg %p104
      %p195 = pneg %p101
      %p196 = pneg %p130
      %p197 = pneg %p127
      %p198 = scmp.lt.s32.totalorder %s15, 1
      %s199 = scalar_select %p198, %s15, 1
      %s200 = smul.addr %s199, 5
      %s201 = smul.addr %s200, 8
      %s202 = scalar_lea.vmem %s4, %s201
      %p203 = scmp.lt.s32.totalorder %s15, 1
      %s204 = scalar_select %p203, %s15, 1
      %s205 = smul.addr %s204, 8
      %s206 = smul.addr %s205, 8
      %s207 = scalar_lea.vmem %s0, %s206
      %p208 = scmp.lt.s32.totalorder %s15, 1
      %s209 = scalar_select %p208, %s15, 1
      %s210 = smul.addr %s209, 4
      %s211 = smul.addr %s210, 4
      %s212 = scalar_lea.vmem %s1, %s211
      %p213 = scmp.lt.s32.totalorder %s15, 1
      %s214 = scalar_select %p213, %s15, 1
      %s215 = smul.addr %s214, 5
      %s216 = smul.addr %s215, 8
      %s217 = scalar_lea.vmem %s4, %s216
      %v219 = vld [vmem:[%s207] sm:$0xff]
      %v220 = vld [vmem:[%s207 + $0x8] sm:$0xff]
      %v221 = vld [vmem:[%s207 + $0x10] sm:$0xff]
      %v222 = vld [vmem:[%s207 + $0x18] sm:$0xff]
      %v223 = vld [vmem:[%s207 + $0x20] sm:$0xff]
      %v224 = vld [vmem:[%s207 + $0x28] sm:$0xff]
      %v225 = vld [vmem:[%s207 + $0x30] sm:$0xff]
      %v226 = vld [vmem:[%s207 + $0x38] sm:$0xff]
      %v227 = vld [vmem:[%s212] sm:$0xf]
      %v228 = vld [vmem:[%s212 + $0x4] sm:$0xf]
      %v229 = vld [vmem:[%s212 + $0x8] sm:$0xf]
      %v230 = vld [vmem:[%s212 + $0xc] sm:$0xf]
      %v231 = vlaneseq
      %v232 = vshrl.u32 %v231, 7
      %v233 = vsub.s32 0, %v232
      %v234 = vrot.slane %v227, %v233
      %v235 = vmul.f32 %v219, %v234
      %v236 = vmul.f32 %v220, %v234
      %v237 = vmul.f32 %v221, %v234
      %v238 = vmul.f32 %v222, %v234
      %v239 = vmul.f32 %v223, %v234
      %v240 = vadd.f32 %v235, 0.0
      %v241 = vadd.f32 %v236, 0.0
      %v242 = vadd.f32 %v237, 0.0
      %v243 = vadd.f32 %v238, 0.0
      %v244 = vadd.f32 %v239, 0.0
      %v245 = vlaneseq
      %v246 = vshrl.u32 %v245, 7
      %v247 = vsub.s32 1, %v246
      %v248 = vrot.slane %v227, %v247
      %v249 = vmul.f32 %v219, %v248
      %v250 = vmul.f32 %v220, %v248
      %v251 = vmul.f32 %v221, %v248
      %v252 = vmul.f32 %v222, %v248
      %v253 = vmul.f32 %v223, %v248
      %v259 = vrot.slane %v249, 1
      %v260 = vrot.slane %v250, 1
      %v261 = vrot.slane %v251, 1
      %v262 = vrot.slane %v252, 1
      %v263 = vrot.slane %v253, 1
      %v269 = vadd.f32 %v240, %v259
      %v270 = vadd.f32 %v241, %v260
      %v271 = vadd.f32 %v242, %v261
      %v272 = vadd.f32 %v243, %v262
      %v273 = vadd.f32 %v244, %v263
      %v274 = vlaneseq
      %v275 = vshrl.u32 %v274, 7
      %v276 = vsub.s32 2, %v275
      %v277 = vrot.slane %v227, %v276
      %v278 = vmul.f32 %v219, %v277
      %v279 = vmul.f32 %v220, %v277
      %v280 = vmul.f32 %v221, %v277
      %v281 = vmul.f32 %v222, %v277
      %v282 = vmul.f32 %v223, %v277
      %v288 = vrot.slane %v278, 2
      %v289 = vrot.slane %v279, 2
      %v290 = vrot.slane %v280, 2
      %v291 = vrot.slane %v281, 2
      %v292 = vrot.slane %v282, 2
      %v298 = vadd.f32 %v269, %v288
      %v299 = vadd.f32 %v270, %v289
      %v300 = vadd.f32 %v271, %v290
      %v301 = vadd.f32 %v272, %v291
      %v302 = vadd.f32 %v273, %v292
      %v303 = vlaneseq
      %v304 = vshrl.u32 %v303, 7
      %v305 = vsub.s32 3, %v304
      %v306 = vrot.slane %v227, %v305
      %v307 = vmul.f32 %v219, %v306
      %v308 = vmul.f32 %v220, %v306
      %v309 = vmul.f32 %v221, %v306
      %v310 = vmul.f32 %v222, %v306
      %v311 = vmul.f32 %v223, %v306
      %v317 = vrot.slane %v307, 3
      %v318 = vrot.slane %v308, 3
      %v319 = vrot.slane %v309, 3
      %v320 = vrot.slane %v310, 3
      %v321 = vrot.slane %v311, 3
      %v327 = vadd.f32 %v298, %v317
      %v328 = vadd.f32 %v299, %v318
      %v329 = vadd.f32 %v300, %v319
      %v330 = vadd.f32 %v301, %v320
      %v331 = vadd.f32 %v302, %v321
      %v332 = vlaneseq
      %v333 = vshrl.u32 %v332, 7
      %v334 = vsub.s32 0, %v333
      %v335 = vrot.slane %v228, %v334
      %v336 = vmul.f32 %v220, %v335
      %v337 = vmul.f32 %v221, %v335
      %v338 = vmul.f32 %v222, %v335
      %v339 = vmul.f32 %v223, %v335
      %v340 = vmul.f32 %v224, %v335
      %v341 = vadd.f32 %v327, %v336
      %v342 = vadd.f32 %v328, %v337
      %v343 = vadd.f32 %v329, %v338
      %v344 = vadd.f32 %v330, %v339
      %v345 = vadd.f32 %v331, %v340
      %v346 = vlaneseq
      %v347 = vshrl.u32 %v346, 7
      %v348 = vsub.s32 1, %v347
      %v349 = vrot.slane %v228, %v348
      %v350 = vmul.f32 %v220, %v349
      %v351 = vmul.f32 %v221, %v349
      %v352 = vmul.f32 %v222, %v349
      %v353 = vmul.f32 %v223, %v349
      %v354 = vmul.f32 %v224, %v349
      %v360 = vrot.slane %v350, 1
      %v361 = vrot.slane %v351, 1
      %v362 = vrot.slane %v352, 1
      %v363 = vrot.slane %v353, 1
      %v364 = vrot.slane %v354, 1
      %v370 = vadd.f32 %v341, %v360
      %v371 = vadd.f32 %v342, %v361
      %v372 = vadd.f32 %v343, %v362
      %v373 = vadd.f32 %v344, %v363
      %v374 = vadd.f32 %v345, %v364
      %v375 = vlaneseq
      %v376 = vshrl.u32 %v375, 7
      %v377 = vsub.s32 2, %v376
      %v378 = vrot.slane %v228, %v377
      %v379 = vmul.f32 %v220, %v378
      %v380 = vmul.f32 %v221, %v378
      %v381 = vmul.f32 %v222, %v378
      %v382 = vmul.f32 %v223, %v378
      %v383 = vmul.f32 %v224, %v378
      %v389 = vrot.slane %v379, 2
      %v390 = vrot.slane %v380, 2
      %v391 = vrot.slane %v381, 2
      %v392 = vrot.slane %v382, 2
      %v393 = vrot.slane %v383, 2
      %v399 = vadd.f32 %v370, %v389
      %v400 = vadd.f32 %v371, %v390
      %v401 = vadd.f32 %v372, %v391
      %v402 = vadd.f32 %v373, %v392
      %v403 = vadd.f32 %v374, %v393
      %v404 = vlaneseq
      %v405 = vshrl.u32 %v404, 7
      %v406 = vsub.s32 3, %v405
      %v407 = vrot.slane %v228, %v406
      %v408 = vmul.f32 %v220, %v407
      %v409 = vmul.f32 %v221, %v407
      %v410 = vmul.f32 %v222, %v407
      %v411 = vmul.f32 %v223, %v407
      %v412 = vmul.f32 %v224, %v407
      %v418 = vrot.slane %v408, 3
      %v419 = vrot.slane %v409, 3
      %v420 = vrot.slane %v410, 3
      %v421 = vrot.slane %v411, 3
      %v422 = vrot.slane %v412, 3
      %v428 = vadd.f32 %v399, %v418
      %v429 = vadd.f32 %v400, %v419
      %v430 = vadd.f32 %v401, %v420
      %v431 = vadd.f32 %v402, %v421
      %v432 = vadd.f32 %v403, %v422
      %v433 = vlaneseq
      %v434 = vshrl.u32 %v433, 7
      %v435 = vsub.s32 0, %v434
      %v436 = vrot.slane %v229, %v435
      %v437 = vmul.f32 %v221, %v436
      %v438 = vmul.f32 %v222, %v436
      %v439 = vmul.f32 %v223, %v436
      %v440 = vmul.f32 %v224, %v436
      %v441 = vmul.f32 %v225, %v436
      %v442 = vadd.f32 %v428, %v437
      %v443 = vadd.f32 %v429, %v438
      %v444 = vadd.f32 %v430, %v439
      %v445 = vadd.f32 %v431, %v440
      %v446 = vadd.f32 %v432, %v441
      %v447 = vlaneseq
      %v448 = vshrl.u32 %v447, 7
      %v449 = vsub.s32 1, %v448
      %v450 = vrot.slane %v229, %v449
      %v451 = vmul.f32 %v221, %v450
      %v452 = vmul.f32 %v222, %v450
      %v453 = vmul.f32 %v223, %v450
      %v454 = vmul.f32 %v224, %v450
      %v455 = vmul.f32 %v225, %v450
      %v461 = vrot.slane %v451, 1
      %v462 = vrot.slane %v452, 1
      %v463 = vrot.slane %v453, 1
      %v464 = vrot.slane %v454, 1
      %v465 = vrot.slane %v455, 1
      %v471 = vadd.f32 %v442, %v461
      %v472 = vadd.f32 %v443, %v462
      %v473 = vadd.f32 %v444, %v463
      %v474 = vadd.f32 %v445, %v464
      %v475 = vadd.f32 %v446, %v465
      %v476 = vlaneseq
      %v477 = vshrl.u32 %v476, 7
      %v478 = vsub.s32 2, %v477
      %v479 = vrot.slane %v229, %v478
      %v480 = vmul.f32 %v221, %v479
      %v481 = vmul.f32 %v222, %v479
      %v482 = vmul.f32 %v223, %v479
      %v483 = vmul.f32 %v224, %v479
      %v484 = vmul.f32 %v225, %v479
      %v490 = vrot.slane %v480, 2
      %v491 = vrot.slane %v481, 2
      %v492 = vrot.slane %v482, 2
      %v493 = vrot.slane %v483, 2
      %v494 = vrot.slane %v484, 2
      %v500 = vadd.f32 %v471, %v490
      %v501 = vadd.f32 %v472, %v491
      %v502 = vadd.f32 %v473, %v492
      %v503 = vadd.f32 %v474, %v493
      %v504 = vadd.f32 %v475, %v494
      %v505 = vlaneseq
      %v506 = vshrl.u32 %v505, 7
      %v507 = vsub.s32 3, %v506
      %v508 = vrot.slane %v229, %v507
      %v509 = vmul.f32 %v221, %v508
      %v510 = vmul.f32 %v222, %v508
      %v511 = vmul.f32 %v223, %v508
      %v512 = vmul.f32 %v224, %v508
      %v513 = vmul.f32 %v225, %v508
      %v519 = vrot.slane %v509, 3
      %v520 = vrot.slane %v510, 3
      %v521 = vrot.slane %v511, 3
      %v522 = vrot.slane %v512, 3
      %v523 = vrot.slane %v513, 3
      %v529 = vadd.f32 %v500, %v519
      %v530 = vadd.f32 %v501, %v520
      %v531 = vadd.f32 %v502, %v521
      %v532 = vadd.f32 %v503, %v522
      %v533 = vadd.f32 %v504, %v523
      %v534 = vlaneseq
      %v535 = vshrl.u32 %v534, 7
      %v536 = vsub.s32 0, %v535
      %v537 = vrot.slane %v230, %v536
      %v538 = vmul.f32 %v222, %v537
      %v539 = vmul.f32 %v223, %v537
      %v540 = vmul.f32 %v224, %v537
      %v541 = vmul.f32 %v225, %v537
      %v542 = vmul.f32 %v226, %v537
      %v543 = vadd.f32 %v529, %v538
      %v544 = vadd.f32 %v530, %v539
      %v545 = vadd.f32 %v531, %v540
      %v546 = vadd.f32 %v532, %v541
      %v547 = vadd.f32 %v533, %v542
      %v548 = vlaneseq
      %v549 = vshrl.u32 %v548, 7
      %v550 = vsub.s32 1, %v549
      %v551 = vrot.slane %v230, %v550
      %v552 = vmul.f32 %v222, %v551
      %v553 = vmul.f32 %v223, %v551
      %v554 = vmul.f32 %v224, %v551
      %v555 = vmul.f32 %v225, %v551
      %v556 = vmul.f32 %v226, %v551
      %v562 = vrot.slane %v552, 1
      %v563 = vrot.slane %v553, 1
      %v564 = vrot.slane %v554, 1
      %v565 = vrot.slane %v555, 1
      %v566 = vrot.slane %v556, 1
      %v572 = vadd.f32 %v543, %v562
      %v573 = vadd.f32 %v544, %v563
      %v574 = vadd.f32 %v545, %v564
      %v575 = vadd.f32 %v546, %v565
      %v576 = vadd.f32 %v547, %v566
      %v577 = vlaneseq
      %v578 = vshrl.u32 %v577, 7
      %v579 = vsub.s32 2, %v578
      %v580 = vrot.slane %v230, %v579
      %v581 = vmul.f32 %v222, %v580
      %v582 = vmul.f32 %v223, %v580
      %v583 = vmul.f32 %v224, %v580
      %v584 = vmul.f32 %v225, %v580
      %v585 = vmul.f32 %v226, %v580
      %v591 = vrot.slane %v581, 2
      %v592 = vrot.slane %v582, 2
      %v593 = vrot.slane %v583, 2
      %v594 = vrot.slane %v584, 2
      %v595 = vrot.slane %v585, 2
      %v601 = vadd.f32 %v572, %v591
      %v602 = vadd.f32 %v573, %v592
      %v603 = vadd.f32 %v574, %v593
      %v604 = vadd.f32 %v575, %v594
      %v605 = vadd.f32 %v576, %v595
      %v606 = vlaneseq
      %v607 = vshrl.u32 %v606, 7
      %v608 = vsub.s32 3, %v607
      %v609 = vrot.slane %v230, %v608
      %v610 = vmul.f32 %v222, %v609
      %v611 = vmul.f32 %v223, %v609
      %v612 = vmul.f32 %v224, %v609
      %v613 = vmul.f32 %v225, %v609
      %v614 = vmul.f32 %v226, %v609
      %v620 = vrot.slane %v610, 3
      %v621 = vrot.slane %v611, 3
      %v622 = vrot.slane %v612, 3
      %v623 = vrot.slane %v613, 3
      %v624 = vrot.slane %v614, 3
      %v630 = vadd.f32 %v601, %v620
      %v631 = vadd.f32 %v602, %v621
      %v632 = vadd.f32 %v603, %v622
      %v633 = vadd.f32 %v604, %v623
      %v634 = vadd.f32 %v605, %v624
      %v640 = vcombine.high %v630, %v630
      %v642 = vunpack.c.l.s4 1966171168
      %v643 = vunpack.c.0.s8 %v642
      %v644 = vlaneseq
      %v645 = vshrl.u32 %v644, 7
      %v646 = vsub.s32 %v643, %v645
      %v647 = vrot.slane %v630, %v646
      %v649 = vunpack.c.l.s4 1966171168
      %v650 = vunpack.c.0.s8 %v649
      %v651 = vlaneseq
      %v652 = vshrl.u32 %v651, 7
      %v653 = vsub.s32 %v650, %v652
      %v654 = vrot.slane %v640, %v653
      %v655 = vcombine.high %v647, %v647
      %v657 = vunpack.c.l.s4 1966171168
      %v658 = vunpack.c.0.s8 %v657
      %v659 = vlaneseq
      %v660 = vshrl.u32 %v659, 7
      %v661 = vsub.s32 %v658, %v660
      %v662 = vrot.slane %v647, %v661
      %v664 = vunpack.c.l.s4 1966171168
      %v665 = vunpack.c.0.s8 %v664
      %v666 = vlaneseq
      %v667 = vshrl.u32 %v666, 7
      %v668 = vsub.s32 %v665, %v667
      %v669 = vrot.slane %v654, %v668
      %v671 = vunpack.c.l.s4 1966171168
      %v672 = vunpack.c.0.s8 %v671
      %v673 = vlaneseq
      %v674 = vshrl.u32 %v673, 7
      %v675 = vsub.s32 %v672, %v674
      %v676 = vrot.slane %v655, %v675
      %v677 = vcombine.high %v662, %v662
      %v678 = vcombine.high %v676, %v676
      %v679 = vcombine.high %v631, %v631
      %v681 = vunpack.c.l.s4 1966171168
      %v682 = vunpack.c.0.s8 %v681
      %v683 = vlaneseq
      %v684 = vshrl.u32 %v683, 7
      %v685 = vsub.s32 %v682, %v684
      %v686 = vrot.slane %v631, %v685
      %v688 = vunpack.c.l.s4 1966171168
      %v689 = vunpack.c.0.s8 %v688
      %v690 = vlaneseq
      %v691 = vshrl.u32 %v690, 7
      %v692 = vsub.s32 %v689, %v691
      %v693 = vrot.slane %v679, %v692
      %v694 = vcombine.high %v686, %v686
      %v696 = vunpack.c.l.s4 1966171168
      %v697 = vunpack.c.0.s8 %v696
      %v698 = vlaneseq
      %v699 = vshrl.u32 %v698, 7
      %v700 = vsub.s32 %v697, %v699
      %v701 = vrot.slane %v686, %v700
      %v703 = vunpack.c.l.s4 1966171168
      %v704 = vunpack.c.0.s8 %v703
      %v705 = vlaneseq
      %v706 = vshrl.u32 %v705, 7
      %v707 = vsub.s32 %v704, %v706
      %v708 = vrot.slane %v693, %v707
      %v710 = vunpack.c.l.s4 1966171168
      %v711 = vunpack.c.0.s8 %v710
      %v712 = vlaneseq
      %v713 = vshrl.u32 %v712, 7
      %v714 = vsub.s32 %v711, %v713
      %v715 = vrot.slane %v694, %v714
      %v716 = vcombine.high %v701, %v701
      %v717 = vcombine.high %v715, %v715
      %v718 = vcombine.high %v632, %v632
      %v720 = vunpack.c.l.s4 1966171168
      %v721 = vunpack.c.0.s8 %v720
      %v722 = vlaneseq
      %v723 = vshrl.u32 %v722, 7
      %v724 = vsub.s32 %v721, %v723
      %v725 = vrot.slane %v632, %v724
      %v727 = vunpack.c.l.s4 1966171168
      %v728 = vunpack.c.0.s8 %v727
      %v729 = vlaneseq
      %v730 = vshrl.u32 %v729, 7
      %v731 = vsub.s32 %v728, %v730
      %v732 = vrot.slane %v718, %v731
      %v733 = vcombine.high %v725, %v725
      %v735 = vunpack.c.l.s4 1966171168
      %v736 = vunpack.c.0.s8 %v735
      %v737 = vlaneseq
      %v738 = vshrl.u32 %v737, 7
      %v739 = vsub.s32 %v736, %v738
      %v740 = vrot.slane %v725, %v739
      %v742 = vunpack.c.l.s4 1966171168
      %v743 = vunpack.c.0.s8 %v742
      %v744 = vlaneseq
      %v745 = vshrl.u32 %v744, 7
      %v746 = vsub.s32 %v743, %v745
      %v747 = vrot.slane %v732, %v746
      %v749 = vunpack.c.l.s4 1966171168
      %v750 = vunpack.c.0.s8 %v749
      %v751 = vlaneseq
      %v752 = vshrl.u32 %v751, 7
      %v753 = vsub.s32 %v750, %v752
      %v754 = vrot.slane %v733, %v753
      %v755 = vcombine.high %v740, %v740
      %v756 = vcombine.high %v754, %v754
      %v757 = vcombine.high %v633, %v633
      %v759 = vunpack.c.l.s4 1966171168
      %v760 = vunpack.c.0.s8 %v759
      %v761 = vlaneseq
      %v762 = vshrl.u32 %v761, 7
      %v763 = vsub.s32 %v760, %v762
      %v764 = vrot.slane %v633, %v763
      %v766 = vunpack.c.l.s4 1966171168
      %v767 = vunpack.c.0.s8 %v766
      %v768 = vlaneseq
      %v769 = vshrl.u32 %v768, 7
      %v770 = vsub.s32 %v767, %v769
      %v771 = vrot.slane %v757, %v770
      %v772 = vcombine.high %v764, %v764
      %v774 = vunpack.c.l.s4 1966171168
      %v775 = vunpack.c.0.s8 %v774
      %v776 = vlaneseq
      %v777 = vshrl.u32 %v776, 7
      %v778 = vsub.s32 %v775, %v777
      %v779 = vrot.slane %v764, %v778
      %v781 = vunpack.c.l.s4 1966171168
      %v782 = vunpack.c.0.s8 %v781
      %v783 = vlaneseq
      %v784 = vshrl.u32 %v783, 7
      %v785 = vsub.s32 %v782, %v784
      %v786 = vrot.slane %v771, %v785
      %v788 = vunpack.c.l.s4 1966171168
      %v789 = vunpack.c.0.s8 %v788
      %v790 = vlaneseq
      %v791 = vshrl.u32 %v790, 7
      %v792 = vsub.s32 %v789, %v791
      %v793 = vrot.slane %v772, %v792
      %v794 = vcombine.high %v779, %v779
      %v795 = vcombine.high %v793, %v793
      %v796 = vcombine.high %v634, %v634
      %v798 = vunpack.c.l.s4 1966171168
      %v799 = vunpack.c.0.s8 %v798
      %v800 = vlaneseq
      %v801 = vshrl.u32 %v800, 7
      %v802 = vsub.s32 %v799, %v801
      %v803 = vrot.slane %v634, %v802
      %v805 = vunpack.c.l.s4 1966171168
      %v806 = vunpack.c.0.s8 %v805
      %v807 = vlaneseq
      %v808 = vshrl.u32 %v807, 7
      %v809 = vsub.s32 %v806, %v808
      %v810 = vrot.slane %v796, %v809
      %v811 = vcombine.high %v803, %v803
      %v813 = vunpack.c.l.s4 1966171168
      %v814 = vunpack.c.0.s8 %v813
      %v815 = vlaneseq
      %v816 = vshrl.u32 %v815, 7
      %v817 = vsub.s32 %v814, %v816
      %v818 = vrot.slane %v803, %v817
      %v820 = vunpack.c.l.s4 1966171168
      %v821 = vunpack.c.0.s8 %v820
      %v822 = vlaneseq
      %v823 = vshrl.u32 %v822, 7
      %v824 = vsub.s32 %v821, %v823
      %v825 = vrot.slane %v810, %v824
      %v827 = vunpack.c.l.s4 1966171168
      %v828 = vunpack.c.0.s8 %v827
      %v829 = vlaneseq
      %v830 = vshrl.u32 %v829, 7
      %v831 = vsub.s32 %v828, %v830
      %v832 = vrot.slane %v811, %v831
      %v833 = vcombine.high %v818, %v818
      %v834 = vcombine.high %v832, %v832
      %v835 = vcombine.low %v662, %v676
      %v836 = vcombine.low %v677, %v678
      %v837 = vcombine.low %v669, %v701
      %v838 = vcombine.low %v715, %v716
      %v840 = vunpack.c.l.s4 1966171168
      %v841 = vunpack.c.0.s8 %v840
      %v842 = vlaneseq
      %v843 = vshrl.u32 %v842, 7
      %v844 = vsub.s32 %v841, %v843
      %v845 = vrot.slane %v835, %v844
      %v847 = vunpack.c.l.s4 1966171168
      %v848 = vunpack.c.0.s8 %v847
      %v849 = vlaneseq
      %v850 = vshrl.u32 %v849, 7
      %v851 = vsub.s32 %v848, %v850
      %v852 = vrot.slane %v836, %v851
      %v854 = vunpack.c.l.s4 1966171168
      %v855 = vunpack.c.0.s8 %v854
      %v856 = vlaneseq
      %v857 = vshrl.u32 %v856, 7
      %v858 = vsub.s32 %v855, %v857
      %v859 = vrot.slane %v837, %v858
      %v861 = vunpack.c.l.s4 1966171168
      %v862 = vunpack.c.0.s8 %v861
      %v863 = vlaneseq
      %v864 = vshrl.u32 %v863, 7
      %v865 = vsub.s32 %v862, %v864
      %v866 = vrot.slane %v838, %v865
      %v867 = vcombine.low %v845, %v852
      %v868 = vcombine.low %v859, %v866
      %v870 = vunpack.c.l.s4 1966171168
      %v871 = vunpack.c.0.s8 %v870
      %v872 = vlaneseq
      %v873 = vshrl.u32 %v872, 7
      %v874 = vsub.s32 %v871, %v873
      %v875 = vrot.slane %v867, %v874
      %v877 = vunpack.c.l.s4 1966171168
      %v878 = vunpack.c.0.s8 %v877
      %v879 = vlaneseq
      %v880 = vshrl.u32 %v879, 7
      %v881 = vsub.s32 %v878, %v880
      %v882 = vrot.slane %v868, %v881
      %v883 = vcombine.low %v875, %v882
      %v884 = vcombine.low %v717, %v708
      %v885 = vcombine.low %v740, %v754
      %v886 = vcombine.low %v755, %v756
      %v887 = vcombine.low %v747, %v779
      %v889 = vunpack.c.l.s4 1966171168
      %v890 = vunpack.c.0.s8 %v889
      %v891 = vlaneseq
      %v892 = vshrl.u32 %v891, 7
      %v893 = vsub.s32 %v890, %v892
      %v894 = vrot.slane %v884, %v893
      %v896 = vunpack.c.l.s4 1966171168
      %v897 = vunpack.c.0.s8 %v896
      %v898 = vlaneseq
      %v899 = vshrl.u32 %v898, 7
      %v900 = vsub.s32 %v897, %v899
      %v901 = vrot.slane %v885, %v900
      %v903 = vunpack.c.l.s4 1966171168
      %v904 = vunpack.c.0.s8 %v903
      %v905 = vlaneseq
      %v906 = vshrl.u32 %v905, 7
      %v907 = vsub.s32 %v904, %v906
      %v908 = vrot.slane %v886, %v907
      %v910 = vunpack.c.l.s4 1966171168
      %v911 = vunpack.c.0.s8 %v910
      %v912 = vlaneseq
      %v913 = vshrl.u32 %v912, 7
      %v914 = vsub.s32 %v911, %v913
      %v915 = vrot.slane %v887, %v914
      %v916 = vcombine.low %v894, %v901
      %v917 = vcombine.low %v908, %v915
      %v919 = vunpack.c.l.s4 1966171168
      %v920 = vunpack.c.0.s8 %v919
      %v921 = vlaneseq
      %v922 = vshrl.u32 %v921, 7
      %v923 = vsub.s32 %v920, %v922
      %v924 = vrot.slane %v916, %v923
      %v926 = vunpack.c.l.s4 1966171168
      %v927 = vunpack.c.0.s8 %v926
      %v928 = vlaneseq
      %v929 = vshrl.u32 %v928, 7
      %v930 = vsub.s32 %v927, %v929
      %v931 = vrot.slane %v917, %v930
      %v932 = vcombine.low %v924, %v931
      %v933 = vcombine.low %v793, %v794
      %v934 = vcombine.low %v795, %v786
      %v935 = vcombine.low %v818, %v832
      %v936 = vcombine.low %v833, %v834
      %v938 = vunpack.c.l.s4 1966171168
      %v939 = vunpack.c.0.s8 %v938
      %v940 = vlaneseq
      %v941 = vshrl.u32 %v940, 7
      %v942 = vsub.s32 %v939, %v941
      %v943 = vrot.slane %v933, %v942
      %v945 = vunpack.c.l.s4 1966171168
      %v946 = vunpack.c.0.s8 %v945
      %v947 = vlaneseq
      %v948 = vshrl.u32 %v947, 7
      %v949 = vsub.s32 %v946, %v948
      %v950 = vrot.slane %v934, %v949
      %v952 = vunpack.c.l.s4 1966171168
      %v953 = vunpack.c.0.s8 %v952
      %v954 = vlaneseq
      %v955 = vshrl.u32 %v954, 7
      %v956 = vsub.s32 %v953, %v955
      %v957 = vrot.slane %v935, %v956
      %v959 = vunpack.c.l.s4 1966171168
      %v960 = vunpack.c.0.s8 %v959
      %v961 = vlaneseq
      %v962 = vshrl.u32 %v961, 7
      %v963 = vsub.s32 %v960, %v962
      %v964 = vrot.slane %v936, %v963
      %v965 = vcombine.low %v943, %v950
      %v966 = vcombine.low %v957, %v964
      %v968 = vunpack.c.l.s4 1966171168
      %v969 = vunpack.c.0.s8 %v968
      %v970 = vlaneseq
      %v971 = vshrl.u32 %v970, 7
      %v972 = vsub.s32 %v969, %v971
      %v973 = vrot.slane %v965, %v972
      %v975 = vunpack.c.l.s4 1966171168
      %v976 = vunpack.c.0.s8 %v975
      %v977 = vlaneseq
      %v978 = vshrl.u32 %v977, 7
      %v979 = vsub.s32 %v976, %v978
      %v980 = vrot.slane %v966, %v979
      %v981 = vcombine.low %v973, %v980
      %v983 = vunpack.c.l.s4 1966171168
      %v984 = vunpack.c.0.s8 %v983
      %v985 = vlaneseq
      %v986 = vshrl.u32 %v985, 7
      %v987 = vsub.s32 %v984, %v986
      %v988 = vrot.slane %v825, %v987
      %v990 = vunpack.c.l.s4 1966171168
      %v991 = vunpack.c.0.s8 %v990
      %v992 = vlaneseq
      %v993 = vshrl.u32 %v992, 7
      %v994 = vsub.s32 %v991, %v993
      %v995 = vrot.slane %v988, %v994
      %v1000 = vpack.c.bf16 %v932, %v883
      %v1001 = vpack.c.bf16 %v995, %v981
      %v1002 = vld [vmem:[%s2] sm:$0xf]
      %v1003 = vld [vmem:[%s2 + $0x4] sm:$0xf]
      %v1004 = vld [vmem:[%s2 + $0x8] sm:$0xf]
      %v1005 = vld [vmem:[%s2 + $0xc] sm:$0xf]
      %v1006 = vld [vmem:[%s2 + $0x10] sm:$0xf]
      %v1007 = vld [vmem:[%s2 + $0x14] sm:$0xf]
      %v1008 = vld [vmem:[%s3] sm:$0x1]
      %v1010 = vlaneseq
      %v1011 = vshrl.u32 %v1010, 7
      %v1012 = vsub.s32 0, %v1011
      %v1013 = vrot.slane %v1008, %v1012
      %v1021 = vunpack.c.l.b16 %v1002
      %v1022 = vunpack.c.l.b16 %v1003
      %v1023 = vunpack.c.l.b16 %v1004
      %v1024 = vunpack.c.l.b16 %v1005
      %v1025 = vunpack.c.l.b16 %v1006
      %v1026 = vunpack.c.l.b16 %v1007
      %v1027 = vpack.c.b16 %v1022, %v1021
      %v1028 = vpack.c.b16 %v1024, %v1023
      %v1029 = vpack.c.b16 %v1026, %v1025
      %vm1033 = vcmask 392192
      %v1035 = vsel %vm1033, %v1000, 0
      %v1038 = vsel %vm1033, %v1001, 0
      %1040 = vmatprep.subr.bf16.mxu0 0
      %1041 = vmatpush1.bf16.msra.mxu0 0
      %1042 = vmatprep.subr.bf16.mxu0 0
      %1043 = vmatpush1.bf16.msra.mxu0 0
      %1044 = vmatprep.subr.bf16.mxu0 0
      %1045 = vmatpush1.bf16.msra.mxu0 0
      %1046 = vmatprep.subr.bf16.mxu0 0
      %1047 = vmatpush1.bf16.msra.mxu0 0
      %1048 = vmatprep.subr.bf16.mxu0 0
      %1049 = vmatpush1.bf16.msra.mxu0 0
      %1050 = vmatprep.subr.bf16.mxu0 0
      %1051 = vmatpush1.bf16.msra.mxu0 %v1029
      %1052 = vmatprep.subr.bf16.mxu0 0
      %1053 = vmatpush1.bf16.msra.mxu0 %v1028
      %1054 = vmatprep.subr.bf16.mxu0 0
      %1055 = vmatpush1.bf16.msra.mxu0 %v1027
      %1056 = vmatprep.subr.bf16.mxu0 0
      %1057 = vmatpush2.bf16.msra.mxu0 0
      %1058 = vmatprep.subr.bf16.mxu0 0
      %1059 = vmatpush2.bf16.msra.mxu0 0
      %1060 = vmatprep.subr.bf16.mxu0 0
      %1061 = vmatpush2.bf16.msra.mxu0 0
      %1062 = vmatprep.subr.bf16.mxu0 0
      %1063 = vmatpush2.bf16.msra.mxu0 0
      %1064 = vmatprep.subr.bf16.mxu0 0
      %1065 = vmatpush2.bf16.msra.mxu0 0
      %1066 = vmatprep.subr.bf16.mxu0 0
      %1067 = vmatpush2.bf16.msra.mxu0 0
      %1068 = vmatprep.subr.bf16.mxu0 0
      %1069 = vmatpush2.bf16.msra.mxu0 0
      %1070 = vmatprep.subr.bf16.mxu0 0
      %1071 = vmatpush2.bf16.msra.mxu0 0
      %1072 = vmatprep.mubr.bf16.mxu0 0
      %1073 = vmatmul.mubr.bf16.gmra.mxu0 %v1035
      %v1074 = vpop.f32.mrf.mxu0
      %v1075 = vadd.f32 %v1013, %v1074
      %v1076 = vpop.f32.mrf.mxu0
      %v1077 = vpop.f32.mrf.mxu0
      %v1078 = vadd.f32 %v1013, %v1077
      %v1079 = vpop.f32.mrf.mxu0
      %1080 = vmatprep.mubr.bf16.mxu0 0
      %1081 = vmatmul.mubr.bf16.gmra.mxu0 %v1038
      %v1082 = vpop.f32.mrf.mxu0
      %v1083 = vadd.f32 %v1013, %v1082
      %v1084 = vpop.f32.mrf.mxu0
      %v1085 = vpop.f32.mrf.mxu0
      %v1086 = vadd.f32 %v1013, %v1085
      %v1087 = vpop.f32.mrf.mxu0
      %1088 = vdwg.mxu0
      %v1093 = vcombine.high %v1075, %v1075
      %v1095 = vunpack.c.l.s4 1966171168
      %v1096 = vunpack.c.0.s8 %v1095
      %v1097 = vlaneseq
      %v1098 = vshrl.u32 %v1097, 7
      %v1099 = vsub.s32 %v1096, %v1098
      %v1100 = vrot.slane %v1075, %v1099
      %v1102 = vunpack.c.l.s4 1966171168
      %v1103 = vunpack.c.0.s8 %v1102
      %v1104 = vlaneseq
      %v1105 = vshrl.u32 %v1104, 7
      %v1106 = vsub.s32 %v1103, %v1105
      %v1107 = vrot.slane %v1093, %v1106
      %v1108 = vcombine.high %v1100, %v1100
      %v1109 = vcombine.high %v1107, %v1107
      %v1111 = vunpack.c.l.s4 1966171168
      %v1112 = vunpack.c.0.s8 %v1111
      %v1113 = vlaneseq
      %v1114 = vshrl.u32 %v1113, 7
      %v1115 = vsub.s32 %v1112, %v1114
      %v1116 = vrot.slane %v1100, %v1115
      %v1118 = vunpack.c.l.s4 1966171168
      %v1119 = vunpack.c.0.s8 %v1118
      %v1120 = vlaneseq
      %v1121 = vshrl.u32 %v1120, 7
      %v1122 = vsub.s32 %v1119, %v1121
      %v1123 = vrot.slane %v1107, %v1122
      %v1125 = vunpack.c.l.s4 1966171168
      %v1126 = vunpack.c.0.s8 %v1125
      %v1127 = vlaneseq
      %v1128 = vshrl.u32 %v1127, 7
      %v1129 = vsub.s32 %v1126, %v1128
      %v1130 = vrot.slane %v1108, %v1129
      %v1132 = vunpack.c.l.s4 1966171168
      %v1133 = vunpack.c.0.s8 %v1132
      %v1134 = vlaneseq
      %v1135 = vshrl.u32 %v1134, 7
      %v1136 = vsub.s32 %v1133, %v1135
      %v1137 = vrot.slane %v1109, %v1136
      %v1138 = vcombine.high %v1116, %v1116
      %v1139 = vcombine.high %v1123, %v1123
      %v1140 = vcombine.high %v1130, %v1130
      %v1141 = vcombine.high %v1137, %v1137
      %v1142 = vcombine.high %v1078, %v1078
      %v1144 = vunpack.c.l.s4 1966171168
      %v1145 = vunpack.c.0.s8 %v1144
      %v1146 = vlaneseq
      %v1147 = vshrl.u32 %v1146, 7
      %v1148 = vsub.s32 %v1145, %v1147
      %v1149 = vrot.slane %v1078, %v1148
      %v1151 = vunpack.c.l.s4 1966171168
      %v1152 = vunpack.c.0.s8 %v1151
      %v1153 = vlaneseq
      %v1154 = vshrl.u32 %v1153, 7
      %v1155 = vsub.s32 %v1152, %v1154
      %v1156 = vrot.slane %v1142, %v1155
      %v1157 = vcombine.high %v1149, %v1149
      %v1158 = vcombine.high %v1156, %v1156
      %v1160 = vunpack.c.l.s4 1966171168
      %v1161 = vunpack.c.0.s8 %v1160
      %v1162 = vlaneseq
      %v1163 = vshrl.u32 %v1162, 7
      %v1164 = vsub.s32 %v1161, %v1163
      %v1165 = vrot.slane %v1149, %v1164
      %v1167 = vunpack.c.l.s4 1966171168
      %v1168 = vunpack.c.0.s8 %v1167
      %v1169 = vlaneseq
      %v1170 = vshrl.u32 %v1169, 7
      %v1171 = vsub.s32 %v1168, %v1170
      %v1172 = vrot.slane %v1156, %v1171
      %v1174 = vunpack.c.l.s4 1966171168
      %v1175 = vunpack.c.0.s8 %v1174
      %v1176 = vlaneseq
      %v1177 = vshrl.u32 %v1176, 7
      %v1178 = vsub.s32 %v1175, %v1177
      %v1179 = vrot.slane %v1157, %v1178
      %v1181 = vunpack.c.l.s4 1966171168
      %v1182 = vunpack.c.0.s8 %v1181
      %v1183 = vlaneseq
      %v1184 = vshrl.u32 %v1183, 7
      %v1185 = vsub.s32 %v1182, %v1184
      %v1186 = vrot.slane %v1158, %v1185
      %v1187 = vcombine.high %v1165, %v1165
      %v1188 = vcombine.high %v1172, %v1172
      %v1189 = vcombine.high %v1179, %v1179
      %v1190 = vcombine.high %v1186, %v1186
      %v1191 = vcombine.high %v1083, %v1083
      %v1193 = vunpack.c.l.s4 1966171168
      %v1194 = vunpack.c.0.s8 %v1193
      %v1195 = vlaneseq
      %v1196 = vshrl.u32 %v1195, 7
      %v1197 = vsub.s32 %v1194, %v1196
      %v1198 = vrot.slane %v1083, %v1197
      %v1200 = vunpack.c.l.s4 1966171168
      %v1201 = vunpack.c.0.s8 %v1200
      %v1202 = vlaneseq
      %v1203 = vshrl.u32 %v1202, 7
      %v1204 = vsub.s32 %v1201, %v1203
      %v1205 = vrot.slane %v1191, %v1204
      %v1206 = vcombine.high %v1198, %v1198
      %v1207 = vcombine.high %v1205, %v1205
      %v1209 = vunpack.c.l.s4 1966171168
      %v1210 = vunpack.c.0.s8 %v1209
      %v1211 = vlaneseq
      %v1212 = vshrl.u32 %v1211, 7
      %v1213 = vsub.s32 %v1210, %v1212
      %v1214 = vrot.slane %v1198, %v1213
      %v1216 = vunpack.c.l.s4 1966171168
      %v1217 = vunpack.c.0.s8 %v1216
      %v1218 = vlaneseq
      %v1219 = vshrl.u32 %v1218, 7
      %v1220 = vsub.s32 %v1217, %v1219
      %v1221 = vrot.slane %v1205, %v1220
      %v1223 = vunpack.c.l.s4 1966171168
      %v1224 = vunpack.c.0.s8 %v1223
      %v1225 = vlaneseq
      %v1226 = vshrl.u32 %v1225, 7
      %v1227 = vsub.s32 %v1224, %v1226
      %v1228 = vrot.slane %v1206, %v1227
      %v1230 = vunpack.c.l.s4 1966171168
      %v1231 = vunpack.c.0.s8 %v1230
      %v1232 = vlaneseq
      %v1233 = vshrl.u32 %v1232, 7
      %v1234 = vsub.s32 %v1231, %v1233
      %v1235 = vrot.slane %v1207, %v1234
      %v1236 = vcombine.high %v1214, %v1214
      %v1237 = vcombine.high %v1221, %v1221
      %v1238 = vcombine.high %v1228, %v1228
      %v1239 = vcombine.high %v1235, %v1235
      %v1241 = vunpack.c.l.s4 1966171168
      %v1242 = vunpack.c.0.s8 %v1241
      %v1243 = vlaneseq
      %v1244 = vshrl.u32 %v1243, 7
      %v1245 = vsub.s32 %v1242, %v1244
      %v1246 = vrot.slane %v1086, %v1245
      %v1248 = vunpack.c.l.s4 1966171168
      %v1249 = vunpack.c.0.s8 %v1248
      %v1250 = vlaneseq
      %v1251 = vshrl.u32 %v1250, 7
      %v1252 = vsub.s32 %v1249, %v1251
      %v1253 = vrot.slane %v1246, %v1252
      %v1254 = vcombine.low %v1116, %v1130
      %v1255 = vcombine.low %v1138, %v1140
      %v1257 = vunpack.c.l.s4 1966171168
      %v1258 = vunpack.c.0.s8 %v1257
      %v1259 = vlaneseq
      %v1260 = vshrl.u32 %v1259, 7
      %v1261 = vsub.s32 %v1258, %v1260
      %v1262 = vrot.slane %v1254, %v1261
      %v1264 = vunpack.c.l.s4 1966171168
      %v1265 = vunpack.c.0.s8 %v1264
      %v1266 = vlaneseq
      %v1267 = vshrl.u32 %v1266, 7
      %v1268 = vsub.s32 %v1265, %v1267
      %v1269 = vrot.slane %v1255, %v1268
      %v1271 = vunpack.c.l.s4 1966171168
      %v1272 = vunpack.c.0.s8 %v1271
      %v1273 = vlaneseq
      %v1274 = vshrl.u32 %v1273, 7
      %v1275 = vsub.s32 %v1272, %v1274
      %v1276 = vrot.slane %v1123, %v1275
      %v1277 = vcombine.low %v1262, %v1269
      %v1279 = vunpack.c.l.s4 1966171168
      %v1280 = vunpack.c.0.s8 %v1279
      %v1281 = vlaneseq
      %v1282 = vshrl.u32 %v1281, 7
      %v1283 = vsub.s32 %v1280, %v1282
      %v1284 = vrot.slane %v1277, %v1283
      %v1286 = vunpack.c.l.s4 1966171168
      %v1287 = vunpack.c.0.s8 %v1286
      %v1288 = vlaneseq
      %v1289 = vshrl.u32 %v1288, 7
      %v1290 = vsub.s32 %v1287, %v1289
      %v1291 = vrot.slane %v1276, %v1290
      %v1292 = vcombine.low %v1284, %v1291
      %v1293 = vcombine.low %v1137, %v1139
      %v1294 = vcombine.low %v1141, %v1165
      %v1296 = vunpack.c.l.s4 1966171168
      %v1297 = vunpack.c.0.s8 %v1296
      %v1298 = vlaneseq
      %v1299 = vshrl.u32 %v1298, 7
      %v1300 = vsub.s32 %v1297, %v1299
      %v1301 = vrot.slane %v1293, %v1300
      %v1303 = vunpack.c.l.s4 1966171168
      %v1304 = vunpack.c.0.s8 %v1303
      %v1305 = vlaneseq
      %v1306 = vshrl.u32 %v1305, 7
      %v1307 = vsub.s32 %v1304, %v1306
      %v1308 = vrot.slane %v1294, %v1307
      %v1310 = vunpack.c.l.s4 1966171168
      %v1311 = vunpack.c.0.s8 %v1310
      %v1312 = vlaneseq
      %v1313 = vshrl.u32 %v1312, 7
      %v1314 = vsub.s32 %v1311, %v1313
      %v1315 = vrot.slane %v1179, %v1314
      %v1316 = vcombine.low %v1301, %v1308
      %v1318 = vunpack.c.l.s4 1966171168
      %v1319 = vunpack.c.0.s8 %v1318
      %v1320 = vlaneseq
      %v1321 = vshrl.u32 %v1320, 7
      %v1322 = vsub.s32 %v1319, %v1321
      %v1323 = vrot.slane %v1316, %v1322
      %v1325 = vunpack.c.l.s4 1966171168
      %v1326 = vunpack.c.0.s8 %v1325
      %v1327 = vlaneseq
      %v1328 = vshrl.u32 %v1327, 7
      %v1329 = vsub.s32 %v1326, %v1328
      %v1330 = vrot.slane %v1315, %v1329
      %v1331 = vcombine.low %v1323, %v1330
      %v1332 = vcombine.low %v1187, %v1189
      %v1333 = vcombine.low %v1172, %v1186
      %v1335 = vunpack.c.l.s4 1966171168
      %v1336 = vunpack.c.0.s8 %v1335
      %v1337 = vlaneseq
      %v1338 = vshrl.u32 %v1337, 7
      %v1339 = vsub.s32 %v1336, %v1338
      %v1340 = vrot.slane %v1332, %v1339
      %v1342 = vunpack.c.l.s4 1966171168
      %v1343 = vunpack.c.0.s8 %v1342
      %v1344 = vlaneseq
      %v1345 = vshrl.u32 %v1344, 7
      %v1346 = vsub.s32 %v1343, %v1345
      %v1347 = vrot.slane %v1333, %v1346
      %v1349 = vunpack.c.l.s4 1966171168
      %v1350 = vunpack.c.0.s8 %v1349
      %v1351 = vlaneseq
      %v1352 = vshrl.u32 %v1351, 7
      %v1353 = vsub.s32 %v1350, %v1352
      %v1354 = vrot.slane %v1188, %v1353
      %v1355 = vcombine.low %v1340, %v1347
      %v1357 = vunpack.c.l.s4 1966171168
      %v1358 = vunpack.c.0.s8 %v1357
      %v1359 = vlaneseq
      %v1360 = vshrl.u32 %v1359, 7
      %v1361 = vsub.s32 %v1358, %v1360
      %v1362 = vrot.slane %v1355, %v1361
      %v1364 = vunpack.c.l.s4 1966171168
      %v1365 = vunpack.c.0.s8 %v1364
      %v1366 = vlaneseq
      %v1367 = vshrl.u32 %v1366, 7
      %v1368 = vsub.s32 %v1365, %v1367
      %v1369 = vrot.slane %v1354, %v1368
      %v1370 = vcombine.low %v1362, %v1369
      %v1371 = vcombine.low %v1190, %v1214
      %v1372 = vcombine.low %v1228, %v1236
      %v1374 = vunpack.c.l.s4 1966171168
      %v1375 = vunpack.c.0.s8 %v1374
      %v1376 = vlaneseq
      %v1377 = vshrl.u32 %v1376, 7
      %v1378 = vsub.s32 %v1375, %v1377
      %v1379 = vrot.slane %v1371, %v1378
      %v1381 = vunpack.c.l.s4 1966171168
      %v1382 = vunpack.c.0.s8 %v1381
      %v1383 = vlaneseq
      %v1384 = vshrl.u32 %v1383, 7
      %v1385 = vsub.s32 %v1382, %v1384
      %v1386 = vrot.slane %v1372, %v1385
      %v1388 = vunpack.c.l.s4 1966171168
      %v1389 = vunpack.c.0.s8 %v1388
      %v1390 = vlaneseq
      %v1391 = vshrl.u32 %v1390, 7
      %v1392 = vsub.s32 %v1389, %v1391
      %v1393 = vrot.slane %v1238, %v1392
      %v1394 = vcombine.low %v1379, %v1386
      %v1396 = vunpack.c.l.s4 1966171168
      %v1397 = vunpack.c.0.s8 %v1396
      %v1398 = vlaneseq
      %v1399 = vshrl.u32 %v1398, 7
      %v1400 = vsub.s32 %v1397, %v1399
      %v1401 = vrot.slane %v1394, %v1400
      %v1403 = vunpack.c.l.s4 1966171168
      %v1404 = vunpack.c.0.s8 %v1403
      %v1405 = vlaneseq
      %v1406 = vshrl.u32 %v1405, 7
      %v1407 = vsub.s32 %v1404, %v1406
      %v1408 = vrot.slane %v1393, %v1407
      %v1409 = vcombine.low %v1401, %v1408
      %v1410 = vcombine.low %v1221, %v1235
      %v1411 = vcombine.low %v1237, %v1239
      %v1413 = vunpack.c.l.s4 1966171168
      %v1414 = vunpack.c.0.s8 %v1413
      %v1415 = vlaneseq
      %v1416 = vshrl.u32 %v1415, 7
      %v1417 = vsub.s32 %v1414, %v1416
      %v1418 = vrot.slane %v1410, %v1417
      %v1420 = vunpack.c.l.s4 1966171168
      %v1421 = vunpack.c.0.s8 %v1420
      %v1422 = vlaneseq
      %v1423 = vshrl.u32 %v1422, 7
      %v1424 = vsub.s32 %v1421, %v1423
      %v1425 = vrot.slane %v1411, %v1424
      %v1427 = vunpack.c.l.s4 1966171168
      %v1428 = vunpack.c.0.s8 %v1427
      %v1429 = vlaneseq
      %v1430 = vshrl.u32 %v1429, 7
      %v1431 = vsub.s32 %v1428, %v1430
      %v1432 = vrot.slane %v1253, %v1431
      %v1433 = vcombine.low %v1418, %v1425
      %v1435 = vunpack.c.l.s4 1966171168
      %v1436 = vunpack.c.0.s8 %v1435
      %v1437 = vlaneseq
      %v1438 = vshrl.u32 %v1437, 7
      %v1439 = vsub.s32 %v1436, %v1438
      %v1440 = vrot.slane %v1433, %v1439
      %v1442 = vunpack.c.l.s4 1966171168
      %v1443 = vunpack.c.0.s8 %v1442
      %v1444 = vlaneseq
      %v1445 = vshrl.u32 %v1444, 7
      %v1446 = vsub.s32 %v1443, %v1445
      %v1447 = vrot.slane %v1432, %v1446
      %v1448 = vcombine.low %v1440, %v1447
      %vm1454 = vcmask 126976
      %1455 = vst.msk [vmem:[%s217] sm:$0x1f] %vm1454, %v1292
      %1456 = vst.msk [vmem:[%s217 + $0x8] sm:$0x1f] %vm1454, %v1331
      %1457 = vst.msk [vmem:[%s217 + $0x10] sm:$0x1f] %vm1454, %v1370
      %1458 = vst.msk [vmem:[%s217 + $0x18] sm:$0x1f] %vm1454, %v1409
      %1459 = vst.msk [vmem:[%s217 + $0x20] sm:$0x1f] %vm1454, %v1448
      %p1460 = scmp.lt.s32.totalorder %s15, 1
      %s1461 = scalar_select %p1460, %s15, 1
      %s1462 = smul.addr %s1461, 5
      %s1463 = smul.addr %s1462, 8
      %s1464 = scalar_lea.vmem %s4, %s1463
      // Predicated region
      $region37: #{model_builder_forward.6} parent=35 // pred_check
        %p1465 = pneg %p127
      $region38: #{model_builder_forward.6} parent=35 // pred_check_branch
        %1467 = sbr.rel (%p1465) target = $region40
      $region39: #{model_builder_forward.6} parent=35 // pred_region
        _
      $region40: #{model_builder_forward.6} parent=35 // pred_fallthru
        _
    $region36: #{model_builder_forward.6} parent=5 // pred_fallthru
      _
    %p1468 = scmp.le.s32.totalorder 2, %s10
    // Predicated region
    $region41: #{model_builder_forward.6} parent=5 // pred_check
      %p1469 = pneg %p1468
    $region42: #{model_builder_forward.6} parent=5 // pred_check_branch
      %1471 = sbr.rel (%p1469) target = $region44
    $region43: #{model_builder_forward.6} parent=5 // pred_region
      %s1472 = ssub.s32 %s10, 2
      // Predicated region
      $region45: #{model_builder_forward.6} parent=43 // pred_check
        %p1473 = pneg %p133
      $region46: #{model_builder_forward.6} parent=43 // pred_check_branch
        %1475 = sbr.rel (%p1473) target = $region48
      $region47: #{model_builder_forward.6} parent=43 // pred_region
        %p1476 = scmp.lt.s32.totalorder %s16, 1
        %s1477 = scalar_select %p1476, %s16, 1
        %s1478 = smul.addr %s1477, 5
        %s1479 = smul.addr %s1478, 8
        %s1480 = scalar_lea.vmem %s4, %s1479
      $region48: #{model_builder_forward.6} parent=43 // pred_fallthru
        _
    $region44: #{model_builder_forward.6} parent=5 // pred_fallthru
      _
  $region6: #{model_builder_forward.6} parent=0 // loop_footer
    %s14 = sadd.s32 1, %s10
  $region7: #{model_builder_forward.6} parent=0 // loop_footer_branch
    %9 = sbr.rel target = $region3
  $region8: #{model_builder_forward.6} parent=0 // loop_exit
    _

// kernel: model_builder_forward.7
$region0: #{model_builder_forward.7}
  #allocation0 [shape = 'u32[]', space=smem, size = 0x4, offset = 0x4, fixed_abs, tag = 'smem constant byte address 0x4 - core index']
  #allocation1 [shape = 'u32[144,128]{1,0:T(1,128)}', space=vmem, size = 0x12000, scoped, tag = 'internal scratch']
  %s0 = inlined_call_operand.vmem [shape: f32[2,5,5,32], index: 0, kind: input, shape index: {}]
  %s1 = inlined_call_operand.vmem [shape: bf16[2,288,32], index: 1, kind: input, shape index: {}]
  %s2 = inlined_call_operand.vmem [shape: f32[2,3,32], index: 2, kind: input, shape index: {}]
  %s3 = inlined_call_operand.vmem [shape: f32[32,32], index: 3, kind: input, shape index: {}]
  %s4 = inlined_call_operand.vmem [shape: bf16[288,8], index: 4, kind: input, shape index: {}]
  %s5 = inlined_call_operand.vmem [shape: f32[1,8], index: 5, kind: input, shape index: {}]
  %s6 = inlined_call_operand.vmem [shape: f32[2,5,5,8], index: 6, kind: output, shape index: {}]
  %s7 = sld [smem:[#allocation0]]
  $region57: #{model_builder_forward.7} parent=0
    _
  %s9 = ssub.s32 1, %s7
  %s10 = scalar_select 0, %s9, %s7
  loop: start=0, step=1, limit=4
  $region2: #{model_builder_forward.7} parent=0 // loop_pre_header
    _
  $region3: #{model_builder_forward.7} parent=0 // loop_header
    %s12 = sphi 0, %s16
    %p13 = scmp.ge.s32.totalorder %s12, 4
    %s22 = sphi 0, %s24
    %s25 = sphi 0, %s22
    %s26 = sphi 0, %s25
    %s42 = sphi 0, %s26
    %s46 = sphi 0, %s46
    %s48 = sphi 0, %s46
    %s49 = sphi 0, %s48
    %s63 = sphi 0, %s49
    %s67 = sphi 0, %s67
    %s69 = sphi 0, %s67
    %s70 = sphi 0, %s69
    %s84 = sphi 0, %s70
    %s88 = sphi 0, %s88
    %s90 = sphi 0, %s88
    %s91 = sphi 0, %s90
    %s105 = sphi 0, %s91
    %s109 = sphi 0, %s109
    %s111 = sphi 0, %s109
    %s112 = sphi 0, %s111
    %s126 = sphi 0, %s112
    %s130 = sphi 0, %s130
    %s132 = sphi 0, %s130
    %s133 = sphi 0, %s132
    %s147 = sphi 0, %s133
    %s153 = sphi 0, %s155
    %s156 = sphi 0, %s153
    %s157 = sphi 0, %s156
    %s173 = sphi 0, %s157
  $region4: #{model_builder_forward.7} parent=0 // loop_header_branch
    %15 = sbr.rel (%p13) target = $region8
  $region5: #{model_builder_forward.7} parent=0 // loop_body
    %s17 = ssub.s32 %s12, 1
    %s18 = ssub.s32 %s12, 2
    %s19 = sadd.s32 %s12, 1
    %s20 = ssub.s32 %s12, %s19
    %p21 = scmp.eq.s32.totalorder %s20, 0
    %s23 = sadd.s32 %s22, 1
    %s24 = scalar_select %p21, %s22, %s23
    %p27 = pneg %p21
    %p28 = scmp.eq.s32.totalorder %s12, 1
    %p29 = por %p27, %p28
    %p30 = scmp.ne.s32.totalorder %s22, %s25
    %p31 = scmp.eq.s32.totalorder %s12, 0
    %p32 = por %p30, %p31
    %p33 = scmp.ne.s32.totalorder %s22, %s25
    %p34 = scmp.eq.s32.totalorder %s17, 1
    %p35 = por %p33, %p34
    %p36 = scmp.ne.s32.totalorder %s25, %s26
    %p37 = scmp.eq.s32.totalorder %s17, 0
    %p38 = por %p36, %p37
    %p39 = scmp.ne.s32.totalorder %s25, %s26
    %p40 = scmp.eq.s32.totalorder %s18, 1
    %p41 = por %p39, %p40
    %p43 = scmp.ne.s32.totalorder %s26, %s42
    %p44 = scmp.eq.s32.totalorder %s18, 0
    %p45 = por %p43, %p44
    %s47 = sadd.s32 %s46, 1
    %p50 = scmp.eq.s32.totalorder %s12, 1
    %p51 = scmp.ne.s32.totalorder %s46, %s48
    %p52 = scmp.eq.s32.totalorder %s12, 0
    %p53 = por %p51, %p52
    %p54 = scmp.ne.s32.totalorder %s46, %s48
    %p55 = scmp.eq.s32.totalorder %s17, 1
    %p56 = por %p54, %p55
    %p57 = scmp.ne.s32.totalorder %s48, %s49
    %p58 = scmp.eq.s32.totalorder %s17, 0
    %p59 = por %p57, %p58
    %p60 = scmp.ne.s32.totalorder %s48, %s49
    %p61 = scmp.eq.s32.totalorder %s18, 1
    %p62 = por %p60, %p61
    %p64 = scmp.ne.s32.totalorder %s49, %s63
    %p65 = scmp.eq.s32.totalorder %s18, 0
    %p66 = por %p64, %p65
    %s68 = sadd.s32 %s67, 1
    %p71 = scmp.eq.s32.totalorder %s12, 1
    %p72 = scmp.ne.s32.totalorder %s67, %s69
    %p73 = scmp.eq.s32.totalorder %s12, 0
    %p74 = por %p72, %p73
    %p75 = scmp.ne.s32.totalorder %s67, %s69
    %p76 = scmp.eq.s32.totalorder %s17, 1
    %p77 = por %p75, %p76
    %p78 = scmp.ne.s32.totalorder %s69, %s70
    %p79 = scmp.eq.s32.totalorder %s17, 0
    %p80 = por %p78, %p79
    %p81 = scmp.ne.s32.totalorder %s69, %s70
    %p82 = scmp.eq.s32.totalorder %s18, 1
    %p83 = por %p81, %p82
    %p85 = scmp.ne.s32.totalorder %s70, %s84
    %p86 = scmp.eq.s32.totalorder %s18, 0
    %p87 = por %p85, %p86
    %s89 = sadd.s32 %s88, 1
    %p92 = scmp.eq.s32.totalorder %s12, 1
    %p93 = scmp.ne.s32.totalorder %s88, %s90
    %p94 = scmp.eq.s32.totalorder %s12, 0
    %p95 = por %p93, %p94
    %p96 = scmp.ne.s32.totalorder %s88, %s90
    %p97 = scmp.eq.s32.totalorder %s17, 1
    %p98 = por %p96, %p97
    %p99 = scmp.ne.s32.totalorder %s90, %s91
    %p100 = scmp.eq.s32.totalorder %s17, 0
    %p101 = por %p99, %p100
    %p102 = scmp.ne.s32.totalorder %s90, %s91
    %p103 = scmp.eq.s32.totalorder %s18, 1
    %p104 = por %p102, %p103
    %p106 = scmp.ne.s32.totalorder %s91, %s105
    %p107 = scmp.eq.s32.totalorder %s18, 0
    %p108 = por %p106, %p107
    %s110 = sadd.s32 %s109, 1
    %p113 = scmp.eq.s32.totalorder %s12, 1
    %p114 = scmp.ne.s32.totalorder %s109, %s111
    %p115 = scmp.eq.s32.totalorder %s12, 0
    %p116 = por %p114, %p115
    %p117 = scmp.ne.s32.totalorder %s109, %s111
    %p118 = scmp.eq.s32.totalorder %s17, 1
    %p119 = por %p117, %p118
    %p120 = scmp.ne.s32.totalorder %s111, %s112
    %p121 = scmp.eq.s32.totalorder %s17, 0
    %p122 = por %p120, %p121
    %p123 = scmp.ne.s32.totalorder %s111, %s112
    %p124 = scmp.eq.s32.totalorder %s18, 1
    %p125 = por %p123, %p124
    %p127 = scmp.ne.s32.totalorder %s112, %s126
    %p128 = scmp.eq.s32.totalorder %s18, 0
    %p129 = por %p127, %p128
    %s131 = sadd.s32 %s130, 1
    %p134 = scmp.eq.s32.totalorder %s12, 1
    %p135 = scmp.ne.s32.totalorder %s130, %s132
    %p136 = scmp.eq.s32.totalorder %s12, 0
    %p137 = por %p135, %p136
    %p138 = scmp.ne.s32.totalorder %s130, %s132
    %p139 = scmp.eq.s32.totalorder %s17, 1
    %p140 = por %p138, %p139
    %p141 = scmp.ne.s32.totalorder %s132, %s133
    %p142 = scmp.eq.s32.totalorder %s17, 0
    %p143 = por %p141, %p142
    %p144 = scmp.ne.s32.totalorder %s132, %s133
    %p145 = scmp.eq.s32.totalorder %s18, 1
    %p146 = por %p144, %p145
    %p148 = scmp.ne.s32.totalorder %s133, %s147
    %p149 = scmp.eq.s32.totalorder %s18, 0
    %p150 = por %p148, %p149
    %s151 = ssub.s32 %s12, %s19
    %p152 = scmp.eq.s32.totalorder %s151, 0
    %s154 = sadd.s32 %s153, 1
    %s155 = scalar_select %p152, %s153, %s154
    %p158 = pneg %p152
    %p159 = scmp.eq.s32.totalorder %s12, 1
    %p160 = por %p158, %p159
    %p161 = scmp.ne.s32.totalorder %s153, %s156
    %p162 = scmp.eq.s32.totalorder %s12, 0
    %p163 = por %p161, %p162
    %p164 = scmp.ne.s32.totalorder %s153, %s156
    %p165 = scmp.eq.s32.totalorder %s17, 1
    %p166 = por %p164, %p165
    %p167 = scmp.ne.s32.totalorder %s156, %s157
    %p168 = scmp.eq.s32.totalorder %s17, 0
    %p169 = por %p167, %p168
    %p170 = scmp.ne.s32.totalorder %s156, %s157
    %p171 = scmp.eq.s32.totalorder %s18, 1
    %p172 = por %p170, %p171
    %p174 = scmp.ne.s32.totalorder %s157, %s173
    %p175 = scmp.eq.s32.totalorder %s18, 0
    %p176 = por %p174, %p175
    %p177 = scmp.le.s32.totalorder 1, %s12
    %p178 = scmp.lt.s32.totalorder %s12, 3
    %p179 = pnand %p177, %p178
    %p180 = pneg %p179
    // Predicated region
    $region9: #{model_builder_forward.7} parent=5 // pred_check
      _
    $region10: #{model_builder_forward.7} parent=5 // pred_check_branch
      %182 = sbr.rel (%p179) target = $region12
    $region11: #{model_builder_forward.7} parent=5 // pred_region
      %s183 = ssub.s32 %s12, 1
      // Predicated region
      $region13: #{model_builder_forward.7} parent=11 // pred_check
        %p184 = pneg %p59
      $region14: #{model_builder_forward.7} parent=11 // pred_check_branch
        %186 = sbr.rel (%p184) target = $region16
      $region15: #{model_builder_forward.7} parent=11 // pred_region
        _
      $region16: #{model_builder_forward.7} parent=11 // pred_fallthru
        _
      // Predicated region
      $region17: #{model_builder_forward.7} parent=11 // pred_check
        %p187 = pneg %p80
      $region18: #{model_builder_forward.7} parent=11 // pred_check_branch
        %189 = sbr.rel (%p187) target = $region20
      $region19: #{model_builder_forward.7} parent=11 // pred_region
        _
      $region20: #{model_builder_forward.7} parent=11 // pred_fallthru
        _
      // Predicated region
      $region21: #{model_builder_forward.7} parent=11 // pred_check
        %p190 = pneg %p101
      $region22: #{model_builder_forward.7} parent=11 // pred_check_branch
        %192 = sbr.rel (%p190) target = $region24
      $region23: #{model_builder_forward.7} parent=11 // pred_region
        _
      $region24: #{model_builder_forward.7} parent=11 // pred_fallthru
        _
      // Predicated region
      $region25: #{model_builder_forward.7} parent=11 // pred_check
        %p193 = pneg %p122
      $region26: #{model_builder_forward.7} parent=11 // pred_check_branch
        %195 = sbr.rel (%p193) target = $region28
      $region27: #{model_builder_forward.7} parent=11 // pred_region
        _
      $region28: #{model_builder_forward.7} parent=11 // pred_fallthru
        _
      // Predicated region
      $region29: #{model_builder_forward.7} parent=11 // pred_check
        %p196 = pneg %p143
      $region30: #{model_builder_forward.7} parent=11 // pred_check_branch
        %198 = sbr.rel (%p196) target = $region32
      $region31: #{model_builder_forward.7} parent=11 // pred_region
        _
      $region32: #{model_builder_forward.7} parent=11 // pred_fallthru
        _
    $region12: #{model_builder_forward.7} parent=5 // pred_fallthru
      _
    %p199 = scmp.lt.s32.totalorder %s12, 2
    // Predicated region
    $region33: #{model_builder_forward.7} parent=5 // pred_check
      %p200 = pneg %p199
    $region34: #{model_builder_forward.7} parent=5 // pred_check_branch
      %202 = sbr.rel (%p200) target = $region36
    $region35: #{model_builder_forward.7} parent=5 // pred_region
      // Predicated region
      $region37: #{model_builder_forward.7} parent=35 // pred_check
        %p203 = pneg %p32
      $region38: #{model_builder_forward.7} parent=35 // pred_check_branch
        %205 = sbr.rel (%p203) target = $region40
      $region39: #{model_builder_forward.7} parent=35 // pred_region
        %p206 = scmp.lt.s32.totalorder %s12, 1
        %s207 = scalar_select %p206, %s12, 1
        %s208 = smul.addr %s207, 5
        %s209 = smul.addr %s208, 8
        %s210 = scalar_lea.vmem %s0, %s209
      $region40: #{model_builder_forward.7} parent=35 // pred_fallthru
        _
    $region36: #{model_builder_forward.7} parent=5 // pred_fallthru
      _
    %p211 = scmp.le.s32.totalorder 1, %s12
    %p212 = scmp.lt.s32.totalorder %s12, 3
    %p213 = pnand %p211, %p212
    %p214 = pneg %p213
    // Predicated region
    $region41: #{model_builder_forward.7} parent=5 // pred_check
      _
    $region42: #{model_builder_forward.7} parent=5 // pred_check_branch
      %216 = sbr.rel (%p213) target = $region44
    $region43: #{model_builder_forward.7} parent=5 // pred_region
      %s217 = ssub.s32 %s12, 1
      %p218 = scmp.lt.s32.totalorder %s17, 1
      %s219 = scalar_select %p218, %s17, 1
      %s220 = smul.addr %s219, 5
      %s221 = smul.addr %s220, 8
      %s222 = scalar_lea.vmem %s0, %s221
      %p223 = pneg %p38
      %p224 = pneg %p35
      %p225 = pneg %p59
      %p226 = pneg %p56
      %p227 = pneg %p80
      %p228 = pneg %p77
      %p229 = pneg %p101
      %p230 = pneg %p98
      %p231 = pneg %p122
      %p232 = pneg %p119
      %p233 = pneg %p143
      %p234 = pneg %p140
      %p235 = pneg %p169
      %p236 = pneg %p166
      %p237 = scmp.lt.s32.totalorder %s17, 1
      %s238 = scalar_select %p237, %s17, 1
      %s239 = smul.addr %s238, 5
      %s240 = smul.addr %s239, 8
      %s241 = scalar_lea.vmem %s6, %s240
      %p242 = scmp.lt.s32.totalorder %s17, 1
      %s243 = scalar_select %p242, %s17, 1
      %s244 = smul.addr %s243, 5
      %s245 = smul.addr %s244, 8
      %s246 = scalar_lea.vmem %s0, %s245
      %p247 = scmp.lt.s32.totalorder %s17, 1
      %s248 = scalar_select %p247, %s17, 1
      %s249 = smul.addr %s248, 5
      %s250 = smul.addr %s249, 8
      %s251 = scalar_lea.vmem %s6, %s250
      %v253 = vld [vmem:[%s3] sm:$0xff]
      %v254 = vld [vmem:[%s3 + $0x8] sm:$0xff]
      %v255 = vld [vmem:[%s3 + $0x10] sm:$0xff]
      %v256 = vld [vmem:[%s3 + $0x18] sm:$0xff]
      %v257 = vld [vmem:[%s246] sm:$0x1f]
      %v258 = vld [vmem:[%s246 + $0x8] sm:$0x1f]
      %v259 = vld [vmem:[%s246 + $0x10] sm:$0x1f]
      %v260 = vld [vmem:[%s246 + $0x18] sm:$0x1f]
      %v261 = vld [vmem:[%s246 + $0x20] sm:$0x1f]
      %v267 = vrot.slane %v257, 7
      %v268 = vrot.slane %v258, 7
      %v269 = vrot.slane %v259, 7
      %v270 = vrot.slane %v260, 7
      %v271 = vrot.slane %v261, 7
      %vm277 = vcmask 1040384
      %v278 = vsel %vm277, 0.0, %v267
      %v279 = vsel %vm277, 0.0, %v268
      %v280 = vsel %vm277, 0.0, %v269
      %v281 = vsel %vm277, 0.0, %v270
      %v282 = vsel %vm277, 0.0, %v271
      %vm283 = vcmask 1045504
      %v284 = vsel %vm283, %v278, 0.0
      %v285 = vsel %vm283, %v279, 0.0
      %v286 = vsel %vm283, %v280, 0.0
      %v287 = vsel %vm283, %v281, 0.0
      %v288 = vsel %vm283, %v282, 0.0
      %v294 = vcombine.high 0.0, 0.0
      %v296 = vunpack.c.l.s4 1966171168
      %v297 = vunpack.c.0.s8 %v296
      %v298 = vlaneseq
      %v299 = vshrl.u32 %v298, 7
      %v300 = vsub.s32 %v297, %v299
      %v301 = vrot.slane 0.0, %v300
      %v303 = vunpack.c.l.s4 1966171168
      %v304 = vunpack.c.0.s8 %v303
      %v305 = vlaneseq
      %v306 = vshrl.u32 %v305, 7
      %v307 = vsub.s32 %v304, %v306
      %v308 = vrot.slane %v294, %v307
      %v309 = vcombine.high %v301, %v301
      %v311 = vunpack.c.l.s4 1966171168
      %v312 = vunpack.c.0.s8 %v311
      %v313 = vlaneseq
      %v314 = vshrl.u32 %v313, 7
      %v315 = vsub.s32 %v312, %v314
      %v316 = vrot.slane %v301, %v315
      %v318 = vunpack.c.l.s4 1966171168
      %v319 = vunpack.c.0.s8 %v318
      %v320 = vlaneseq
      %v321 = vshrl.u32 %v320, 7
      %v322 = vsub.s32 %v319, %v321
      %v323 = vrot.slane %v308, %v322
      %v325 = vunpack.c.l.s4 1966171168
      %v326 = vunpack.c.0.s8 %v325
      %v327 = vlaneseq
      %v328 = vshrl.u32 %v327, 7
      %v329 = vsub.s32 %v326, %v328
      %v330 = vrot.slane %v309, %v329
      %v331 = vcombine.high %v316, %v316
      %v332 = vcombine.high %v330, %v330
      %v333 = vcombine.high %v284, %v284
      %v335 = vunpack.c.l.s4 1966171168
      %v336 = vunpack.c.0.s8 %v335
      %v337 = vlaneseq
      %v338 = vshrl.u32 %v337, 7
      %v339 = vsub.s32 %v336, %v338
      %v340 = vrot.slane %v284, %v339
      %v342 = vunpack.c.l.s4 1966171168
      %v343 = vunpack.c.0.s8 %v342
      %v344 = vlaneseq
      %v345 = vshrl.u32 %v344, 7
      %v346 = vsub.s32 %v343, %v345
      %v347 = vrot.slane %v333, %v346
      %v348 = vcombine.high %v340, %v340
      %v350 = vunpack.c.l.s4 1966171168
      %v351 = vunpack.c.0.s8 %v350
      %v352 = vlaneseq
      %v353 = vshrl.u32 %v352, 7
      %v354 = vsub.s32 %v351, %v353
      %v355 = vrot.slane %v340, %v354
      %v357 = vunpack.c.l.s4 1966171168
      %v358 = vunpack.c.0.s8 %v357
      %v359 = vlaneseq
      %v360 = vshrl.u32 %v359, 7
      %v361 = vsub.s32 %v358, %v360
      %v362 = vrot.slane %v347, %v361
      %v364 = vunpack.c.l.s4 1966171168
      %v365 = vunpack.c.0.s8 %v364
      %v366 = vlaneseq
      %v367 = vshrl.u32 %v366, 7
      %v368 = vsub.s32 %v365, %v367
      %v369 = vrot.slane %v348, %v368
      %v370 = vcombine.high %v355, %v355
      %v371 = vcombine.high %v369, %v369
      %v372 = vcombine.high %v285, %v285
      %v374 = vunpack.c.l.s4 1966171168
      %v375 = vunpack.c.0.s8 %v374
      %v376 = vlaneseq
      %v377 = vshrl.u32 %v376, 7
      %v378 = vsub.s32 %v375, %v377
      %v379 = vrot.slane %v285, %v378
      %v381 = vunpack.c.l.s4 1966171168
      %v382 = vunpack.c.0.s8 %v381
      %v383 = vlaneseq
      %v384 = vshrl.u32 %v383, 7
      %v385 = vsub.s32 %v382, %v384
      %v386 = vrot.slane %v372, %v385
      %v387 = vcombine.high %v379, %v379
      %v389 = vunpack.c.l.s4 1966171168
      %v390 = vunpack.c.0.s8 %v389
      %v391 = vlaneseq
      %v392 = vshrl.u32 %v391, 7
      %v393 = vsub.s32 %v390, %v392
      %v394 = vrot.slane %v379, %v393
      %v396 = vunpack.c.l.s4 1966171168
      %v397 = vunpack.c.0.s8 %v396
      %v398 = vlaneseq
      %v399 = vshrl.u32 %v398, 7
      %v400 = vsub.s32 %v397, %v399
      %v401 = vrot.slane %v386, %v400
      %v403 = vunpack.c.l.s4 1966171168
      %v404 = vunpack.c.0.s8 %v403
      %v405 = vlaneseq
      %v406 = vshrl.u32 %v405, 7
      %v407 = vsub.s32 %v404, %v406
      %v408 = vrot.slane %v387, %v407
      %v409 = vcombine.high %v394, %v394
      %v410 = vcombine.high %v408, %v408
      %v411 = vcombine.high %v286, %v286
      %v413 = vunpack.c.l.s4 1966171168
      %v414 = vunpack.c.0.s8 %v413
      %v415 = vlaneseq
      %v416 = vshrl.u32 %v415, 7
      %v417 = vsub.s32 %v414, %v416
      %v418 = vrot.slane %v286, %v417
      %v420 = vunpack.c.l.s4 1966171168
      %v421 = vunpack.c.0.s8 %v420
      %v422 = vlaneseq
      %v423 = vshrl.u32 %v422, 7
      %v424 = vsub.s32 %v421, %v423
      %v425 = vrot.slane %v411, %v424
      %v426 = vcombine.high %v418, %v418
      %v428 = vunpack.c.l.s4 1966171168
      %v429 = vunpack.c.0.s8 %v428
      %v430 = vlaneseq
      %v431 = vshrl.u32 %v430, 7
      %v432 = vsub.s32 %v429, %v431
      %v433 = vrot.slane %v418, %v432
      %v435 = vunpack.c.l.s4 1966171168
      %v436 = vunpack.c.0.s8 %v435
      %v437 = vlaneseq
      %v438 = vshrl.u32 %v437, 7
      %v439 = vsub.s32 %v436, %v438
      %v440 = vrot.slane %v425, %v439
      %v442 = vunpack.c.l.s4 1966171168
      %v443 = vunpack.c.0.s8 %v442
      %v444 = vlaneseq
      %v445 = vshrl.u32 %v444, 7
      %v446 = vsub.s32 %v443, %v445
      %v447 = vrot.slane %v426, %v446
      %v448 = vcombine.high %v433, %v433
      %v449 = vcombine.high %v447, %v447
      %v450 = vcombine.high %v287, %v287
      %v452 = vunpack.c.l.s4 1966171168
      %v453 = vunpack.c.0.s8 %v452
      %v454 = vlaneseq
      %v455 = vshrl.u32 %v454, 7
      %v456 = vsub.s32 %v453, %v455
      %v457 = vrot.slane %v287, %v456
      %v459 = vunpack.c.l.s4 1966171168
      %v460 = vunpack.c.0.s8 %v459
      %v461 = vlaneseq
      %v462 = vshrl.u32 %v461, 7
      %v463 = vsub.s32 %v460, %v462
      %v464 = vrot.slane %v450, %v463
      %v465 = vcombine.high %v457, %v457
      %v467 = vunpack.c.l.s4 1966171168
      %v468 = vunpack.c.0.s8 %v467
      %v469 = vlaneseq
      %v470 = vshrl.u32 %v469, 7
      %v471 = vsub.s32 %v468, %v470
      %v472 = vrot.slane %v457, %v471
      %v474 = vunpack.c.l.s4 1966171168
      %v475 = vunpack.c.0.s8 %v474
      %v476 = vlaneseq
      %v477 = vshrl.u32 %v476, 7
      %v478 = vsub.s32 %v475, %v477
      %v479 = vrot.slane %v464, %v478
      %v481 = vunpack.c.l.s4 1966171168
      %v482 = vunpack.c.0.s8 %v481
      %v483 = vlaneseq
      %v484 = vshrl.u32 %v483, 7
      %v485 = vsub.s32 %v482, %v484
      %v486 = vrot.slane %v465, %v485
      %v487 = vcombine.high %v472, %v472
      %v488 = vcombine.high %v486, %v486
      %v489 = vcombine.high %v308, %v308
      %v491 = vunpack.c.l.s4 1966171168
      %v492 = vunpack.c.0.s8 %v491
      %v493 = vlaneseq
      %v494 = vshrl.u32 %v493, 7
      %v495 = vsub.s32 %v492, %v494
      %v496 = vrot.slane %v489, %v495
      %v497 = vcombine.high %v347, %v347
      %v499 = vunpack.c.l.s4 1966171168
      %v500 = vunpack.c.0.s8 %v499
      %v501 = vlaneseq
      %v502 = vshrl.u32 %v501, 7
      %v503 = vsub.s32 %v500, %v502
      %v504 = vrot.slane %v497, %v503
      %v505 = vcombine.high %v386, %v386
      %v507 = vunpack.c.l.s4 1966171168
      %v508 = vunpack.c.0.s8 %v507
      %v509 = vlaneseq
      %v510 = vshrl.u32 %v509, 7
      %v511 = vsub.s32 %v508, %v510
      %v512 = vrot.slane %v505, %v511
      %v513 = vcombine.high %v425, %v425
      %v515 = vunpack.c.l.s4 1966171168
      %v516 = vunpack.c.0.s8 %v515
      %v517 = vlaneseq
      %v518 = vshrl.u32 %v517, 7
      %v519 = vsub.s32 %v516, %v518
      %v520 = vrot.slane %v513, %v519
      %v521 = vcombine.high %v464, %v464
      %v523 = vunpack.c.l.s4 1966171168
      %v524 = vunpack.c.0.s8 %v523
      %v525 = vlaneseq
      %v526 = vshrl.u32 %v525, 7
      %v527 = vsub.s32 %v524, %v526
      %v528 = vrot.slane %v521, %v527
      %v529 = vcombine.high %v323, %v323
      %v530 = vcombine.high %v362, %v362
      %v531 = vcombine.high %v401, %v401
      %v532 = vcombine.high %v440, %v440
      %v533 = vcombine.high %v479, %v479
      %v535 = vcombine.high %v288, %v288
      %v537 = vunpack.c.l.s4 1966171168
      %v538 = vunpack.c.0.s8 %v537
      %v539 = vlaneseq
      %v540 = vshrl.u32 %v539, 7
      %v541 = vsub.s32 %v538, %v540
      %v542 = vrot.slane %v288, %v541
      %v544 = vunpack.c.l.s4 1966171168
      %v545 = vunpack.c.0.s8 %v544
      %v546 = vlaneseq
      %v547 = vshrl.u32 %v546, 7
      %v548 = vsub.s32 %v545, %v547
      %v549 = vrot.slane %v535, %v548
      %v550 = vcombine.high %v542, %v542
      %v552 = vunpack.c.l.s4 1966171168
      %v553 = vunpack.c.0.s8 %v552
      %v554 = vlaneseq
      %v555 = vshrl.u32 %v554, 7
      %v556 = vsub.s32 %v553, %v555
      %v557 = vrot.slane %v542, %v556
      %v559 = vunpack.c.l.s4 1966171168
      %v560 = vunpack.c.0.s8 %v559
      %v561 = vlaneseq
      %v562 = vshrl.u32 %v561, 7
      %v563 = vsub.s32 %v560, %v562
      %v564 = vrot.slane %v549, %v563
      %v566 = vunpack.c.l.s4 1966171168
      %v567 = vunpack.c.0.s8 %v566
      %v568 = vlaneseq
      %v569 = vshrl.u32 %v568, 7
      %v570 = vsub.s32 %v567, %v569
      %v571 = vrot.slane %v550, %v570
      %v572 = vcombine.high %v557, %v557
      %v573 = vcombine.high %v571, %v571
      %v574 = vcombine.high %v549, %v549
      %v576 = vunpack.c.l.s4 1966171168
      %v577 = vunpack.c.0.s8 %v576
      %v578 = vlaneseq
      %v579 = vshrl.u32 %v578, 7
      %v580 = vsub.s32 %v577, %v579
      %v581 = vrot.slane %v574, %v580
      %v582 = vcombine.high %v564, %v564
      %v583 = vcombine.low %v316, %v330
      %v584 = vcombine.low %v331, %v332
      %v585 = vcombine.low %v323, %v355
      %v586 = vcombine.low %v369, %v370
      %v588 = vunpack.c.l.s4 1966171168
      %v589 = vunpack.c.0.s8 %v588
      %v590 = vlaneseq
      %v591 = vshrl.u32 %v590, 7
      %v592 = vsub.s32 %v589, %v591
      %v593 = vrot.slane %v583, %v592
      %v595 = vunpack.c.l.s4 1966171168
      %v596 = vunpack.c.0.s8 %v595
      %v597 = vlaneseq
      %v598 = vshrl.u32 %v597, 7
      %v599 = vsub.s32 %v596, %v598
      %v600 = vrot.slane %v584, %v599
      %v602 = vunpack.c.l.s4 1966171168
      %v603 = vunpack.c.0.s8 %v602
      %v604 = vlaneseq
      %v605 = vshrl.u32 %v604, 7
      %v606 = vsub.s32 %v603, %v605
      %v607 = vrot.slane %v585, %v606
      %v609 = vunpack.c.l.s4 1966171168
      %v610 = vunpack.c.0.s8 %v609
      %v611 = vlaneseq
      %v612 = vshrl.u32 %v611, 7
      %v613 = vsub.s32 %v610, %v612
      %v614 = vrot.slane %v586, %v613
      %v615 = vcombine.low %v593, %v600
      %v616 = vcombine.low %v607, %v614
      %v618 = vunpack.c.l.s4 1966171168
      %v619 = vunpack.c.0.s8 %v618
      %v620 = vlaneseq
      %v621 = vshrl.u32 %v620, 7
      %v622 = vsub.s32 %v619, %v621
      %v623 = vrot.slane %v615, %v622
      %v625 = vunpack.c.l.s4 1966171168
      %v626 = vunpack.c.0.s8 %v625
      %v627 = vlaneseq
      %v628 = vshrl.u32 %v627, 7
      %v629 = vsub.s32 %v626, %v628
      %v630 = vrot.slane %v616, %v629
      %v631 = vcombine.low %v623, %v630
      %v632 = vcombine.low %v371, %v362
      %v633 = vcombine.low %v394, %v408
      %v634 = vcombine.low %v409, %v410
      %v635 = vcombine.low %v401, %v433
      %v637 = vunpack.c.l.s4 1966171168
      %v638 = vunpack.c.0.s8 %v637
      %v639 = vlaneseq
      %v640 = vshrl.u32 %v639, 7
      %v641 = vsub.s32 %v638, %v640
      %v642 = vrot.slane %v632, %v641
      %v644 = vunpack.c.l.s4 1966171168
      %v645 = vunpack.c.0.s8 %v644
      %v646 = vlaneseq
      %v647 = vshrl.u32 %v646, 7
      %v648 = vsub.s32 %v645, %v647
      %v649 = vrot.slane %v633, %v648
      %v651 = vunpack.c.l.s4 1966171168
      %v652 = vunpack.c.0.s8 %v651
      %v653 = vlaneseq
      %v654 = vshrl.u32 %v653, 7
      %v655 = vsub.s32 %v652, %v654
      %v656 = vrot.slane %v634, %v655
      %v658 = vunpack.c.l.s4 1966171168
      %v659 = vunpack.c.0.s8 %v658
      %v660 = vlaneseq
      %v661 = vshrl.u32 %v660, 7
      %v662 = vsub.s32 %v659, %v661
      %v663 = vrot.slane %v635, %v662
      %v664 = vcombine.low %v642, %v649
      %v665 = vcombine.low %v656, %v663
      %v667 = vunpack.c.l.s4 1966171168
      %v668 = vunpack.c.0.s8 %v667
      %v669 = vlaneseq
      %v670 = vshrl.u32 %v669, 7
      %v671 = vsub.s32 %v668, %v670
      %v672 = vrot.slane %v664, %v671
      %v674 = vunpack.c.l.s4 1966171168
      %v675 = vunpack.c.0.s8 %v674
      %v676 = vlaneseq
      %v677 = vshrl.u32 %v676, 7
      %v678 = vsub.s32 %v675, %v677
      %v679 = vrot.slane %v665, %v678
      %v680 = vcombine.low %v672, %v679
      %v681 = vcombine.low %v447, %v448
      %v682 = vcombine.low %v449, %v440
      %v683 = vcombine.low %v472, %v486
      %v684 = vcombine.low %v487, %v488
      %v686 = vunpack.c.l.s4 1966171168
      %v687 = vunpack.c.0.s8 %v686
      %v688 = vlaneseq
      %v689 = vshrl.u32 %v688, 7
      %v690 = vsub.s32 %v687, %v689
      %v691 = vrot.slane %v681, %v690
      %v693 = vunpack.c.l.s4 1966171168
      %v694 = vunpack.c.0.s8 %v693
      %v695 = vlaneseq
      %v696 = vshrl.u32 %v695, 7
      %v697 = vsub.s32 %v694, %v696
      %v698 = vrot.slane %v682, %v697
      %v700 = vunpack.c.l.s4 1966171168
      %v701 = vunpack.c.0.s8 %v700
      %v702 = vlaneseq
      %v703 = vshrl.u32 %v702, 7
      %v704 = vsub.s32 %v701, %v703
      %v705 = vrot.slane %v683, %v704
      %v707 = vunpack.c.l.s4 1966171168
      %v708 = vunpack.c.0.s8 %v707
      %v709 = vlaneseq
      %v710 = vshrl.u32 %v709, 7
      %v711 = vsub.s32 %v708, %v710
      %v712 = vrot.slane %v684, %v711
      %v713 = vcombine.low %v691, %v698
      %v714 = vcombine.low %v705, %v712
      %v716 = vunpack.c.l.s4 1966171168
      %v717 = vunpack.c.0.s8 %v716
      %v718 = vlaneseq
      %v719 = vshrl.u32 %v718, 7
      %v720 = vsub.s32 %v717, %v719
      %v721 = vrot.slane %v713, %v720
      %v723 = vunpack.c.l.s4 1966171168
      %v724 = vunpack.c.0.s8 %v723
      %v725 = vlaneseq
      %v726 = vshrl.u32 %v725, 7
      %v727 = vsub.s32 %v724, %v726
      %v728 = vrot.slane %v714, %v727
      %v729 = vcombine.low %v721, %v728
      %v731 = vunpack.c.l.s4 1966171168
      %v732 = vunpack.c.0.s8 %v731
      %v733 = vlaneseq
      %v734 = vshrl.u32 %v733, 7
      %v735 = vsub.s32 %v732, %v734
      %v736 = vrot.slane %v479, %v735
      %v738 = vunpack.c.l.s4 1966171168
      %v739 = vunpack.c.0.s8 %v738
      %v740 = vlaneseq
      %v741 = vshrl.u32 %v740, 7
      %v742 = vsub.s32 %v739, %v741
      %v743 = vrot.slane %v736, %v742
      %v748 = vcombine.low %v330, %v331
      %v749 = vcombine.low %v332, %v323
      %v750 = vcombine.low %v496, %v369
      %v751 = vcombine.low %v370, %v371
      %v753 = vunpack.c.l.s4 1966171168
      %v754 = vunpack.c.0.s8 %v753
      %v755 = vlaneseq
      %v756 = vshrl.u32 %v755, 7
      %v757 = vsub.s32 %v754, %v756
      %v758 = vrot.slane %v748, %v757
      %v760 = vunpack.c.l.s4 1966171168
      %v761 = vunpack.c.0.s8 %v760
      %v762 = vlaneseq
      %v763 = vshrl.u32 %v762, 7
      %v764 = vsub.s32 %v761, %v763
      %v765 = vrot.slane %v749, %v764
      %v767 = vunpack.c.l.s4 1966171168
      %v768 = vunpack.c.0.s8 %v767
      %v769 = vlaneseq
      %v770 = vshrl.u32 %v769, 7
      %v771 = vsub.s32 %v768, %v770
      %v772 = vrot.slane %v750, %v771
      %v774 = vunpack.c.l.s4 1966171168
      %v775 = vunpack.c.0.s8 %v774
      %v776 = vlaneseq
      %v777 = vshrl.u32 %v776, 7
      %v778 = vsub.s32 %v775, %v777
      %v779 = vrot.slane %v751, %v778
      %v780 = vcombine.low %v758, %v765
      %v781 = vcombine.low %v772, %v779
      %v783 = vunpack.c.l.s4 1966171168
      %v784 = vunpack.c.0.s8 %v783
      %v785 = vlaneseq
      %v786 = vshrl.u32 %v785, 7
      %v787 = vsub.s32 %v784, %v786
      %v788 = vrot.slane %v780, %v787
      %v790 = vunpack.c.l.s4 1966171168
      %v791 = vunpack.c.0.s8 %v790
      %v792 = vlaneseq
      %v793 = vshrl.u32 %v792, 7
      %v794 = vsub.s32 %v791, %v793
      %v795 = vrot.slane %v781, %v794
      %v796 = vcombine.low %v788, %v795
      %v797 = vcombine.low %v362, %v504
      %v798 = vcombine.low %v408, %v409
      %v799 = vcombine.low %v410, %v401
      %v800 = vcombine.low %v512, %v447
      %v802 = vunpack.c.l.s4 1966171168
      %v803 = vunpack.c.0.s8 %v802
      %v804 = vlaneseq
      %v805 = vshrl.u32 %v804, 7
      %v806 = vsub.s32 %v803, %v805
      %v807 = vrot.slane %v797, %v806
      %v809 = vunpack.c.l.s4 1966171168
      %v810 = vunpack.c.0.s8 %v809
      %v811 = vlaneseq
      %v812 = vshrl.u32 %v811, 7
      %v813 = vsub.s32 %v810, %v812
      %v814 = vrot.slane %v798, %v813
      %v816 = vunpack.c.l.s4 1966171168
      %v817 = vunpack.c.0.s8 %v816
      %v818 = vlaneseq
      %v819 = vshrl.u32 %v818, 7
      %v820 = vsub.s32 %v817, %v819
      %v821 = vrot.slane %v799, %v820
      %v823 = vunpack.c.l.s4 1966171168
      %v824 = vunpack.c.0.s8 %v823
      %v825 = vlaneseq
      %v826 = vshrl.u32 %v825, 7
      %v827 = vsub.s32 %v824, %v826
      %v828 = vrot.slane %v800, %v827
      %v829 = vcombine.low %v807, %v814
      %v830 = vcombine.low %v821, %v828
      %v832 = vunpack.c.l.s4 1966171168
      %v833 = vunpack.c.0.s8 %v832
      %v834 = vlaneseq
      %v835 = vshrl.u32 %v834, 7
      %v836 = vsub.s32 %v833, %v835
      %v837 = vrot.slane %v829, %v836
      %v839 = vunpack.c.l.s4 1966171168
      %v840 = vunpack.c.0.s8 %v839
      %v841 = vlaneseq
      %v842 = vshrl.u32 %v841, 7
      %v843 = vsub.s32 %v840, %v842
      %v844 = vrot.slane %v830, %v843
      %v845 = vcombine.low %v837, %v844
      %v846 = vcombine.low %v448, %v449
      %v847 = vcombine.low %v440, %v520
      %v848 = vcombine.low %v486, %v487
      %v849 = vcombine.low %v488, %v479
      %v851 = vunpack.c.l.s4 1966171168
      %v852 = vunpack.c.0.s8 %v851
      %v853 = vlaneseq
      %v854 = vshrl.u32 %v853, 7
      %v855 = vsub.s32 %v852, %v854
      %v856 = vrot.slane %v846, %v855
      %v858 = vunpack.c.l.s4 1966171168
      %v859 = vunpack.c.0.s8 %v858
      %v860 = vlaneseq
      %v861 = vshrl.u32 %v860, 7
      %v862 = vsub.s32 %v859, %v861
      %v863 = vrot.slane %v847, %v862
      %v865 = vunpack.c.l.s4 1966171168
      %v866 = vunpack.c.0.s8 %v865
      %v867 = vlaneseq
      %v868 = vshrl.u32 %v867, 7
      %v869 = vsub.s32 %v866, %v868
      %v870 = vrot.slane %v848, %v869
      %v872 = vunpack.c.l.s4 1966171168
      %v873 = vunpack.c.0.s8 %v872
      %v874 = vlaneseq
      %v875 = vshrl.u32 %v874, 7
      %v876 = vsub.s32 %v873, %v875
      %v877 = vrot.slane %v849, %v876
      %v878 = vcombine.low %v856, %v863
      %v879 = vcombine.low %v870, %v877
      %v881 = vunpack.c.l.s4 1966171168
      %v882 = vunpack.c.0.s8 %v881
      %v883 = vlaneseq
      %v884 = vshrl.u32 %v883, 7
      %v885 = vsub.s32 %v882, %v884
      %v886 = vrot.slane %v878, %v885
      %v888 = vunpack.c.l.s4 1966171168
      %v889 = vunpack.c.0.s8 %v888
      %v890 = vlaneseq
      %v891 = vshrl.u32 %v890, 7
      %v892 = vsub.s32 %v889, %v891
      %v893 = vrot.slane %v879, %v892
      %v894 = vcombine.low %v886, %v893
      %v896 = vunpack.c.l.s4 1966171168
      %v897 = vunpack.c.0.s8 %v896
      %v898 = vlaneseq
      %v899 = vshrl.u32 %v898, 7
      %v900 = vsub.s32 %v897, %v899
      %v901 = vrot.slane %v528, %v900
      %v903 = vunpack.c.l.s4 1966171168
      %v904 = vunpack.c.0.s8 %v903
      %v905 = vlaneseq
      %v906 = vshrl.u32 %v905, 7
      %v907 = vsub.s32 %v904, %v906
      %v908 = vrot.slane %v901, %v907
      %909 = vrot.lane.b32.xlu0 %v796, 32
      %v910 = vpop.permute.xlu0 %909
      %911 = vrot.lane.b32.xlu0 %v845, 32
      %v912 = vpop.permute.xlu0 %911
      %913 = vrot.lane.b32.xlu0 %v894, 32
      %v914 = vpop.permute.xlu0 %913
      %915 = vrot.lane.b32.xlu0 %v908, 32
      %v916 = vpop.permute.xlu0 %915
      %v921 = vcombine.low %v323, %v496
      %v922 = vcombine.low %v529, %v370
      %v924 = vunpack.c.l.s4 1966171168
      %v925 = vunpack.c.0.s8 %v924
      %v926 = vlaneseq
      %v927 = vshrl.u32 %v926, 7
      %v928 = vsub.s32 %v925, %v927
      %v929 = vrot.slane %v921, %v928
      %v931 = vunpack.c.l.s4 1966171168
      %v932 = vunpack.c.0.s8 %v931
      %v933 = vlaneseq
      %v934 = vshrl.u32 %v933, 7
      %v935 = vsub.s32 %v932, %v934
      %v936 = vrot.slane %v922, %v935
      %v937 = vcombine.low %v600, %v929
      %v938 = vcombine.low %v936, %v642
      %v940 = vunpack.c.l.s4 1966171168
      %v941 = vunpack.c.0.s8 %v940
      %v942 = vlaneseq
      %v943 = vshrl.u32 %v942, 7
      %v944 = vsub.s32 %v941, %v943
      %v945 = vrot.slane %v937, %v944
      %v947 = vunpack.c.l.s4 1966171168
      %v948 = vunpack.c.0.s8 %v947
      %v949 = vlaneseq
      %v950 = vshrl.u32 %v949, 7
      %v951 = vsub.s32 %v948, %v950
      %v952 = vrot.slane %v938, %v951
      %v953 = vcombine.low %v945, %v952
      %v954 = vcombine.low %v504, %v530
      %v955 = vcombine.low %v401, %v512
      %v956 = vcombine.low %v531, %v448
      %v958 = vunpack.c.l.s4 1966171168
      %v959 = vunpack.c.0.s8 %v958
      %v960 = vlaneseq
      %v961 = vshrl.u32 %v960, 7
      %v962 = vsub.s32 %v959, %v961
      %v963 = vrot.slane %v954, %v962
      %v965 = vunpack.c.l.s4 1966171168
      %v966 = vunpack.c.0.s8 %v965
      %v967 = vlaneseq
      %v968 = vshrl.u32 %v967, 7
      %v969 = vsub.s32 %v966, %v968
      %v970 = vrot.slane %v955, %v969
      %v972 = vunpack.c.l.s4 1966171168
      %v973 = vunpack.c.0.s8 %v972
      %v974 = vlaneseq
      %v975 = vshrl.u32 %v974, 7
      %v976 = vsub.s32 %v973, %v975
      %v977 = vrot.slane %v956, %v976
      %v978 = vcombine.low %v963, %v656
      %v979 = vcombine.low %v970, %v977
      %v981 = vunpack.c.l.s4 1966171168
      %v982 = vunpack.c.0.s8 %v981
      %v983 = vlaneseq
      %v984 = vshrl.u32 %v983, 7
      %v985 = vsub.s32 %v982, %v984
      %v986 = vrot.slane %v978, %v985
      %v988 = vunpack.c.l.s4 1966171168
      %v989 = vunpack.c.0.s8 %v988
      %v990 = vlaneseq
      %v991 = vshrl.u32 %v990, 7
      %v992 = vsub.s32 %v989, %v991
      %v993 = vrot.slane %v979, %v992
      %v994 = vcombine.low %v986, %v993
      %v995 = vcombine.low %v520, %v532
      %v996 = vcombine.low %v479, %v528
      %v998 = vunpack.c.l.s4 1966171168
      %v999 = vunpack.c.0.s8 %v998
      %v1000 = vlaneseq
      %v1001 = vshrl.u32 %v1000, 7
      %v1002 = vsub.s32 %v999, %v1001
      %v1003 = vrot.slane %v995, %v1002
      %v1005 = vunpack.c.l.s4 1966171168
      %v1006 = vunpack.c.0.s8 %v1005
      %v1007 = vlaneseq
      %v1008 = vshrl.u32 %v1007, 7
      %v1009 = vsub.s32 %v1006, %v1008
      %v1010 = vrot.slane %v996, %v1009
      %v1011 = vcombine.low %v698, %v1003
      %v1012 = vcombine.low %v712, %v1010
      %v1014 = vunpack.c.l.s4 1966171168
      %v1015 = vunpack.c.0.s8 %v1014
      %v1016 = vlaneseq
      %v1017 = vshrl.u32 %v1016, 7
      %v1018 = vsub.s32 %v1015, %v1017
      %v1019 = vrot.slane %v1011, %v1018
      %v1021 = vunpack.c.l.s4 1966171168
      %v1022 = vunpack.c.0.s8 %v1021
      %v1023 = vlaneseq
      %v1024 = vshrl.u32 %v1023, 7
      %v1025 = vsub.s32 %v1022, %v1024
      %v1026 = vrot.slane %v1012, %v1025
      %v1027 = vcombine.low %v1019, %v1026
      %v1029 = vunpack.c.l.s4 1966171168
      %v1030 = vunpack.c.0.s8 %v1029
      %v1031 = vlaneseq
      %v1032 = vshrl.u32 %v1031, 7
      %v1033 = vsub.s32 %v1030, %v1032
      %v1034 = vrot.slane %v533, %v1033
      %v1036 = vunpack.c.l.s4 1966171168
      %v1037 = vunpack.c.0.s8 %v1036
      %v1038 = vlaneseq
      %v1039 = vshrl.u32 %v1038, 7
      %v1040 = vsub.s32 %v1037, %v1039
      %v1041 = vrot.slane %v1034, %v1040
      %1042 = vrot.lane.b32.xlu0 %v953, 64
      %v1043 = vpop.permute.xlu0 %1042
      %1044 = vrot.lane.b32.xlu0 %v994, 64
      %v1045 = vpop.permute.xlu0 %1044
      %1046 = vrot.lane.b32.xlu0 %v1027, 64
      %v1047 = vpop.permute.xlu0 %1046
      %1048 = vrot.lane.b32.xlu0 %v1041, 64
      %v1049 = vpop.permute.xlu0 %1048
      %v1054 = vcombine.low %v355, %v369
      %v1055 = vcombine.low %v362, %v394
      %v1057 = vunpack.c.l.s4 1966171168
      %v1058 = vunpack.c.0.s8 %v1057
      %v1059 = vlaneseq
      %v1060 = vshrl.u32 %v1059, 7
      %v1061 = vsub.s32 %v1058, %v1060
      %v1062 = vrot.slane %v1054, %v1061
      %v1064 = vunpack.c.l.s4 1966171168
      %v1065 = vunpack.c.0.s8 %v1064
      %v1066 = vlaneseq
      %v1067 = vshrl.u32 %v1066, 7
      %v1068 = vsub.s32 %v1065, %v1067
      %v1069 = vrot.slane %v1055, %v1068
      %v1070 = vcombine.low %v1062, %v779
      %v1071 = vcombine.low %v1069, %v814
      %v1073 = vunpack.c.l.s4 1966171168
      %v1074 = vunpack.c.0.s8 %v1073
      %v1075 = vlaneseq
      %v1076 = vshrl.u32 %v1075, 7
      %v1077 = vsub.s32 %v1074, %v1076
      %v1078 = vrot.slane %v1070, %v1077
      %v1080 = vunpack.c.l.s4 1966171168
      %v1081 = vunpack.c.0.s8 %v1080
      %v1082 = vlaneseq
      %v1083 = vshrl.u32 %v1082, 7
      %v1084 = vsub.s32 %v1081, %v1083
      %v1085 = vrot.slane %v1071, %v1084
      %v1086 = vcombine.low %v1078, %v1085
      %v1087 = vcombine.low %v433, %v447
      %v1088 = vcombine.low %v440, %v472
      %v1090 = vunpack.c.l.s4 1966171168
      %v1091 = vunpack.c.0.s8 %v1090
      %v1092 = vlaneseq
      %v1093 = vshrl.u32 %v1092, 7
      %v1094 = vsub.s32 %v1091, %v1093
      %v1095 = vrot.slane %v1087, %v1094
      %v1097 = vunpack.c.l.s4 1966171168
      %v1098 = vunpack.c.0.s8 %v1097
      %v1099 = vlaneseq
      %v1100 = vshrl.u32 %v1099, 7
      %v1101 = vsub.s32 %v1098, %v1100
      %v1102 = vrot.slane %v1088, %v1101
      %v1103 = vcombine.low %v821, %v1095
      %v1104 = vcombine.low %v856, %v1102
      %v1106 = vunpack.c.l.s4 1966171168
      %v1107 = vunpack.c.0.s8 %v1106
      %v1108 = vlaneseq
      %v1109 = vshrl.u32 %v1108, 7
      %v1110 = vsub.s32 %v1107, %v1109
      %v1111 = vrot.slane %v1103, %v1110
      %v1113 = vunpack.c.l.s4 1966171168
      %v1114 = vunpack.c.0.s8 %v1113
      %v1115 = vlaneseq
      %v1116 = vshrl.u32 %v1115, 7
      %v1117 = vsub.s32 %v1114, %v1116
      %v1118 = vrot.slane %v1104, %v1117
      %v1119 = vcombine.low %v1111, %v1118
      %v1120 = vcombine.low %v557, %v571
      %v1121 = vcombine.low %v572, %v573
      %v1123 = vunpack.c.l.s4 1966171168
      %v1124 = vunpack.c.0.s8 %v1123
      %v1125 = vlaneseq
      %v1126 = vshrl.u32 %v1125, 7
      %v1127 = vsub.s32 %v1124, %v1126
      %v1128 = vrot.slane %v1120, %v1127
      %v1130 = vunpack.c.l.s4 1966171168
      %v1131 = vunpack.c.0.s8 %v1130
      %v1132 = vlaneseq
      %v1133 = vshrl.u32 %v1132, 7
      %v1134 = vsub.s32 %v1131, %v1133
      %v1135 = vrot.slane %v1121, %v1134
      %v1136 = vcombine.low %v1128, %v1135
      %v1138 = vunpack.c.l.s4 1966171168
      %v1139 = vunpack.c.0.s8 %v1138
      %v1140 = vlaneseq
      %v1141 = vshrl.u32 %v1140, 7
      %v1142 = vsub.s32 %v1139, %v1141
      %v1143 = vrot.slane %v1136, %v1142
      %v1144 = vcombine.low %v893, %v1143
      %v1146 = vunpack.c.l.s4 1966171168
      %v1147 = vunpack.c.0.s8 %v1146
      %v1148 = vlaneseq
      %v1149 = vshrl.u32 %v1148, 7
      %v1150 = vsub.s32 %v1147, %v1149
      %v1151 = vrot.slane %v564, %v1150
      %v1153 = vunpack.c.l.s4 1966171168
      %v1154 = vunpack.c.0.s8 %v1153
      %v1155 = vlaneseq
      %v1156 = vshrl.u32 %v1155, 7
      %v1157 = vsub.s32 %v1154, %v1156
      %v1158 = vrot.slane %v1151, %v1157
      %1159 = vrot.lane.b32.xlu0 %v1086, 96
      %v1160 = vpop.permute.xlu0 %1159
      %1161 = vrot.lane.b32.xlu0 %v1119, 96
      %v1162 = vpop.permute.xlu0 %1161
      %1163 = vrot.lane.b32.xlu0 %v1144, 96
      %v1164 = vpop.permute.xlu0 %1163
      %1165 = vrot.lane.b32.xlu0 %v1158, 96
      %v1166 = vpop.permute.xlu0 %1165
      %v1171 = vcombine.low %v504, %v408
      %v1173 = vunpack.c.l.s4 1966171168
      %v1174 = vunpack.c.0.s8 %v1173
      %v1175 = vlaneseq
      %v1176 = vshrl.u32 %v1175, 7
      %v1177 = vsub.s32 %v1174, %v1176
      %v1178 = vrot.slane %v1171, %v1177
      %v1179 = vcombine.low %v614, %v642
      %v1180 = vcombine.low %v1178, %v656
      %v1182 = vunpack.c.l.s4 1966171168
      %v1183 = vunpack.c.0.s8 %v1182
      %v1184 = vlaneseq
      %v1185 = vshrl.u32 %v1184, 7
      %v1186 = vsub.s32 %v1183, %v1185
      %v1187 = vrot.slane %v1179, %v1186
      %v1189 = vunpack.c.l.s4 1966171168
      %v1190 = vunpack.c.0.s8 %v1189
      %v1191 = vlaneseq
      %v1192 = vshrl.u32 %v1191, 7
      %v1193 = vsub.s32 %v1190, %v1192
      %v1194 = vrot.slane %v1180, %v1193
      %v1195 = vcombine.low %v1187, %v1194
      %v1196 = vcombine.low %v520, %v486
      %v1198 = vunpack.c.l.s4 1966171168
      %v1199 = vunpack.c.0.s8 %v1198
      %v1200 = vlaneseq
      %v1201 = vshrl.u32 %v1200, 7
      %v1202 = vsub.s32 %v1199, %v1201
      %v1203 = vrot.slane %v1196, %v1202
      %v1204 = vcombine.low %v970, %v691
      %v1205 = vcombine.low %v698, %v1203
      %v1207 = vunpack.c.l.s4 1966171168
      %v1208 = vunpack.c.0.s8 %v1207
      %v1209 = vlaneseq
      %v1210 = vshrl.u32 %v1209, 7
      %v1211 = vsub.s32 %v1208, %v1210
      %v1212 = vrot.slane %v1204, %v1211
      %v1214 = vunpack.c.l.s4 1966171168
      %v1215 = vunpack.c.0.s8 %v1214
      %v1216 = vlaneseq
      %v1217 = vshrl.u32 %v1216, 7
      %v1218 = vsub.s32 %v1215, %v1217
      %v1219 = vrot.slane %v1205, %v1218
      %v1220 = vcombine.low %v1212, %v1219
      %v1221 = vcombine.low %v571, %v572
      %v1222 = vcombine.low %v573, %v564
      %v1224 = vunpack.c.l.s4 1966171168
      %v1225 = vunpack.c.0.s8 %v1224
      %v1226 = vlaneseq
      %v1227 = vshrl.u32 %v1226, 7
      %v1228 = vsub.s32 %v1225, %v1227
      %v1229 = vrot.slane %v1221, %v1228
      %v1231 = vunpack.c.l.s4 1966171168
      %v1232 = vunpack.c.0.s8 %v1231
      %v1233 = vlaneseq
      %v1234 = vshrl.u32 %v1233, 7
      %v1235 = vsub.s32 %v1232, %v1234
      %v1236 = vrot.slane %v1222, %v1235
      %v1237 = vcombine.low %v1229, %v1236
      %v1239 = vunpack.c.l.s4 1966171168
      %v1240 = vunpack.c.0.s8 %v1239
      %v1241 = vlaneseq
      %v1242 = vshrl.u32 %v1241, 7
      %v1243 = vsub.s32 %v1240, %v1242
      %v1244 = vrot.slane %v1237, %v1243
      %v1245 = vcombine.low %v1026, %v1244
      %v1247 = vunpack.c.l.s4 1966171168
      %v1248 = vunpack.c.0.s8 %v1247
      %v1249 = vlaneseq
      %v1250 = vshrl.u32 %v1249, 7
      %v1251 = vsub.s32 %v1248, %v1250
      %v1252 = vrot.slane %v581, %v1251
      %v1254 = vunpack.c.l.s4 1966171168
      %v1255 = vunpack.c.0.s8 %v1254
      %v1256 = vlaneseq
      %v1257 = vshrl.u32 %v1256, 7
      %v1258 = vsub.s32 %v1255, %v1257
      %v1259 = vrot.slane %v1252, %v1258
      %v1264 = vcombine.low %v530, %v409
      %v1266 = vunpack.c.l.s4 1966171168
      %v1267 = vunpack.c.0.s8 %v1266
      %v1268 = vlaneseq
      %v1269 = vshrl.u32 %v1268, 7
      %v1270 = vsub.s32 %v1267, %v1269
      %v1271 = vrot.slane %v1264, %v1270
      %v1272 = vcombine.low %v779, %v807
      %v1273 = vcombine.low %v1271, %v821
      %v1275 = vunpack.c.l.s4 1966171168
      %v1276 = vunpack.c.0.s8 %v1275
      %v1277 = vlaneseq
      %v1278 = vshrl.u32 %v1277, 7
      %v1279 = vsub.s32 %v1276, %v1278
      %v1280 = vrot.slane %v1272, %v1279
      %v1282 = vunpack.c.l.s4 1966171168
      %v1283 = vunpack.c.0.s8 %v1282
      %v1284 = vlaneseq
      %v1285 = vshrl.u32 %v1284, 7
      %v1286 = vsub.s32 %v1283, %v1285
      %v1287 = vrot.slane %v1273, %v1286
      %v1288 = vcombine.low %v1280, %v1287
      %v1289 = vcombine.low %v512, %v531
      %v1290 = vcombine.low %v532, %v487
      %v1292 = vunpack.c.l.s4 1966171168
      %v1293 = vunpack.c.0.s8 %v1292
      %v1294 = vlaneseq
      %v1295 = vshrl.u32 %v1294, 7
      %v1296 = vsub.s32 %v1293, %v1295
      %v1297 = vrot.slane %v1289, %v1296
      %v1299 = vunpack.c.l.s4 1966171168
      %v1300 = vunpack.c.0.s8 %v1299
      %v1301 = vlaneseq
      %v1302 = vshrl.u32 %v1301, 7
      %v1303 = vsub.s32 %v1300, %v1302
      %v1304 = vrot.slane %v1290, %v1303
      %v1305 = vcombine.low %v1297, %v856
      %v1306 = vcombine.low %v863, %v1304
      %v1308 = vunpack.c.l.s4 1966171168
      %v1309 = vunpack.c.0.s8 %v1308
      %v1310 = vlaneseq
      %v1311 = vshrl.u32 %v1310, 7
      %v1312 = vsub.s32 %v1309, %v1311
      %v1313 = vrot.slane %v1305, %v1312
      %v1315 = vunpack.c.l.s4 1966171168
      %v1316 = vunpack.c.0.s8 %v1315
      %v1317 = vlaneseq
      %v1318 = vshrl.u32 %v1317, 7
      %v1319 = vsub.s32 %v1316, %v1318
      %v1320 = vrot.slane %v1306, %v1319
      %v1321 = vcombine.low %v1313, %v1320
      %v1322 = vcombine.low %v528, %v533
      %v1323 = vcombine.low %v564, %v581
      %v1325 = vunpack.c.l.s4 1966171168
      %v1326 = vunpack.c.0.s8 %v1325
      %v1327 = vlaneseq
      %v1328 = vshrl.u32 %v1327, 7
      %v1329 = vsub.s32 %v1326, %v1328
      %v1330 = vrot.slane %v1322, %v1329
      %v1332 = vunpack.c.l.s4 1966171168
      %v1333 = vunpack.c.0.s8 %v1332
      %v1334 = vlaneseq
      %v1335 = vshrl.u32 %v1334, 7
      %v1336 = vsub.s32 %v1333, %v1335
      %v1337 = vrot.slane %v1323, %v1336
      %v1338 = vcombine.low %v877, %v1330
      %v1339 = vcombine.low %v1135, %v1337
      %v1341 = vunpack.c.l.s4 1966171168
      %v1342 = vunpack.c.0.s8 %v1341
      %v1343 = vlaneseq
      %v1344 = vshrl.u32 %v1343, 7
      %v1345 = vsub.s32 %v1342, %v1344
      %v1346 = vrot.slane %v1338, %v1345
      %v1348 = vunpack.c.l.s4 1966171168
      %v1349 = vunpack.c.0.s8 %v1348
      %v1350 = vlaneseq
      %v1351 = vshrl.u32 %v1350, 7
      %v1352 = vsub.s32 %v1349, %v1351
      %v1353 = vrot.slane %v1339, %v1352
      %v1354 = vcombine.low %v1346, %v1353
      %v1356 = vunpack.c.l.s4 1966171168
      %v1357 = vunpack.c.0.s8 %v1356
      %v1358 = vlaneseq
      %v1359 = vshrl.u32 %v1358, 7
      %v1360 = vsub.s32 %v1357, %v1359
      %v1361 = vrot.slane %v582, %v1360
      %v1363 = vunpack.c.l.s4 1966171168
      %v1364 = vunpack.c.0.s8 %v1363
      %v1365 = vlaneseq
      %v1366 = vshrl.u32 %v1365, 7
      %v1367 = vsub.s32 %v1364, %v1366
      %v1368 = vrot.slane %v1361, %v1367
      %1369 = vrot.lane.b32.xlu0 %v1288, 32
      %v1370 = vpop.permute.xlu0 %1369
      %1371 = vrot.lane.b32.xlu0 %v1321, 32
      %v1372 = vpop.permute.xlu0 %1371
      %1373 = vrot.lane.b32.xlu0 %v1354, 32
      %v1374 = vpop.permute.xlu0 %1373
      %1375 = vrot.lane.b32.xlu0 %v1368, 32
      %v1376 = vpop.permute.xlu0 %1375
      %v1381 = vcombine.low %v649, %v656
      %v1382 = vcombine.low %v663, %v691
      %v1384 = vunpack.c.l.s4 1966171168
      %v1385 = vunpack.c.0.s8 %v1384
      %v1386 = vlaneseq
      %v1387 = vshrl.u32 %v1386, 7
      %v1388 = vsub.s32 %v1385, %v1387
      %v1389 = vrot.slane %v1381, %v1388
      %v1391 = vunpack.c.l.s4 1966171168
      %v1392 = vunpack.c.0.s8 %v1391
      %v1393 = vlaneseq
      %v1394 = vshrl.u32 %v1393, 7
      %v1395 = vsub.s32 %v1392, %v1394
      %v1396 = vrot.slane %v1382, %v1395
      %v1397 = vcombine.low %v1389, %v1396
      %v1398 = vcombine.low %v479, %v557
      %v1400 = vunpack.c.l.s4 1966171168
      %v1401 = vunpack.c.0.s8 %v1400
      %v1402 = vlaneseq
      %v1403 = vshrl.u32 %v1402, 7
      %v1404 = vsub.s32 %v1401, %v1403
      %v1405 = vrot.slane %v1398, %v1404
      %v1406 = vcombine.low %v698, %v705
      %v1407 = vcombine.low %v712, %v1405
      %v1409 = vunpack.c.l.s4 1966171168
      %v1410 = vunpack.c.0.s8 %v1409
      %v1411 = vlaneseq
      %v1412 = vshrl.u32 %v1411, 7
      %v1413 = vsub.s32 %v1410, %v1412
      %v1414 = vrot.slane %v1406, %v1413
      %v1416 = vunpack.c.l.s4 1966171168
      %v1417 = vunpack.c.0.s8 %v1416
      %v1418 = vlaneseq
      %v1419 = vshrl.u32 %v1418, 7
      %v1420 = vsub.s32 %v1417, %v1419
      %v1421 = vrot.slane %v1407, %v1420
      %v1422 = vcombine.low %v1414, %v1421
      %v1423 = vcombine.low %v1244, %v623
      %v1425 = vunpack.c.l.s4 1966171168
      %v1426 = vunpack.c.0.s8 %v1425
      %v1427 = vlaneseq
      %v1428 = vshrl.u32 %v1427, 7
      %v1429 = vsub.s32 %v1426, %v1428
      %v1430 = vrot.slane %v323, %v1429
      %v1432 = vunpack.c.l.s4 1966171168
      %v1433 = vunpack.c.0.s8 %v1432
      %v1434 = vlaneseq
      %v1435 = vshrl.u32 %v1434, 7
      %v1436 = vsub.s32 %v1433, %v1435
      %v1437 = vrot.slane %v1430, %v1436
      %1438 = vrot.lane.b32.xlu0 %v1397, 64
      %v1439 = vpop.permute.xlu0 %1438
      %1440 = vrot.lane.b32.xlu0 %v1422, 64
      %v1441 = vpop.permute.xlu0 %1440
      %1442 = vrot.lane.b32.xlu0 %v1423, 64
      %v1443 = vpop.permute.xlu0 %1442
      %1444 = vrot.lane.b32.xlu0 %v1437, 64
      %v1445 = vpop.permute.xlu0 %1444
      %v1450 = vcombine.low %v814, %v821
      %v1451 = vcombine.low %v828, %v856
      %v1453 = vunpack.c.l.s4 1966171168
      %v1454 = vunpack.c.0.s8 %v1453
      %v1455 = vlaneseq
      %v1456 = vshrl.u32 %v1455, 7
      %v1457 = vsub.s32 %v1454, %v1456
      %v1458 = vrot.slane %v1450, %v1457
      %v1460 = vunpack.c.l.s4 1966171168
      %v1461 = vunpack.c.0.s8 %v1460
      %v1462 = vlaneseq
      %v1463 = vshrl.u32 %v1462, 7
      %v1464 = vsub.s32 %v1461, %v1463
      %v1465 = vrot.slane %v1451, %v1464
      %v1466 = vcombine.low %v1458, %v1465
      %v1467 = vcombine.low %v528, %v571
      %v1469 = vunpack.c.l.s4 1966171168
      %v1470 = vunpack.c.0.s8 %v1469
      %v1471 = vlaneseq
      %v1472 = vshrl.u32 %v1471, 7
      %v1473 = vsub.s32 %v1470, %v1472
      %v1474 = vrot.slane %v1467, %v1473
      %v1475 = vcombine.low %v863, %v870
      %v1476 = vcombine.low %v877, %v1474
      %v1478 = vunpack.c.l.s4 1966171168
      %v1479 = vunpack.c.0.s8 %v1478
      %v1480 = vlaneseq
      %v1481 = vshrl.u32 %v1480, 7
      %v1482 = vsub.s32 %v1479, %v1481
      %v1483 = vrot.slane %v1475, %v1482
      %v1485 = vunpack.c.l.s4 1966171168
      %v1486 = vunpack.c.0.s8 %v1485
      %v1487 = vlaneseq
      %v1488 = vshrl.u32 %v1487, 7
      %v1489 = vsub.s32 %v1486, %v1488
      %v1490 = vrot.slane %v1476, %v1489
      %v1491 = vcombine.low %v1483, %v1490
      %v1492 = vcombine.low %v1353, %v788
      %v1494 = vunpack.c.l.s4 1966171168
      %v1495 = vunpack.c.0.s8 %v1494
      %v1496 = vlaneseq
      %v1497 = vshrl.u32 %v1496, 7
      %v1498 = vsub.s32 %v1495, %v1497
      %v1499 = vrot.slane %v496, %v1498
      %v1501 = vunpack.c.l.s4 1966171168
      %v1502 = vunpack.c.0.s8 %v1501
      %v1503 = vlaneseq
      %v1504 = vshrl.u32 %v1503, 7
      %v1505 = vsub.s32 %v1502, %v1504
      %v1506 = vrot.slane %v1499, %v1505
      %1507 = vrot.lane.b32.xlu0 %v1466, 96
      %v1508 = vpop.permute.xlu0 %1507
      %1509 = vrot.lane.b32.xlu0 %v1491, 96
      %v1510 = vpop.permute.xlu0 %1509
      %1511 = vrot.lane.b32.xlu0 %v1492, 96
      %v1512 = vpop.permute.xlu0 %1511
      %1513 = vrot.lane.b32.xlu0 %v1506, 96
      %v1514 = vpop.permute.xlu0 %1513
      %v1519 = vcombine.low %v656, %v970
      %v1520 = vcombine.low %v977, %v698
      %v1522 = vunpack.c.l.s4 1966171168
      %v1523 = vunpack.c.0.s8 %v1522
      %v1524 = vlaneseq
      %v1525 = vshrl.u32 %v1524, 7
      %v1526 = vsub.s32 %v1523, %v1525
      %v1527 = vrot.slane %v1519, %v1526
      %v1529 = vunpack.c.l.s4 1966171168
      %v1530 = vunpack.c.0.s8 %v1529
      %v1531 = vlaneseq
      %v1532 = vshrl.u32 %v1531, 7
      %v1533 = vsub.s32 %v1530, %v1532
      %v1534 = vrot.slane %v1520, %v1533
      %v1535 = vcombine.low %v1527, %v1534
      %v1536 = vcombine.low %v533, %v572
      %v1538 = vunpack.c.l.s4 1966171168
      %v1539 = vunpack.c.0.s8 %v1538
      %v1540 = vlaneseq
      %v1541 = vshrl.u32 %v1540, 7
      %v1542 = vsub.s32 %v1539, %v1541
      %v1543 = vrot.slane %v1536, %v1542
      %v1544 = vcombine.low %v1003, %v712
      %v1545 = vcombine.low %v1010, %v1543
      %v1547 = vunpack.c.l.s4 1966171168
      %v1548 = vunpack.c.0.s8 %v1547
      %v1549 = vlaneseq
      %v1550 = vshrl.u32 %v1549, 7
      %v1551 = vsub.s32 %v1548, %v1550
      %v1552 = vrot.slane %v1544, %v1551
      %v1554 = vunpack.c.l.s4 1966171168
      %v1555 = vunpack.c.0.s8 %v1554
      %v1556 = vlaneseq
      %v1557 = vshrl.u32 %v1556, 7
      %v1558 = vsub.s32 %v1555, %v1557
      %v1559 = vrot.slane %v1545, %v1558
      %v1560 = vcombine.low %v1552, %v1559
      %v1561 = vcombine.low %v581, %v582
      %v1563 = vunpack.c.l.s4 1966171168
      %v1564 = vunpack.c.0.s8 %v1563
      %v1565 = vlaneseq
      %v1566 = vshrl.u32 %v1565, 7
      %v1567 = vsub.s32 %v1564, %v1566
      %v1568 = vrot.slane %v1561, %v1567
      %v1569 = vcombine.low %v1236, %v1568
      %v1571 = vunpack.c.l.s4 1966171168
      %v1572 = vunpack.c.0.s8 %v1571
      %v1573 = vlaneseq
      %v1574 = vshrl.u32 %v1573, 7
      %v1575 = vsub.s32 %v1572, %v1574
      %v1576 = vrot.slane %v1569, %v1575
      %v1577 = vcombine.low %v1576, %v945
      %v1579 = vunpack.c.l.s4 1966171168
      %v1580 = vunpack.c.0.s8 %v1579
      %v1581 = vlaneseq
      %v1582 = vshrl.u32 %v1581, 7
      %v1583 = vsub.s32 %v1580, %v1582
      %v1584 = vrot.slane %v529, %v1583
      %v1586 = vunpack.c.l.s4 1966171168
      %v1587 = vunpack.c.0.s8 %v1586
      %v1588 = vlaneseq
      %v1589 = vshrl.u32 %v1588, 7
      %v1590 = vsub.s32 %v1587, %v1589
      %v1591 = vrot.slane %v1584, %v1590
      %vm1596 = vcmask 261120
      %v1597 = vsel %vm1596, %v631, %v910
      %v1598 = vsel %vm1596, %v680, %v912
      %v1599 = vsel %vm1596, %v729, %v914
      %v1600 = vsel %vm1596, %v743, %v916
      %vm1601 = vcmask 523264
      %v1602 = vsel %vm1601, %v1597, %v1043
      %v1603 = vsel %vm1601, %v1598, %v1045
      %v1604 = vsel %vm1601, %v1599, %v1047
      %v1605 = vsel %vm1601, %v1600, %v1049
      %vm1606 = vcmask 785408
      %v1607 = vsel %vm1606, %v1602, %v1160
      %v1608 = vsel %vm1606, %v1603, %v1162
      %v1609 = vsel %vm1606, %v1604, %v1164
      %v1610 = vsel %vm1606, %v1605, %v1166
      %v1611 = vsel %vm1596, %v1195, %v1370
      %v1612 = vsel %vm1596, %v1220, %v1372
      %v1613 = vsel %vm1596, %v1245, %v1374
      %v1614 = vsel %vm1596, %v1259, %v1376
      %v1615 = vsel %vm1601, %v1611, %v1439
      %v1616 = vsel %vm1601, %v1612, %v1441
      %v1617 = vsel %vm1601, %v1613, %v1443
      %v1618 = vsel %vm1601, %v1614, %v1445
      %v1619 = vsel %vm1606, %v1615, %v1508
      %v1620 = vsel %vm1606, %v1616, %v1510
      %v1621 = vsel %vm1606, %v1617, %v1512
      %v1622 = vsel %vm1606, %v1618, %v1514
      %v1623 = vpack.c.bf16 %v1608, %v1607
      %v1624 = vpack.c.bf16 %v1620, %v1619
      %v1625 = vpack.c.bf16 %v1560, %v1535
      %v1626 = vpack.c.bf16 %v1610, %v1609
      %v1627 = vpack.c.bf16 %v1622, %v1621
      %v1628 = vpack.c.bf16 %v1591, %v1577
      %v1629 = vld [vmem:[%s1] sm:$0xf]
      %v1630 = vld [vmem:[%s1 + $0x4] sm:$0xf]
      %v1631 = vld [vmem:[%s1 + $0x8] sm:$0xf]
      %v1632 = vld [vmem:[%s1 + $0xc] sm:$0xf]
      %v1633 = vld [vmem:[%s1 + $0x10] sm:$0xf]
      %v1634 = vld [vmem:[%s1 + $0x14] sm:$0xf]
      %v1635 = vld [vmem:[%s1 + $0x18] sm:$0xf]
      %v1636 = vld [vmem:[%s1 + $0x1c] sm:$0xf]
      %v1637 = vld [vmem:[%s1 + $0x20] sm:$0xf]
      %v1638 = vld [vmem:[%s1 + $0x24] sm:$0xf]
      %v1639 = vld [vmem:[%s1 + $0x28] sm:$0xf]
      %v1640 = vld [vmem:[%s1 + $0x2c] sm:$0xf]
      %v1641 = vld [vmem:[%s1 + $0x30] sm:$0xf]
      %v1642 = vld [vmem:[%s1 + $0x34] sm:$0xf]
      %v1643 = vld [vmem:[%s1 + $0x38] sm:$0xf]
      %v1644 = vld [vmem:[%s1 + $0x3c] sm:$0xf]
      %v1645 = vld [vmem:[%s1 + $0x40] sm:$0xf]
      %v1646 = vld [vmem:[%s1 + $0x44] sm:$0xf]
      %v1647 = vld [vmem:[%s1 + $0x48] sm:$0xf]
      %v1648 = vld [vmem:[%s1 + $0x4c] sm:$0xf]
      %v1649 = vld [vmem:[%s1 + $0x50] sm:$0xf]
      %v1650 = vld [vmem:[%s1 + $0x54] sm:$0xf]
      %v1651 = vld [vmem:[%s1 + $0x58] sm:$0xf]
      %v1652 = vld [vmem:[%s1 + $0x5c] sm:$0xf]
      %v1653 = vld [vmem:[%s1 + $0x60] sm:$0xf]
      %v1654 = vld [vmem:[%s1 + $0x64] sm:$0xf]
      %v1655 = vld [vmem:[%s1 + $0x68] sm:$0xf]
      %v1656 = vld [vmem:[%s1 + $0x6c] sm:$0xf]
      %v1657 = vld [vmem:[%s1 + $0x70] sm:$0xf]
      %v1658 = vld [vmem:[%s1 + $0x74] sm:$0xf]
      %v1659 = vld [vmem:[%s1 + $0x78] sm:$0xf]
      %v1660 = vld [vmem:[%s1 + $0x7c] sm:$0xf]
      %v1661 = vld [vmem:[%s1 + $0x80] sm:$0xf]
      %v1662 = vld [vmem:[%s1 + $0x84] sm:$0xf]
      %v1663 = vld [vmem:[%s1 + $0x88] sm:$0xf]
      %v1664 = vld [vmem:[%s1 + $0x8c] sm:$0xf]
      %v1665 = vld [vmem:[%s2] sm:$0x7]
      %v1666 = vlaneseq
      %v1667 = vshrl.u32 %v1666, 7
      %v1668 = vsub.s32 0, %v1667
      %v1669 = vrot.slane %v1665, %v1668
      %v1706 = vunpack.c.l.b16 %v1629
      %v1707 = vunpack.c.l.b16 %v1630
      %v1708 = vunpack.c.l.b16 %v1631
      %v1709 = vunpack.c.l.b16 %v1632
      %v1710 = vunpack.c.l.b16 %v1633
      %v1711 = vunpack.c.l.b16 %v1634
      %v1712 = vunpack.c.l.b16 %v1635
      %v1713 = vunpack.c.l.b16 %v1636
      %v1714 = vunpack.c.l.b16 %v1637
      %v1715 = vunpack.c.l.b16 %v1638
      %v1716 = vunpack.c.l.b16 %v1639
      %v1717 = vunpack.c.l.b16 %v1640
      %v1718 = vunpack.c.l.b16 %v1641
      %v1719 = vunpack.c.l.b16 %v1642
      %v1720 = vunpack.c.l.b16 %v1643
      %v1721 = vunpack.c.l.b16 %v1644
      %v1722 = vunpack.c.l.b16 %v1645
      %v1723 = vunpack.c.l.b16 %v1646
      %v1724 = vunpack.c.l.b16 %v1647
      %v1725 = vunpack.c.l.b16 %v1648
      %v1726 = vunpack.c.l.b16 %v1649
      %v1727 = vunpack.c.l.b16 %v1650
      %v1728 = vunpack.c.l.b16 %v1651
      %v1729 = vunpack.c.l.b16 %v1652
      %v1730 = vunpack.c.l.b16 %v1653
      %v1731 = vunpack.c.l.b16 %v1654
      %v1732 = vunpack.c.l.b16 %v1655
      %v1733 = vunpack.c.l.b16 %v1656
      %v1734 = vunpack.c.l.b16 %v1657
      %v1735 = vunpack.c.l.b16 %v1658
      %v1736 = vunpack.c.l.b16 %v1659
      %v1737 = vunpack.c.l.b16 %v1660
      %v1738 = vunpack.c.l.b16 %v1661
      %v1739 = vunpack.c.l.b16 %v1662
      %v1740 = vunpack.c.l.b16 %v1663
      %v1741 = vunpack.c.l.b16 %v1664
      %v1742 = vpack.c.b16 %v1707, %v1706
      %v1743 = vpack.c.b16 %v1709, %v1708
      %v1744 = vpack.c.b16 %v1711, %v1710
      %v1745 = vpack.c.b16 %v1713, %v1712
      %v1746 = vpack.c.b16 %v1715, %v1714
      %v1747 = vpack.c.b16 %v1717, %v1716
      %v1748 = vpack.c.b16 %v1719, %v1718
      %v1749 = vpack.c.b16 %v1721, %v1720
      %v1750 = vpack.c.b16 %v1723, %v1722
      %v1751 = vpack.c.b16 %v1725, %v1724
      %v1752 = vpack.c.b16 %v1727, %v1726
      %v1753 = vpack.c.b16 %v1729, %v1728
      %v1754 = vpack.c.b16 %v1731, %v1730
      %v1755 = vpack.c.b16 %v1733, %v1732
      %v1756 = vpack.c.b16 %v1735, %v1734
      %v1757 = vpack.c.b16 %v1737, %v1736
      %v1758 = vpack.c.b16 %v1739, %v1738
      %v1759 = vpack.c.b16 %v1741, %v1740
      %v1779 = vsel %vm1596, %v1625, 0
      %v1782 = vsel %vm1596, %v1628, 0
      %1784 = vmatprep.subr.bf16.mxu0 0
      %1785 = vmatpush1.bf16.msra.mxu0 %v1749
      %1786 = vmatprep.subr.bf16.mxu0 0
      %1787 = vmatpush1.bf16.msra.mxu0 %v1748
      %1788 = vmatprep.subr.bf16.mxu0 0
      %1789 = vmatpush1.bf16.msra.mxu0 %v1747
      %1790 = vmatprep.subr.bf16.mxu0 0
      %1791 = vmatpush1.bf16.msra.mxu0 %v1746
      %1792 = vmatprep.subr.bf16.mxu0 0
      %1793 = vmatpush1.bf16.msra.mxu0 %v1745
      %1794 = vmatprep.subr.bf16.mxu0 0
      %1795 = vmatpush1.bf16.msra.mxu0 %v1744
      %1796 = vmatprep.subr.bf16.mxu0 0
      %1797 = vmatpush1.bf16.msra.mxu0 %v1743
      %1798 = vmatprep.subr.bf16.mxu0 0
      %1799 = vmatpush1.bf16.msra.mxu0 %v1742
      %1800 = vmatprep.subr.bf16.mxu0 0
      %1801 = vmatpush2.bf16.msra.mxu0 %v1757
      %1802 = vmatprep.subr.bf16.mxu0 0
      %1803 = vmatpush2.bf16.msra.mxu0 %v1756
      %1804 = vmatprep.subr.bf16.mxu0 0
      %1805 = vmatpush2.bf16.msra.mxu0 %v1755
      %1806 = vmatprep.subr.bf16.mxu0 0
      %1807 = vmatpush2.bf16.msra.mxu0 %v1754
      %1808 = vmatprep.subr.bf16.mxu0 0
      %1809 = vmatpush2.bf16.msra.mxu0 %v1753
      %1810 = vmatprep.subr.bf16.mxu0 0
      %1811 = vmatpush2.bf16.msra.mxu0 %v1752
      %1812 = vmatprep.subr.bf16.mxu0 0
      %1813 = vmatpush2.bf16.msra.mxu0 %v1751
      %1814 = vmatprep.subr.bf16.mxu0 0
      %1815 = vmatpush2.bf16.msra.mxu0 %v1750
      %1816 = vmatprep.mubr.bf16.mxu0 %v1624
      %1817 = vmatmul.mubr.bf16.gmra.mxu0 %v1623
      %v1818 = vpop.f32.mrf.mxu0
      %v1819 = vadd.f32 %v1669, %v1818
      %v1820 = vpop.f32.mrf.mxu0
      %v1821 = vpop.f32.mrf.mxu0
      %v1822 = vadd.f32 %v1669, %v1821
      %v1823 = vpop.f32.mrf.mxu0
      %1824 = vmatprep.mubr.bf16.mxu0 %v1627
      %1825 = vmatmul.mubr.bf16.gmra.mxu0 %v1626
      %v1826 = vpop.f32.mrf.mxu0
      %v1827 = vadd.f32 %v1669, %v1826
      %v1828 = vpop.f32.mrf.mxu0
      %v1829 = vpop.f32.mrf.mxu0
      %v1830 = vadd.f32 %v1669, %v1829
      %v1831 = vpop.f32.mrf.mxu0
      %1832 = vdwg.mxu0
      %1833 = vmatprep.subr.bf16.mxu0 0
      %1834 = vmatpush1.bf16.msra.mxu0 0
      %1835 = vmatprep.subr.bf16.mxu0 0
      %1836 = vmatpush1.bf16.msra.mxu0 0
      %1837 = vmatprep.subr.bf16.mxu0 0
      %1838 = vmatpush1.bf16.msra.mxu0 0
      %1839 = vmatprep.subr.bf16.mxu0 0
      %1840 = vmatpush1.bf16.msra.mxu0 0
      %1841 = vmatprep.subr.bf16.mxu0 0
      %1842 = vmatpush1.bf16.msra.mxu0 0
      %1843 = vmatprep.subr.bf16.mxu0 0
      %1844 = vmatpush1.bf16.msra.mxu0 0
      %1845 = vmatprep.subr.bf16.mxu0 0
      %1846 = vmatpush1.bf16.msra.mxu0 %v1759
      %1847 = vmatprep.subr.bf16.mxu0 0
      %1848 = vmatpush1.bf16.msra.mxu0 %v1758
      %1849 = vmatprep.subr.bf16.mxu0 0
      %1850 = vmatpush2.bf16.msra.mxu0 0
      %1851 = vmatprep.subr.bf16.mxu0 0
      %1852 = vmatpush2.bf16.msra.mxu0 0
      %1853 = vmatprep.subr.bf16.mxu0 0
      %1854 = vmatpush2.bf16.msra.mxu0 0
      %1855 = vmatprep.subr.bf16.mxu0 0
      %1856 = vmatpush2.bf16.msra.mxu0 0
      %1857 = vmatprep.subr.bf16.mxu0 0
      %1858 = vmatpush2.bf16.msra.mxu0 0
      %1859 = vmatprep.subr.bf16.mxu0 0
      %1860 = vmatpush2.bf16.msra.mxu0 0
      %1861 = vmatprep.subr.bf16.mxu0 0
      %1862 = vmatpush2.bf16.msra.mxu0 0
      %1863 = vmatprep.subr.bf16.mxu0 0
      %1864 = vmatpush2.bf16.msra.mxu0 0
      %1865 = vmatprep.mubr.bf16.mxu0 0
      %1866 = vmatmul.mubr.bf16.gmra.mxu0 %v1779
      %v1867 = vpop.f32.mrf.mxu0
      %v1868 = vadd.f32 %v1819, %v1867
      %v1869 = vpop.f32.mrf.mxu0
      %v1870 = vpop.f32.mrf.mxu0
      %v1871 = vadd.f32 %v1822, %v1870
      %v1872 = vpop.f32.mrf.mxu0
      %1873 = vmatprep.mubr.bf16.mxu0 0
      %1874 = vmatmul.mubr.bf16.gmra.mxu0 %v1782
      %v1875 = vpop.f32.mrf.mxu0
      %v1876 = vadd.f32 %v1827, %v1875
      %v1877 = vpop.f32.mrf.mxu0
      %v1878 = vpop.f32.mrf.mxu0
      %v1879 = vadd.f32 %v1830, %v1878
      %v1880 = vpop.f32.mrf.mxu0
      %1881 = vdwg.mxu0
      %v1882 = vsel %vm1596, %v1868, 0.0
      %v1883 = vsel %vm1596, %v1871, 0.0
      %v1884 = vadd.f32 %v1882, %v1883
      %v1885 = vsel %vm1596, %v1876, 0.0
      %v1886 = vadd.f32 %v1884, %v1885
      %vm1887 = vcmask 253952
      %v1888 = vsel %vm1887, %v1879, 0.0
      %v1889 = vadd.f32 %v1886, %v1888
      %v1890 = vrot.slane %v1889, 4
      %v1891 = vadd.f32 %v1889, %v1890
      %v1892 = vrot.slane %v1891, 2
      %v1893 = vadd.f32 %v1891, %v1892
      %v1894 = vrot.slane %v1893, 1
      %v1895 = vadd.f32 %v1893, %v1894
      %v1897 = vsel %vm1596, %v1895, 0
      %1899 = vmatprep.subr.mxu0 0.0
      %1900 = vmatpush1.msra.mxu0 0.0
      %1901 = vmatprep.subr.mxu0 0.0
      %1902 = vmatpush1.msra.mxu0 0.0
      %1903 = vmatprep.subr.mxu0 0.0
      %1904 = vmatpush1.msra.mxu0 0.0
      %1905 = vmatprep.subr.mxu0 0.0
      %1906 = vmatpush1.msra.mxu0 0.0
      %1907 = vmatprep.subr.mxu0 0.0
      %1908 = vmatpush1.msra.mxu0 0.0
      %1909 = vmatprep.subr.mxu0 0.0
      %1910 = vmatpush1.msra.mxu0 0.0
      %1911 = vmatprep.subr.mxu0 0.0
      %1912 = vmatpush1.msra.mxu0 0.0
      %1913 = vmatprep.subr.mxu0 0.0
      %1914 = vmatpush1.msra.mxu0 0.0
      %1915 = vmatprep.subr.mxu0 0.0
      %1916 = vmatpush1.msra.mxu0 0.0
      %1917 = vmatprep.subr.mxu0 0.0
      %1918 = vmatpush1.msra.mxu0 0.0
      %1919 = vmatprep.subr.mxu0 0.0
      %1920 = vmatpush1.msra.mxu0 0.0
      %1921 = vmatprep.subr.mxu0 0.0
      %1922 = vmatpush1.msra.mxu0 0.0
      %1923 = vmatprep.subr.mxu0 0.0
      %1924 = vmatpush1.msra.mxu0 %v256
      %1925 = vmatprep.subr.mxu0 0.0
      %1926 = vmatpush1.msra.mxu0 %v255
      %1927 = vmatprep.subr.mxu0 0.0
      %1928 = vmatpush1.msra.mxu0 %v254
      %1929 = vmatprep.subr.mxu0 0.0
      %1930 = vmatpush1.msra.mxu0 %v253
      %1931 = vmatprep.subr.mxu0 0.0
      %1932 = vmatpush2.msra.mxu0 0.0
      %1933 = vmatprep.subr.mxu0 0.0
      %1934 = vmatpush2.msra.mxu0 0.0
      %1935 = vmatprep.subr.mxu0 0.0
      %1936 = vmatpush2.msra.mxu0 0.0
      %1937 = vmatprep.subr.mxu0 0.0
      %1938 = vmatpush2.msra.mxu0 0.0
      %1939 = vmatprep.subr.mxu0 0.0
      %1940 = vmatpush2.msra.mxu0 0.0
      %1941 = vmatprep.subr.mxu0 0.0
      %1942 = vmatpush2.msra.mxu0 0.0
      %1943 = vmatprep.subr.mxu0 0.0
      %1944 = vmatpush2.msra.mxu0 0.0
      %1945 = vmatprep.subr.mxu0 0.0
      %1946 = vmatpush2.msra.mxu0 0.0
      %1947 = vmatprep.subr.mxu0 0.0
      %1948 = vmatpush2.msra.mxu0 0.0
      %1949 = vmatprep.subr.mxu0 0.0
      %1950 = vmatpush2.msra.mxu0 0.0
      %1951 = vmatprep.subr.mxu0 0.0
      %1952 = vmatpush2.msra.mxu0 0.0
      %1953 = vmatprep.subr.mxu0 0.0
      %1954 = vmatpush2.msra.mxu0 0.0
      %1955 = vmatprep.subr.mxu0 0.0
      %1956 = vmatpush2.msra.mxu0 0.0
      %1957 = vmatprep.subr.mxu0 0.0
      %1958 = vmatpush2.msra.mxu0 0.0
      %1959 = vmatprep.subr.mxu0 0.0
      %1960 = vmatpush2.msra.mxu0 0.0
      %1961 = vmatprep.subr.mxu0 0.0
      %1962 = vmatpush2.msra.mxu0 0.0
      %1963 = vmatprep.mubr.f32.mxu0 0.0
      %1964 = vmatmul.mubr.f32.gmra.mxu0 %v1897
      %v1965 = vpop.f32.mrf.mxu0
      %v1966 = vadd.f32 0.0, %v1965
      %v1967 = vpop.f32.mrf.mxu0
      %1968 = vdwg.mxu0
      %v1969 = vmul.f32 %v1966, 0.04
      %v1970 = vlaneseq
      %v1971 = vshrl.u32 %v1970, 7
      %v1972 = vsub.s32 0, %v1971
      %v1973 = vrot.slane %v1969, %v1972
      %v1974 = vsub.f32 %v1868, %v1973
      %v1975 = vsub.f32 %v1871, %v1973
      %v1976 = vsub.f32 %v1876, %v1973
      %v1977 = vsub.f32 %v1879, %v1973
      %v1978 = vmul.f32 %v1974, %v1974
      %v1979 = vmul.f32 %v1975, %v1975
      %v1980 = vmul.f32 %v1976, %v1976
      %v1981 = vmul.f32 %v1977, %v1977
      %v1982 = vsel %vm1596, %v1978, 0.0
      %v1983 = vsel %vm1596, %v1979, 0.0
      %v1984 = vadd.f32 %v1982, %v1983
      %v1985 = vsel %vm1596, %v1980, 0.0
      %v1986 = vadd.f32 %v1984, %v1985
      %v1987 = vsel %vm1887, %v1981, 0.0
      %v1988 = vadd.f32 %v1986, %v1987
      %v1989 = vrot.slane %v1988, 4
      %v1990 = vadd.f32 %v1988, %v1989
      %v1991 = vrot.slane %v1990, 2
      %v1992 = vadd.f32 %v1990, %v1991
      %v1993 = vrot.slane %v1992, 1
      %v1994 = vadd.f32 %v1992, %v1993
      %v1996 = vsel %vm1596, %v1994, 0
      %1998 = vmatprep.subr.mxu0 0.0
      %1999 = vmatpush1.msra.mxu0 0.0
      %2000 = vmatprep.subr.mxu0 0.0
      %2001 = vmatpush1.msra.mxu0 0.0
      %2002 = vmatprep.subr.mxu0 0.0
      %2003 = vmatpush1.msra.mxu0 0.0
      %2004 = vmatprep.subr.mxu0 0.0
      %2005 = vmatpush1.msra.mxu0 0.0
      %2006 = vmatprep.subr.mxu0 0.0
      %2007 = vmatpush1.msra.mxu0 0.0
      %2008 = vmatprep.subr.mxu0 0.0
      %2009 = vmatpush1.msra.mxu0 0.0
      %2010 = vmatprep.subr.mxu0 0.0
      %2011 = vmatpush1.msra.mxu0 0.0
      %2012 = vmatprep.subr.mxu0 0.0
      %2013 = vmatpush1.msra.mxu0 0.0
      %2014 = vmatprep.subr.mxu0 0.0
      %2015 = vmatpush1.msra.mxu0 0.0
      %2016 = vmatprep.subr.mxu0 0.0
      %2017 = vmatpush1.msra.mxu0 0.0
      %2018 = vmatprep.subr.mxu0 0.0
      %2019 = vmatpush1.msra.mxu0 0.0
      %2020 = vmatprep.subr.mxu0 0.0
      %2021 = vmatpush1.msra.mxu0 0.0
      %2022 = vmatprep.subr.mxu0 0.0
      %2023 = vmatpush1.msra.mxu0 %v256
      %2024 = vmatprep.subr.mxu0 0.0
      %2025 = vmatpush1.msra.mxu0 %v255
      %2026 = vmatprep.subr.mxu0 0.0
      %2027 = vmatpush1.msra.mxu0 %v254
      %2028 = vmatprep.subr.mxu0 0.0
      %2029 = vmatpush1.msra.mxu0 %v253
      %2030 = vmatprep.subr.mxu0 0.0
      %2031 = vmatpush2.msra.mxu0 0.0
      %2032 = vmatprep.subr.mxu0 0.0
      %2033 = vmatpush2.msra.mxu0 0.0
      %2034 = vmatprep.subr.mxu0 0.0
      %2035 = vmatpush2.msra.mxu0 0.0
      %2036 = vmatprep.subr.mxu0 0.0
      %2037 = vmatpush2.msra.mxu0 0.0
      %2038 = vmatprep.subr.mxu0 0.0
      %2039 = vmatpush2.msra.mxu0 0.0
      %2040 = vmatprep.subr.mxu0 0.0
      %2041 = vmatpush2.msra.mxu0 0.0
      %2042 = vmatprep.subr.mxu0 0.0
      %2043 = vmatpush2.msra.mxu0 0.0
      %2044 = vmatprep.subr.mxu0 0.0
      %2045 = vmatpush2.msra.mxu0 0.0
      %2046 = vmatprep.subr.mxu0 0.0
      %2047 = vmatpush2.msra.mxu0 0.0
      %2048 = vmatprep.subr.mxu0 0.0
      %2049 = vmatpush2.msra.mxu0 0.0
      %2050 = vmatprep.subr.mxu0 0.0
      %2051 = vmatpush2.msra.mxu0 0.0
      %2052 = vmatprep.subr.mxu0 0.0
      %2053 = vmatpush2.msra.mxu0 0.0
      %2054 = vmatprep.subr.mxu0 0.0
      %2055 = vmatpush2.msra.mxu0 0.0
      %2056 = vmatprep.subr.mxu0 0.0
      %2057 = vmatpush2.msra.mxu0 0.0
      %2058 = vmatprep.subr.mxu0 0.0
      %2059 = vmatpush2.msra.mxu0 0.0
      %2060 = vmatprep.subr.mxu0 0.0
      %2061 = vmatpush2.msra.mxu0 0.0
      %2062 = vmatprep.mubr.f32.mxu0 0.0
      %2063 = vmatmul.mubr.f32.gmra.mxu0 %v1996
      %v2064 = vpop.f32.mrf.mxu0
      %v2065 = vadd.f32 0.0, %v2064
      %v2066 = vpop.f32.mrf.mxu0
      %2067 = vdwg.mxu0
      %v2068 = vmul.f32 %v2065, 0.04
      %v2069 = vadd.f32 %v2068, 1e-05
      %v2070 = vrsqrt.pop %v2069
      %v2072 = vrot.slane %v1665, 1
      %v2074 = vmul.f32 %v2070, %v2072
      %v2075 = vlaneseq
      %v2076 = vshrl.u32 %v2075, 7
      %v2077 = vsub.s32 0, %v2076
      %v2078 = vrot.slane %v2074, %v2077
      %v2079 = vmul.f32 %v1974, %v2078
      %v2080 = vmul.f32 %v1975, %v2078
      %v2081 = vmul.f32 %v1976, %v2078
      %v2082 = vmul.f32 %v1977, %v2078
      %v2083 = vlaneseq
      %v2084 = vshrl.u32 %v2083, 7
      %v2085 = vsub.s32 2, %v2084
      %v2086 = vrot.slane %v1665, %v2085
      %v2087 = vadd.f32 %v2079, %v2086
      %v2088 = vadd.f32 %v2080, %v2086
      %v2089 = vadd.f32 %v2081, %v2086
      %v2090 = vadd.f32 %v2082, %v2086
      %v2091 = vmax.f32 %v2087, 0.0
      %v2092 = vmax.f32 %v2088, 0.0
      %v2093 = vmax.f32 %v2089, 0.0
      %v2094 = vmax.f32 %v2090, 0.0
      %v2099 = vcombine.high %v2091, %v2091
      %v2101 = vunpack.c.l.s4 1966171168
      %v2102 = vunpack.c.0.s8 %v2101
      %v2103 = vlaneseq
      %v2104 = vshrl.u32 %v2103, 7
      %v2105 = vsub.s32 %v2102, %v2104
      %v2106 = vrot.slane %v2091, %v2105
      %v2108 = vunpack.c.l.s4 1966171168
      %v2109 = vunpack.c.0.s8 %v2108
      %v2110 = vlaneseq
      %v2111 = vshrl.u32 %v2110, 7
      %v2112 = vsub.s32 %v2109, %v2111
      %v2113 = vrot.slane %v2099, %v2112
      %v2114 = vcombine.high %v2106, %v2106
      %v2115 = vcombine.high %v2113, %v2113
      %v2117 = vunpack.c.l.s4 1966171168
      %v2118 = vunpack.c.0.s8 %v2117
      %v2119 = vlaneseq
      %v2120 = vshrl.u32 %v2119, 7
      %v2121 = vsub.s32 %v2118, %v2120
      %v2122 = vrot.slane %v2106, %v2121
      %v2124 = vunpack.c.l.s4 1966171168
      %v2125 = vunpack.c.0.s8 %v2124
      %v2126 = vlaneseq
      %v2127 = vshrl.u32 %v2126, 7
      %v2128 = vsub.s32 %v2125, %v2127
      %v2129 = vrot.slane %v2113, %v2128
      %v2131 = vunpack.c.l.s4 1966171168
      %v2132 = vunpack.c.0.s8 %v2131
      %v2133 = vlaneseq
      %v2134 = vshrl.u32 %v2133, 7
      %v2135 = vsub.s32 %v2132, %v2134
      %v2136 = vrot.slane %v2114, %v2135
      %v2138 = vunpack.c.l.s4 1966171168
      %v2139 = vunpack.c.0.s8 %v2138
      %v2140 = vlaneseq
      %v2141 = vshrl.u32 %v2140, 7
      %v2142 = vsub.s32 %v2139, %v2141
      %v2143 = vrot.slane %v2115, %v2142
      %v2144 = vcombine.high %v2122, %v2122
      %v2145 = vcombine.high %v2129, %v2129
      %v2146 = vcombine.high %v2136, %v2136
      %v2147 = vcombine.high %v2143, %v2143
      %v2148 = vcombine.high %v2092, %v2092
      %v2150 = vunpack.c.l.s4 1966171168
      %v2151 = vunpack.c.0.s8 %v2150
      %v2152 = vlaneseq
      %v2153 = vshrl.u32 %v2152, 7
      %v2154 = vsub.s32 %v2151, %v2153
      %v2155 = vrot.slane %v2092, %v2154
      %v2157 = vunpack.c.l.s4 1966171168
      %v2158 = vunpack.c.0.s8 %v2157
      %v2159 = vlaneseq
      %v2160 = vshrl.u32 %v2159, 7
      %v2161 = vsub.s32 %v2158, %v2160
      %v2162 = vrot.slane %v2148, %v2161
      %v2163 = vcombine.high %v2155, %v2155
      %v2164 = vcombine.high %v2162, %v2162
      %v2166 = vunpack.c.l.s4 1966171168
      %v2167 = vunpack.c.0.s8 %v2166
      %v2168 = vlaneseq
      %v2169 = vshrl.u32 %v2168, 7
      %v2170 = vsub.s32 %v2167, %v2169
      %v2171 = vrot.slane %v2155, %v2170
      %v2173 = vunpack.c.l.s4 1966171168
      %v2174 = vunpack.c.0.s8 %v2173
      %v2175 = vlaneseq
      %v2176 = vshrl.u32 %v2175, 7
      %v2177 = vsub.s32 %v2174, %v2176
      %v2178 = vrot.slane %v2162, %v2177
      %v2180 = vunpack.c.l.s4 1966171168
      %v2181 = vunpack.c.0.s8 %v2180
      %v2182 = vlaneseq
      %v2183 = vshrl.u32 %v2182, 7
      %v2184 = vsub.s32 %v2181, %v2183
      %v2185 = vrot.slane %v2163, %v2184
      %v2187 = vunpack.c.l.s4 1966171168
      %v2188 = vunpack.c.0.s8 %v2187
      %v2189 = vlaneseq
      %v2190 = vshrl.u32 %v2189, 7
      %v2191 = vsub.s32 %v2188, %v2190
      %v2192 = vrot.slane %v2164, %v2191
      %v2193 = vcombine.high %v2171, %v2171
      %v2194 = vcombine.high %v2178, %v2178
      %v2195 = vcombine.high %v2185, %v2185
      %v2196 = vcombine.high %v2192, %v2192
      %v2197 = vcombine.high %v2093, %v2093
      %v2199 = vunpack.c.l.s4 1966171168
      %v2200 = vunpack.c.0.s8 %v2199
      %v2201 = vlaneseq
      %v2202 = vshrl.u32 %v2201, 7
      %v2203 = vsub.s32 %v2200, %v2202
      %v2204 = vrot.slane %v2093, %v2203
      %v2206 = vunpack.c.l.s4 1966171168
      %v2207 = vunpack.c.0.s8 %v2206
      %v2208 = vlaneseq
      %v2209 = vshrl.u32 %v2208, 7
      %v2210 = vsub.s32 %v2207, %v2209
      %v2211 = vrot.slane %v2197, %v2210
      %v2212 = vcombine.high %v2204, %v2204
      %v2213 = vcombine.high %v2211, %v2211
      %v2215 = vunpack.c.l.s4 1966171168
      %v2216 = vunpack.c.0.s8 %v2215
      %v2217 = vlaneseq
      %v2218 = vshrl.u32 %v2217, 7
      %v2219 = vsub.s32 %v2216, %v2218
      %v2220 = vrot.slane %v2204, %v2219
      %v2222 = vunpack.c.l.s4 1966171168
      %v2223 = vunpack.c.0.s8 %v2222
      %v2224 = vlaneseq
      %v2225 = vshrl.u32 %v2224, 7
      %v2226 = vsub.s32 %v2223, %v2225
      %v2227 = vrot.slane %v2211, %v2226
      %v2229 = vunpack.c.l.s4 1966171168
      %v2230 = vunpack.c.0.s8 %v2229
      %v2231 = vlaneseq
      %v2232 = vshrl.u32 %v2231, 7
      %v2233 = vsub.s32 %v2230, %v2232
      %v2234 = vrot.slane %v2212, %v2233
      %v2236 = vunpack.c.l.s4 1966171168
      %v2237 = vunpack.c.0.s8 %v2236
      %v2238 = vlaneseq
      %v2239 = vshrl.u32 %v2238, 7
      %v2240 = vsub.s32 %v2237, %v2239
      %v2241 = vrot.slane %v2213, %v2240
      %v2242 = vcombine.high %v2220, %v2220
      %v2243 = vcombine.high %v2227, %v2227
      %v2244 = vcombine.high %v2234, %v2234
      %v2245 = vcombine.high %v2241, %v2241
      %v2247 = vunpack.c.l.s4 1966171168
      %v2248 = vunpack.c.0.s8 %v2247
      %v2249 = vlaneseq
      %v2250 = vshrl.u32 %v2249, 7
      %v2251 = vsub.s32 %v2248, %v2250
      %v2252 = vrot.slane %v2094, %v2251
      %v2254 = vunpack.c.l.s4 1966171168
      %v2255 = vunpack.c.0.s8 %v2254
      %v2256 = vlaneseq
      %v2257 = vshrl.u32 %v2256, 7
      %v2258 = vsub.s32 %v2255, %v2257
      %v2259 = vrot.slane %v2252, %v2258
      %v2260 = vcombine.low %v2122, %v2122
      %v2261 = vcombine.low %v2136, %v2144
      %v2262 = vcombine.low %v2146, %v2129
      %v2264 = vunpack.c.l.s4 1966171168
      %v2265 = vunpack.c.0.s8 %v2264
      %v2266 = vlaneseq
      %v2267 = vshrl.u32 %v2266, 7
      %v2268 = vsub.s32 %v2265, %v2267
      %v2269 = vrot.slane %v2260, %v2268
      %v2271 = vunpack.c.l.s4 1966171168
      %v2272 = vunpack.c.0.s8 %v2271
      %v2273 = vlaneseq
      %v2274 = vshrl.u32 %v2273, 7
      %v2275 = vsub.s32 %v2272, %v2274
      %v2276 = vrot.slane %v2261, %v2275
      %v2278 = vunpack.c.l.s4 1966171168
      %v2279 = vunpack.c.0.s8 %v2278
      %v2280 = vlaneseq
      %v2281 = vshrl.u32 %v2280, 7
      %v2282 = vsub.s32 %v2279, %v2281
      %v2283 = vrot.slane %v2262, %v2282
      %v2284 = vcombine.low %v2269, %v2276
      %v2286 = vunpack.c.l.s4 1966171168
      %v2287 = vunpack.c.0.s8 %v2286
      %v2288 = vlaneseq
      %v2289 = vshrl.u32 %v2288, 7
      %v2290 = vsub.s32 %v2287, %v2289
      %v2291 = vrot.slane %v2284, %v2290
      %v2293 = vunpack.c.l.s4 1966171168
      %v2294 = vunpack.c.0.s8 %v2293
      %v2295 = vlaneseq
      %v2296 = vshrl.u32 %v2295, 7
      %v2297 = vsub.s32 %v2294, %v2296
      %v2298 = vrot.slane %v2283, %v2297
      %v2299 = vcombine.low %v2291, %v2298
      %v2300 = vcombine.low %v2143, %v2143
      %v2301 = vcombine.low %v2145, %v2147
      %v2302 = vcombine.low %v2171, %v2185
      %v2304 = vunpack.c.l.s4 1966171168
      %v2305 = vunpack.c.0.s8 %v2304
      %v2306 = vlaneseq
      %v2307 = vshrl.u32 %v2306, 7
      %v2308 = vsub.s32 %v2305, %v2307
      %v2309 = vrot.slane %v2300, %v2308
      %v2311 = vunpack.c.l.s4 1966171168
      %v2312 = vunpack.c.0.s8 %v2311
      %v2313 = vlaneseq
      %v2314 = vshrl.u32 %v2313, 7
      %v2315 = vsub.s32 %v2312, %v2314
      %v2316 = vrot.slane %v2301, %v2315
      %v2318 = vunpack.c.l.s4 1966171168
      %v2319 = vunpack.c.0.s8 %v2318
      %v2320 = vlaneseq
      %v2321 = vshrl.u32 %v2320, 7
      %v2322 = vsub.s32 %v2319, %v2321
      %v2323 = vrot.slane %v2302, %v2322
      %v2324 = vcombine.low %v2309, %v2316
      %v2326 = vunpack.c.l.s4 1966171168
      %v2327 = vunpack.c.0.s8 %v2326
      %v2328 = vlaneseq
      %v2329 = vshrl.u32 %v2328, 7
      %v2330 = vsub.s32 %v2327, %v2329
      %v2331 = vrot.slane %v2324, %v2330
      %v2333 = vunpack.c.l.s4 1966171168
      %v2334 = vunpack.c.0.s8 %v2333
      %v2335 = vlaneseq
      %v2336 = vshrl.u32 %v2335, 7
      %v2337 = vsub.s32 %v2334, %v2336
      %v2338 = vrot.slane %v2323, %v2337
      %v2339 = vcombine.low %v2331, %v2338
      %v2340 = vcombine.low %v2193, %v2193
      %v2341 = vcombine.low %v2195, %v2178
      %v2342 = vcombine.low %v2192, %v2194
      %v2344 = vunpack.c.l.s4 1966171168
      %v2345 = vunpack.c.0.s8 %v2344
      %v2346 = vlaneseq
      %v2347 = vshrl.u32 %v2346, 7
      %v2348 = vsub.s32 %v2345, %v2347
      %v2349 = vrot.slane %v2340, %v2348
      %v2351 = vunpack.c.l.s4 1966171168
      %v2352 = vunpack.c.0.s8 %v2351
      %v2353 = vlaneseq
      %v2354 = vshrl.u32 %v2353, 7
      %v2355 = vsub.s32 %v2352, %v2354
      %v2356 = vrot.slane %v2341, %v2355
      %v2358 = vunpack.c.l.s4 1966171168
      %v2359 = vunpack.c.0.s8 %v2358
      %v2360 = vlaneseq
      %v2361 = vshrl.u32 %v2360, 7
      %v2362 = vsub.s32 %v2359, %v2361
      %v2363 = vrot.slane %v2342, %v2362
      %v2364 = vcombine.low %v2349, %v2356
      %v2366 = vunpack.c.l.s4 1966171168
      %v2367 = vunpack.c.0.s8 %v2366
      %v2368 = vlaneseq
      %v2369 = vshrl.u32 %v2368, 7
      %v2370 = vsub.s32 %v2367, %v2369
      %v2371 = vrot.slane %v2364, %v2370
      %v2373 = vunpack.c.l.s4 1966171168
      %v2374 = vunpack.c.0.s8 %v2373
      %v2375 = vlaneseq
      %v2376 = vshrl.u32 %v2375, 7
      %v2377 = vsub.s32 %v2374, %v2376
      %v2378 = vrot.slane %v2363, %v2377
      %v2379 = vcombine.low %v2371, %v2378
      %v2380 = vcombine.low %v2196, %v2196
      %v2381 = vcombine.low %v2220, %v2234
      %v2382 = vcombine.low %v2242, %v2244
      %v2384 = vunpack.c.l.s4 1966171168
      %v2385 = vunpack.c.0.s8 %v2384
      %v2386 = vlaneseq
      %v2387 = vshrl.u32 %v2386, 7
      %v2388 = vsub.s32 %v2385, %v2387
      %v2389 = vrot.slane %v2380, %v2388
      %v2391 = vunpack.c.l.s4 1966171168
      %v2392 = vunpack.c.0.s8 %v2391
      %v2393 = vlaneseq
      %v2394 = vshrl.u32 %v2393, 7
      %v2395 = vsub.s32 %v2392, %v2394
      %v2396 = vrot.slane %v2381, %v2395
      %v2398 = vunpack.c.l.s4 1966171168
      %v2399 = vunpack.c.0.s8 %v2398
      %v2400 = vlaneseq
      %v2401 = vshrl.u32 %v2400, 7
      %v2402 = vsub.s32 %v2399, %v2401
      %v2403 = vrot.slane %v2382, %v2402
      %v2404 = vcombine.low %v2389, %v2396
      %v2406 = vunpack.c.l.s4 1966171168
      %v2407 = vunpack.c.0.s8 %v2406
      %v2408 = vlaneseq
      %v2409 = vshrl.u32 %v2408, 7
      %v2410 = vsub.s32 %v2407, %v2409
      %v2411 = vrot.slane %v2404, %v2410
      %v2413 = vunpack.c.l.s4 1966171168
      %v2414 = vunpack.c.0.s8 %v2413
      %v2415 = vlaneseq
      %v2416 = vshrl.u32 %v2415, 7
      %v2417 = vsub.s32 %v2414, %v2416
      %v2418 = vrot.slane %v2403, %v2417
      %v2419 = vcombine.low %v2411, %v2418
      %v2420 = vcombine.low %v2227, %v2227
      %v2421 = vcombine.low %v2241, %v2243
      %v2422 = vcombine.low %v2245, %v2259
      %v2424 = vunpack.c.l.s4 1966171168
      %v2425 = vunpack.c.0.s8 %v2424
      %v2426 = vlaneseq
      %v2427 = vshrl.u32 %v2426, 7
      %v2428 = vsub.s32 %v2425, %v2427
      %v2429 = vrot.slane %v2420, %v2428
      %v2431 = vunpack.c.l.s4 1966171168
      %v2432 = vunpack.c.0.s8 %v2431
      %v2433 = vlaneseq
      %v2434 = vshrl.u32 %v2433, 7
      %v2435 = vsub.s32 %v2432, %v2434
      %v2436 = vrot.slane %v2421, %v2435
      %v2438 = vunpack.c.l.s4 1966171168
      %v2439 = vunpack.c.0.s8 %v2438
      %v2440 = vlaneseq
      %v2441 = vshrl.u32 %v2440, 7
      %v2442 = vsub.s32 %v2439, %v2441
      %v2443 = vrot.slane %v2422, %v2442
      %v2444 = vcombine.low %v2429, %v2436
      %v2446 = vunpack.c.l.s4 1966171168
      %v2447 = vunpack.c.0.s8 %v2446
      %v2448 = vlaneseq
      %v2449 = vshrl.u32 %v2448, 7
      %v2450 = vsub.s32 %v2447, %v2449
      %v2451 = vrot.slane %v2444, %v2450
      %v2453 = vunpack.c.l.s4 1966171168
      %v2454 = vunpack.c.0.s8 %v2453
      %v2455 = vlaneseq
      %v2456 = vshrl.u32 %v2455, 7
      %v2457 = vsub.s32 %v2454, %v2456
      %v2458 = vrot.slane %v2443, %v2457
      %v2459 = vcombine.low %v2451, %v2458
      %v2465 = vsel %vm277, 0.0, %v2299
      %v2466 = vsel %vm277, 0.0, %v2339
      %v2467 = vsel %vm277, 0.0, %v2379
      %v2468 = vsel %vm277, 0.0, %v2419
      %v2469 = vsel %vm277, 0.0, %v2459
      %v2470 = vsel %vm283, %v2465, 0.0
      %v2471 = vsel %vm283, %v2466, 0.0
      %v2472 = vsel %vm283, %v2467, 0.0
      %v2473 = vsel %vm283, %v2468, 0.0
      %v2474 = vsel %vm283, %v2469, 0.0
      %v2479 = vcombine.high %v2470, %v2470
      %v2481 = vunpack.c.l.s4 1966171168
      %v2482 = vunpack.c.0.s8 %v2481
      %v2483 = vlaneseq
      %v2484 = vshrl.u32 %v2483, 7
      %v2485 = vsub.s32 %v2482, %v2484
      %v2486 = vrot.slane %v2470, %v2485
      %v2488 = vunpack.c.l.s4 1966171168
      %v2489 = vunpack.c.0.s8 %v2488
      %v2490 = vlaneseq
      %v2491 = vshrl.u32 %v2490, 7
      %v2492 = vsub.s32 %v2489, %v2491
      %v2493 = vrot.slane %v2479, %v2492
      %v2494 = vcombine.high %v2486, %v2486
      %v2496 = vunpack.c.l.s4 1966171168
      %v2497 = vunpack.c.0.s8 %v2496
      %v2498 = vlaneseq
      %v2499 = vshrl.u32 %v2498, 7
      %v2500 = vsub.s32 %v2497, %v2499
      %v2501 = vrot.slane %v2486, %v2500
      %v2503 = vunpack.c.l.s4 1966171168
      %v2504 = vunpack.c.0.s8 %v2503
      %v2505 = vlaneseq
      %v2506 = vshrl.u32 %v2505, 7
      %v2507 = vsub.s32 %v2504, %v2506
      %v2508 = vrot.slane %v2493, %v2507
      %v2510 = vunpack.c.l.s4 1966171168
      %v2511 = vunpack.c.0.s8 %v2510
      %v2512 = vlaneseq
      %v2513 = vshrl.u32 %v2512, 7
      %v2514 = vsub.s32 %v2511, %v2513
      %v2515 = vrot.slane %v2494, %v2514
      %v2516 = vcombine.high %v2501, %v2501
      %v2517 = vcombine.high %v2515, %v2515
      %v2518 = vcombine.high %v2471, %v2471
      %v2520 = vunpack.c.l.s4 1966171168
      %v2521 = vunpack.c.0.s8 %v2520
      %v2522 = vlaneseq
      %v2523 = vshrl.u32 %v2522, 7
      %v2524 = vsub.s32 %v2521, %v2523
      %v2525 = vrot.slane %v2471, %v2524
      %v2527 = vunpack.c.l.s4 1966171168
      %v2528 = vunpack.c.0.s8 %v2527
      %v2529 = vlaneseq
      %v2530 = vshrl.u32 %v2529, 7
      %v2531 = vsub.s32 %v2528, %v2530
      %v2532 = vrot.slane %v2518, %v2531
      %v2533 = vcombine.high %v2525, %v2525
      %v2535 = vunpack.c.l.s4 1966171168
      %v2536 = vunpack.c.0.s8 %v2535
      %v2537 = vlaneseq
      %v2538 = vshrl.u32 %v2537, 7
      %v2539 = vsub.s32 %v2536, %v2538
      %v2540 = vrot.slane %v2525, %v2539
      %v2542 = vunpack.c.l.s4 1966171168
      %v2543 = vunpack.c.0.s8 %v2542
      %v2544 = vlaneseq
      %v2545 = vshrl.u32 %v2544, 7
      %v2546 = vsub.s32 %v2543, %v2545
      %v2547 = vrot.slane %v2532, %v2546
      %v2549 = vunpack.c.l.s4 1966171168
      %v2550 = vunpack.c.0.s8 %v2549
      %v2551 = vlaneseq
      %v2552 = vshrl.u32 %v2551, 7
      %v2553 = vsub.s32 %v2550, %v2552
      %v2554 = vrot.slane %v2533, %v2553
      %v2555 = vcombine.high %v2540, %v2540
      %v2556 = vcombine.high %v2554, %v2554
      %v2557 = vcombine.high %v2472, %v2472
      %v2559 = vunpack.c.l.s4 1966171168
      %v2560 = vunpack.c.0.s8 %v2559
      %v2561 = vlaneseq
      %v2562 = vshrl.u32 %v2561, 7
      %v2563 = vsub.s32 %v2560, %v2562
      %v2564 = vrot.slane %v2472, %v2563
      %v2566 = vunpack.c.l.s4 1966171168
      %v2567 = vunpack.c.0.s8 %v2566
      %v2568 = vlaneseq
      %v2569 = vshrl.u32 %v2568, 7
      %v2570 = vsub.s32 %v2567, %v2569
      %v2571 = vrot.slane %v2557, %v2570
      %v2572 = vcombine.high %v2564, %v2564
      %v2574 = vunpack.c.l.s4 1966171168
      %v2575 = vunpack.c.0.s8 %v2574
      %v2576 = vlaneseq
      %v2577 = vshrl.u32 %v2576, 7
      %v2578 = vsub.s32 %v2575, %v2577
      %v2579 = vrot.slane %v2564, %v2578
      %v2581 = vunpack.c.l.s4 1966171168
      %v2582 = vunpack.c.0.s8 %v2581
      %v2583 = vlaneseq
      %v2584 = vshrl.u32 %v2583, 7
      %v2585 = vsub.s32 %v2582, %v2584
      %v2586 = vrot.slane %v2571, %v2585
      %v2588 = vunpack.c.l.s4 1966171168
      %v2589 = vunpack.c.0.s8 %v2588
      %v2590 = vlaneseq
      %v2591 = vshrl.u32 %v2590, 7
      %v2592 = vsub.s32 %v2589, %v2591
      %v2593 = vrot.slane %v2572, %v2592
      %v2594 = vcombine.high %v2579, %v2579
      %v2595 = vcombine.high %v2593, %v2593
      %v2596 = vcombine.high %v2473, %v2473
      %v2598 = vunpack.c.l.s4 1966171168
      %v2599 = vunpack.c.0.s8 %v2598
      %v2600 = vlaneseq
      %v2601 = vshrl.u32 %v2600, 7
      %v2602 = vsub.s32 %v2599, %v2601
      %v2603 = vrot.slane %v2473, %v2602
      %v2605 = vunpack.c.l.s4 1966171168
      %v2606 = vunpack.c.0.s8 %v2605
      %v2607 = vlaneseq
      %v2608 = vshrl.u32 %v2607, 7
      %v2609 = vsub.s32 %v2606, %v2608
      %v2610 = vrot.slane %v2596, %v2609
      %v2611 = vcombine.high %v2603, %v2603
      %v2613 = vunpack.c.l.s4 1966171168
      %v2614 = vunpack.c.0.s8 %v2613
      %v2615 = vlaneseq
      %v2616 = vshrl.u32 %v2615, 7
      %v2617 = vsub.s32 %v2614, %v2616
      %v2618 = vrot.slane %v2603, %v2617
      %v2620 = vunpack.c.l.s4 1966171168
      %v2621 = vunpack.c.0.s8 %v2620
      %v2622 = vlaneseq
      %v2623 = vshrl.u32 %v2622, 7
      %v2624 = vsub.s32 %v2621, %v2623
      %v2625 = vrot.slane %v2610, %v2624
      %v2627 = vunpack.c.l.s4 1966171168
      %v2628 = vunpack.c.0.s8 %v2627
      %v2629 = vlaneseq
      %v2630 = vshrl.u32 %v2629, 7
      %v2631 = vsub.s32 %v2628, %v2630
      %v2632 = vrot.slane %v2611, %v2631
      %v2633 = vcombine.high %v2618, %v2618
      %v2634 = vcombine.high %v2632, %v2632
      %v2635 = vcombine.high %v2493, %v2493
      %v2637 = vunpack.c.l.s4 1966171168
      %v2638 = vunpack.c.0.s8 %v2637
      %v2639 = vlaneseq
      %v2640 = vshrl.u32 %v2639, 7
      %v2641 = vsub.s32 %v2638, %v2640
      %v2642 = vrot.slane %v2635, %v2641
      %v2643 = vcombine.high %v2532, %v2532
      %v2645 = vunpack.c.l.s4 1966171168
      %v2646 = vunpack.c.0.s8 %v2645
      %v2647 = vlaneseq
      %v2648 = vshrl.u32 %v2647, 7
      %v2649 = vsub.s32 %v2646, %v2648
      %v2650 = vrot.slane %v2643, %v2649
      %v2651 = vcombine.high %v2571, %v2571
      %v2653 = vunpack.c.l.s4 1966171168
      %v2654 = vunpack.c.0.s8 %v2653
      %v2655 = vlaneseq
      %v2656 = vshrl.u32 %v2655, 7
      %v2657 = vsub.s32 %v2654, %v2656
      %v2658 = vrot.slane %v2651, %v2657
      %v2659 = vcombine.high %v2610, %v2610
      %v2661 = vunpack.c.l.s4 1966171168
      %v2662 = vunpack.c.0.s8 %v2661
      %v2663 = vlaneseq
      %v2664 = vshrl.u32 %v2663, 7
      %v2665 = vsub.s32 %v2662, %v2664
      %v2666 = vrot.slane %v2659, %v2665
      %v2667 = vcombine.high %v2508, %v2508
      %v2668 = vcombine.high %v2547, %v2547
      %v2669 = vcombine.high %v2586, %v2586
      %v2670 = vcombine.high %v2625, %v2625
      %v2672 = vcombine.high %v2474, %v2474
      %v2674 = vunpack.c.l.s4 1966171168
      %v2675 = vunpack.c.0.s8 %v2674
      %v2676 = vlaneseq
      %v2677 = vshrl.u32 %v2676, 7
      %v2678 = vsub.s32 %v2675, %v2677
      %v2679 = vrot.slane %v2474, %v2678
      %v2681 = vunpack.c.l.s4 1966171168
      %v2682 = vunpack.c.0.s8 %v2681
      %v2683 = vlaneseq
      %v2684 = vshrl.u32 %v2683, 7
      %v2685 = vsub.s32 %v2682, %v2684
      %v2686 = vrot.slane %v2672, %v2685
      %v2687 = vcombine.high %v2679, %v2679
      %v2689 = vunpack.c.l.s4 1966171168
      %v2690 = vunpack.c.0.s8 %v2689
      %v2691 = vlaneseq
      %v2692 = vshrl.u32 %v2691, 7
      %v2693 = vsub.s32 %v2690, %v2692
      %v2694 = vrot.slane %v2679, %v2693
      %v2696 = vunpack.c.l.s4 1966171168
      %v2697 = vunpack.c.0.s8 %v2696
      %v2698 = vlaneseq
      %v2699 = vshrl.u32 %v2698, 7
      %v2700 = vsub.s32 %v2697, %v2699
      %v2701 = vrot.slane %v2686, %v2700
      %v2703 = vunpack.c.l.s4 1966171168
      %v2704 = vunpack.c.0.s8 %v2703
      %v2705 = vlaneseq
      %v2706 = vshrl.u32 %v2705, 7
      %v2707 = vsub.s32 %v2704, %v2706
      %v2708 = vrot.slane %v2687, %v2707
      %v2709 = vcombine.high %v2694, %v2694
      %v2710 = vcombine.high %v2708, %v2708
      %v2711 = vcombine.high %v2686, %v2686
      %v2713 = vunpack.c.l.s4 1966171168
      %v2714 = vunpack.c.0.s8 %v2713
      %v2715 = vlaneseq
      %v2716 = vshrl.u32 %v2715, 7
      %v2717 = vsub.s32 %v2714, %v2716
      %v2718 = vrot.slane %v2711, %v2717
      %v2719 = vcombine.high %v2701, %v2701
      %v2720 = vcombine.low %v323, %v2501
      %v2721 = vcombine.low %v2515, %v2516
      %v2723 = vunpack.c.l.s4 1966171168
      %v2724 = vunpack.c.0.s8 %v2723
      %v2725 = vlaneseq
      %v2726 = vshrl.u32 %v2725, 7
      %v2727 = vsub.s32 %v2724, %v2726
      %v2728 = vrot.slane %v2720, %v2727
      %v2730 = vunpack.c.l.s4 1966171168
      %v2731 = vunpack.c.0.s8 %v2730
      %v2732 = vlaneseq
      %v2733 = vshrl.u32 %v2732, 7
      %v2734 = vsub.s32 %v2731, %v2733
      %v2735 = vrot.slane %v2721, %v2734
      %v2736 = vcombine.low %v2728, %v2735
      %v2738 = vunpack.c.l.s4 1966171168
      %v2739 = vunpack.c.0.s8 %v2738
      %v2740 = vlaneseq
      %v2741 = vshrl.u32 %v2740, 7
      %v2742 = vsub.s32 %v2739, %v2741
      %v2743 = vrot.slane %v2736, %v2742
      %v2744 = vcombine.low %v623, %v2743
      %v2745 = vcombine.low %v2517, %v2508
      %v2746 = vcombine.low %v2540, %v2554
      %v2747 = vcombine.low %v2555, %v2556
      %v2748 = vcombine.low %v2547, %v2579
      %v2750 = vunpack.c.l.s4 1966171168
      %v2751 = vunpack.c.0.s8 %v2750
      %v2752 = vlaneseq
      %v2753 = vshrl.u32 %v2752, 7
      %v2754 = vsub.s32 %v2751, %v2753
      %v2755 = vrot.slane %v2745, %v2754
      %v2757 = vunpack.c.l.s4 1966171168
      %v2758 = vunpack.c.0.s8 %v2757
      %v2759 = vlaneseq
      %v2760 = vshrl.u32 %v2759, 7
      %v2761 = vsub.s32 %v2758, %v2760
      %v2762 = vrot.slane %v2746, %v2761
      %v2764 = vunpack.c.l.s4 1966171168
      %v2765 = vunpack.c.0.s8 %v2764
      %v2766 = vlaneseq
      %v2767 = vshrl.u32 %v2766, 7
      %v2768 = vsub.s32 %v2765, %v2767
      %v2769 = vrot.slane %v2747, %v2768
      %v2771 = vunpack.c.l.s4 1966171168
      %v2772 = vunpack.c.0.s8 %v2771
      %v2773 = vlaneseq
      %v2774 = vshrl.u32 %v2773, 7
      %v2775 = vsub.s32 %v2772, %v2774
      %v2776 = vrot.slane %v2748, %v2775
      %v2777 = vcombine.low %v2755, %v2762
      %v2778 = vcombine.low %v2769, %v2776
      %v2780 = vunpack.c.l.s4 1966171168
      %v2781 = vunpack.c.0.s8 %v2780
      %v2782 = vlaneseq
      %v2783 = vshrl.u32 %v2782, 7
      %v2784 = vsub.s32 %v2781, %v2783
      %v2785 = vrot.slane %v2777, %v2784
      %v2787 = vunpack.c.l.s4 1966171168
      %v2788 = vunpack.c.0.s8 %v2787
      %v2789 = vlaneseq
      %v2790 = vshrl.u32 %v2789, 7
      %v2791 = vsub.s32 %v2788, %v2790
      %v2792 = vrot.slane %v2778, %v2791
      %v2793 = vcombine.low %v2785, %v2792
      %v2794 = vcombine.low %v2593, %v2594
      %v2795 = vcombine.low %v2595, %v2586
      %v2796 = vcombine.low %v2618, %v2632
      %v2797 = vcombine.low %v2633, %v2634
      %v2799 = vunpack.c.l.s4 1966171168
      %v2800 = vunpack.c.0.s8 %v2799
      %v2801 = vlaneseq
      %v2802 = vshrl.u32 %v2801, 7
      %v2803 = vsub.s32 %v2800, %v2802
      %v2804 = vrot.slane %v2794, %v2803
      %v2806 = vunpack.c.l.s4 1966171168
      %v2807 = vunpack.c.0.s8 %v2806
      %v2808 = vlaneseq
      %v2809 = vshrl.u32 %v2808, 7
      %v2810 = vsub.s32 %v2807, %v2809
      %v2811 = vrot.slane %v2795, %v2810
      %v2813 = vunpack.c.l.s4 1966171168
      %v2814 = vunpack.c.0.s8 %v2813
      %v2815 = vlaneseq
      %v2816 = vshrl.u32 %v2815, 7
      %v2817 = vsub.s32 %v2814, %v2816
      %v2818 = vrot.slane %v2796, %v2817
      %v2820 = vunpack.c.l.s4 1966171168
      %v2821 = vunpack.c.0.s8 %v2820
      %v2822 = vlaneseq
      %v2823 = vshrl.u32 %v2822, 7
      %v2824 = vsub.s32 %v2821, %v2823
      %v2825 = vrot.slane %v2797, %v2824
      %v2826 = vcombine.low %v2804, %v2811
      %v2827 = vcombine.low %v2818, %v2825
      %v2829 = vunpack.c.l.s4 1966171168
      %v2830 = vunpack.c.0.s8 %v2829
      %v2831 = vlaneseq
      %v2832 = vshrl.u32 %v2831, 7
      %v2833 = vsub.s32 %v2830, %v2832
      %v2834 = vrot.slane %v2826, %v2833
      %v2836 = vunpack.c.l.s4 1966171168
      %v2837 = vunpack.c.0.s8 %v2836
      %v2838 = vlaneseq
      %v2839 = vshrl.u32 %v2838, 7
      %v2840 = vsub.s32 %v2837, %v2839
      %v2841 = vrot.slane %v2827, %v2840
      %v2842 = vcombine.low %v2834, %v2841
      %v2844 = vunpack.c.l.s4 1966171168
      %v2845 = vunpack.c.0.s8 %v2844
      %v2846 = vlaneseq
      %v2847 = vshrl.u32 %v2846, 7
      %v2848 = vsub.s32 %v2845, %v2847
      %v2849 = vrot.slane %v2625, %v2848
      %v2851 = vunpack.c.l.s4 1966171168
      %v2852 = vunpack.c.0.s8 %v2851
      %v2853 = vlaneseq
      %v2854 = vshrl.u32 %v2853, 7
      %v2855 = vsub.s32 %v2852, %v2854
      %v2856 = vrot.slane %v2849, %v2855
      %v2861 = vcombine.low %v496, %v2515
      %v2862 = vcombine.low %v2516, %v2517
      %v2864 = vunpack.c.l.s4 1966171168
      %v2865 = vunpack.c.0.s8 %v2864
      %v2866 = vlaneseq
      %v2867 = vshrl.u32 %v2866, 7
      %v2868 = vsub.s32 %v2865, %v2867
      %v2869 = vrot.slane %v2861, %v2868
      %v2871 = vunpack.c.l.s4 1966171168
      %v2872 = vunpack.c.0.s8 %v2871
      %v2873 = vlaneseq
      %v2874 = vshrl.u32 %v2873, 7
      %v2875 = vsub.s32 %v2872, %v2874
      %v2876 = vrot.slane %v2862, %v2875
      %v2877 = vcombine.low %v2869, %v2876
      %v2879 = vunpack.c.l.s4 1966171168
      %v2880 = vunpack.c.0.s8 %v2879
      %v2881 = vlaneseq
      %v2882 = vshrl.u32 %v2881, 7
      %v2883 = vsub.s32 %v2880, %v2882
      %v2884 = vrot.slane %v2877, %v2883
      %v2885 = vcombine.low %v788, %v2884
      %v2886 = vcombine.low %v2508, %v2642
      %v2887 = vcombine.low %v2554, %v2555
      %v2888 = vcombine.low %v2556, %v2547
      %v2889 = vcombine.low %v2650, %v2593
      %v2891 = vunpack.c.l.s4 1966171168
      %v2892 = vunpack.c.0.s8 %v2891
      %v2893 = vlaneseq
      %v2894 = vshrl.u32 %v2893, 7
      %v2895 = vsub.s32 %v2892, %v2894
      %v2896 = vrot.slane %v2886, %v2895
      %v2898 = vunpack.c.l.s4 1966171168
      %v2899 = vunpack.c.0.s8 %v2898
      %v2900 = vlaneseq
      %v2901 = vshrl.u32 %v2900, 7
      %v2902 = vsub.s32 %v2899, %v2901
      %v2903 = vrot.slane %v2887, %v2902
      %v2905 = vunpack.c.l.s4 1966171168
      %v2906 = vunpack.c.0.s8 %v2905
      %v2907 = vlaneseq
      %v2908 = vshrl.u32 %v2907, 7
      %v2909 = vsub.s32 %v2906, %v2908
      %v2910 = vrot.slane %v2888, %v2909
      %v2912 = vunpack.c.l.s4 1966171168
      %v2913 = vunpack.c.0.s8 %v2912
      %v2914 = vlaneseq
      %v2915 = vshrl.u32 %v2914, 7
      %v2916 = vsub.s32 %v2913, %v2915
      %v2917 = vrot.slane %v2889, %v2916
      %v2918 = vcombine.low %v2896, %v2903
      %v2919 = vcombine.low %v2910, %v2917
      %v2921 = vunpack.c.l.s4 1966171168
      %v2922 = vunpack.c.0.s8 %v2921
      %v2923 = vlaneseq
      %v2924 = vshrl.u32 %v2923, 7
      %v2925 = vsub.s32 %v2922, %v2924
      %v2926 = vrot.slane %v2918, %v2925
      %v2928 = vunpack.c.l.s4 1966171168
      %v2929 = vunpack.c.0.s8 %v2928
      %v2930 = vlaneseq
      %v2931 = vshrl.u32 %v2930, 7
      %v2932 = vsub.s32 %v2929, %v2931
      %v2933 = vrot.slane %v2919, %v2932
      %v2934 = vcombine.low %v2926, %v2933
      %v2935 = vcombine.low %v2594, %v2595
      %v2936 = vcombine.low %v2586, %v2658
      %v2937 = vcombine.low %v2632, %v2633
      %v2938 = vcombine.low %v2634, %v2625
      %v2940 = vunpack.c.l.s4 1966171168
      %v2941 = vunpack.c.0.s8 %v2940
      %v2942 = vlaneseq
      %v2943 = vshrl.u32 %v2942, 7
      %v2944 = vsub.s32 %v2941, %v2943
      %v2945 = vrot.slane %v2935, %v2944
      %v2947 = vunpack.c.l.s4 1966171168
      %v2948 = vunpack.c.0.s8 %v2947
      %v2949 = vlaneseq
      %v2950 = vshrl.u32 %v2949, 7
      %v2951 = vsub.s32 %v2948, %v2950
      %v2952 = vrot.slane %v2936, %v2951
      %v2954 = vunpack.c.l.s4 1966171168
      %v2955 = vunpack.c.0.s8 %v2954
      %v2956 = vlaneseq
      %v2957 = vshrl.u32 %v2956, 7
      %v2958 = vsub.s32 %v2955, %v2957
      %v2959 = vrot.slane %v2937, %v2958
      %v2961 = vunpack.c.l.s4 1966171168
      %v2962 = vunpack.c.0.s8 %v2961
      %v2963 = vlaneseq
      %v2964 = vshrl.u32 %v2963, 7
      %v2965 = vsub.s32 %v2962, %v2964
      %v2966 = vrot.slane %v2938, %v2965
      %v2967 = vcombine.low %v2945, %v2952
      %v2968 = vcombine.low %v2959, %v2966
      %v2970 = vunpack.c.l.s4 1966171168
      %v2971 = vunpack.c.0.s8 %v2970
      %v2972 = vlaneseq
      %v2973 = vshrl.u32 %v2972, 7
      %v2974 = vsub.s32 %v2971, %v2973
      %v2975 = vrot.slane %v2967, %v2974
      %v2977 = vunpack.c.l.s4 1966171168
      %v2978 = vunpack.c.0.s8 %v2977
      %v2979 = vlaneseq
      %v2980 = vshrl.u32 %v2979, 7
      %v2981 = vsub.s32 %v2978, %v2980
      %v2982 = vrot.slane %v2968, %v2981
      %v2983 = vcombine.low %v2975, %v2982
      %v2985 = vunpack.c.l.s4 1966171168
      %v2986 = vunpack.c.0.s8 %v2985
      %v2987 = vlaneseq
      %v2988 = vshrl.u32 %v2987, 7
      %v2989 = vsub.s32 %v2986, %v2988
      %v2990 = vrot.slane %v2666, %v2989
      %v2992 = vunpack.c.l.s4 1966171168
      %v2993 = vunpack.c.0.s8 %v2992
      %v2994 = vlaneseq
      %v2995 = vshrl.u32 %v2994, 7
      %v2996 = vsub.s32 %v2993, %v2995
      %v2997 = vrot.slane %v2990, %v2996
      %2998 = vrot.lane.b32.xlu0 %v2885, 32
      %v2999 = vpop.permute.xlu0 %2998
      %3000 = vrot.lane.b32.xlu0 %v2934, 32
      %v3001 = vpop.permute.xlu0 %3000
      %3002 = vrot.lane.b32.xlu0 %v2983, 32
      %v3003 = vpop.permute.xlu0 %3002
      %3004 = vrot.lane.b32.xlu0 %v2997, 32
      %v3005 = vpop.permute.xlu0 %3004
      %v3010 = vcombine.low %v529, %v2516
      %v3012 = vunpack.c.l.s4 1966171168
      %v3013 = vunpack.c.0.s8 %v3012
      %v3014 = vlaneseq
      %v3015 = vshrl.u32 %v3014, 7
      %v3016 = vsub.s32 %v3013, %v3015
      %v3017 = vrot.slane %v3010, %v3016
      %v3018 = vcombine.low %v3017, %v2755
      %v3020 = vunpack.c.l.s4 1966171168
      %v3021 = vunpack.c.0.s8 %v3020
      %v3022 = vlaneseq
      %v3023 = vshrl.u32 %v3022, 7
      %v3024 = vsub.s32 %v3021, %v3023
      %v3025 = vrot.slane %v3018, %v3024
      %v3026 = vcombine.low %v945, %v3025
      %v3027 = vcombine.low %v2642, %v2667
      %v3028 = vcombine.low %v2547, %v2650
      %v3029 = vcombine.low %v2668, %v2594
      %v3031 = vunpack.c.l.s4 1966171168
      %v3032 = vunpack.c.0.s8 %v3031
      %v3033 = vlaneseq
      %v3034 = vshrl.u32 %v3033, 7
      %v3035 = vsub.s32 %v3032, %v3034
      %v3036 = vrot.slane %v3027, %v3035
      %v3038 = vunpack.c.l.s4 1966171168
      %v3039 = vunpack.c.0.s8 %v3038
      %v3040 = vlaneseq
      %v3041 = vshrl.u32 %v3040, 7
      %v3042 = vsub.s32 %v3039, %v3041
      %v3043 = vrot.slane %v3028, %v3042
      %v3045 = vunpack.c.l.s4 1966171168
      %v3046 = vunpack.c.0.s8 %v3045
      %v3047 = vlaneseq
      %v3048 = vshrl.u32 %v3047, 7
      %v3049 = vsub.s32 %v3046, %v3048
      %v3050 = vrot.slane %v3029, %v3049
      %v3051 = vcombine.low %v3036, %v2769
      %v3052 = vcombine.low %v3043, %v3050
      %v3054 = vunpack.c.l.s4 1966171168
      %v3055 = vunpack.c.0.s8 %v3054
      %v3056 = vlaneseq
      %v3057 = vshrl.u32 %v3056, 7
      %v3058 = vsub.s32 %v3055, %v3057
      %v3059 = vrot.slane %v3051, %v3058
      %v3061 = vunpack.c.l.s4 1966171168
      %v3062 = vunpack.c.0.s8 %v3061
      %v3063 = vlaneseq
      %v3064 = vshrl.u32 %v3063, 7
      %v3065 = vsub.s32 %v3062, %v3064
      %v3066 = vrot.slane %v3052, %v3065
      %v3067 = vcombine.low %v3059, %v3066
      %v3068 = vcombine.low %v2658, %v2669
      %v3069 = vcombine.low %v2625, %v2666
      %v3071 = vunpack.c.l.s4 1966171168
      %v3072 = vunpack.c.0.s8 %v3071
      %v3073 = vlaneseq
      %v3074 = vshrl.u32 %v3073, 7
      %v3075 = vsub.s32 %v3072, %v3074
      %v3076 = vrot.slane %v3068, %v3075
      %v3078 = vunpack.c.l.s4 1966171168
      %v3079 = vunpack.c.0.s8 %v3078
      %v3080 = vlaneseq
      %v3081 = vshrl.u32 %v3080, 7
      %v3082 = vsub.s32 %v3079, %v3081
      %v3083 = vrot.slane %v3069, %v3082
      %v3084 = vcombine.low %v2811, %v3076
      %v3085 = vcombine.low %v2825, %v3083
      %v3087 = vunpack.c.l.s4 1966171168
      %v3088 = vunpack.c.0.s8 %v3087
      %v3089 = vlaneseq
      %v3090 = vshrl.u32 %v3089, 7
      %v3091 = vsub.s32 %v3088, %v3090
      %v3092 = vrot.slane %v3084, %v3091
      %v3094 = vunpack.c.l.s4 1966171168
      %v3095 = vunpack.c.0.s8 %v3094
      %v3096 = vlaneseq
      %v3097 = vshrl.u32 %v3096, 7
      %v3098 = vsub.s32 %v3095, %v3097
      %v3099 = vrot.slane %v3085, %v3098
      %v3100 = vcombine.low %v3092, %v3099
      %v3102 = vunpack.c.l.s4 1966171168
      %v3103 = vunpack.c.0.s8 %v3102
      %v3104 = vlaneseq
      %v3105 = vshrl.u32 %v3104, 7
      %v3106 = vsub.s32 %v3103, %v3105
      %v3107 = vrot.slane %v2670, %v3106
      %v3109 = vunpack.c.l.s4 1966171168
      %v3110 = vunpack.c.0.s8 %v3109
      %v3111 = vlaneseq
      %v3112 = vshrl.u32 %v3111, 7
      %v3113 = vsub.s32 %v3110, %v3112
      %v3114 = vrot.slane %v3107, %v3113
      %3115 = vrot.lane.b32.xlu0 %v3026, 64
      %v3116 = vpop.permute.xlu0 %3115
      %3117 = vrot.lane.b32.xlu0 %v3067, 64
      %v3118 = vpop.permute.xlu0 %3117
      %3119 = vrot.lane.b32.xlu0 %v3100, 64
      %v3120 = vpop.permute.xlu0 %3119
      %3121 = vrot.lane.b32.xlu0 %v3114, 64
      %v3122 = vpop.permute.xlu0 %3121
      %v3127 = vcombine.low %v2501, %v2515
      %v3128 = vcombine.low %v2508, %v2540
      %v3130 = vunpack.c.l.s4 1966171168
      %v3131 = vunpack.c.0.s8 %v3130
      %v3132 = vlaneseq
      %v3133 = vshrl.u32 %v3132, 7
      %v3134 = vsub.s32 %v3131, %v3133
      %v3135 = vrot.slane %v3127, %v3134
      %v3137 = vunpack.c.l.s4 1966171168
      %v3138 = vunpack.c.0.s8 %v3137
      %v3139 = vlaneseq
      %v3140 = vshrl.u32 %v3139, 7
      %v3141 = vsub.s32 %v3138, %v3140
      %v3142 = vrot.slane %v3128, %v3141
      %v3143 = vcombine.low %v3135, %v2876
      %v3144 = vcombine.low %v3142, %v2903
      %v3146 = vunpack.c.l.s4 1966171168
      %v3147 = vunpack.c.0.s8 %v3146
      %v3148 = vlaneseq
      %v3149 = vshrl.u32 %v3148, 7
      %v3150 = vsub.s32 %v3147, %v3149
      %v3151 = vrot.slane %v3143, %v3150
      %v3153 = vunpack.c.l.s4 1966171168
      %v3154 = vunpack.c.0.s8 %v3153
      %v3155 = vlaneseq
      %v3156 = vshrl.u32 %v3155, 7
      %v3157 = vsub.s32 %v3154, %v3156
      %v3158 = vrot.slane %v3144, %v3157
      %v3159 = vcombine.low %v3151, %v3158
      %v3160 = vcombine.low %v2579, %v2593
      %v3161 = vcombine.low %v2586, %v2618
      %v3163 = vunpack.c.l.s4 1966171168
      %v3164 = vunpack.c.0.s8 %v3163
      %v3165 = vlaneseq
      %v3166 = vshrl.u32 %v3165, 7
      %v3167 = vsub.s32 %v3164, %v3166
      %v3168 = vrot.slane %v3160, %v3167
      %v3170 = vunpack.c.l.s4 1966171168
      %v3171 = vunpack.c.0.s8 %v3170
      %v3172 = vlaneseq
      %v3173 = vshrl.u32 %v3172, 7
      %v3174 = vsub.s32 %v3171, %v3173
      %v3175 = vrot.slane %v3161, %v3174
      %v3176 = vcombine.low %v2910, %v3168
      %v3177 = vcombine.low %v2945, %v3175
      %v3179 = vunpack.c.l.s4 1966171168
      %v3180 = vunpack.c.0.s8 %v3179
      %v3181 = vlaneseq
      %v3182 = vshrl.u32 %v3181, 7
      %v3183 = vsub.s32 %v3180, %v3182
      %v3184 = vrot.slane %v3176, %v3183
      %v3186 = vunpack.c.l.s4 1966171168
      %v3187 = vunpack.c.0.s8 %v3186
      %v3188 = vlaneseq
      %v3189 = vshrl.u32 %v3188, 7
      %v3190 = vsub.s32 %v3187, %v3189
      %v3191 = vrot.slane %v3177, %v3190
      %v3192 = vcombine.low %v3184, %v3191
      %v3193 = vcombine.low %v2694, %v2708
      %v3194 = vcombine.low %v2709, %v2710
      %v3196 = vunpack.c.l.s4 1966171168
      %v3197 = vunpack.c.0.s8 %v3196
      %v3198 = vlaneseq
      %v3199 = vshrl.u32 %v3198, 7
      %v3200 = vsub.s32 %v3197, %v3199
      %v3201 = vrot.slane %v3193, %v3200
      %v3203 = vunpack.c.l.s4 1966171168
      %v3204 = vunpack.c.0.s8 %v3203
      %v3205 = vlaneseq
      %v3206 = vshrl.u32 %v3205, 7
      %v3207 = vsub.s32 %v3204, %v3206
      %v3208 = vrot.slane %v3194, %v3207
      %v3209 = vcombine.low %v3201, %v3208
      %v3211 = vunpack.c.l.s4 1966171168
      %v3212 = vunpack.c.0.s8 %v3211
      %v3213 = vlaneseq
      %v3214 = vshrl.u32 %v3213, 7
      %v3215 = vsub.s32 %v3212, %v3214
      %v3216 = vrot.slane %v3209, %v3215
      %v3217 = vcombine.low %v2982, %v3216
      %v3219 = vunpack.c.l.s4 1966171168
      %v3220 = vunpack.c.0.s8 %v3219
      %v3221 = vlaneseq
      %v3222 = vshrl.u32 %v3221, 7
      %v3223 = vsub.s32 %v3220, %v3222
      %v3224 = vrot.slane %v2701, %v3223
      %v3226 = vunpack.c.l.s4 1966171168
      %v3227 = vunpack.c.0.s8 %v3226
      %v3228 = vlaneseq
      %v3229 = vshrl.u32 %v3228, 7
      %v3230 = vsub.s32 %v3227, %v3229
      %v3231 = vrot.slane %v3224, %v3230
      %3232 = vrot.lane.b32.xlu0 %v3159, 96
      %v3233 = vpop.permute.xlu0 %3232
      %3234 = vrot.lane.b32.xlu0 %v3192, 96
      %v3235 = vpop.permute.xlu0 %3234
      %3236 = vrot.lane.b32.xlu0 %v3217, 96
      %v3237 = vpop.permute.xlu0 %3236
      %3238 = vrot.lane.b32.xlu0 %v3231, 96
      %v3239 = vpop.permute.xlu0 %3238
      %v3244 = vcombine.low %v2642, %v2554
      %v3246 = vunpack.c.l.s4 1966171168
      %v3247 = vunpack.c.0.s8 %v3246
      %v3248 = vlaneseq
      %v3249 = vshrl.u32 %v3248, 7
      %v3250 = vsub.s32 %v3247, %v3249
      %v3251 = vrot.slane %v3244, %v3250
      %v3252 = vcombine.low %v2735, %v2755
      %v3253 = vcombine.low %v3251, %v2769
      %v3255 = vunpack.c.l.s4 1966171168
      %v3256 = vunpack.c.0.s8 %v3255
      %v3257 = vlaneseq
      %v3258 = vshrl.u32 %v3257, 7
      %v3259 = vsub.s32 %v3256, %v3258
      %v3260 = vrot.slane %v3252, %v3259
      %v3262 = vunpack.c.l.s4 1966171168
      %v3263 = vunpack.c.0.s8 %v3262
      %v3264 = vlaneseq
      %v3265 = vshrl.u32 %v3264, 7
      %v3266 = vsub.s32 %v3263, %v3265
      %v3267 = vrot.slane %v3253, %v3266
      %v3268 = vcombine.low %v3260, %v3267
      %v3269 = vcombine.low %v2658, %v2632
      %v3271 = vunpack.c.l.s4 1966171168
      %v3272 = vunpack.c.0.s8 %v3271
      %v3273 = vlaneseq
      %v3274 = vshrl.u32 %v3273, 7
      %v3275 = vsub.s32 %v3272, %v3274
      %v3276 = vrot.slane %v3269, %v3275
      %v3277 = vcombine.low %v3043, %v2804
      %v3278 = vcombine.low %v2811, %v3276
      %v3280 = vunpack.c.l.s4 1966171168
      %v3281 = vunpack.c.0.s8 %v3280
      %v3282 = vlaneseq
      %v3283 = vshrl.u32 %v3282, 7
      %v3284 = vsub.s32 %v3281, %v3283
      %v3285 = vrot.slane %v3277, %v3284
      %v3287 = vunpack.c.l.s4 1966171168
      %v3288 = vunpack.c.0.s8 %v3287
      %v3289 = vlaneseq
      %v3290 = vshrl.u32 %v3289, 7
      %v3291 = vsub.s32 %v3288, %v3290
      %v3292 = vrot.slane %v3278, %v3291
      %v3293 = vcombine.low %v3285, %v3292
      %v3294 = vcombine.low %v2708, %v2709
      %v3295 = vcombine.low %v2710, %v2701
      %v3297 = vunpack.c.l.s4 1966171168
      %v3298 = vunpack.c.0.s8 %v3297
      %v3299 = vlaneseq
      %v3300 = vshrl.u32 %v3299, 7
      %v3301 = vsub.s32 %v3298, %v3300
      %v3302 = vrot.slane %v3294, %v3301
      %v3304 = vunpack.c.l.s4 1966171168
      %v3305 = vunpack.c.0.s8 %v3304
      %v3306 = vlaneseq
      %v3307 = vshrl.u32 %v3306, 7
      %v3308 = vsub.s32 %v3305, %v3307
      %v3309 = vrot.slane %v3295, %v3308
      %v3310 = vcombine.low %v3302, %v3309
      %v3312 = vunpack.c.l.s4 1966171168
      %v3313 = vunpack.c.0.s8 %v3312
      %v3314 = vlaneseq
      %v3315 = vshrl.u32 %v3314, 7
      %v3316 = vsub.s32 %v3313, %v3315
      %v3317 = vrot.slane %v3310, %v3316
      %v3318 = vcombine.low %v3099, %v3317
      %v3320 = vunpack.c.l.s4 1966171168
      %v3321 = vunpack.c.0.s8 %v3320
      %v3322 = vlaneseq
      %v3323 = vshrl.u32 %v3322, 7
      %v3324 = vsub.s32 %v3321, %v3323
      %v3325 = vrot.slane %v2718, %v3324
      %v3327 = vunpack.c.l.s4 1966171168
      %v3328 = vunpack.c.0.s8 %v3327
      %v3329 = vlaneseq
      %v3330 = vshrl.u32 %v3329, 7
      %v3331 = vsub.s32 %v3328, %v3330
      %v3332 = vrot.slane %v3325, %v3331
      %v3337 = vcombine.low %v2667, %v2555
      %v3339 = vunpack.c.l.s4 1966171168
      %v3340 = vunpack.c.0.s8 %v3339
      %v3341 = vlaneseq
      %v3342 = vshrl.u32 %v3341, 7
      %v3343 = vsub.s32 %v3340, %v3342
      %v3344 = vrot.slane %v3337, %v3343
      %v3345 = vcombine.low %v2876, %v2896
      %v3346 = vcombine.low %v3344, %v2910
      %v3348 = vunpack.c.l.s4 1966171168
      %v3349 = vunpack.c.0.s8 %v3348
      %v3350 = vlaneseq
      %v3351 = vshrl.u32 %v3350, 7
      %v3352 = vsub.s32 %v3349, %v3351
      %v3353 = vrot.slane %v3345, %v3352
      %v3355 = vunpack.c.l.s4 1966171168
      %v3356 = vunpack.c.0.s8 %v3355
      %v3357 = vlaneseq
      %v3358 = vshrl.u32 %v3357, 7
      %v3359 = vsub.s32 %v3356, %v3358
      %v3360 = vrot.slane %v3346, %v3359
      %v3361 = vcombine.low %v3353, %v3360
      %v3362 = vcombine.low %v2650, %v2668
      %v3363 = vcombine.low %v2669, %v2633
      %v3365 = vunpack.c.l.s4 1966171168
      %v3366 = vunpack.c.0.s8 %v3365
      %v3367 = vlaneseq
      %v3368 = vshrl.u32 %v3367, 7
      %v3369 = vsub.s32 %v3366, %v3368
      %v3370 = vrot.slane %v3362, %v3369
      %v3372 = vunpack.c.l.s4 1966171168
      %v3373 = vunpack.c.0.s8 %v3372
      %v3374 = vlaneseq
      %v3375 = vshrl.u32 %v3374, 7
      %v3376 = vsub.s32 %v3373, %v3375
      %v3377 = vrot.slane %v3363, %v3376
      %v3378 = vcombine.low %v3370, %v2945
      %v3379 = vcombine.low %v2952, %v3377
      %v3381 = vunpack.c.l.s4 1966171168
      %v3382 = vunpack.c.0.s8 %v3381
      %v3383 = vlaneseq
      %v3384 = vshrl.u32 %v3383, 7
      %v3385 = vsub.s32 %v3382, %v3384
      %v3386 = vrot.slane %v3378, %v3385
      %v3388 = vunpack.c.l.s4 1966171168
      %v3389 = vunpack.c.0.s8 %v3388
      %v3390 = vlaneseq
      %v3391 = vshrl.u32 %v3390, 7
      %v3392 = vsub.s32 %v3389, %v3391
      %v3393 = vrot.slane %v3379, %v3392
      %v3394 = vcombine.low %v3386, %v3393
      %v3395 = vcombine.low %v2666, %v2670
      %v3396 = vcombine.low %v2701, %v2718
      %v3398 = vunpack.c.l.s4 1966171168
      %v3399 = vunpack.c.0.s8 %v3398
      %v3400 = vlaneseq
      %v3401 = vshrl.u32 %v3400, 7
      %v3402 = vsub.s32 %v3399, %v3401
      %v3403 = vrot.slane %v3395, %v3402
      %v3405 = vunpack.c.l.s4 1966171168
      %v3406 = vunpack.c.0.s8 %v3405
      %v3407 = vlaneseq
      %v3408 = vshrl.u32 %v3407, 7
      %v3409 = vsub.s32 %v3406, %v3408
      %v3410 = vrot.slane %v3396, %v3409
      %v3411 = vcombine.low %v2966, %v3403
      %v3412 = vcombine.low %v3208, %v3410
      %v3414 = vunpack.c.l.s4 1966171168
      %v3415 = vunpack.c.0.s8 %v3414
      %v3416 = vlaneseq
      %v3417 = vshrl.u32 %v3416, 7
      %v3418 = vsub.s32 %v3415, %v3417
      %v3419 = vrot.slane %v3411, %v3418
      %v3421 = vunpack.c.l.s4 1966171168
      %v3422 = vunpack.c.0.s8 %v3421
      %v3423 = vlaneseq
      %v3424 = vshrl.u32 %v3423, 7
      %v3425 = vsub.s32 %v3422, %v3424
      %v3426 = vrot.slane %v3412, %v3425
      %v3427 = vcombine.low %v3419, %v3426
      %v3429 = vunpack.c.l.s4 1966171168
      %v3430 = vunpack.c.0.s8 %v3429
      %v3431 = vlaneseq
      %v3432 = vshrl.u32 %v3431, 7
      %v3433 = vsub.s32 %v3430, %v3432
      %v3434 = vrot.slane %v2719, %v3433
      %v3436 = vunpack.c.l.s4 1966171168
      %v3437 = vunpack.c.0.s8 %v3436
      %v3438 = vlaneseq
      %v3439 = vshrl.u32 %v3438, 7
      %v3440 = vsub.s32 %v3437, %v3439
      %v3441 = vrot.slane %v3434, %v3440
      %3442 = vrot.lane.b32.xlu0 %v3361, 32
      %v3443 = vpop.permute.xlu0 %3442
      %3444 = vrot.lane.b32.xlu0 %v3394, 32
      %v3445 = vpop.permute.xlu0 %3444
      %3446 = vrot.lane.b32.xlu0 %v3427, 32
      %v3447 = vpop.permute.xlu0 %3446
      %3448 = vrot.lane.b32.xlu0 %v3441, 32
      %v3449 = vpop.permute.xlu0 %3448
      %v3454 = vcombine.low %v2762, %v2769
      %v3455 = vcombine.low %v2776, %v2804
      %v3457 = vunpack.c.l.s4 1966171168
      %v3458 = vunpack.c.0.s8 %v3457
      %v3459 = vlaneseq
      %v3460 = vshrl.u32 %v3459, 7
      %v3461 = vsub.s32 %v3458, %v3460
      %v3462 = vrot.slane %v3454, %v3461
      %v3464 = vunpack.c.l.s4 1966171168
      %v3465 = vunpack.c.0.s8 %v3464
      %v3466 = vlaneseq
      %v3467 = vshrl.u32 %v3466, 7
      %v3468 = vsub.s32 %v3465, %v3467
      %v3469 = vrot.slane %v3455, %v3468
      %v3470 = vcombine.low %v3462, %v3469
      %v3471 = vcombine.low %v2625, %v2694
      %v3473 = vunpack.c.l.s4 1966171168
      %v3474 = vunpack.c.0.s8 %v3473
      %v3475 = vlaneseq
      %v3476 = vshrl.u32 %v3475, 7
      %v3477 = vsub.s32 %v3474, %v3476
      %v3478 = vrot.slane %v3471, %v3477
      %v3479 = vcombine.low %v2811, %v2818
      %v3480 = vcombine.low %v2825, %v3478
      %v3482 = vunpack.c.l.s4 1966171168
      %v3483 = vunpack.c.0.s8 %v3482
      %v3484 = vlaneseq
      %v3485 = vshrl.u32 %v3484, 7
      %v3486 = vsub.s32 %v3483, %v3485
      %v3487 = vrot.slane %v3479, %v3486
      %v3489 = vunpack.c.l.s4 1966171168
      %v3490 = vunpack.c.0.s8 %v3489
      %v3491 = vlaneseq
      %v3492 = vshrl.u32 %v3491, 7
      %v3493 = vsub.s32 %v3490, %v3492
      %v3494 = vrot.slane %v3480, %v3493
      %v3495 = vcombine.low %v3487, %v3494
      %v3496 = vcombine.low %v3317, %v623
      %3497 = vrot.lane.b32.xlu0 %v3470, 64
      %v3498 = vpop.permute.xlu0 %3497
      %3499 = vrot.lane.b32.xlu0 %v3495, 64
      %v3500 = vpop.permute.xlu0 %3499
      %3501 = vrot.lane.b32.xlu0 %v3496, 64
      %v3502 = vpop.permute.xlu0 %3501
      %v3506 = vcombine.low %v2903, %v2910
      %v3507 = vcombine.low %v2917, %v2945
      %v3509 = vunpack.c.l.s4 1966171168
      %v3510 = vunpack.c.0.s8 %v3509
      %v3511 = vlaneseq
      %v3512 = vshrl.u32 %v3511, 7
      %v3513 = vsub.s32 %v3510, %v3512
      %v3514 = vrot.slane %v3506, %v3513
      %v3516 = vunpack.c.l.s4 1966171168
      %v3517 = vunpack.c.0.s8 %v3516
      %v3518 = vlaneseq
      %v3519 = vshrl.u32 %v3518, 7
      %v3520 = vsub.s32 %v3517, %v3519
      %v3521 = vrot.slane %v3507, %v3520
      %v3522 = vcombine.low %v3514, %v3521
      %v3523 = vcombine.low %v2666, %v2708
      %v3525 = vunpack.c.l.s4 1966171168
      %v3526 = vunpack.c.0.s8 %v3525
      %v3527 = vlaneseq
      %v3528 = vshrl.u32 %v3527, 7
      %v3529 = vsub.s32 %v3526, %v3528
      %v3530 = vrot.slane %v3523, %v3529
      %v3531 = vcombine.low %v2952, %v2959
      %v3532 = vcombine.low %v2966, %v3530
      %v3534 = vunpack.c.l.s4 1966171168
      %v3535 = vunpack.c.0.s8 %v3534
      %v3536 = vlaneseq
      %v3537 = vshrl.u32 %v3536, 7
      %v3538 = vsub.s32 %v3535, %v3537
      %v3539 = vrot.slane %v3531, %v3538
      %v3541 = vunpack.c.l.s4 1966171168
      %v3542 = vunpack.c.0.s8 %v3541
      %v3543 = vlaneseq
      %v3544 = vshrl.u32 %v3543, 7
      %v3545 = vsub.s32 %v3542, %v3544
      %v3546 = vrot.slane %v3532, %v3545
      %v3547 = vcombine.low %v3539, %v3546
      %v3548 = vcombine.low %v3426, %v788
      %3549 = vrot.lane.b32.xlu0 %v3522, 96
      %v3550 = vpop.permute.xlu0 %3549
      %3551 = vrot.lane.b32.xlu0 %v3547, 96
      %v3552 = vpop.permute.xlu0 %3551
      %3553 = vrot.lane.b32.xlu0 %v3548, 96
      %v3554 = vpop.permute.xlu0 %3553
      %v3558 = vcombine.low %v2769, %v3043
      %v3559 = vcombine.low %v3050, %v2811
      %v3561 = vunpack.c.l.s4 1966171168
      %v3562 = vunpack.c.0.s8 %v3561
      %v3563 = vlaneseq
      %v3564 = vshrl.u32 %v3563, 7
      %v3565 = vsub.s32 %v3562, %v3564
      %v3566 = vrot.slane %v3558, %v3565
      %v3568 = vunpack.c.l.s4 1966171168
      %v3569 = vunpack.c.0.s8 %v3568
      %v3570 = vlaneseq
      %v3571 = vshrl.u32 %v3570, 7
      %v3572 = vsub.s32 %v3569, %v3571
      %v3573 = vrot.slane %v3559, %v3572
      %v3574 = vcombine.low %v3566, %v3573
      %v3575 = vcombine.low %v2670, %v2709
      %v3577 = vunpack.c.l.s4 1966171168
      %v3578 = vunpack.c.0.s8 %v3577
      %v3579 = vlaneseq
      %v3580 = vshrl.u32 %v3579, 7
      %v3581 = vsub.s32 %v3578, %v3580
      %v3582 = vrot.slane %v3575, %v3581
      %v3583 = vcombine.low %v3076, %v2825
      %v3584 = vcombine.low %v3083, %v3582
      %v3586 = vunpack.c.l.s4 1966171168
      %v3587 = vunpack.c.0.s8 %v3586
      %v3588 = vlaneseq
      %v3589 = vshrl.u32 %v3588, 7
      %v3590 = vsub.s32 %v3587, %v3589
      %v3591 = vrot.slane %v3583, %v3590
      %v3593 = vunpack.c.l.s4 1966171168
      %v3594 = vunpack.c.0.s8 %v3593
      %v3595 = vlaneseq
      %v3596 = vshrl.u32 %v3595, 7
      %v3597 = vsub.s32 %v3594, %v3596
      %v3598 = vrot.slane %v3584, %v3597
      %v3599 = vcombine.low %v3591, %v3598
      %v3600 = vcombine.low %v2718, %v2719
      %v3602 = vunpack.c.l.s4 1966171168
      %v3603 = vunpack.c.0.s8 %v3602
      %v3604 = vlaneseq
      %v3605 = vshrl.u32 %v3604, 7
      %v3606 = vsub.s32 %v3603, %v3605
      %v3607 = vrot.slane %v3600, %v3606
      %v3608 = vcombine.low %v3309, %v3607
      %v3610 = vunpack.c.l.s4 1966171168
      %v3611 = vunpack.c.0.s8 %v3610
      %v3612 = vlaneseq
      %v3613 = vshrl.u32 %v3612, 7
      %v3614 = vsub.s32 %v3611, %v3613
      %v3615 = vrot.slane %v3608, %v3614
      %v3616 = vcombine.low %v3615, %v945
      %v3620 = vsel %vm1596, %v2744, %v2999
      %v3621 = vsel %vm1596, %v2793, %v3001
      %v3622 = vsel %vm1596, %v2842, %v3003
      %v3623 = vsel %vm1596, %v2856, %v3005
      %v3624 = vsel %vm1601, %v3620, %v3116
      %v3625 = vsel %vm1601, %v3621, %v3118
      %v3626 = vsel %vm1601, %v3622, %v3120
      %v3627 = vsel %vm1601, %v3623, %v3122
      %v3628 = vsel %vm1606, %v3624, %v3233
      %v3629 = vsel %vm1606, %v3625, %v3235
      %v3630 = vsel %vm1606, %v3626, %v3237
      %v3631 = vsel %vm1606, %v3627, %v3239
      %v3632 = vsel %vm1596, %v3268, %v3443
      %v3633 = vsel %vm1596, %v3293, %v3445
      %v3634 = vsel %vm1596, %v3318, %v3447
      %v3635 = vsel %vm1596, %v3332, %v3449
      %v3636 = vsel %vm1601, %v3632, %v3498
      %v3637 = vsel %vm1601, %v3633, %v3500
      %v3638 = vsel %vm1601, %v3634, %v3502
      %v3639 = vsel %vm1601, %v3635, %v1445
      %v3640 = vsel %vm1606, %v3636, %v3550
      %v3641 = vsel %vm1606, %v3637, %v3552
      %v3642 = vsel %vm1606, %v3638, %v3554
      %v3643 = vsel %vm1606, %v3639, %v1514
      %v3644 = vpack.c.bf16 %v3629, %v3628
      %v3645 = vpack.c.bf16 %v3641, %v3640
      %v3646 = vpack.c.bf16 %v3599, %v3574
      %v3647 = vpack.c.bf16 %v3631, %v3630
      %v3648 = vpack.c.bf16 %v3643, %v3642
      %v3649 = vpack.c.bf16 %v1591, %v3616
      %s3650 = scalar_lea.vmem %s1, 144
      %v3651 = vld [vmem:[%s3650] sm:$0xf]
      %v3652 = vld [vmem:[%s3650 + $0x4] sm:$0xf]
      %v3653 = vld [vmem:[%s3650 + $0x8] sm:$0xf]
      %v3654 = vld [vmem:[%s3650 + $0xc] sm:$0xf]
      %v3655 = vld [vmem:[%s3650 + $0x10] sm:$0xf]
      %v3656 = vld [vmem:[%s3650 + $0x14] sm:$0xf]
      %v3657 = vld [vmem:[%s3650 + $0x18] sm:$0xf]
      %v3658 = vld [vmem:[%s3650 + $0x1c] sm:$0xf]
      %v3659 = vld [vmem:[%s3650 + $0x20] sm:$0xf]
      %v3660 = vld [vmem:[%s3650 + $0x24] sm:$0xf]
      %v3661 = vld [vmem:[%s3650 + $0x28] sm:$0xf]
      %v3662 = vld [vmem:[%s3650 + $0x2c] sm:$0xf]
      %v3663 = vld [vmem:[%s3650 + $0x30] sm:$0xf]
      %v3664 = vld [vmem:[%s3650 + $0x34] sm:$0xf]
      %v3665 = vld [vmem:[%s3650 + $0x38] sm:$0xf]
      %v3666 = vld [vmem:[%s3650 + $0x3c] sm:$0xf]
      %v3667 = vld [vmem:[%s3650 + $0x40] sm:$0xf]
      %v3668 = vld [vmem:[%s3650 + $0x44] sm:$0xf]
      %v3669 = vld [vmem:[%s3650 + $0x48] sm:$0xf]
      %v3670 = vld [vmem:[%s3650 + $0x4c] sm:$0xf]
      %v3671 = vld [vmem:[%s3650 + $0x50] sm:$0xf]
      %v3672 = vld [vmem:[%s3650 + $0x54] sm:$0xf]
      %v3673 = vld [vmem:[%s3650 + $0x58] sm:$0xf]
      %v3674 = vld [vmem:[%s3650 + $0x5c] sm:$0xf]
      %v3675 = vld [vmem:[%s3650 + $0x60] sm:$0xf]
      %v3676 = vld [vmem:[%s3650 + $0x64] sm:$0xf]
      %v3677 = vld [vmem:[%s3650 + $0x68] sm:$0xf]
      %v3678 = vld [vmem:[%s3650 + $0x6c] sm:$0xf]
      %v3679 = vld [vmem:[%s3650 + $0x70] sm:$0xf]
      %v3680 = vld [vmem:[%s3650 + $0x74] sm:$0xf]
      %v3681 = vld [vmem:[%s3650 + $0x78] sm:$0xf]
      %v3682 = vld [vmem:[%s3650 + $0x7c] sm:$0xf]
      %v3683 = vld [vmem:[%s3650 + $0x80] sm:$0xf]
      %v3684 = vld [vmem:[%s3650 + $0x84] sm:$0xf]
      %v3685 = vld [vmem:[%s3650 + $0x88] sm:$0xf]
      %v3686 = vld [vmem:[%s3650 + $0x8c] sm:$0xf]
      %s3687 = scalar_lea.vmem %s2, 4
      %v3688 = vld [vmem:[%s3687] sm:$0x7]
      %v3689 = vlaneseq
      %v3690 = vshrl.u32 %v3689, 7
      %v3691 = vsub.s32 0, %v3690
      %v3692 = vrot.slane %v3688, %v3691
      %v3729 = vunpack.c.l.b16 %v3651
      %v3730 = vunpack.c.l.b16 %v3652
      %v3731 = vunpack.c.l.b16 %v3653
      %v3732 = vunpack.c.l.b16 %v3654
      %v3733 = vunpack.c.l.b16 %v3655
      %v3734 = vunpack.c.l.b16 %v3656
      %v3735 = vunpack.c.l.b16 %v3657
      %v3736 = vunpack.c.l.b16 %v3658
      %v3737 = vunpack.c.l.b16 %v3659
      %v3738 = vunpack.c.l.b16 %v3660
      %v3739 = vunpack.c.l.b16 %v3661
      %v3740 = vunpack.c.l.b16 %v3662
      %v3741 = vunpack.c.l.b16 %v3663
      %v3742 = vunpack.c.l.b16 %v3664
      %v3743 = vunpack.c.l.b16 %v3665
      %v3744 = vunpack.c.l.b16 %v3666
      %v3745 = vunpack.c.l.b16 %v3667
      %v3746 = vunpack.c.l.b16 %v3668
      %v3747 = vunpack.c.l.b16 %v3669
      %v3748 = vunpack.c.l.b16 %v3670
      %v3749 = vunpack.c.l.b16 %v3671
      %v3750 = vunpack.c.l.b16 %v3672
      %v3751 = vunpack.c.l.b16 %v3673
      %v3752 = vunpack.c.l.b16 %v3674
      %v3753 = vunpack.c.l.b16 %v3675
      %v3754 = vunpack.c.l.b16 %v3676
      %v3755 = vunpack.c.l.b16 %v3677
      %v3756 = vunpack.c.l.b16 %v3678
      %v3757 = vunpack.c.l.b16 %v3679
      %v3758 = vunpack.c.l.b16 %v3680
      %v3759 = vunpack.c.l.b16 %v3681
      %v3760 = vunpack.c.l.b16 %v3682
      %v3761 = vunpack.c.l.b16 %v3683
      %v3762 = vunpack.c.l.b16 %v3684
      %v3763 = vunpack.c.l.b16 %v3685
      %v3764 = vunpack.c.l.b16 %v3686
      %v3765 = vpack.c.b16 %v3730, %v3729
      %v3766 = vpack.c.b16 %v3732, %v3731
      %v3767 = vpack.c.b16 %v3734, %v3733
      %v3768 = vpack.c.b16 %v3736, %v3735
      %v3769 = vpack.c.b16 %v3738, %v3737
      %v3770 = vpack.c.b16 %v3740, %v3739
      %v3771 = vpack.c.b16 %v3742, %v3741
      %v3772 = vpack.c.b16 %v3744, %v3743
      %v3773 = vpack.c.b16 %v3746, %v3745
      %v3774 = vpack.c.b16 %v3748, %v3747
      %v3775 = vpack.c.b16 %v3750, %v3749
      %v3776 = vpack.c.b16 %v3752, %v3751
      %v3777 = vpack.c.b16 %v3754, %v3753
      %v3778 = vpack.c.b16 %v3756, %v3755
      %v3779 = vpack.c.b16 %v3758, %v3757
      %v3780 = vpack.c.b16 %v3760, %v3759
      %v3781 = vpack.c.b16 %v3762, %v3761
      %v3782 = vpack.c.b16 %v3764, %v3763
      %v3802 = vsel %vm1596, %v3646, 0
      %v3805 = vsel %vm1596, %v3649, 0
      %3807 = vmatprep.subr.bf16.mxu0 0
      %3808 = vmatpush1.bf16.msra.mxu0 %v3772
      %3809 = vmatprep.subr.bf16.mxu0 0
      %3810 = vmatpush1.bf16.msra.mxu0 %v3771
      %3811 = vmatprep.subr.bf16.mxu0 0
      %3812 = vmatpush1.bf16.msra.mxu0 %v3770
      %3813 = vmatprep.subr.bf16.mxu0 0
      %3814 = vmatpush1.bf16.msra.mxu0 %v3769
      %3815 = vmatprep.subr.bf16.mxu0 0
      %3816 = vmatpush1.bf16.msra.mxu0 %v3768
      %3817 = vmatprep.subr.bf16.mxu0 0
      %3818 = vmatpush1.bf16.msra.mxu0 %v3767
      %3819 = vmatprep.subr.bf16.mxu0 0
      %3820 = vmatpush1.bf16.msra.mxu0 %v3766
      %3821 = vmatprep.subr.bf16.mxu0 0
      %3822 = vmatpush1.bf16.msra.mxu0 %v3765
      %3823 = vmatprep.subr.bf16.mxu0 0
      %3824 = vmatpush2.bf16.msra.mxu0 %v3780
      %3825 = vmatprep.subr.bf16.mxu0 0
      %3826 = vmatpush2.bf16.msra.mxu0 %v3779
      %3827 = vmatprep.subr.bf16.mxu0 0
      %3828 = vmatpush2.bf16.msra.mxu0 %v3778
      %3829 = vmatprep.subr.bf16.mxu0 0
      %3830 = vmatpush2.bf16.msra.mxu0 %v3777
      %3831 = vmatprep.subr.bf16.mxu0 0
      %3832 = vmatpush2.bf16.msra.mxu0 %v3776
      %3833 = vmatprep.subr.bf16.mxu0 0
      %3834 = vmatpush2.bf16.msra.mxu0 %v3775
      %3835 = vmatprep.subr.bf16.mxu0 0
      %3836 = vmatpush2.bf16.msra.mxu0 %v3774
      %3837 = vmatprep.subr.bf16.mxu0 0
      %3838 = vmatpush2.bf16.msra.mxu0 %v3773
      %3839 = vmatprep.mubr.bf16.mxu0 %v3645
      %3840 = vmatmul.mubr.bf16.gmra.mxu0 %v3644
      %v3841 = vpop.f32.mrf.mxu0
      %v3842 = vadd.f32 %v3692, %v3841
      %v3843 = vpop.f32.mrf.mxu0
      %v3844 = vpop.f32.mrf.mxu0
      %v3845 = vadd.f32 %v3692, %v3844
      %v3846 = vpop.f32.mrf.mxu0
      %3847 = vmatprep.mubr.bf16.mxu0 %v3648
      %3848 = vmatmul.mubr.bf16.gmra.mxu0 %v3647
      %v3849 = vpop.f32.mrf.mxu0
      %v3850 = vadd.f32 %v3692, %v3849
      %v3851 = vpop.f32.mrf.mxu0
      %v3852 = vpop.f32.mrf.mxu0
      %v3853 = vadd.f32 %v3692, %v3852
      %v3854 = vpop.f32.mrf.mxu0
      %3855 = vdwg.mxu0
      %3856 = vmatprep.subr.bf16.mxu0 0
      %3857 = vmatpush1.bf16.msra.mxu0 0
      %3858 = vmatprep.subr.bf16.mxu0 0
      %3859 = vmatpush1.bf16.msra.mxu0 0
      %3860 = vmatprep.subr.bf16.mxu0 0
      %3861 = vmatpush1.bf16.msra.mxu0 0
      %3862 = vmatprep.subr.bf16.mxu0 0
      %3863 = vmatpush1.bf16.msra.mxu0 0
      %3864 = vmatprep.subr.bf16.mxu0 0
      %3865 = vmatpush1.bf16.msra.mxu0 0
      %3866 = vmatprep.subr.bf16.mxu0 0
      %3867 = vmatpush1.bf16.msra.mxu0 0
      %3868 = vmatprep.subr.bf16.mxu0 0
      %3869 = vmatpush1.bf16.msra.mxu0 %v3782
      %3870 = vmatprep.subr.bf16.mxu0 0
      %3871 = vmatpush1.bf16.msra.mxu0 %v3781
      %3872 = vmatprep.subr.bf16.mxu0 0
      %3873 = vmatpush2.bf16.msra.mxu0 0
      %3874 = vmatprep.subr.bf16.mxu0 0
      %3875 = vmatpush2.bf16.msra.mxu0 0
      %3876 = vmatprep.subr.bf16.mxu0 0
      %3877 = vmatpush2.bf16.msra.mxu0 0
      %3878 = vmatprep.subr.bf16.mxu0 0
      %3879 = vmatpush2.bf16.msra.mxu0 0
      %3880 = vmatprep.subr.bf16.mxu0 0
      %3881 = vmatpush2.bf16.msra.mxu0 0
      %3882 = vmatprep.subr.bf16.mxu0 0
      %3883 = vmatpush2.bf16.msra.mxu0 0
      %3884 = vmatprep.subr.bf16.mxu0 0
      %3885 = vmatpush2.bf16.msra.mxu0 0
      %3886 = vmatprep.subr.bf16.mxu0 0
      %3887 = vmatpush2.bf16.msra.mxu0 0
      %3888 = vmatprep.mubr.bf16.mxu0 0
      %3889 = vmatmul.mubr.bf16.gmra.mxu0 %v3802
      %v3890 = vpop.f32.mrf.mxu0
      %v3891 = vadd.f32 %v3842, %v3890
      %v3892 = vpop.f32.mrf.mxu0
      %v3893 = vpop.f32.mrf.mxu0
      %v3894 = vadd.f32 %v3845, %v3893
      %v3895 = vpop.f32.mrf.mxu0
      %3896 = vmatprep.mubr.bf16.mxu0 0
      %3897 = vmatmul.mubr.bf16.gmra.mxu0 %v3805
      %v3898 = vpop.f32.mrf.mxu0
      %v3899 = vadd.f32 %v3850, %v3898
      %v3900 = vpop.f32.mrf.mxu0
      %v3901 = vpop.f32.mrf.mxu0
      %v3902 = vadd.f32 %v3853, %v3901
      %v3903 = vpop.f32.mrf.mxu0
      %3904 = vdwg.mxu0
      %v3905 = vsel %vm1596, %v3891, 0.0
      %v3906 = vsel %vm1596, %v3894, 0.0
      %v3907 = vadd.f32 %v3905, %v3906
      %v3908 = vsel %vm1596, %v3899, 0.0
      %v3909 = vadd.f32 %v3907, %v3908
      %v3910 = vsel %vm1887, %v3902, 0.0
      %v3911 = vadd.f32 %v3909, %v3910
      %v3912 = vrot.slane %v3911, 4
      %v3913 = vadd.f32 %v3911, %v3912
      %v3914 = vrot.slane %v3913, 2
      %v3915 = vadd.f32 %v3913, %v3914
      %v3916 = vrot.slane %v3915, 1
      %v3917 = vadd.f32 %v3915, %v3916
      %v3919 = vsel %vm1596, %v3917, 0
      %3921 = vmatprep.subr.mxu0 0.0
      %3922 = vmatpush1.msra.mxu0 0.0
      %3923 = vmatprep.subr.mxu0 0.0
      %3924 = vmatpush1.msra.mxu0 0.0
      %3925 = vmatprep.subr.mxu0 0.0
      %3926 = vmatpush1.msra.mxu0 0.0
      %3927 = vmatprep.subr.mxu0 0.0
      %3928 = vmatpush1.msra.mxu0 0.0
      %3929 = vmatprep.subr.mxu0 0.0
      %3930 = vmatpush1.msra.mxu0 0.0
      %3931 = vmatprep.subr.mxu0 0.0
      %3932 = vmatpush1.msra.mxu0 0.0
      %3933 = vmatprep.subr.mxu0 0.0
      %3934 = vmatpush1.msra.mxu0 0.0
      %3935 = vmatprep.subr.mxu0 0.0
      %3936 = vmatpush1.msra.mxu0 0.0
      %3937 = vmatprep.subr.mxu0 0.0
      %3938 = vmatpush1.msra.mxu0 0.0
      %3939 = vmatprep.subr.mxu0 0.0
      %3940 = vmatpush1.msra.mxu0 0.0
      %3941 = vmatprep.subr.mxu0 0.0
      %3942 = vmatpush1.msra.mxu0 0.0
      %3943 = vmatprep.subr.mxu0 0.0
      %3944 = vmatpush1.msra.mxu0 0.0
      %3945 = vmatprep.subr.mxu0 0.0
      %3946 = vmatpush1.msra.mxu0 %v256
      %3947 = vmatprep.subr.mxu0 0.0
      %3948 = vmatpush1.msra.mxu0 %v255
      %3949 = vmatprep.subr.mxu0 0.0
      %3950 = vmatpush1.msra.mxu0 %v254
      %3951 = vmatprep.subr.mxu0 0.0
      %3952 = vmatpush1.msra.mxu0 %v253
      %3953 = vmatprep.subr.mxu0 0.0
      %3954 = vmatpush2.msra.mxu0 0.0
      %3955 = vmatprep.subr.mxu0 0.0
      %3956 = vmatpush2.msra.mxu0 0.0
      %3957 = vmatprep.subr.mxu0 0.0
      %3958 = vmatpush2.msra.mxu0 0.0
      %3959 = vmatprep.subr.mxu0 0.0
      %3960 = vmatpush2.msra.mxu0 0.0
      %3961 = vmatprep.subr.mxu0 0.0
      %3962 = vmatpush2.msra.mxu0 0.0
      %3963 = vmatprep.subr.mxu0 0.0
      %3964 = vmatpush2.msra.mxu0 0.0
      %3965 = vmatprep.subr.mxu0 0.0
      %3966 = vmatpush2.msra.mxu0 0.0
      %3967 = vmatprep.subr.mxu0 0.0
      %3968 = vmatpush2.msra.mxu0 0.0
      %3969 = vmatprep.subr.mxu0 0.0
      %3970 = vmatpush2.msra.mxu0 0.0
      %3971 = vmatprep.subr.mxu0 0.0
      %3972 = vmatpush2.msra.mxu0 0.0
      %3973 = vmatprep.subr.mxu0 0.0
      %3974 = vmatpush2.msra.mxu0 0.0
      %3975 = vmatprep.subr.mxu0 0.0
      %3976 = vmatpush2.msra.mxu0 0.0
      %3977 = vmatprep.subr.mxu0 0.0
      %3978 = vmatpush2.msra.mxu0 0.0
      %3979 = vmatprep.subr.mxu0 0.0
      %3980 = vmatpush2.msra.mxu0 0.0
      %3981 = vmatprep.subr.mxu0 0.0
      %3982 = vmatpush2.msra.mxu0 0.0
      %3983 = vmatprep.subr.mxu0 0.0
      %3984 = vmatpush2.msra.mxu0 0.0
      %3985 = vmatprep.mubr.f32.mxu0 0.0
      %3986 = vmatmul.mubr.f32.gmra.mxu0 %v3919
      %v3987 = vpop.f32.mrf.mxu0
      %v3988 = vadd.f32 0.0, %v3987
      %v3989 = vpop.f32.mrf.mxu0
      %3990 = vdwg.mxu0
      %v3991 = vmul.f32 %v3988, 0.04
      %v3992 = vlaneseq
      %v3993 = vshrl.u32 %v3992, 7
      %v3994 = vsub.s32 0, %v3993
      %v3995 = vrot.slane %v3991, %v3994
      %v3996 = vsub.f32 %v3891, %v3995
      %v3997 = vsub.f32 %v3894, %v3995
      %v3998 = vsub.f32 %v3899, %v3995
      %v3999 = vsub.f32 %v3902, %v3995
      %v4000 = vmul.f32 %v3996, %v3996
      %v4001 = vmul.f32 %v3997, %v3997
      %v4002 = vmul.f32 %v3998, %v3998
      %v4003 = vmul.f32 %v3999, %v3999
      %v4004 = vsel %vm1596, %v4000, 0.0
      %v4005 = vsel %vm1596, %v4001, 0.0
      %v4006 = vadd.f32 %v4004, %v4005
      %v4007 = vsel %vm1596, %v4002, 0.0
      %v4008 = vadd.f32 %v4006, %v4007
      %v4009 = vsel %vm1887, %v4003, 0.0
      %v4010 = vadd.f32 %v4008, %v4009
      %v4011 = vrot.slane %v4010, 4
      %v4012 = vadd.f32 %v4010, %v4011
      %v4013 = vrot.slane %v4012, 2
      %v4014 = vadd.f32 %v4012, %v4013
      %v4015 = vrot.slane %v4014, 1
      %v4016 = vadd.f32 %v4014, %v4015
      %v4018 = vsel %vm1596, %v4016, 0
      %4020 = vmatprep.subr.mxu0 0.0
      %4021 = vmatpush1.msra.mxu0 0.0
      %4022 = vmatprep.subr.mxu0 0.0
      %4023 = vmatpush1.msra.mxu0 0.0
      %4024 = vmatprep.subr.mxu0 0.0
      %4025 = vmatpush1.msra.mxu0 0.0
      %4026 = vmatprep.subr.mxu0 0.0
      %4027 = vmatpush1.msra.mxu0 0.0
      %4028 = vmatprep.subr.mxu0 0.0
      %4029 = vmatpush1.msra.mxu0 0.0
      %4030 = vmatprep.subr.mxu0 0.0
      %4031 = vmatpush1.msra.mxu0 0.0
      %4032 = vmatprep.subr.mxu0 0.0
      %4033 = vmatpush1.msra.mxu0 0.0
      %4034 = vmatprep.subr.mxu0 0.0
      %4035 = vmatpush1.msra.mxu0 0.0
      %4036 = vmatprep.subr.mxu0 0.0
      %4037 = vmatpush1.msra.mxu0 0.0
      %4038 = vmatprep.subr.mxu0 0.0
      %4039 = vmatpush1.msra.mxu0 0.0
      %4040 = vmatprep.subr.mxu0 0.0
      %4041 = vmatpush1.msra.mxu0 0.0
      %4042 = vmatprep.subr.mxu0 0.0
      %4043 = vmatpush1.msra.mxu0 0.0
      %4044 = vmatprep.subr.mxu0 0.0
      %4045 = vmatpush1.msra.mxu0 %v256
      %4046 = vmatprep.subr.mxu0 0.0
      %4047 = vmatpush1.msra.mxu0 %v255
      %4048 = vmatprep.subr.mxu0 0.0
      %4049 = vmatpush1.msra.mxu0 %v254
      %4050 = vmatprep.subr.mxu0 0.0
      %4051 = vmatpush1.msra.mxu0 %v253
      %4052 = vmatprep.subr.mxu0 0.0
      %4053 = vmatpush2.msra.mxu0 0.0
      %4054 = vmatprep.subr.mxu0 0.0
      %4055 = vmatpush2.msra.mxu0 0.0
      %4056 = vmatprep.subr.mxu0 0.0
      %4057 = vmatpush2.msra.mxu0 0.0
      %4058 = vmatprep.subr.mxu0 0.0
      %4059 = vmatpush2.msra.mxu0 0.0
      %4060 = vmatprep.subr.mxu0 0.0
      %4061 = vmatpush2.msra.mxu0 0.0
      %4062 = vmatprep.subr.mxu0 0.0
      %4063 = vmatpush2.msra.mxu0 0.0
      %4064 = vmatprep.subr.mxu0 0.0
      %4065 = vmatpush2.msra.mxu0 0.0
      %4066 = vmatprep.subr.mxu0 0.0
      %4067 = vmatpush2.msra.mxu0 0.0
      %4068 = vmatprep.subr.mxu0 0.0
      %4069 = vmatpush2.msra.mxu0 0.0
      %4070 = vmatprep.subr.mxu0 0.0
      %4071 = vmatpush2.msra.mxu0 0.0
      %4072 = vmatprep.subr.mxu0 0.0
      %4073 = vmatpush2.msra.mxu0 0.0
      %4074 = vmatprep.subr.mxu0 0.0
      %4075 = vmatpush2.msra.mxu0 0.0
      %4076 = vmatprep.subr.mxu0 0.0
      %4077 = vmatpush2.msra.mxu0 0.0
      %4078 = vmatprep.subr.mxu0 0.0
      %4079 = vmatpush2.msra.mxu0 0.0
      %4080 = vmatprep.subr.mxu0 0.0
      %4081 = vmatpush2.msra.mxu0 0.0
      %4082 = vmatprep.subr.mxu0 0.0
      %4083 = vmatpush2.msra.mxu0 0.0
      %4084 = vmatprep.mubr.f32.mxu0 0.0
      %4085 = vmatmul.mubr.f32.gmra.mxu0 %v4018
      %v4086 = vpop.f32.mrf.mxu0
      %v4087 = vadd.f32 0.0, %v4086
      %v4088 = vpop.f32.mrf.mxu0
      %4089 = vdwg.mxu0
      %v4090 = vmul.f32 %v4087, 0.04
      %v4091 = vadd.f32 %v4090, 1e-05
      %v4092 = vrsqrt.pop %v4091
      %v4094 = vrot.slane %v3688, 1
      %v4096 = vmul.f32 %v4092, %v4094
      %v4097 = vlaneseq
      %v4098 = vshrl.u32 %v4097, 7
      %v4099 = vsub.s32 0, %v4098
      %v4100 = vrot.slane %v4096, %v4099
      %v4101 = vmul.f32 %v3996, %v4100
      %v4102 = vmul.f32 %v3997, %v4100
      %v4103 = vmul.f32 %v3998, %v4100
      %v4104 = vmul.f32 %v3999, %v4100
      %v4105 = vlaneseq
      %v4106 = vshrl.u32 %v4105, 7
      %v4107 = vsub.s32 2, %v4106
      %v4108 = vrot.slane %v3688, %v4107
      %v4109 = vadd.f32 %v4101, %v4108
      %v4110 = vadd.f32 %v4102, %v4108
      %v4111 = vadd.f32 %v4103, %v4108
      %v4112 = vadd.f32 %v4104, %v4108
      %v4113 = vmax.f32 %v4109, 0.0
      %v4114 = vmax.f32 %v4110, 0.0
      %v4115 = vmax.f32 %v4111, 0.0
      %v4116 = vmax.f32 %v4112, 0.0
      %v4121 = vcombine.high %v4113, %v4113
      %v4123 = vunpack.c.l.s4 1966171168
      %v4124 = vunpack.c.0.s8 %v4123
      %v4125 = vlaneseq
      %v4126 = vshrl.u32 %v4125, 7
      %v4127 = vsub.s32 %v4124, %v4126
      %v4128 = vrot.slane %v4113, %v4127
      %v4130 = vunpack.c.l.s4 1966171168
      %v4131 = vunpack.c.0.s8 %v4130
      %v4132 = vlaneseq
      %v4133 = vshrl.u32 %v4132, 7
      %v4134 = vsub.s32 %v4131, %v4133
      %v4135 = vrot.slane %v4121, %v4134
      %v4136 = vcombine.high %v4128, %v4128
      %v4137 = vcombine.high %v4135, %v4135
      %v4139 = vunpack.c.l.s4 1966171168
      %v4140 = vunpack.c.0.s8 %v4139
      %v4141 = vlaneseq
      %v4142 = vshrl.u32 %v4141, 7
      %v4143 = vsub.s32 %v4140, %v4142
      %v4144 = vrot.slane %v4128, %v4143
      %v4146 = vunpack.c.l.s4 1966171168
      %v4147 = vunpack.c.0.s8 %v4146
      %v4148 = vlaneseq
      %v4149 = vshrl.u32 %v4148, 7
      %v4150 = vsub.s32 %v4147, %v4149
      %v4151 = vrot.slane %v4135, %v4150
      %v4153 = vunpack.c.l.s4 1966171168
      %v4154 = vunpack.c.0.s8 %v4153
      %v4155 = vlaneseq
      %v4156 = vshrl.u32 %v4155, 7
      %v4157 = vsub.s32 %v4154, %v4156
      %v4158 = vrot.slane %v4136, %v4157
      %v4160 = vunpack.c.l.s4 1966171168
      %v4161 = vunpack.c.0.s8 %v4160
      %v4162 = vlaneseq
      %v4163 = vshrl.u32 %v4162, 7
      %v4164 = vsub.s32 %v4161, %v4163
      %v4165 = vrot.slane %v4137, %v4164
      %v4166 = vcombine.high %v4144, %v4144
      %v4167 = vcombine.high %v4151, %v4151
      %v4168 = vcombine.high %v4158, %v4158
      %v4169 = vcombine.high %v4165, %v4165
      %v4170 = vcombine.high %v4114, %v4114
      %v4172 = vunpack.c.l.s4 1966171168
      %v4173 = vunpack.c.0.s8 %v4172
      %v4174 = vlaneseq
      %v4175 = vshrl.u32 %v4174, 7
      %v4176 = vsub.s32 %v4173, %v4175
      %v4177 = vrot.slane %v4114, %v4176
      %v4179 = vunpack.c.l.s4 1966171168
      %v4180 = vunpack.c.0.s8 %v4179
      %v4181 = vlaneseq
      %v4182 = vshrl.u32 %v4181, 7
      %v4183 = vsub.s32 %v4180, %v4182
      %v4184 = vrot.slane %v4170, %v4183
      %v4185 = vcombine.high %v4177, %v4177
      %v4186 = vcombine.high %v4184, %v4184
      %v4188 = vunpack.c.l.s4 1966171168
      %v4189 = vunpack.c.0.s8 %v4188
      %v4190 = vlaneseq
      %v4191 = vshrl.u32 %v4190, 7
      %v4192 = vsub.s32 %v4189, %v4191
      %v4193 = vrot.slane %v4177, %v4192
      %v4195 = vunpack.c.l.s4 1966171168
      %v4196 = vunpack.c.0.s8 %v4195
      %v4197 = vlaneseq
      %v4198 = vshrl.u32 %v4197, 7
      %v4199 = vsub.s32 %v4196, %v4198
      %v4200 = vrot.slane %v4184, %v4199
      %v4202 = vunpack.c.l.s4 1966171168
      %v4203 = vunpack.c.0.s8 %v4202
      %v4204 = vlaneseq
      %v4205 = vshrl.u32 %v4204, 7
      %v4206 = vsub.s32 %v4203, %v4205
      %v4207 = vrot.slane %v4185, %v4206
      %v4209 = vunpack.c.l.s4 1966171168
      %v4210 = vunpack.c.0.s8 %v4209
      %v4211 = vlaneseq
      %v4212 = vshrl.u32 %v4211, 7
      %v4213 = vsub.s32 %v4210, %v4212
      %v4214 = vrot.slane %v4186, %v4213
      %v4215 = vcombine.high %v4193, %v4193
      %v4216 = vcombine.high %v4200, %v4200
      %v4217 = vcombine.high %v4207, %v4207
      %v4218 = vcombine.high %v4214, %v4214
      %v4219 = vcombine.high %v4115, %v4115
      %v4221 = vunpack.c.l.s4 1966171168
      %v4222 = vunpack.c.0.s8 %v4221
      %v4223 = vlaneseq
      %v4224 = vshrl.u32 %v4223, 7
      %v4225 = vsub.s32 %v4222, %v4224
      %v4226 = vrot.slane %v4115, %v4225
      %v4228 = vunpack.c.l.s4 1966171168
      %v4229 = vunpack.c.0.s8 %v4228
      %v4230 = vlaneseq
      %v4231 = vshrl.u32 %v4230, 7
      %v4232 = vsub.s32 %v4229, %v4231
      %v4233 = vrot.slane %v4219, %v4232
      %v4234 = vcombine.high %v4226, %v4226
      %v4235 = vcombine.high %v4233, %v4233
      %v4237 = vunpack.c.l.s4 1966171168
      %v4238 = vunpack.c.0.s8 %v4237
      %v4239 = vlaneseq
      %v4240 = vshrl.u32 %v4239, 7
      %v4241 = vsub.s32 %v4238, %v4240
      %v4242 = vrot.slane %v4226, %v4241
      %v4244 = vunpack.c.l.s4 1966171168
      %v4245 = vunpack.c.0.s8 %v4244
      %v4246 = vlaneseq
      %v4247 = vshrl.u32 %v4246, 7
      %v4248 = vsub.s32 %v4245, %v4247
      %v4249 = vrot.slane %v4233, %v4248
      %v4251 = vunpack.c.l.s4 1966171168
      %v4252 = vunpack.c.0.s8 %v4251
      %v4253 = vlaneseq
      %v4254 = vshrl.u32 %v4253, 7
      %v4255 = vsub.s32 %v4252, %v4254
      %v4256 = vrot.slane %v4234, %v4255
      %v4258 = vunpack.c.l.s4 1966171168
      %v4259 = vunpack.c.0.s8 %v4258
      %v4260 = vlaneseq
      %v4261 = vshrl.u32 %v4260, 7
      %v4262 = vsub.s32 %v4259, %v4261
      %v4263 = vrot.slane %v4235, %v4262
      %v4264 = vcombine.high %v4242, %v4242
      %v4265 = vcombine.high %v4249, %v4249
      %v4266 = vcombine.high %v4256, %v4256
      %v4267 = vcombine.high %v4263, %v4263
      %v4269 = vunpack.c.l.s4 1966171168
      %v4270 = vunpack.c.0.s8 %v4269
      %v4271 = vlaneseq
      %v4272 = vshrl.u32 %v4271, 7
      %v4273 = vsub.s32 %v4270, %v4272
      %v4274 = vrot.slane %v4116, %v4273
      %v4276 = vunpack.c.l.s4 1966171168
      %v4277 = vunpack.c.0.s8 %v4276
      %v4278 = vlaneseq
      %v4279 = vshrl.u32 %v4278, 7
      %v4280 = vsub.s32 %v4277, %v4279
      %v4281 = vrot.slane %v4274, %v4280
      %v4282 = vcombine.low %v4144, %v4144
      %v4283 = vcombine.low %v4158, %v4166
      %v4284 = vcombine.low %v4168, %v4151
      %v4286 = vunpack.c.l.s4 1966171168
      %v4287 = vunpack.c.0.s8 %v4286
      %v4288 = vlaneseq
      %v4289 = vshrl.u32 %v4288, 7
      %v4290 = vsub.s32 %v4287, %v4289
      %v4291 = vrot.slane %v4282, %v4290
      %v4293 = vunpack.c.l.s4 1966171168
      %v4294 = vunpack.c.0.s8 %v4293
      %v4295 = vlaneseq
      %v4296 = vshrl.u32 %v4295, 7
      %v4297 = vsub.s32 %v4294, %v4296
      %v4298 = vrot.slane %v4283, %v4297
      %v4300 = vunpack.c.l.s4 1966171168
      %v4301 = vunpack.c.0.s8 %v4300
      %v4302 = vlaneseq
      %v4303 = vshrl.u32 %v4302, 7
      %v4304 = vsub.s32 %v4301, %v4303
      %v4305 = vrot.slane %v4284, %v4304
      %v4306 = vcombine.low %v4291, %v4298
      %v4308 = vunpack.c.l.s4 1966171168
      %v4309 = vunpack.c.0.s8 %v4308
      %v4310 = vlaneseq
      %v4311 = vshrl.u32 %v4310, 7
      %v4312 = vsub.s32 %v4309, %v4311
      %v4313 = vrot.slane %v4306, %v4312
      %v4315 = vunpack.c.l.s4 1966171168
      %v4316 = vunpack.c.0.s8 %v4315
      %v4317 = vlaneseq
      %v4318 = vshrl.u32 %v4317, 7
      %v4319 = vsub.s32 %v4316, %v4318
      %v4320 = vrot.slane %v4305, %v4319
      %v4321 = vcombine.low %v4313, %v4320
      %v4322 = vcombine.low %v4165, %v4165
      %v4323 = vcombine.low %v4167, %v4169
      %v4324 = vcombine.low %v4193, %v4207
      %v4326 = vunpack.c.l.s4 1966171168
      %v4327 = vunpack.c.0.s8 %v4326
      %v4328 = vlaneseq
      %v4329 = vshrl.u32 %v4328, 7
      %v4330 = vsub.s32 %v4327, %v4329
      %v4331 = vrot.slane %v4322, %v4330
      %v4333 = vunpack.c.l.s4 1966171168
      %v4334 = vunpack.c.0.s8 %v4333
      %v4335 = vlaneseq
      %v4336 = vshrl.u32 %v4335, 7
      %v4337 = vsub.s32 %v4334, %v4336
      %v4338 = vrot.slane %v4323, %v4337
      %v4340 = vunpack.c.l.s4 1966171168
      %v4341 = vunpack.c.0.s8 %v4340
      %v4342 = vlaneseq
      %v4343 = vshrl.u32 %v4342, 7
      %v4344 = vsub.s32 %v4341, %v4343
      %v4345 = vrot.slane %v4324, %v4344
      %v4346 = vcombine.low %v4331, %v4338
      %v4348 = vunpack.c.l.s4 1966171168
      %v4349 = vunpack.c.0.s8 %v4348
      %v4350 = vlaneseq
      %v4351 = vshrl.u32 %v4350, 7
      %v4352 = vsub.s32 %v4349, %v4351
      %v4353 = vrot.slane %v4346, %v4352
      %v4355 = vunpack.c.l.s4 1966171168
      %v4356 = vunpack.c.0.s8 %v4355
      %v4357 = vlaneseq
      %v4358 = vshrl.u32 %v4357, 7
      %v4359 = vsub.s32 %v4356, %v4358
      %v4360 = vrot.slane %v4345, %v4359
      %v4361 = vcombine.low %v4353, %v4360
      %v4362 = vcombine.low %v4215, %v4215
      %v4363 = vcombine.low %v4217, %v4200
      %v4364 = vcombine.low %v4214, %v4216
      %v4366 = vunpack.c.l.s4 1966171168
      %v4367 = vunpack.c.0.s8 %v4366
      %v4368 = vlaneseq
      %v4369 = vshrl.u32 %v4368, 7
      %v4370 = vsub.s32 %v4367, %v4369
      %v4371 = vrot.slane %v4362, %v4370
      %v4373 = vunpack.c.l.s4 1966171168
      %v4374 = vunpack.c.0.s8 %v4373
      %v4375 = vlaneseq
      %v4376 = vshrl.u32 %v4375, 7
      %v4377 = vsub.s32 %v4374, %v4376
      %v4378 = vrot.slane %v4363, %v4377
      %v4380 = vunpack.c.l.s4 1966171168
      %v4381 = vunpack.c.0.s8 %v4380
      %v4382 = vlaneseq
      %v4383 = vshrl.u32 %v4382, 7
      %v4384 = vsub.s32 %v4381, %v4383
      %v4385 = vrot.slane %v4364, %v4384
      %v4386 = vcombine.low %v4371, %v4378
      %v4388 = vunpack.c.l.s4 1966171168
      %v4389 = vunpack.c.0.s8 %v4388
      %v4390 = vlaneseq
      %v4391 = vshrl.u32 %v4390, 7
      %v4392 = vsub.s32 %v4389, %v4391
      %v4393 = vrot.slane %v4386, %v4392
      %v4395 = vunpack.c.l.s4 1966171168
      %v4396 = vunpack.c.0.s8 %v4395
      %v4397 = vlaneseq
      %v4398 = vshrl.u32 %v4397, 7
      %v4399 = vsub.s32 %v4396, %v4398
      %v4400 = vrot.slane %v4385, %v4399
      %v4401 = vcombine.low %v4393, %v4400
      %v4402 = vcombine.low %v4218, %v4218
      %v4403 = vcombine.low %v4242, %v4256
      %v4404 = vcombine.low %v4264, %v4266
      %v4406 = vunpack.c.l.s4 1966171168
      %v4407 = vunpack.c.0.s8 %v4406
      %v4408 = vlaneseq
      %v4409 = vshrl.u32 %v4408, 7
      %v4410 = vsub.s32 %v4407, %v4409
      %v4411 = vrot.slane %v4402, %v4410
      %v4413 = vunpack.c.l.s4 1966171168
      %v4414 = vunpack.c.0.s8 %v4413
      %v4415 = vlaneseq
      %v4416 = vshrl.u32 %v4415, 7
      %v4417 = vsub.s32 %v4414, %v4416
      %v4418 = vrot.slane %v4403, %v4417
      %v4420 = vunpack.c.l.s4 1966171168
      %v4421 = vunpack.c.0.s8 %v4420
      %v4422 = vlaneseq
      %v4423 = vshrl.u32 %v4422, 7
      %v4424 = vsub.s32 %v4421, %v4423
      %v4425 = vrot.slane %v4404, %v4424
      %v4426 = vcombine.low %v4411, %v4418
      %v4428 = vunpack.c.l.s4 1966171168
      %v4429 = vunpack.c.0.s8 %v4428
      %v4430 = vlaneseq
      %v4431 = vshrl.u32 %v4430, 7
      %v4432 = vsub.s32 %v4429, %v4431
      %v4433 = vrot.slane %v4426, %v4432
      %v4435 = vunpack.c.l.s4 1966171168
      %v4436 = vunpack.c.0.s8 %v4435
      %v4437 = vlaneseq
      %v4438 = vshrl.u32 %v4437, 7
      %v4439 = vsub.s32 %v4436, %v4438
      %v4440 = vrot.slane %v4425, %v4439
      %v4441 = vcombine.low %v4433, %v4440
      %v4442 = vcombine.low %v4249, %v4249
      %v4443 = vcombine.low %v4263, %v4265
      %v4444 = vcombine.low %v4267, %v4281
      %v4446 = vunpack.c.l.s4 1966171168
      %v4447 = vunpack.c.0.s8 %v4446
      %v4448 = vlaneseq
      %v4449 = vshrl.u32 %v4448, 7
      %v4450 = vsub.s32 %v4447, %v4449
      %v4451 = vrot.slane %v4442, %v4450
      %v4453 = vunpack.c.l.s4 1966171168
      %v4454 = vunpack.c.0.s8 %v4453
      %v4455 = vlaneseq
      %v4456 = vshrl.u32 %v4455, 7
      %v4457 = vsub.s32 %v4454, %v4456
      %v4458 = vrot.slane %v4443, %v4457
      %v4460 = vunpack.c.l.s4 1966171168
      %v4461 = vunpack.c.0.s8 %v4460
      %v4462 = vlaneseq
      %v4463 = vshrl.u32 %v4462, 7
      %v4464 = vsub.s32 %v4461, %v4463
      %v4465 = vrot.slane %v4444, %v4464
      %v4466 = vcombine.low %v4451, %v4458
      %v4468 = vunpack.c.l.s4 1966171168
      %v4469 = vunpack.c.0.s8 %v4468
      %v4470 = vlaneseq
      %v4471 = vshrl.u32 %v4470, 7
      %v4472 = vsub.s32 %v4469, %v4471
      %v4473 = vrot.slane %v4466, %v4472
      %v4475 = vunpack.c.l.s4 1966171168
      %v4476 = vunpack.c.0.s8 %v4475
      %v4477 = vlaneseq
      %v4478 = vshrl.u32 %v4477, 7
      %v4479 = vsub.s32 %v4476, %v4478
      %v4480 = vrot.slane %v4465, %v4479
      %v4481 = vcombine.low %v4473, %v4480
      %v4487 = vsel %vm277, 0.0, %v4321
      %v4488 = vsel %vm277, 0.0, %v4361
      %v4489 = vsel %vm277, 0.0, %v4401
      %v4490 = vsel %vm277, 0.0, %v4441
      %v4491 = vsel %vm277, 0.0, %v4481
      %v4492 = vsel %vm283, %v4487, 0.0
      %v4493 = vsel %vm283, %v4488, 0.0
      %v4494 = vsel %vm283, %v4489, 0.0
      %v4495 = vsel %vm283, %v4490, 0.0
      %v4496 = vsel %vm283, %v4491, 0.0
      %v4501 = vcombine.high %v4492, %v4492
      %v4503 = vunpack.c.l.s4 1966171168
      %v4504 = vunpack.c.0.s8 %v4503
      %v4505 = vlaneseq
      %v4506 = vshrl.u32 %v4505, 7
      %v4507 = vsub.s32 %v4504, %v4506
      %v4508 = vrot.slane %v4492, %v4507
      %v4510 = vunpack.c.l.s4 1966171168
      %v4511 = vunpack.c.0.s8 %v4510
      %v4512 = vlaneseq
      %v4513 = vshrl.u32 %v4512, 7
      %v4514 = vsub.s32 %v4511, %v4513
      %v4515 = vrot.slane %v4501, %v4514
      %v4516 = vcombine.high %v4508, %v4508
      %v4518 = vunpack.c.l.s4 1966171168
      %v4519 = vunpack.c.0.s8 %v4518
      %v4520 = vlaneseq
      %v4521 = vshrl.u32 %v4520, 7
      %v4522 = vsub.s32 %v4519, %v4521
      %v4523 = vrot.slane %v4508, %v4522
      %v4525 = vunpack.c.l.s4 1966171168
      %v4526 = vunpack.c.0.s8 %v4525
      %v4527 = vlaneseq
      %v4528 = vshrl.u32 %v4527, 7
      %v4529 = vsub.s32 %v4526, %v4528
      %v4530 = vrot.slane %v4515, %v4529
      %v4532 = vunpack.c.l.s4 1966171168
      %v4533 = vunpack.c.0.s8 %v4532
      %v4534 = vlaneseq
      %v4535 = vshrl.u32 %v4534, 7
      %v4536 = vsub.s32 %v4533, %v4535
      %v4537 = vrot.slane %v4516, %v4536
      %v4538 = vcombine.high %v4523, %v4523
      %v4539 = vcombine.high %v4537, %v4537
      %v4540 = vcombine.high %v4493, %v4493
      %v4542 = vunpack.c.l.s4 1966171168
      %v4543 = vunpack.c.0.s8 %v4542
      %v4544 = vlaneseq
      %v4545 = vshrl.u32 %v4544, 7
      %v4546 = vsub.s32 %v4543, %v4545
      %v4547 = vrot.slane %v4493, %v4546
      %v4549 = vunpack.c.l.s4 1966171168
      %v4550 = vunpack.c.0.s8 %v4549
      %v4551 = vlaneseq
      %v4552 = vshrl.u32 %v4551, 7
      %v4553 = vsub.s32 %v4550, %v4552
      %v4554 = vrot.slane %v4540, %v4553
      %v4555 = vcombine.high %v4547, %v4547
      %v4557 = vunpack.c.l.s4 1966171168
      %v4558 = vunpack.c.0.s8 %v4557
      %v4559 = vlaneseq
      %v4560 = vshrl.u32 %v4559, 7
      %v4561 = vsub.s32 %v4558, %v4560
      %v4562 = vrot.slane %v4547, %v4561
      %v4564 = vunpack.c.l.s4 1966171168
      %v4565 = vunpack.c.0.s8 %v4564
      %v4566 = vlaneseq
      %v4567 = vshrl.u32 %v4566, 7
      %v4568 = vsub.s32 %v4565, %v4567
      %v4569 = vrot.slane %v4554, %v4568
      %v4571 = vunpack.c.l.s4 1966171168
      %v4572 = vunpack.c.0.s8 %v4571
      %v4573 = vlaneseq
      %v4574 = vshrl.u32 %v4573, 7
      %v4575 = vsub.s32 %v4572, %v4574
      %v4576 = vrot.slane %v4555, %v4575
      %v4577 = vcombine.high %v4562, %v4562
      %v4578 = vcombine.high %v4576, %v4576
      %v4579 = vcombine.high %v4494, %v4494
      %v4581 = vunpack.c.l.s4 1966171168
      %v4582 = vunpack.c.0.s8 %v4581
      %v4583 = vlaneseq
      %v4584 = vshrl.u32 %v4583, 7
      %v4585 = vsub.s32 %v4582, %v4584
      %v4586 = vrot.slane %v4494, %v4585
      %v4588 = vunpack.c.l.s4 1966171168
      %v4589 = vunpack.c.0.s8 %v4588
      %v4590 = vlaneseq
      %v4591 = vshrl.u32 %v4590, 7
      %v4592 = vsub.s32 %v4589, %v4591
      %v4593 = vrot.slane %v4579, %v4592
      %v4594 = vcombine.high %v4586, %v4586
      %v4596 = vunpack.c.l.s4 1966171168
      %v4597 = vunpack.c.0.s8 %v4596
      %v4598 = vlaneseq
      %v4599 = vshrl.u32 %v4598, 7
      %v4600 = vsub.s32 %v4597, %v4599
      %v4601 = vrot.slane %v4586, %v4600
      %v4603 = vunpack.c.l.s4 1966171168
      %v4604 = vunpack.c.0.s8 %v4603
      %v4605 = vlaneseq
      %v4606 = vshrl.u32 %v4605, 7
      %v4607 = vsub.s32 %v4604, %v4606
      %v4608 = vrot.slane %v4593, %v4607
      %v4610 = vunpack.c.l.s4 1966171168
      %v4611 = vunpack.c.0.s8 %v4610
      %v4612 = vlaneseq
      %v4613 = vshrl.u32 %v4612, 7
      %v4614 = vsub.s32 %v4611, %v4613
      %v4615 = vrot.slane %v4594, %v4614
      %v4616 = vcombine.high %v4601, %v4601
      %v4617 = vcombine.high %v4615, %v4615
      %v4618 = vcombine.high %v4495, %v4495
      %v4620 = vunpack.c.l.s4 1966171168
      %v4621 = vunpack.c.0.s8 %v4620
      %v4622 = vlaneseq
      %v4623 = vshrl.u32 %v4622, 7
      %v4624 = vsub.s32 %v4621, %v4623
      %v4625 = vrot.slane %v4495, %v4624
      %v4627 = vunpack.c.l.s4 1966171168
      %v4628 = vunpack.c.0.s8 %v4627
      %v4629 = vlaneseq
      %v4630 = vshrl.u32 %v4629, 7
      %v4631 = vsub.s32 %v4628, %v4630
      %v4632 = vrot.slane %v4618, %v4631
      %v4633 = vcombine.high %v4625, %v4625
      %v4635 = vunpack.c.l.s4 1966171168
      %v4636 = vunpack.c.0.s8 %v4635
      %v4637 = vlaneseq
      %v4638 = vshrl.u32 %v4637, 7
      %v4639 = vsub.s32 %v4636, %v4638
      %v4640 = vrot.slane %v4625, %v4639
      %v4642 = vunpack.c.l.s4 1966171168
      %v4643 = vunpack.c.0.s8 %v4642
      %v4644 = vlaneseq
      %v4645 = vshrl.u32 %v4644, 7
      %v4646 = vsub.s32 %v4643, %v4645
      %v4647 = vrot.slane %v4632, %v4646
      %v4649 = vunpack.c.l.s4 1966171168
      %v4650 = vunpack.c.0.s8 %v4649
      %v4651 = vlaneseq
      %v4652 = vshrl.u32 %v4651, 7
      %v4653 = vsub.s32 %v4650, %v4652
      %v4654 = vrot.slane %v4633, %v4653
      %v4655 = vcombine.high %v4640, %v4640
      %v4656 = vcombine.high %v4654, %v4654
      %v4657 = vcombine.high %v4515, %v4515
      %v4659 = vunpack.c.l.s4 1966171168
      %v4660 = vunpack.c.0.s8 %v4659
      %v4661 = vlaneseq
      %v4662 = vshrl.u32 %v4661, 7
      %v4663 = vsub.s32 %v4660, %v4662
      %v4664 = vrot.slane %v4657, %v4663
      %v4665 = vcombine.high %v4554, %v4554
      %v4667 = vunpack.c.l.s4 1966171168
      %v4668 = vunpack.c.0.s8 %v4667
      %v4669 = vlaneseq
      %v4670 = vshrl.u32 %v4669, 7
      %v4671 = vsub.s32 %v4668, %v4670
      %v4672 = vrot.slane %v4665, %v4671
      %v4673 = vcombine.high %v4593, %v4593
      %v4675 = vunpack.c.l.s4 1966171168
      %v4676 = vunpack.c.0.s8 %v4675
      %v4677 = vlaneseq
      %v4678 = vshrl.u32 %v4677, 7
      %v4679 = vsub.s32 %v4676, %v4678
      %v4680 = vrot.slane %v4673, %v4679
      %v4681 = vcombine.high %v4632, %v4632
      %v4683 = vunpack.c.l.s4 1966171168
      %v4684 = vunpack.c.0.s8 %v4683
      %v4685 = vlaneseq
      %v4686 = vshrl.u32 %v4685, 7
      %v4687 = vsub.s32 %v4684, %v4686
      %v4688 = vrot.slane %v4681, %v4687
      %v4689 = vcombine.high %v4530, %v4530
      %v4690 = vcombine.high %v4569, %v4569
      %v4691 = vcombine.high %v4608, %v4608
      %v4692 = vcombine.high %v4647, %v4647
      %v4694 = vcombine.high %v4496, %v4496
      %v4696 = vunpack.c.l.s4 1966171168
      %v4697 = vunpack.c.0.s8 %v4696
      %v4698 = vlaneseq
      %v4699 = vshrl.u32 %v4698, 7
      %v4700 = vsub.s32 %v4697, %v4699
      %v4701 = vrot.slane %v4496, %v4700
      %v4703 = vunpack.c.l.s4 1966171168
      %v4704 = vunpack.c.0.s8 %v4703
      %v4705 = vlaneseq
      %v4706 = vshrl.u32 %v4705, 7
      %v4707 = vsub.s32 %v4704, %v4706
      %v4708 = vrot.slane %v4694, %v4707
      %v4709 = vcombine.high %v4701, %v4701
      %v4711 = vunpack.c.l.s4 1966171168
      %v4712 = vunpack.c.0.s8 %v4711
      %v4713 = vlaneseq
      %v4714 = vshrl.u32 %v4713, 7
      %v4715 = vsub.s32 %v4712, %v4714
      %v4716 = vrot.slane %v4701, %v4715
      %v4718 = vunpack.c.l.s4 1966171168
      %v4719 = vunpack.c.0.s8 %v4718
      %v4720 = vlaneseq
      %v4721 = vshrl.u32 %v4720, 7
      %v4722 = vsub.s32 %v4719, %v4721
      %v4723 = vrot.slane %v4708, %v4722
      %v4725 = vunpack.c.l.s4 1966171168
      %v4726 = vunpack.c.0.s8 %v4725
      %v4727 = vlaneseq
      %v4728 = vshrl.u32 %v4727, 7
      %v4729 = vsub.s32 %v4726, %v4728
      %v4730 = vrot.slane %v4709, %v4729
      %v4731 = vcombine.high %v4716, %v4716
      %v4732 = vcombine.high %v4730, %v4730
      %v4733 = vcombine.high %v4708, %v4708
      %v4735 = vunpack.c.l.s4 1966171168
      %v4736 = vunpack.c.0.s8 %v4735
      %v4737 = vlaneseq
      %v4738 = vshrl.u32 %v4737, 7
      %v4739 = vsub.s32 %v4736, %v4738
      %v4740 = vrot.slane %v4733, %v4739
      %v4741 = vcombine.high %v4723, %v4723
      %v4742 = vcombine.low %v323, %v4523
      %v4743 = vcombine.low %v4537, %v4538
      %v4745 = vunpack.c.l.s4 1966171168
      %v4746 = vunpack.c.0.s8 %v4745
      %v4747 = vlaneseq
      %v4748 = vshrl.u32 %v4747, 7
      %v4749 = vsub.s32 %v4746, %v4748
      %v4750 = vrot.slane %v4742, %v4749
      %v4752 = vunpack.c.l.s4 1966171168
      %v4753 = vunpack.c.0.s8 %v4752
      %v4754 = vlaneseq
      %v4755 = vshrl.u32 %v4754, 7
      %v4756 = vsub.s32 %v4753, %v4755
      %v4757 = vrot.slane %v4743, %v4756
      %v4758 = vcombine.low %v4750, %v4757
      %v4760 = vunpack.c.l.s4 1966171168
      %v4761 = vunpack.c.0.s8 %v4760
      %v4762 = vlaneseq
      %v4763 = vshrl.u32 %v4762, 7
      %v4764 = vsub.s32 %v4761, %v4763
      %v4765 = vrot.slane %v4758, %v4764
      %v4766 = vcombine.low %v623, %v4765
      %v4767 = vcombine.low %v4539, %v4530
      %v4768 = vcombine.low %v4562, %v4576
      %v4769 = vcombine.low %v4577, %v4578
      %v4770 = vcombine.low %v4569, %v4601
      %v4772 = vunpack.c.l.s4 1966171168
      %v4773 = vunpack.c.0.s8 %v4772
      %v4774 = vlaneseq
      %v4775 = vshrl.u32 %v4774, 7
      %v4776 = vsub.s32 %v4773, %v4775
      %v4777 = vrot.slane %v4767, %v4776
      %v4779 = vunpack.c.l.s4 1966171168
      %v4780 = vunpack.c.0.s8 %v4779
      %v4781 = vlaneseq
      %v4782 = vshrl.u32 %v4781, 7
      %v4783 = vsub.s32 %v4780, %v4782
      %v4784 = vrot.slane %v4768, %v4783
      %v4786 = vunpack.c.l.s4 1966171168
      %v4787 = vunpack.c.0.s8 %v4786
      %v4788 = vlaneseq
      %v4789 = vshrl.u32 %v4788, 7
      %v4790 = vsub.s32 %v4787, %v4789
      %v4791 = vrot.slane %v4769, %v4790
      %v4793 = vunpack.c.l.s4 1966171168
      %v4794 = vunpack.c.0.s8 %v4793
      %v4795 = vlaneseq
      %v4796 = vshrl.u32 %v4795, 7
      %v4797 = vsub.s32 %v4794, %v4796
      %v4798 = vrot.slane %v4770, %v4797
      %v4799 = vcombine.low %v4777, %v4784
      %v4800 = vcombine.low %v4791, %v4798
      %v4802 = vunpack.c.l.s4 1966171168
      %v4803 = vunpack.c.0.s8 %v4802
      %v4804 = vlaneseq
      %v4805 = vshrl.u32 %v4804, 7
      %v4806 = vsub.s32 %v4803, %v4805
      %v4807 = vrot.slane %v4799, %v4806
      %v4809 = vunpack.c.l.s4 1966171168
      %v4810 = vunpack.c.0.s8 %v4809
      %v4811 = vlaneseq
      %v4812 = vshrl.u32 %v4811, 7
      %v4813 = vsub.s32 %v4810, %v4812
      %v4814 = vrot.slane %v4800, %v4813
      %v4815 = vcombine.low %v4807, %v4814
      %v4816 = vcombine.low %v4615, %v4616
      %v4817 = vcombine.low %v4617, %v4608
      %v4818 = vcombine.low %v4640, %v4654
      %v4819 = vcombine.low %v4655, %v4656
      %v4821 = vunpack.c.l.s4 1966171168
      %v4822 = vunpack.c.0.s8 %v4821
      %v4823 = vlaneseq
      %v4824 = vshrl.u32 %v4823, 7
      %v4825 = vsub.s32 %v4822, %v4824
      %v4826 = vrot.slane %v4816, %v4825
      %v4828 = vunpack.c.l.s4 1966171168
      %v4829 = vunpack.c.0.s8 %v4828
      %v4830 = vlaneseq
      %v4831 = vshrl.u32 %v4830, 7
      %v4832 = vsub.s32 %v4829, %v4831
      %v4833 = vrot.slane %v4817, %v4832
      %v4835 = vunpack.c.l.s4 1966171168
      %v4836 = vunpack.c.0.s8 %v4835
      %v4837 = vlaneseq
      %v4838 = vshrl.u32 %v4837, 7
      %v4839 = vsub.s32 %v4836, %v4838
      %v4840 = vrot.slane %v4818, %v4839
      %v4842 = vunpack.c.l.s4 1966171168
      %v4843 = vunpack.c.0.s8 %v4842
      %v4844 = vlaneseq
      %v4845 = vshrl.u32 %v4844, 7
      %v4846 = vsub.s32 %v4843, %v4845
      %v4847 = vrot.slane %v4819, %v4846
      %v4848 = vcombine.low %v4826, %v4833
      %v4849 = vcombine.low %v4840, %v4847
      %v4851 = vunpack.c.l.s4 1966171168
      %v4852 = vunpack.c.0.s8 %v4851
      %v4853 = vlaneseq
      %v4854 = vshrl.u32 %v4853, 7
      %v4855 = vsub.s32 %v4852, %v4854
      %v4856 = vrot.slane %v4848, %v4855
      %v4858 = vunpack.c.l.s4 1966171168
      %v4859 = vunpack.c.0.s8 %v4858
      %v4860 = vlaneseq
      %v4861 = vshrl.u32 %v4860, 7
      %v4862 = vsub.s32 %v4859, %v4861
      %v4863 = vrot.slane %v4849, %v4862
      %v4864 = vcombine.low %v4856, %v4863
      %v4866 = vunpack.c.l.s4 1966171168
      %v4867 = vunpack.c.0.s8 %v4866
      %v4868 = vlaneseq
      %v4869 = vshrl.u32 %v4868, 7
      %v4870 = vsub.s32 %v4867, %v4869
      %v4871 = vrot.slane %v4647, %v4870
      %v4873 = vunpack.c.l.s4 1966171168
      %v4874 = vunpack.c.0.s8 %v4873
      %v4875 = vlaneseq
      %v4876 = vshrl.u32 %v4875, 7
      %v4877 = vsub.s32 %v4874, %v4876
      %v4878 = vrot.slane %v4871, %v4877
      %v4883 = vcombine.low %v496, %v4537
      %v4884 = vcombine.low %v4538, %v4539
      %v4886 = vunpack.c.l.s4 1966171168
      %v4887 = vunpack.c.0.s8 %v4886
      %v4888 = vlaneseq
      %v4889 = vshrl.u32 %v4888, 7
      %v4890 = vsub.s32 %v4887, %v4889
      %v4891 = vrot.slane %v4883, %v4890
      %v4893 = vunpack.c.l.s4 1966171168
      %v4894 = vunpack.c.0.s8 %v4893
      %v4895 = vlaneseq
      %v4896 = vshrl.u32 %v4895, 7
      %v4897 = vsub.s32 %v4894, %v4896
      %v4898 = vrot.slane %v4884, %v4897
      %v4899 = vcombine.low %v4891, %v4898
      %v4901 = vunpack.c.l.s4 1966171168
      %v4902 = vunpack.c.0.s8 %v4901
      %v4903 = vlaneseq
      %v4904 = vshrl.u32 %v4903, 7
      %v4905 = vsub.s32 %v4902, %v4904
      %v4906 = vrot.slane %v4899, %v4905
      %v4907 = vcombine.low %v788, %v4906
      %v4908 = vcombine.low %v4530, %v4664
      %v4909 = vcombine.low %v4576, %v4577
      %v4910 = vcombine.low %v4578, %v4569
      %v4911 = vcombine.low %v4672, %v4615
      %v4913 = vunpack.c.l.s4 1966171168
      %v4914 = vunpack.c.0.s8 %v4913
      %v4915 = vlaneseq
      %v4916 = vshrl.u32 %v4915, 7
      %v4917 = vsub.s32 %v4914, %v4916
      %v4918 = vrot.slane %v4908, %v4917
      %v4920 = vunpack.c.l.s4 1966171168
      %v4921 = vunpack.c.0.s8 %v4920
      %v4922 = vlaneseq
      %v4923 = vshrl.u32 %v4922, 7
      %v4924 = vsub.s32 %v4921, %v4923
      %v4925 = vrot.slane %v4909, %v4924
      %v4927 = vunpack.c.l.s4 1966171168
      %v4928 = vunpack.c.0.s8 %v4927
      %v4929 = vlaneseq
      %v4930 = vshrl.u32 %v4929, 7
      %v4931 = vsub.s32 %v4928, %v4930
      %v4932 = vrot.slane %v4910, %v4931
      %v4934 = vunpack.c.l.s4 1966171168
      %v4935 = vunpack.c.0.s8 %v4934
      %v4936 = vlaneseq
      %v4937 = vshrl.u32 %v4936, 7
      %v4938 = vsub.s32 %v4935, %v4937
      %v4939 = vrot.slane %v4911, %v4938
      %v4940 = vcombine.low %v4918, %v4925
      %v4941 = vcombine.low %v4932, %v4939
      %v4943 = vunpack.c.l.s4 1966171168
      %v4944 = vunpack.c.0.s8 %v4943
      %v4945 = vlaneseq
      %v4946 = vshrl.u32 %v4945, 7
      %v4947 = vsub.s32 %v4944, %v4946
      %v4948 = vrot.slane %v4940, %v4947
      %v4950 = vunpack.c.l.s4 1966171168
      %v4951 = vunpack.c.0.s8 %v4950
      %v4952 = vlaneseq
      %v4953 = vshrl.u32 %v4952, 7
      %v4954 = vsub.s32 %v4951, %v4953
      %v4955 = vrot.slane %v4941, %v4954
      %v4956 = vcombine.low %v4948, %v4955
      %v4957 = vcombine.low %v4616, %v4617
      %v4958 = vcombine.low %v4608, %v4680
      %v4959 = vcombine.low %v4654, %v4655
      %v4960 = vcombine.low %v4656, %v4647
      %v4962 = vunpack.c.l.s4 1966171168
      %v4963 = vunpack.c.0.s8 %v4962
      %v4964 = vlaneseq
      %v4965 = vshrl.u32 %v4964, 7
      %v4966 = vsub.s32 %v4963, %v4965
      %v4967 = vrot.slane %v4957, %v4966
      %v4969 = vunpack.c.l.s4 1966171168
      %v4970 = vunpack.c.0.s8 %v4969
      %v4971 = vlaneseq
      %v4972 = vshrl.u32 %v4971, 7
      %v4973 = vsub.s32 %v4970, %v4972
      %v4974 = vrot.slane %v4958, %v4973
      %v4976 = vunpack.c.l.s4 1966171168
      %v4977 = vunpack.c.0.s8 %v4976
      %v4978 = vlaneseq
      %v4979 = vshrl.u32 %v4978, 7
      %v4980 = vsub.s32 %v4977, %v4979
      %v4981 = vrot.slane %v4959, %v4980
      %v4983 = vunpack.c.l.s4 1966171168
      %v4984 = vunpack.c.0.s8 %v4983
      %v4985 = vlaneseq
      %v4986 = vshrl.u32 %v4985, 7
      %v4987 = vsub.s32 %v4984, %v4986
      %v4988 = vrot.slane %v4960, %v4987
      %v4989 = vcombine.low %v4967, %v4974
      %v4990 = vcombine.low %v4981, %v4988
      %v4992 = vunpack.c.l.s4 1966171168
      %v4993 = vunpack.c.0.s8 %v4992
      %v4994 = vlaneseq
      %v4995 = vshrl.u32 %v4994, 7
      %v4996 = vsub.s32 %v4993, %v4995
      %v4997 = vrot.slane %v4989, %v4996
      %v4999 = vunpack.c.l.s4 1966171168
      %v5000 = vunpack.c.0.s8 %v4999
      %v5001 = vlaneseq
      %v5002 = vshrl.u32 %v5001, 7
      %v5003 = vsub.s32 %v5000, %v5002
      %v5004 = vrot.slane %v4990, %v5003
      %v5005 = vcombine.low %v4997, %v5004
      %v5007 = vunpack.c.l.s4 1966171168
      %v5008 = vunpack.c.0.s8 %v5007
      %v5009 = vlaneseq
      %v5010 = vshrl.u32 %v5009, 7
      %v5011 = vsub.s32 %v5008, %v5010
      %v5012 = vrot.slane %v4688, %v5011
      %v5014 = vunpack.c.l.s4 1966171168
      %v5015 = vunpack.c.0.s8 %v5014
      %v5016 = vlaneseq
      %v5017 = vshrl.u32 %v5016, 7
      %v5018 = vsub.s32 %v5015, %v5017
      %v5019 = vrot.slane %v5012, %v5018
      %5020 = vrot.lane.b32.xlu0 %v4907, 32
      %v5021 = vpop.permute.xlu0 %5020
      %5022 = vrot.lane.b32.xlu0 %v4956, 32
      %v5023 = vpop.permute.xlu0 %5022
      %5024 = vrot.lane.b32.xlu0 %v5005, 32
      %v5025 = vpop.permute.xlu0 %5024
      %5026 = vrot.lane.b32.xlu0 %v5019, 32
      %v5027 = vpop.permute.xlu0 %5026
      %v5032 = vcombine.low %v529, %v4538
      %v5034 = vunpack.c.l.s4 1966171168
      %v5035 = vunpack.c.0.s8 %v5034
      %v5036 = vlaneseq
      %v5037 = vshrl.u32 %v5036, 7
      %v5038 = vsub.s32 %v5035, %v5037
      %v5039 = vrot.slane %v5032, %v5038
      %v5040 = vcombine.low %v5039, %v4777
      %v5042 = vunpack.c.l.s4 1966171168
      %v5043 = vunpack.c.0.s8 %v5042
      %v5044 = vlaneseq
      %v5045 = vshrl.u32 %v5044, 7
      %v5046 = vsub.s32 %v5043, %v5045
      %v5047 = vrot.slane %v5040, %v5046
      %v5048 = vcombine.low %v945, %v5047
      %v5049 = vcombine.low %v4664, %v4689
      %v5050 = vcombine.low %v4569, %v4672
      %v5051 = vcombine.low %v4690, %v4616
      %v5053 = vunpack.c.l.s4 1966171168
      %v5054 = vunpack.c.0.s8 %v5053
      %v5055 = vlaneseq
      %v5056 = vshrl.u32 %v5055, 7
      %v5057 = vsub.s32 %v5054, %v5056
      %v5058 = vrot.slane %v5049, %v5057
      %v5060 = vunpack.c.l.s4 1966171168
      %v5061 = vunpack.c.0.s8 %v5060
      %v5062 = vlaneseq
      %v5063 = vshrl.u32 %v5062, 7
      %v5064 = vsub.s32 %v5061, %v5063
      %v5065 = vrot.slane %v5050, %v5064
      %v5067 = vunpack.c.l.s4 1966171168
      %v5068 = vunpack.c.0.s8 %v5067
      %v5069 = vlaneseq
      %v5070 = vshrl.u32 %v5069, 7
      %v5071 = vsub.s32 %v5068, %v5070
      %v5072 = vrot.slane %v5051, %v5071
      %v5073 = vcombine.low %v5058, %v4791
      %v5074 = vcombine.low %v5065, %v5072
      %v5076 = vunpack.c.l.s4 1966171168
      %v5077 = vunpack.c.0.s8 %v5076
      %v5078 = vlaneseq
      %v5079 = vshrl.u32 %v5078, 7
      %v5080 = vsub.s32 %v5077, %v5079
      %v5081 = vrot.slane %v5073, %v5080
      %v5083 = vunpack.c.l.s4 1966171168
      %v5084 = vunpack.c.0.s8 %v5083
      %v5085 = vlaneseq
      %v5086 = vshrl.u32 %v5085, 7
      %v5087 = vsub.s32 %v5084, %v5086
      %v5088 = vrot.slane %v5074, %v5087
      %v5089 = vcombine.low %v5081, %v5088
      %v5090 = vcombine.low %v4680, %v4691
      %v5091 = vcombine.low %v4647, %v4688
      %v5093 = vunpack.c.l.s4 1966171168
      %v5094 = vunpack.c.0.s8 %v5093
      %v5095 = vlaneseq
      %v5096 = vshrl.u32 %v5095, 7
      %v5097 = vsub.s32 %v5094, %v5096
      %v5098 = vrot.slane %v5090, %v5097
      %v5100 = vunpack.c.l.s4 1966171168
      %v5101 = vunpack.c.0.s8 %v5100
      %v5102 = vlaneseq
      %v5103 = vshrl.u32 %v5102, 7
      %v5104 = vsub.s32 %v5101, %v5103
      %v5105 = vrot.slane %v5091, %v5104
      %v5106 = vcombine.low %v4833, %v5098
      %v5107 = vcombine.low %v4847, %v5105
      %v5109 = vunpack.c.l.s4 1966171168
      %v5110 = vunpack.c.0.s8 %v5109
      %v5111 = vlaneseq
      %v5112 = vshrl.u32 %v5111, 7
      %v5113 = vsub.s32 %v5110, %v5112
      %v5114 = vrot.slane %v5106, %v5113
      %v5116 = vunpack.c.l.s4 1966171168
      %v5117 = vunpack.c.0.s8 %v5116
      %v5118 = vlaneseq
      %v5119 = vshrl.u32 %v5118, 7
      %v5120 = vsub.s32 %v5117, %v5119
      %v5121 = vrot.slane %v5107, %v5120
      %v5122 = vcombine.low %v5114, %v5121
      %v5124 = vunpack.c.l.s4 1966171168
      %v5125 = vunpack.c.0.s8 %v5124
      %v5126 = vlaneseq
      %v5127 = vshrl.u32 %v5126, 7
      %v5128 = vsub.s32 %v5125, %v5127
      %v5129 = vrot.slane %v4692, %v5128
      %v5131 = vunpack.c.l.s4 1966171168
      %v5132 = vunpack.c.0.s8 %v5131
      %v5133 = vlaneseq
      %v5134 = vshrl.u32 %v5133, 7
      %v5135 = vsub.s32 %v5132, %v5134
      %v5136 = vrot.slane %v5129, %v5135
      %5137 = vrot.lane.b32.xlu0 %v5048, 64
      %v5138 = vpop.permute.xlu0 %5137
      %5139 = vrot.lane.b32.xlu0 %v5089, 64
      %v5140 = vpop.permute.xlu0 %5139
      %5141 = vrot.lane.b32.xlu0 %v5122, 64
      %v5142 = vpop.permute.xlu0 %5141
      %5143 = vrot.lane.b32.xlu0 %v5136, 64
      %v5144 = vpop.permute.xlu0 %5143
      %v5149 = vcombine.low %v4523, %v4537
      %v5150 = vcombine.low %v4530, %v4562
      %v5152 = vunpack.c.l.s4 1966171168
      %v5153 = vunpack.c.0.s8 %v5152
      %v5154 = vlaneseq
      %v5155 = vshrl.u32 %v5154, 7
      %v5156 = vsub.s32 %v5153, %v5155
      %v5157 = vrot.slane %v5149, %v5156
      %v5159 = vunpack.c.l.s4 1966171168
      %v5160 = vunpack.c.0.s8 %v5159
      %v5161 = vlaneseq
      %v5162 = vshrl.u32 %v5161, 7
      %v5163 = vsub.s32 %v5160, %v5162
      %v5164 = vrot.slane %v5150, %v5163
      %v5165 = vcombine.low %v5157, %v4898
      %v5166 = vcombine.low %v5164, %v4925
      %v5168 = vunpack.c.l.s4 1966171168
      %v5169 = vunpack.c.0.s8 %v5168
      %v5170 = vlaneseq
      %v5171 = vshrl.u32 %v5170, 7
      %v5172 = vsub.s32 %v5169, %v5171
      %v5173 = vrot.slane %v5165, %v5172
      %v5175 = vunpack.c.l.s4 1966171168
      %v5176 = vunpack.c.0.s8 %v5175
      %v5177 = vlaneseq
      %v5178 = vshrl.u32 %v5177, 7
      %v5179 = vsub.s32 %v5176, %v5178
      %v5180 = vrot.slane %v5166, %v5179
      %v5181 = vcombine.low %v5173, %v5180
      %v5182 = vcombine.low %v4601, %v4615
      %v5183 = vcombine.low %v4608, %v4640
      %v5185 = vunpack.c.l.s4 1966171168
      %v5186 = vunpack.c.0.s8 %v5185
      %v5187 = vlaneseq
      %v5188 = vshrl.u32 %v5187, 7
      %v5189 = vsub.s32 %v5186, %v5188
      %v5190 = vrot.slane %v5182, %v5189
      %v5192 = vunpack.c.l.s4 1966171168
      %v5193 = vunpack.c.0.s8 %v5192
      %v5194 = vlaneseq
      %v5195 = vshrl.u32 %v5194, 7
      %v5196 = vsub.s32 %v5193, %v5195
      %v5197 = vrot.slane %v5183, %v5196
      %v5198 = vcombine.low %v4932, %v5190
      %v5199 = vcombine.low %v4967, %v5197
      %v5201 = vunpack.c.l.s4 1966171168
      %v5202 = vunpack.c.0.s8 %v5201
      %v5203 = vlaneseq
      %v5204 = vshrl.u32 %v5203, 7
      %v5205 = vsub.s32 %v5202, %v5204
      %v5206 = vrot.slane %v5198, %v5205
      %v5208 = vunpack.c.l.s4 1966171168
      %v5209 = vunpack.c.0.s8 %v5208
      %v5210 = vlaneseq
      %v5211 = vshrl.u32 %v5210, 7
      %v5212 = vsub.s32 %v5209, %v5211
      %v5213 = vrot.slane %v5199, %v5212
      %v5214 = vcombine.low %v5206, %v5213
      %v5215 = vcombine.low %v4716, %v4730
      %v5216 = vcombine.low %v4731, %v4732
      %v5218 = vunpack.c.l.s4 1966171168
      %v5219 = vunpack.c.0.s8 %v5218
      %v5220 = vlaneseq
      %v5221 = vshrl.u32 %v5220, 7
      %v5222 = vsub.s32 %v5219, %v5221
      %v5223 = vrot.slane %v5215, %v5222
      %v5225 = vunpack.c.l.s4 1966171168
      %v5226 = vunpack.c.0.s8 %v5225
      %v5227 = vlaneseq
      %v5228 = vshrl.u32 %v5227, 7
      %v5229 = vsub.s32 %v5226, %v5228
      %v5230 = vrot.slane %v5216, %v5229
      %v5231 = vcombine.low %v5223, %v5230
      %v5233 = vunpack.c.l.s4 1966171168
      %v5234 = vunpack.c.0.s8 %v5233
      %v5235 = vlaneseq
      %v5236 = vshrl.u32 %v5235, 7
      %v5237 = vsub.s32 %v5234, %v5236
      %v5238 = vrot.slane %v5231, %v5237
      %v5239 = vcombine.low %v5004, %v5238
      %v5241 = vunpack.c.l.s4 1966171168
      %v5242 = vunpack.c.0.s8 %v5241
      %v5243 = vlaneseq
      %v5244 = vshrl.u32 %v5243, 7
      %v5245 = vsub.s32 %v5242, %v5244
      %v5246 = vrot.slane %v4723, %v5245
      %v5248 = vunpack.c.l.s4 1966171168
      %v5249 = vunpack.c.0.s8 %v5248
      %v5250 = vlaneseq
      %v5251 = vshrl.u32 %v5250, 7
      %v5252 = vsub.s32 %v5249, %v5251
      %v5253 = vrot.slane %v5246, %v5252
      %5254 = vrot.lane.b32.xlu0 %v5181, 96
      %v5255 = vpop.permute.xlu0 %5254
      %5256 = vrot.lane.b32.xlu0 %v5214, 96
      %v5257 = vpop.permute.xlu0 %5256
      %5258 = vrot.lane.b32.xlu0 %v5239, 96
      %v5259 = vpop.permute.xlu0 %5258
      %5260 = vrot.lane.b32.xlu0 %v5253, 96
      %v5261 = vpop.permute.xlu0 %5260
      %v5266 = vcombine.low %v4664, %v4576
      %v5268 = vunpack.c.l.s4 1966171168
      %v5269 = vunpack.c.0.s8 %v5268
      %v5270 = vlaneseq
      %v5271 = vshrl.u32 %v5270, 7
      %v5272 = vsub.s32 %v5269, %v5271
      %v5273 = vrot.slane %v5266, %v5272
      %v5274 = vcombine.low %v4757, %v4777
      %v5275 = vcombine.low %v5273, %v4791
      %v5277 = vunpack.c.l.s4 1966171168
      %v5278 = vunpack.c.0.s8 %v5277
      %v5279 = vlaneseq
      %v5280 = vshrl.u32 %v5279, 7
      %v5281 = vsub.s32 %v5278, %v5280
      %v5282 = vrot.slane %v5274, %v5281
      %v5284 = vunpack.c.l.s4 1966171168
      %v5285 = vunpack.c.0.s8 %v5284
      %v5286 = vlaneseq
      %v5287 = vshrl.u32 %v5286, 7
      %v5288 = vsub.s32 %v5285, %v5287
      %v5289 = vrot.slane %v5275, %v5288
      %v5290 = vcombine.low %v5282, %v5289
      %v5291 = vcombine.low %v4680, %v4654
      %v5293 = vunpack.c.l.s4 1966171168
      %v5294 = vunpack.c.0.s8 %v5293
      %v5295 = vlaneseq
      %v5296 = vshrl.u32 %v5295, 7
      %v5297 = vsub.s32 %v5294, %v5296
      %v5298 = vrot.slane %v5291, %v5297
      %v5299 = vcombine.low %v5065, %v4826
      %v5300 = vcombine.low %v4833, %v5298
      %v5302 = vunpack.c.l.s4 1966171168
      %v5303 = vunpack.c.0.s8 %v5302
      %v5304 = vlaneseq
      %v5305 = vshrl.u32 %v5304, 7
      %v5306 = vsub.s32 %v5303, %v5305
      %v5307 = vrot.slane %v5299, %v5306
      %v5309 = vunpack.c.l.s4 1966171168
      %v5310 = vunpack.c.0.s8 %v5309
      %v5311 = vlaneseq
      %v5312 = vshrl.u32 %v5311, 7
      %v5313 = vsub.s32 %v5310, %v5312
      %v5314 = vrot.slane %v5300, %v5313
      %v5315 = vcombine.low %v5307, %v5314
      %v5316 = vcombine.low %v4730, %v4731
      %v5317 = vcombine.low %v4732, %v4723
      %v5319 = vunpack.c.l.s4 1966171168
      %v5320 = vunpack.c.0.s8 %v5319
      %v5321 = vlaneseq
      %v5322 = vshrl.u32 %v5321, 7
      %v5323 = vsub.s32 %v5320, %v5322
      %v5324 = vrot.slane %v5316, %v5323
      %v5326 = vunpack.c.l.s4 1966171168
      %v5327 = vunpack.c.0.s8 %v5326
      %v5328 = vlaneseq
      %v5329 = vshrl.u32 %v5328, 7
      %v5330 = vsub.s32 %v5327, %v5329
      %v5331 = vrot.slane %v5317, %v5330
      %v5332 = vcombine.low %v5324, %v5331
      %v5334 = vunpack.c.l.s4 1966171168
      %v5335 = vunpack.c.0.s8 %v5334
      %v5336 = vlaneseq
      %v5337 = vshrl.u32 %v5336, 7
      %v5338 = vsub.s32 %v5335, %v5337
      %v5339 = vrot.slane %v5332, %v5338
      %v5340 = vcombine.low %v5121, %v5339
      %v5342 = vunpack.c.l.s4 1966171168
      %v5343 = vunpack.c.0.s8 %v5342
      %v5344 = vlaneseq
      %v5345 = vshrl.u32 %v5344, 7
      %v5346 = vsub.s32 %v5343, %v5345
      %v5347 = vrot.slane %v4740, %v5346
      %v5349 = vunpack.c.l.s4 1966171168
      %v5350 = vunpack.c.0.s8 %v5349
      %v5351 = vlaneseq
      %v5352 = vshrl.u32 %v5351, 7
      %v5353 = vsub.s32 %v5350, %v5352
      %v5354 = vrot.slane %v5347, %v5353
      %v5359 = vcombine.low %v4689, %v4577
      %v5361 = vunpack.c.l.s4 1966171168
      %v5362 = vunpack.c.0.s8 %v5361
      %v5363 = vlaneseq
      %v5364 = vshrl.u32 %v5363, 7
      %v5365 = vsub.s32 %v5362, %v5364
      %v5366 = vrot.slane %v5359, %v5365
      %v5367 = vcombine.low %v4898, %v4918
      %v5368 = vcombine.low %v5366, %v4932
      %v5370 = vunpack.c.l.s4 1966171168
      %v5371 = vunpack.c.0.s8 %v5370
      %v5372 = vlaneseq
      %v5373 = vshrl.u32 %v5372, 7
      %v5374 = vsub.s32 %v5371, %v5373
      %v5375 = vrot.slane %v5367, %v5374
      %v5377 = vunpack.c.l.s4 1966171168
      %v5378 = vunpack.c.0.s8 %v5377
      %v5379 = vlaneseq
      %v5380 = vshrl.u32 %v5379, 7
      %v5381 = vsub.s32 %v5378, %v5380
      %v5382 = vrot.slane %v5368, %v5381
      %v5383 = vcombine.low %v5375, %v5382
      %v5384 = vcombine.low %v4672, %v4690
      %v5385 = vcombine.low %v4691, %v4655
      %v5387 = vunpack.c.l.s4 1966171168
      %v5388 = vunpack.c.0.s8 %v5387
      %v5389 = vlaneseq
      %v5390 = vshrl.u32 %v5389, 7
      %v5391 = vsub.s32 %v5388, %v5390
      %v5392 = vrot.slane %v5384, %v5391
      %v5394 = vunpack.c.l.s4 1966171168
      %v5395 = vunpack.c.0.s8 %v5394
      %v5396 = vlaneseq
      %v5397 = vshrl.u32 %v5396, 7
      %v5398 = vsub.s32 %v5395, %v5397
      %v5399 = vrot.slane %v5385, %v5398
      %v5400 = vcombine.low %v5392, %v4967
      %v5401 = vcombine.low %v4974, %v5399
      %v5403 = vunpack.c.l.s4 1966171168
      %v5404 = vunpack.c.0.s8 %v5403
      %v5405 = vlaneseq
      %v5406 = vshrl.u32 %v5405, 7
      %v5407 = vsub.s32 %v5404, %v5406
      %v5408 = vrot.slane %v5400, %v5407
      %v5410 = vunpack.c.l.s4 1966171168
      %v5411 = vunpack.c.0.s8 %v5410
      %v5412 = vlaneseq
      %v5413 = vshrl.u32 %v5412, 7
      %v5414 = vsub.s32 %v5411, %v5413
      %v5415 = vrot.slane %v5401, %v5414
      %v5416 = vcombine.low %v5408, %v5415
      %v5417 = vcombine.low %v4688, %v4692
      %v5418 = vcombine.low %v4723, %v4740
      %v5420 = vunpack.c.l.s4 1966171168
      %v5421 = vunpack.c.0.s8 %v5420
      %v5422 = vlaneseq
      %v5423 = vshrl.u32 %v5422, 7
      %v5424 = vsub.s32 %v5421, %v5423
      %v5425 = vrot.slane %v5417, %v5424
      %v5427 = vunpack.c.l.s4 1966171168
      %v5428 = vunpack.c.0.s8 %v5427
      %v5429 = vlaneseq
      %v5430 = vshrl.u32 %v5429, 7
      %v5431 = vsub.s32 %v5428, %v5430
      %v5432 = vrot.slane %v5418, %v5431
      %v5433 = vcombine.low %v4988, %v5425
      %v5434 = vcombine.low %v5230, %v5432
      %v5436 = vunpack.c.l.s4 1966171168
      %v5437 = vunpack.c.0.s8 %v5436
      %v5438 = vlaneseq
      %v5439 = vshrl.u32 %v5438, 7
      %v5440 = vsub.s32 %v5437, %v5439
      %v5441 = vrot.slane %v5433, %v5440
      %v5443 = vunpack.c.l.s4 1966171168
      %v5444 = vunpack.c.0.s8 %v5443
      %v5445 = vlaneseq
      %v5446 = vshrl.u32 %v5445, 7
      %v5447 = vsub.s32 %v5444, %v5446
      %v5448 = vrot.slane %v5434, %v5447
      %v5449 = vcombine.low %v5441, %v5448
      %v5451 = vunpack.c.l.s4 1966171168
      %v5452 = vunpack.c.0.s8 %v5451
      %v5453 = vlaneseq
      %v5454 = vshrl.u32 %v5453, 7
      %v5455 = vsub.s32 %v5452, %v5454
      %v5456 = vrot.slane %v4741, %v5455
      %v5458 = vunpack.c.l.s4 1966171168
      %v5459 = vunpack.c.0.s8 %v5458
      %v5460 = vlaneseq
      %v5461 = vshrl.u32 %v5460, 7
      %v5462 = vsub.s32 %v5459, %v5461
      %v5463 = vrot.slane %v5456, %v5462
      %5464 = vrot.lane.b32.xlu0 %v5383, 32
      %v5465 = vpop.permute.xlu0 %5464
      %5466 = vrot.lane.b32.xlu0 %v5416, 32
      %v5467 = vpop.permute.xlu0 %5466
      %5468 = vrot.lane.b32.xlu0 %v5449, 32
      %v5469 = vpop.permute.xlu0 %5468
      %5470 = vrot.lane.b32.xlu0 %v5463, 32
      %v5471 = vpop.permute.xlu0 %5470
      %v5476 = vcombine.low %v4784, %v4791
      %v5477 = vcombine.low %v4798, %v4826
      %v5479 = vunpack.c.l.s4 1966171168
      %v5480 = vunpack.c.0.s8 %v5479
      %v5481 = vlaneseq
      %v5482 = vshrl.u32 %v5481, 7
      %v5483 = vsub.s32 %v5480, %v5482
      %v5484 = vrot.slane %v5476, %v5483
      %v5486 = vunpack.c.l.s4 1966171168
      %v5487 = vunpack.c.0.s8 %v5486
      %v5488 = vlaneseq
      %v5489 = vshrl.u32 %v5488, 7
      %v5490 = vsub.s32 %v5487, %v5489
      %v5491 = vrot.slane %v5477, %v5490
      %v5492 = vcombine.low %v5484, %v5491
      %v5493 = vcombine.low %v4647, %v4716
      %v5495 = vunpack.c.l.s4 1966171168
      %v5496 = vunpack.c.0.s8 %v5495
      %v5497 = vlaneseq
      %v5498 = vshrl.u32 %v5497, 7
      %v5499 = vsub.s32 %v5496, %v5498
      %v5500 = vrot.slane %v5493, %v5499
      %v5501 = vcombine.low %v4833, %v4840
      %v5502 = vcombine.low %v4847, %v5500
      %v5504 = vunpack.c.l.s4 1966171168
      %v5505 = vunpack.c.0.s8 %v5504
      %v5506 = vlaneseq
      %v5507 = vshrl.u32 %v5506, 7
      %v5508 = vsub.s32 %v5505, %v5507
      %v5509 = vrot.slane %v5501, %v5508
      %v5511 = vunpack.c.l.s4 1966171168
      %v5512 = vunpack.c.0.s8 %v5511
      %v5513 = vlaneseq
      %v5514 = vshrl.u32 %v5513, 7
      %v5515 = vsub.s32 %v5512, %v5514
      %v5516 = vrot.slane %v5502, %v5515
      %v5517 = vcombine.low %v5509, %v5516
      %v5518 = vcombine.low %v5339, %v623
      %5519 = vrot.lane.b32.xlu0 %v5492, 64
      %v5520 = vpop.permute.xlu0 %5519
      %5521 = vrot.lane.b32.xlu0 %v5517, 64
      %v5522 = vpop.permute.xlu0 %5521
      %5523 = vrot.lane.b32.xlu0 %v5518, 64
      %v5524 = vpop.permute.xlu0 %5523
      %v5528 = vcombine.low %v4925, %v4932
      %v5529 = vcombine.low %v4939, %v4967
      %v5531 = vunpack.c.l.s4 1966171168
      %v5532 = vunpack.c.0.s8 %v5531
      %v5533 = vlaneseq
      %v5534 = vshrl.u32 %v5533, 7
      %v5535 = vsub.s32 %v5532, %v5534
      %v5536 = vrot.slane %v5528, %v5535
      %v5538 = vunpack.c.l.s4 1966171168
      %v5539 = vunpack.c.0.s8 %v5538
      %v5540 = vlaneseq
      %v5541 = vshrl.u32 %v5540, 7
      %v5542 = vsub.s32 %v5539, %v5541
      %v5543 = vrot.slane %v5529, %v5542
      %v5544 = vcombine.low %v5536, %v5543
      %v5545 = vcombine.low %v4688, %v4730
      %v5547 = vunpack.c.l.s4 1966171168
      %v5548 = vunpack.c.0.s8 %v5547
      %v5549 = vlaneseq
      %v5550 = vshrl.u32 %v5549, 7
      %v5551 = vsub.s32 %v5548, %v5550
      %v5552 = vrot.slane %v5545, %v5551
      %v5553 = vcombine.low %v4974, %v4981
      %v5554 = vcombine.low %v4988, %v5552
      %v5556 = vunpack.c.l.s4 1966171168
      %v5557 = vunpack.c.0.s8 %v5556
      %v5558 = vlaneseq
      %v5559 = vshrl.u32 %v5558, 7
      %v5560 = vsub.s32 %v5557, %v5559
      %v5561 = vrot.slane %v5553, %v5560
      %v5563 = vunpack.c.l.s4 1966171168
      %v5564 = vunpack.c.0.s8 %v5563
      %v5565 = vlaneseq
      %v5566 = vshrl.u32 %v5565, 7
      %v5567 = vsub.s32 %v5564, %v5566
      %v5568 = vrot.slane %v5554, %v5567
      %v5569 = vcombine.low %v5561, %v5568
      %v5570 = vcombine.low %v5448, %v788
      %5571 = vrot.lane.b32.xlu0 %v5544, 96
      %v5572 = vpop.permute.xlu0 %5571
      %5573 = vrot.lane.b32.xlu0 %v5569, 96
      %v5574 = vpop.permute.xlu0 %5573
      %5575 = vrot.lane.b32.xlu0 %v5570, 96
      %v5576 = vpop.permute.xlu0 %5575
      %v5580 = vcombine.low %v4791, %v5065
      %v5581 = vcombine.low %v5072, %v4833
      %v5583 = vunpack.c.l.s4 1966171168
      %v5584 = vunpack.c.0.s8 %v5583
      %v5585 = vlaneseq
      %v5586 = vshrl.u32 %v5585, 7
      %v5587 = vsub.s32 %v5584, %v5586
      %v5588 = vrot.slane %v5580, %v5587
      %v5590 = vunpack.c.l.s4 1966171168
      %v5591 = vunpack.c.0.s8 %v5590
      %v5592 = vlaneseq
      %v5593 = vshrl.u32 %v5592, 7
      %v5594 = vsub.s32 %v5591, %v5593
      %v5595 = vrot.slane %v5581, %v5594
      %v5596 = vcombine.low %v5588, %v5595
      %v5597 = vcombine.low %v4692, %v4731
      %v5599 = vunpack.c.l.s4 1966171168
      %v5600 = vunpack.c.0.s8 %v5599
      %v5601 = vlaneseq
      %v5602 = vshrl.u32 %v5601, 7
      %v5603 = vsub.s32 %v5600, %v5602
      %v5604 = vrot.slane %v5597, %v5603
      %v5605 = vcombine.low %v5098, %v4847
      %v5606 = vcombine.low %v5105, %v5604
      %v5608 = vunpack.c.l.s4 1966171168
      %v5609 = vunpack.c.0.s8 %v5608
      %v5610 = vlaneseq
      %v5611 = vshrl.u32 %v5610, 7
      %v5612 = vsub.s32 %v5609, %v5611
      %v5613 = vrot.slane %v5605, %v5612
      %v5615 = vunpack.c.l.s4 1966171168
      %v5616 = vunpack.c.0.s8 %v5615
      %v5617 = vlaneseq
      %v5618 = vshrl.u32 %v5617, 7
      %v5619 = vsub.s32 %v5616, %v5618
      %v5620 = vrot.slane %v5606, %v5619
      %v5621 = vcombine.low %v5613, %v5620
      %v5622 = vcombine.low %v4740, %v4741
      %v5624 = vunpack.c.l.s4 1966171168
      %v5625 = vunpack.c.0.s8 %v5624
      %v5626 = vlaneseq
      %v5627 = vshrl.u32 %v5626, 7
      %v5628 = vsub.s32 %v5625, %v5627
      %v5629 = vrot.slane %v5622, %v5628
      %v5630 = vcombine.low %v5331, %v5629
      %v5632 = vunpack.c.l.s4 1966171168
      %v5633 = vunpack.c.0.s8 %v5632
      %v5634 = vlaneseq
      %v5635 = vshrl.u32 %v5634, 7
      %v5636 = vsub.s32 %v5633, %v5635
      %v5637 = vrot.slane %v5630, %v5636
      %v5638 = vcombine.low %v5637, %v945
      %v5642 = vsel %vm1596, %v4766, %v5021
      %v5643 = vsel %vm1596, %v4815, %v5023
      %v5644 = vsel %vm1596, %v4864, %v5025
      %v5645 = vsel %vm1596, %v4878, %v5027
      %v5646 = vsel %vm1601, %v5642, %v5138
      %v5647 = vsel %vm1601, %v5643, %v5140
      %v5648 = vsel %vm1601, %v5644, %v5142
      %v5649 = vsel %vm1601, %v5645, %v5144
      %v5650 = vsel %vm1606, %v5646, %v5255
      %v5651 = vsel %vm1606, %v5647, %v5257
      %v5652 = vsel %vm1606, %v5648, %v5259
      %v5653 = vsel %vm1606, %v5649, %v5261
      %v5654 = vsel %vm1596, %v5290, %v5465
      %v5655 = vsel %vm1596, %v5315, %v5467
      %v5656 = vsel %vm1596, %v5340, %v5469
      %v5657 = vsel %vm1596, %v5354, %v5471
      %v5658 = vsel %vm1601, %v5654, %v5520
      %v5659 = vsel %vm1601, %v5655, %v5522
      %v5660 = vsel %vm1601, %v5656, %v5524
      %v5661 = vsel %vm1601, %v5657, %v1445
      %v5662 = vsel %vm1606, %v5658, %v5572
      %v5663 = vsel %vm1606, %v5659, %v5574
      %v5664 = vsel %vm1606, %v5660, %v5576
      %v5665 = vsel %vm1606, %v5661, %v1514
      %v5666 = vpack.c.bf16 %v5651, %v5650
      %v5667 = vpack.c.bf16 %v5663, %v5662
      %v5668 = vpack.c.bf16 %v5621, %v5596
      %v5669 = vpack.c.bf16 %v5653, %v5652
      %v5670 = vpack.c.bf16 %v5665, %v5664
      %v5671 = vpack.c.bf16 %v1591, %v5638
      %v5672 = vld [vmem:[%s4] sm:$0xf]
      %v5673 = vld [vmem:[%s4 + $0x4] sm:$0xf]
      %v5674 = vld [vmem:[%s4 + $0x8] sm:$0xf]
      %v5675 = vld [vmem:[%s4 + $0xc] sm:$0xf]
      %v5676 = vld [vmem:[%s4 + $0x10] sm:$0xf]
      %v5677 = vld [vmem:[%s4 + $0x14] sm:$0xf]
      %v5678 = vld [vmem:[%s4 + $0x18] sm:$0xf]
      %v5679 = vld [vmem:[%s4 + $0x1c] sm:$0xf]
      %v5680 = vld [vmem:[%s4 + $0x20] sm:$0xf]
      %v5681 = vld [vmem:[%s4 + $0x24] sm:$0xf]
      %v5682 = vld [vmem:[%s4 + $0x28] sm:$0xf]
      %v5683 = vld [vmem:[%s4 + $0x2c] sm:$0xf]
      %v5684 = vld [vmem:[%s4 + $0x30] sm:$0xf]
      %v5685 = vld [vmem:[%s4 + $0x34] sm:$0xf]
      %v5686 = vld [vmem:[%s4 + $0x38] sm:$0xf]
      %v5687 = vld [vmem:[%s4 + $0x3c] sm:$0xf]
      %v5688 = vld [vmem:[%s4 + $0x40] sm:$0xf]
      %v5689 = vld [vmem:[%s4 + $0x44] sm:$0xf]
      %v5690 = vld [vmem:[%s4 + $0x48] sm:$0xf]
      %v5691 = vld [vmem:[%s4 + $0x4c] sm:$0xf]
      %v5692 = vld [vmem:[%s4 + $0x50] sm:$0xf]
      %v5693 = vld [vmem:[%s4 + $0x54] sm:$0xf]
      %v5694 = vld [vmem:[%s4 + $0x58] sm:$0xf]
      %v5695 = vld [vmem:[%s4 + $0x5c] sm:$0xf]
      %v5696 = vld [vmem:[%s4 + $0x60] sm:$0xf]
      %v5697 = vld [vmem:[%s4 + $0x64] sm:$0xf]
      %v5698 = vld [vmem:[%s4 + $0x68] sm:$0xf]
      %v5699 = vld [vmem:[%s4 + $0x6c] sm:$0xf]
      %v5700 = vld [vmem:[%s4 + $0x70] sm:$0xf]
      %v5701 = vld [vmem:[%s4 + $0x74] sm:$0xf]
      %v5702 = vld [vmem:[%s4 + $0x78] sm:$0xf]
      %v5703 = vld [vmem:[%s4 + $0x7c] sm:$0xf]
      %v5704 = vld [vmem:[%s4 + $0x80] sm:$0xf]
      %v5705 = vld [vmem:[%s4 + $0x84] sm:$0xf]
      %v5706 = vld [vmem:[%s4 + $0x88] sm:$0xf]
      %v5707 = vld [vmem:[%s4 + $0x8c] sm:$0xf]
      %v5708 = vld [vmem:[%s5] sm:$0x1]
      %v5710 = vlaneseq
      %v5711 = vshrl.u32 %v5710, 7
      %v5712 = vsub.s32 0, %v5711
      %v5713 = vrot.slane %v5708, %v5712
      %v5751 = vunpack.c.l.b16 %v5672
      %v5752 = vunpack.c.l.b16 %v5673
      %v5753 = vunpack.c.l.b16 %v5674
      %v5754 = vunpack.c.l.b16 %v5675
      %v5755 = vunpack.c.l.b16 %v5676
      %v5756 = vunpack.c.l.b16 %v5677
      %v5757 = vunpack.c.l.b16 %v5678
      %v5758 = vunpack.c.l.b16 %v5679
      %v5759 = vunpack.c.l.b16 %v5680
      %v5760 = vunpack.c.l.b16 %v5681
      %v5761 = vunpack.c.l.b16 %v5682
      %v5762 = vunpack.c.l.b16 %v5683
      %v5763 = vunpack.c.l.b16 %v5684
      %v5764 = vunpack.c.l.b16 %v5685
      %v5765 = vunpack.c.l.b16 %v5686
      %v5766 = vunpack.c.l.b16 %v5687
      %v5767 = vunpack.c.l.b16 %v5688
      %v5768 = vunpack.c.l.b16 %v5689
      %v5769 = vunpack.c.l.b16 %v5690
      %v5770 = vunpack.c.l.b16 %v5691
      %v5771 = vunpack.c.l.b16 %v5692
      %v5772 = vunpack.c.l.b16 %v5693
      %v5773 = vunpack.c.l.b16 %v5694
      %v5774 = vunpack.c.l.b16 %v5695
      %v5775 = vunpack.c.l.b16 %v5696
      %v5776 = vunpack.c.l.b16 %v5697
      %v5777 = vunpack.c.l.b16 %v5698
      %v5778 = vunpack.c.l.b16 %v5699
      %v5779 = vunpack.c.l.b16 %v5700
      %v5780 = vunpack.c.l.b16 %v5701
      %v5781 = vunpack.c.l.b16 %v5702
      %v5782 = vunpack.c.l.b16 %v5703
      %v5783 = vunpack.c.l.b16 %v5704
      %v5784 = vunpack.c.l.b16 %v5705
      %v5785 = vunpack.c.l.b16 %v5706
      %v5786 = vunpack.c.l.b16 %v5707
      %v5787 = vpack.c.b16 %v5752, %v5751
      %v5788 = vpack.c.b16 %v5754, %v5753
      %v5789 = vpack.c.b16 %v5756, %v5755
      %v5790 = vpack.c.b16 %v5758, %v5757
      %v5791 = vpack.c.b16 %v5760, %v5759
      %v5792 = vpack.c.b16 %v5762, %v5761
      %v5793 = vpack.c.b16 %v5764, %v5763
      %v5794 = vpack.c.b16 %v5766, %v5765
      %v5795 = vpack.c.b16 %v5768, %v5767
      %v5796 = vpack.c.b16 %v5770, %v5769
      %v5797 = vpack.c.b16 %v5772, %v5771
      %v5798 = vpack.c.b16 %v5774, %v5773
      %v5799 = vpack.c.b16 %v5776, %v5775
      %v5800 = vpack.c.b16 %v5778, %v5777
      %v5801 = vpack.c.b16 %v5780, %v5779
      %v5802 = vpack.c.b16 %v5782, %v5781
      %v5803 = vpack.c.b16 %v5784, %v5783
      %v5804 = vpack.c.b16 %v5786, %v5785
      %v5824 = vsel %vm1596, %v5668, 0
      %v5827 = vsel %vm1596, %v5671, 0
      %5829 = vmatprep.subr.bf16.mxu0 0
      %5830 = vmatpush1.bf16.msra.mxu0 %v5794
      %5831 = vmatprep.subr.bf16.mxu0 0
      %5832 = vmatpush1.bf16.msra.mxu0 %v5793
      %5833 = vmatprep.subr.bf16.mxu0 0
      %5834 = vmatpush1.bf16.msra.mxu0 %v5792
      %5835 = vmatprep.subr.bf16.mxu0 0
      %5836 = vmatpush1.bf16.msra.mxu0 %v5791
      %5837 = vmatprep.subr.bf16.mxu0 0
      %5838 = vmatpush1.bf16.msra.mxu0 %v5790
      %5839 = vmatprep.subr.bf16.mxu0 0
      %5840 = vmatpush1.bf16.msra.mxu0 %v5789
      %5841 = vmatprep.subr.bf16.mxu0 0
      %5842 = vmatpush1.bf16.msra.mxu0 %v5788
      %5843 = vmatprep.subr.bf16.mxu0 0
      %5844 = vmatpush1.bf16.msra.mxu0 %v5787
      %5845 = vmatprep.subr.bf16.mxu0 0
      %5846 = vmatpush2.bf16.msra.mxu0 %v5802
      %5847 = vmatprep.subr.bf16.mxu0 0
      %5848 = vmatpush2.bf16.msra.mxu0 %v5801
      %5849 = vmatprep.subr.bf16.mxu0 0
      %5850 = vmatpush2.bf16.msra.mxu0 %v5800
      %5851 = vmatprep.subr.bf16.mxu0 0
      %5852 = vmatpush2.bf16.msra.mxu0 %v5799
      %5853 = vmatprep.subr.bf16.mxu0 0
      %5854 = vmatpush2.bf16.msra.mxu0 %v5798
      %5855 = vmatprep.subr.bf16.mxu0 0
      %5856 = vmatpush2.bf16.msra.mxu0 %v5797
      %5857 = vmatprep.subr.bf16.mxu0 0
      %5858 = vmatpush2.bf16.msra.mxu0 %v5796
      %5859 = vmatprep.subr.bf16.mxu0 0
      %5860 = vmatpush2.bf16.msra.mxu0 %v5795
      %5861 = vmatprep.mubr.bf16.mxu0 %v5667
      %5862 = vmatmul.mubr.bf16.gmra.mxu0 %v5666
      %v5863 = vpop.f32.mrf.mxu0
      %v5864 = vadd.f32 %v5713, %v5863
      %v5865 = vpop.f32.mrf.mxu0
      %v5866 = vpop.f32.mrf.mxu0
      %v5867 = vadd.f32 %v5713, %v5866
      %v5868 = vpop.f32.mrf.mxu0
      %5869 = vmatprep.mubr.bf16.mxu0 %v5670
      %5870 = vmatmul.mubr.bf16.gmra.mxu0 %v5669
      %v5871 = vpop.f32.mrf.mxu0
      %v5872 = vadd.f32 %v5713, %v5871
      %v5873 = vpop.f32.mrf.mxu0
      %v5874 = vpop.f32.mrf.mxu0
      %v5875 = vadd.f32 %v5713, %v5874
      %v5876 = vpop.f32.mrf.mxu0
      %5877 = vdwg.mxu0
      %5878 = vmatprep.subr.bf16.mxu0 0
      %5879 = vmatpush1.bf16.msra.mxu0 0
      %5880 = vmatprep.subr.bf16.mxu0 0
      %5881 = vmatpush1.bf16.msra.mxu0 0
      %5882 = vmatprep.subr.bf16.mxu0 0
      %5883 = vmatpush1.bf16.msra.mxu0 0
      %5884 = vmatprep.subr.bf16.mxu0 0
      %5885 = vmatpush1.bf16.msra.mxu0 0
      %5886 = vmatprep.subr.bf16.mxu0 0
      %5887 = vmatpush1.bf16.msra.mxu0 0
      %5888 = vmatprep.subr.bf16.mxu0 0
      %5889 = vmatpush1.bf16.msra.mxu0 0
      %5890 = vmatprep.subr.bf16.mxu0 0
      %5891 = vmatpush1.bf16.msra.mxu0 %v5804
      %5892 = vmatprep.subr.bf16.mxu0 0
      %5893 = vmatpush1.bf16.msra.mxu0 %v5803
      %5894 = vmatprep.subr.bf16.mxu0 0
      %5895 = vmatpush2.bf16.msra.mxu0 0
      %5896 = vmatprep.subr.bf16.mxu0 0
      %5897 = vmatpush2.bf16.msra.mxu0 0
      %5898 = vmatprep.subr.bf16.mxu0 0
      %5899 = vmatpush2.bf16.msra.mxu0 0
      %5900 = vmatprep.subr.bf16.mxu0 0
      %5901 = vmatpush2.bf16.msra.mxu0 0
      %5902 = vmatprep.subr.bf16.mxu0 0
      %5903 = vmatpush2.bf16.msra.mxu0 0
      %5904 = vmatprep.subr.bf16.mxu0 0
      %5905 = vmatpush2.bf16.msra.mxu0 0
      %5906 = vmatprep.subr.bf16.mxu0 0
      %5907 = vmatpush2.bf16.msra.mxu0 0
      %5908 = vmatprep.subr.bf16.mxu0 0
      %5909 = vmatpush2.bf16.msra.mxu0 0
      %5910 = vmatprep.mubr.bf16.mxu0 0
      %5911 = vmatmul.mubr.bf16.gmra.mxu0 %v5824
      %v5912 = vpop.f32.mrf.mxu0
      %v5913 = vadd.f32 %v5864, %v5912
      %v5914 = vpop.f32.mrf.mxu0
      %v5915 = vpop.f32.mrf.mxu0
      %v5916 = vadd.f32 %v5867, %v5915
      %v5917 = vpop.f32.mrf.mxu0
      %5918 = vmatprep.mubr.bf16.mxu0 0
      %5919 = vmatmul.mubr.bf16.gmra.mxu0 %v5827
      %v5920 = vpop.f32.mrf.mxu0
      %v5921 = vadd.f32 %v5872, %v5920
      %v5922 = vpop.f32.mrf.mxu0
      %v5923 = vpop.f32.mrf.mxu0
      %v5924 = vadd.f32 %v5875, %v5923
      %v5925 = vpop.f32.mrf.mxu0
      %5926 = vdwg.mxu0
      %v5927 = vlaneseq
      %v5928 = vand.u32 %v5927, 127
      %vm5929 = vcmp.ge.s32.totalorder %v5928, 3
      %vm5930 = vcmp.lt.s32.totalorder %v5928, 7
      %vm5931 = vmand %vm5929, %vm5930
      %v5932 = vmul.f32 %v5913, 1.442695
      %v5933 = vpow.pop %v5932
      %v5934 = vmul.f32 %v5916, 1.442695
      %v5935 = vpow.pop %v5934
      %v5936 = vmul.f32 %v5921, 1.442695
      %v5937 = vpow.pop %v5936
      %v5938 = vmul.f32 %v5924, 1.442695
      %v5939 = vpow.pop %v5938
      %v5940 = vsel %vm5931, %v5933, %v5913
      %v5941 = vsel %vm5931, %v5935, %v5916
      %v5942 = vsel %vm5931, %v5937, %v5921
      %v5943 = vsel %vm5931, %v5939, %v5924
      %v5948 = vcombine.high %v5940, %v5940
      %v5950 = vunpack.c.l.s4 1966171168
      %v5951 = vunpack.c.0.s8 %v5950
      %v5952 = vlaneseq
      %v5953 = vshrl.u32 %v5952, 7
      %v5954 = vsub.s32 %v5951, %v5953
      %v5955 = vrot.slane %v5940, %v5954
      %v5957 = vunpack.c.l.s4 1966171168
      %v5958 = vunpack.c.0.s8 %v5957
      %v5959 = vlaneseq
      %v5960 = vshrl.u32 %v5959, 7
      %v5961 = vsub.s32 %v5958, %v5960
      %v5962 = vrot.slane %v5948, %v5961
      %v5963 = vcombine.high %v5955, %v5955
      %v5964 = vcombine.high %v5962, %v5962
      %v5966 = vunpack.c.l.s4 1966171168
      %v5967 = vunpack.c.0.s8 %v5966
      %v5968 = vlaneseq
      %v5969 = vshrl.u32 %v5968, 7
      %v5970 = vsub.s32 %v5967, %v5969
      %v5971 = vrot.slane %v5955, %v5970
      %v5973 = vunpack.c.l.s4 1966171168
      %v5974 = vunpack.c.0.s8 %v5973
      %v5975 = vlaneseq
      %v5976 = vshrl.u32 %v5975, 7
      %v5977 = vsub.s32 %v5974, %v5976
      %v5978 = vrot.slane %v5962, %v5977
      %v5980 = vunpack.c.l.s4 1966171168
      %v5981 = vunpack.c.0.s8 %v5980
      %v5982 = vlaneseq
      %v5983 = vshrl.u32 %v5982, 7
      %v5984 = vsub.s32 %v5981, %v5983
      %v5985 = vrot.slane %v5963, %v5984
      %v5987 = vunpack.c.l.s4 1966171168
      %v5988 = vunpack.c.0.s8 %v5987
      %v5989 = vlaneseq
      %v5990 = vshrl.u32 %v5989, 7
      %v5991 = vsub.s32 %v5988, %v5990
      %v5992 = vrot.slane %v5964, %v5991
      %v5993 = vcombine.high %v5971, %v5971
      %v5994 = vcombine.high %v5978, %v5978
      %v5995 = vcombine.high %v5985, %v5985
      %v5996 = vcombine.high %v5992, %v5992
      %v5997 = vcombine.high %v5941, %v5941
      %v5999 = vunpack.c.l.s4 1966171168
      %v6000 = vunpack.c.0.s8 %v5999
      %v6001 = vlaneseq
      %v6002 = vshrl.u32 %v6001, 7
      %v6003 = vsub.s32 %v6000, %v6002
      %v6004 = vrot.slane %v5941, %v6003
      %v6006 = vunpack.c.l.s4 1966171168
      %v6007 = vunpack.c.0.s8 %v6006
      %v6008 = vlaneseq
      %v6009 = vshrl.u32 %v6008, 7
      %v6010 = vsub.s32 %v6007, %v6009
      %v6011 = vrot.slane %v5997, %v6010
      %v6012 = vcombine.high %v6004, %v6004
      %v6013 = vcombine.high %v6011, %v6011
      %v6015 = vunpack.c.l.s4 1966171168
      %v6016 = vunpack.c.0.s8 %v6015
      %v6017 = vlaneseq
      %v6018 = vshrl.u32 %v6017, 7
      %v6019 = vsub.s32 %v6016, %v6018
      %v6020 = vrot.slane %v6004, %v6019
      %v6022 = vunpack.c.l.s4 1966171168
      %v6023 = vunpack.c.0.s8 %v6022
      %v6024 = vlaneseq
      %v6025 = vshrl.u32 %v6024, 7
      %v6026 = vsub.s32 %v6023, %v6025
      %v6027 = vrot.slane %v6011, %v6026
      %v6029 = vunpack.c.l.s4 1966171168
      %v6030 = vunpack.c.0.s8 %v6029
      %v6031 = vlaneseq
      %v6032 = vshrl.u32 %v6031, 7
      %v6033 = vsub.s32 %v6030, %v6032
      %v6034 = vrot.slane %v6012, %v6033
      %v6036 = vunpack.c.l.s4 1966171168
      %v6037 = vunpack.c.0.s8 %v6036
      %v6038 = vlaneseq
      %v6039 = vshrl.u32 %v6038, 7
      %v6040 = vsub.s32 %v6037, %v6039
      %v6041 = vrot.slane %v6013, %v6040
      %v6042 = vcombine.high %v6020, %v6020
      %v6043 = vcombine.high %v6027, %v6027
      %v6044 = vcombine.high %v6034, %v6034
      %v6045 = vcombine.high %v6041, %v6041
      %v6046 = vcombine.high %v5942, %v5942
      %v6048 = vunpack.c.l.s4 1966171168
      %v6049 = vunpack.c.0.s8 %v6048
      %v6050 = vlaneseq
      %v6051 = vshrl.u32 %v6050, 7
      %v6052 = vsub.s32 %v6049, %v6051
      %v6053 = vrot.slane %v5942, %v6052
      %v6055 = vunpack.c.l.s4 1966171168
      %v6056 = vunpack.c.0.s8 %v6055
      %v6057 = vlaneseq
      %v6058 = vshrl.u32 %v6057, 7
      %v6059 = vsub.s32 %v6056, %v6058
      %v6060 = vrot.slane %v6046, %v6059
      %v6061 = vcombine.high %v6053, %v6053
      %v6062 = vcombine.high %v6060, %v6060
      %v6064 = vunpack.c.l.s4 1966171168
      %v6065 = vunpack.c.0.s8 %v6064
      %v6066 = vlaneseq
      %v6067 = vshrl.u32 %v6066, 7
      %v6068 = vsub.s32 %v6065, %v6067
      %v6069 = vrot.slane %v6053, %v6068
      %v6071 = vunpack.c.l.s4 1966171168
      %v6072 = vunpack.c.0.s8 %v6071
      %v6073 = vlaneseq
      %v6074 = vshrl.u32 %v6073, 7
      %v6075 = vsub.s32 %v6072, %v6074
      %v6076 = vrot.slane %v6060, %v6075
      %v6078 = vunpack.c.l.s4 1966171168
      %v6079 = vunpack.c.0.s8 %v6078
      %v6080 = vlaneseq
      %v6081 = vshrl.u32 %v6080, 7
      %v6082 = vsub.s32 %v6079, %v6081
      %v6083 = vrot.slane %v6061, %v6082
      %v6085 = vunpack.c.l.s4 1966171168
      %v6086 = vunpack.c.0.s8 %v6085
      %v6087 = vlaneseq
      %v6088 = vshrl.u32 %v6087, 7
      %v6089 = vsub.s32 %v6086, %v6088
      %v6090 = vrot.slane %v6062, %v6089
      %v6091 = vcombine.high %v6069, %v6069
      %v6092 = vcombine.high %v6076, %v6076
      %v6093 = vcombine.high %v6083, %v6083
      %v6094 = vcombine.high %v6090, %v6090
      %v6096 = vunpack.c.l.s4 1966171168
      %v6097 = vunpack.c.0.s8 %v6096
      %v6098 = vlaneseq
      %v6099 = vshrl.u32 %v6098, 7
      %v6100 = vsub.s32 %v6097, %v6099
      %v6101 = vrot.slane %v5943, %v6100
      %v6103 = vunpack.c.l.s4 1966171168
      %v6104 = vunpack.c.0.s8 %v6103
      %v6105 = vlaneseq
      %v6106 = vshrl.u32 %v6105, 7
      %v6107 = vsub.s32 %v6104, %v6106
      %v6108 = vrot.slane %v6101, %v6107
      %v6109 = vcombine.low %v5971, %v5985
      %v6110 = vcombine.low %v5993, %v5995
      %v6112 = vunpack.c.l.s4 1966171168
      %v6113 = vunpack.c.0.s8 %v6112
      %v6114 = vlaneseq
      %v6115 = vshrl.u32 %v6114, 7
      %v6116 = vsub.s32 %v6113, %v6115
      %v6117 = vrot.slane %v6109, %v6116
      %v6119 = vunpack.c.l.s4 1966171168
      %v6120 = vunpack.c.0.s8 %v6119
      %v6121 = vlaneseq
      %v6122 = vshrl.u32 %v6121, 7
      %v6123 = vsub.s32 %v6120, %v6122
      %v6124 = vrot.slane %v6110, %v6123
      %v6126 = vunpack.c.l.s4 1966171168
      %v6127 = vunpack.c.0.s8 %v6126
      %v6128 = vlaneseq
      %v6129 = vshrl.u32 %v6128, 7
      %v6130 = vsub.s32 %v6127, %v6129
      %v6131 = vrot.slane %v5978, %v6130
      %v6132 = vcombine.low %v6117, %v6124
      %v6134 = vunpack.c.l.s4 1966171168
      %v6135 = vunpack.c.0.s8 %v6134
      %v6136 = vlaneseq
      %v6137 = vshrl.u32 %v6136, 7
      %v6138 = vsub.s32 %v6135, %v6137
      %v6139 = vrot.slane %v6132, %v6138
      %v6141 = vunpack.c.l.s4 1966171168
      %v6142 = vunpack.c.0.s8 %v6141
      %v6143 = vlaneseq
      %v6144 = vshrl.u32 %v6143, 7
      %v6145 = vsub.s32 %v6142, %v6144
      %v6146 = vrot.slane %v6131, %v6145
      %v6147 = vcombine.low %v6139, %v6146
      %v6148 = vcombine.low %v5992, %v5994
      %v6149 = vcombine.low %v5996, %v6020
      %v6151 = vunpack.c.l.s4 1966171168
      %v6152 = vunpack.c.0.s8 %v6151
      %v6153 = vlaneseq
      %v6154 = vshrl.u32 %v6153, 7
      %v6155 = vsub.s32 %v6152, %v6154
      %v6156 = vrot.slane %v6148, %v6155
      %v6158 = vunpack.c.l.s4 1966171168
      %v6159 = vunpack.c.0.s8 %v6158
      %v6160 = vlaneseq
      %v6161 = vshrl.u32 %v6160, 7
      %v6162 = vsub.s32 %v6159, %v6161
      %v6163 = vrot.slane %v6149, %v6162
      %v6165 = vunpack.c.l.s4 1966171168
      %v6166 = vunpack.c.0.s8 %v6165
      %v6167 = vlaneseq
      %v6168 = vshrl.u32 %v6167, 7
      %v6169 = vsub.s32 %v6166, %v6168
      %v6170 = vrot.slane %v6034, %v6169
      %v6171 = vcombine.low %v6156, %v6163
      %v6173 = vunpack.c.l.s4 1966171168
      %v6174 = vunpack.c.0.s8 %v6173
      %v6175 = vlaneseq
      %v6176 = vshrl.u32 %v6175, 7
      %v6177 = vsub.s32 %v6174, %v6176
      %v6178 = vrot.slane %v6171, %v6177
      %v6180 = vunpack.c.l.s4 1966171168
      %v6181 = vunpack.c.0.s8 %v6180
      %v6182 = vlaneseq
      %v6183 = vshrl.u32 %v6182, 7
      %v6184 = vsub.s32 %v6181, %v6183
      %v6185 = vrot.slane %v6170, %v6184
      %v6186 = vcombine.low %v6178, %v6185
      %v6187 = vcombine.low %v6042, %v6044
      %v6188 = vcombine.low %v6027, %v6041
      %v6190 = vunpack.c.l.s4 1966171168
      %v6191 = vunpack.c.0.s8 %v6190
      %v6192 = vlaneseq
      %v6193 = vshrl.u32 %v6192, 7
      %v6194 = vsub.s32 %v6191, %v6193
      %v6195 = vrot.slane %v6187, %v6194
      %v6197 = vunpack.c.l.s4 1966171168
      %v6198 = vunpack.c.0.s8 %v6197
      %v6199 = vlaneseq
      %v6200 = vshrl.u32 %v6199, 7
      %v6201 = vsub.s32 %v6198, %v6200
      %v6202 = vrot.slane %v6188, %v6201
      %v6204 = vunpack.c.l.s4 1966171168
      %v6205 = vunpack.c.0.s8 %v6204
      %v6206 = vlaneseq
      %v6207 = vshrl.u32 %v6206, 7
      %v6208 = vsub.s32 %v6205, %v6207
      %v6209 = vrot.slane %v6043, %v6208
      %v6210 = vcombine.low %v6195, %v6202
      %v6212 = vunpack.c.l.s4 1966171168
      %v6213 = vunpack.c.0.s8 %v6212
      %v6214 = vlaneseq
      %v6215 = vshrl.u32 %v6214, 7
      %v6216 = vsub.s32 %v6213, %v6215
      %v6217 = vrot.slane %v6210, %v6216
      %v6219 = vunpack.c.l.s4 1966171168
      %v6220 = vunpack.c.0.s8 %v6219
      %v6221 = vlaneseq
      %v6222 = vshrl.u32 %v6221, 7
      %v6223 = vsub.s32 %v6220, %v6222
      %v6224 = vrot.slane %v6209, %v6223
      %v6225 = vcombine.low %v6217, %v6224
      %v6226 = vcombine.low %v6045, %v6069
      %v6227 = vcombine.low %v6083, %v6091
      %v6229 = vunpack.c.l.s4 1966171168
      %v6230 = vunpack.c.0.s8 %v6229
      %v6231 = vlaneseq
      %v6232 = vshrl.u32 %v6231, 7
      %v6233 = vsub.s32 %v6230, %v6232
      %v6234 = vrot.slane %v6226, %v6233
      %v6236 = vunpack.c.l.s4 1966171168
      %v6237 = vunpack.c.0.s8 %v6236
      %v6238 = vlaneseq
      %v6239 = vshrl.u32 %v6238, 7
      %v6240 = vsub.s32 %v6237, %v6239
      %v6241 = vrot.slane %v6227, %v6240
      %v6243 = vunpack.c.l.s4 1966171168
      %v6244 = vunpack.c.0.s8 %v6243
      %v6245 = vlaneseq
      %v6246 = vshrl.u32 %v6245, 7
      %v6247 = vsub.s32 %v6244, %v6246
      %v6248 = vrot.slane %v6093, %v6247
      %v6249 = vcombine.low %v6234, %v6241
      %v6251 = vunpack.c.l.s4 1966171168
      %v6252 = vunpack.c.0.s8 %v6251
      %v6253 = vlaneseq
      %v6254 = vshrl.u32 %v6253, 7
      %v6255 = vsub.s32 %v6252, %v6254
      %v6256 = vrot.slane %v6249, %v6255
      %v6258 = vunpack.c.l.s4 1966171168
      %v6259 = vunpack.c.0.s8 %v6258
      %v6260 = vlaneseq
      %v6261 = vshrl.u32 %v6260, 7
      %v6262 = vsub.s32 %v6259, %v6261
      %v6263 = vrot.slane %v6248, %v6262
      %v6264 = vcombine.low %v6256, %v6263
      %v6265 = vcombine.low %v6076, %v6090
      %v6266 = vcombine.low %v6092, %v6094
      %v6268 = vunpack.c.l.s4 1966171168
      %v6269 = vunpack.c.0.s8 %v6268
      %v6270 = vlaneseq
      %v6271 = vshrl.u32 %v6270, 7
      %v6272 = vsub.s32 %v6269, %v6271
      %v6273 = vrot.slane %v6265, %v6272
      %v6275 = vunpack.c.l.s4 1966171168
      %v6276 = vunpack.c.0.s8 %v6275
      %v6277 = vlaneseq
      %v6278 = vshrl.u32 %v6277, 7
      %v6279 = vsub.s32 %v6276, %v6278
      %v6280 = vrot.slane %v6266, %v6279
      %v6282 = vunpack.c.l.s4 1966171168
      %v6283 = vunpack.c.0.s8 %v6282
      %v6284 = vlaneseq
      %v6285 = vshrl.u32 %v6284, 7
      %v6286 = vsub.s32 %v6283, %v6285
      %v6287 = vrot.slane %v6108, %v6286
      %v6288 = vcombine.low %v6273, %v6280
      %v6290 = vunpack.c.l.s4 1966171168
      %v6291 = vunpack.c.0.s8 %v6290
      %v6292 = vlaneseq
      %v6293 = vshrl.u32 %v6292, 7
      %v6294 = vsub.s32 %v6291, %v6293
      %v6295 = vrot.slane %v6288, %v6294
      %v6297 = vunpack.c.l.s4 1966171168
      %v6298 = vunpack.c.0.s8 %v6297
      %v6299 = vlaneseq
      %v6300 = vshrl.u32 %v6299, 7
      %v6301 = vsub.s32 %v6298, %v6300
      %v6302 = vrot.slane %v6287, %v6301
      %v6303 = vcombine.low %v6295, %v6302
      %vm6309 = vcmask 61440
      %6310 = vst.msk [vmem:[%s251] sm:$0x1f] %vm6309, %v6147
      %6311 = vst.msk [vmem:[%s251 + $0x8] sm:$0x1f] %vm6309, %v6186
      %6312 = vst.msk [vmem:[%s251 + $0x10] sm:$0x1f] %vm6309, %v6225
      %6313 = vst.msk [vmem:[%s251 + $0x18] sm:$0x1f] %vm6309, %v6264
      %6314 = vst.msk [vmem:[%s251 + $0x20] sm:$0x1f] %vm6309, %v6303
      %p6315 = scmp.lt.s32.totalorder %s17, 1
      %s6316 = scalar_select %p6315, %s17, 1
      %s6317 = smul.addr %s6316, 5
      %s6318 = smul.addr %s6317, 8
      %s6319 = scalar_lea.vmem %s6, %s6318
      // Predicated region
      $region45: #{model_builder_forward.7} parent=43 // pred_check
        %p6320 = pneg %p166
      $region46: #{model_builder_forward.7} parent=43 // pred_check_branch
        %6322 = sbr.rel (%p6320) target = $region48
      $region47: #{model_builder_forward.7} parent=43 // pred_region
        _
      $region48: #{model_builder_forward.7} parent=43 // pred_fallthru
        _
    $region44: #{model_builder_forward.7} parent=5 // pred_fallthru
      _
    %p6323 = scmp.le.s32.totalorder 2, %s12
    // Predicated region
    $region49: #{model_builder_forward.7} parent=5 // pred_check
      %p6324 = pneg %p6323
    $region50: #{model_builder_forward.7} parent=5 // pred_check_branch
      %6326 = sbr.rel (%p6324) target = $region52
    $region51: #{model_builder_forward.7} parent=5 // pred_region
      %s6327 = ssub.s32 %s12, 2
      // Predicated region
      $region53: #{model_builder_forward.7} parent=51 // pred_check
        %p6328 = pneg %p172
      $region54: #{model_builder_forward.7} parent=51 // pred_check_branch
        %6330 = sbr.rel (%p6328) target = $region56
      $region55: #{model_builder_forward.7} parent=51 // pred_region
        %p6331 = scmp.lt.s32.totalorder %s18, 1
        %s6332 = scalar_select %p6331, %s18, 1
        %s6333 = smul.addr %s6332, 5
        %s6334 = smul.addr %s6333, 8
        %s6335 = scalar_lea.vmem %s6, %s6334
      $region56: #{model_builder_forward.7} parent=51 // pred_fallthru
        _
    $region52: #{model_builder_forward.7} parent=5 // pred_fallthru
      _
  $region6: #{model_builder_forward.7} parent=0 // loop_footer
    %s16 = sadd.s32 1, %s12
  $region7: #{model_builder_forward.7} parent=0 // loop_footer_branch
    %11 = sbr.rel target = $region3
  $region8: #{model_builder_forward.7} parent=0 // loop_exit
    _

</llo_original>
